<compile_context>
chip_gen: v7x
topology: tpu7x:2x2x1
jax: 0.10.0
libtpu: 0.0.40
codegen_flags: <defaults>
</compile_context>

<pallas_src>
import functools

import jax
import jax.numpy as jnp
from jax.experimental import pallas as pl
from jax.experimental.pallas import tpu as pltpu

HIDDEN = [600, 500, 400, 300, 200, 100, 50]
LEAKY_SLOPE = 0.01
BN_EPS = 1e-5
LANE = 128
NEG_BIG = -1e30  # finite "−inf" for masking padded softmax columns


def _round_up(n, m):
    return (n + m - 1) // m * m


def _mlp_kernel(pad_dims, out_size, x_ref, vec_ref, *refs):
    """Fused MLP forward.

    Inputs:
      x_ref   : [B, in_pad] bf16 (zero-padded features), VMEM
      vec_ref : [3*n_hidden + 1, max_w] f32 packed small params, VMEM
                rows 3i, 3i+1, 3i+2 = bias, gamma, beta of hidden layer i
                row 3*n_hidden       = final bias
      refs    : W_0..W_{L-1} HBM refs (pl.ANY, bf16 [in_pad_i, out_pad_i]),
                out_ref ([B, out_pad_final] f32),
                W_0..W_{L-1} VMEM scratch buffers, DMA semaphores (L,).
    """
    n_layers = len(pad_dims) - 1
    n_hidden = n_layers - 1
    w_hbm = refs[:n_layers]
    out_ref = refs[n_layers]
    w_bufs = refs[n_layers + 1: 2 * n_layers + 1]
    sem = refs[2 * n_layers + 1]

    # Kick off ALL weight DMAs immediately.  Layer 0's (smallest) completes
    # first; every later layer's transfer overlaps the preceding layers' MXU
    # work, so the matmuls never sit behind a serial 2 MB weight copy.
    copies = []
    for i in range(n_layers):
        cp = pltpu.make_async_copy(w_hbm[i], w_bufs[i], sem.at[i])
        cp.start()
        copies.append(cp)

    h = x_ref[...]                       # [B, in_pad] bf16
    inv_b = 1.0 / h.shape[0]             # static batch size

    for i in range(n_hidden):
        width = pad_dims[i + 1]
        b = vec_ref[3 * i: 3 * i + 1, :width]          # [1, w_i] f32
        gamma = vec_ref[3 * i + 1: 3 * i + 2, :width]
        beta = vec_ref[3 * i + 2: 3 * i + 3, :width]

        copies[i].wait()                                # weight i is in VMEM
        w = w_bufs[i][...]                              # bf16 [pin, pout]

        # Linear: bf16 operands, f32 MXU accumulation.
        h = jnp.dot(h, w, preferred_element_type=jnp.float32) + b
        # LeakyReLU (slope 0.01): max(h, 0.01*h).
        h = jnp.maximum(h, LEAKY_SLOPE * h)
        # BatchNorm1d, training mode (batch stats, biased variance),
        # numerically stable two-pass form; all BN math in f32.
        mean = jnp.sum(h, axis=0, keepdims=True) * inv_b
        d = h - mean
        var = jnp.sum(d * d, axis=0, keepdims=True) * inv_b
        scale = gamma * jax.lax.rsqrt(var + BN_EPS)
        # bf16 inter-layer activation (halves live footprint / vst traffic);
        # padded columns stay exactly 0 (gamma/beta are 0 there).
        h = (d * scale + beta).astype(jnp.bfloat16)

    # Final Linear.
    copies[n_hidden].wait()
    w = w_bufs[n_hidden][...]
    out_pad = pad_dims[-1]
    b = vec_ref[3 * n_hidden: 3 * n_hidden + 1, :out_pad]
    logits = jnp.dot(h, w, preferred_element_type=jnp.float32) + b

    # Softmax over the REAL output columns only.  Padded columns get a huge
    # negative logit so exp underflows to exactly 0; exact divide so rows sum
    # to 1 to f32 precision.
    col = jax.lax.broadcasted_iota(jnp.int32, logits.shape, 1)
    logits = jnp.where(col < out_size, logits, NEG_BIG)
    m = jnp.max(logits, axis=-1, keepdims=True)
    e = jnp.exp(logits - m)
    out_ref[...] = e / jnp.sum(e, axis=-1, keepdims=True)


def image_classifier_forward(x, weights, vec, output_size):
    """x: [B, input_size] f32/bf16. weights: list of padded bf16 [in,out]
    matrices. vec: packed [3*n_hidden+1, max_w] f32.
    Returns [B, output_size] softmax probabilities (f32)."""
    batch, in_features = x.shape
    in_pad = weights[0].shape[0]
    x = x.astype(jnp.bfloat16)
    if in_features < in_pad:
        x = jnp.pad(x, ((0, 0), (0, in_pad - in_features)))
    out_pad = weights[-1].shape[1]
    n_layers = len(weights)
    pad_dims = tuple([in_pad] + [w.shape[1] for w in weights])

    kernel = functools.partial(_mlp_kernel, pad_dims, output_size)

    flops = 2 * batch * sum(pad_dims[i] * pad_dims[i + 1]
                            for i in range(n_layers))
    bytes_accessed = (sum(int(w.size) * 2 for w in weights)   # bf16 weights
                      + int(x.size) * 2                        # bf16 x
                      + int(vec.size) * 4                      # f32 vec
                      + batch * out_pad * 4)                   # f32 out
    transcendentals = sum(pad_dims[1:-1]) + batch * out_pad    # rsqrt + exp

    y = pl.pallas_call(
        kernel,
        out_shape=jax.ShapeDtypeStruct((batch, out_pad), jnp.float32),
        in_specs=(
            [pl.BlockSpec(memory_space=pltpu.MemorySpace.VMEM)] * 2     # x, vec
            + [pl.BlockSpec(memory_space=pl.ANY)] * n_layers            # weights stay in HBM
        ),
        out_specs=pl.BlockSpec(memory_space=pltpu.MemorySpace.VMEM),
        scratch_shapes=(
            [pltpu.VMEM((pad_dims[i], pad_dims[i + 1]), jnp.bfloat16)
             for i in range(n_layers)]
            + [pltpu.SemaphoreType.DMA((n_layers,))]
        ),
        compiler_params=pltpu.CompilerParams(vmem_limit_bytes=32 << 20),
        cost_estimate=pl.CostEstimate(flops=flops,
                                      transcendentals=transcendentals,
                                      bytes_accessed=bytes_accessed),
    )(x, vec, *weights)
    return y[:, :output_size]


def init_params(key, input_size, output_size):
    """PyTorch-style uniform(+-1/sqrt(fan_in)) init, padded to 128-lane widths.

    Returns (weights, vec):
      weights : list of bf16 [in_pad, out_pad] matrices (zero-padded)
      vec     : f32 [3*len(HIDDEN)+1, max_w] packed bias/gamma/beta rows
    """
    real_dims = [input_size] + HIDDEN + [output_size]
    pad_dims = [_round_up(d, LANE) for d in real_dims]
    n_layers = len(real_dims) - 1
    max_w = max(pad_dims[1:])

    weights = []
    vec = jnp.zeros((3 * len(HIDDEN) + 1, max_w), jnp.float32)
    for i in range(n_layers):
        fin, fout = real_dims[i], real_dims[i + 1]
        pin, pout = pad_dims[i], pad_dims[i + 1]
        key, kw, kb = jax.random.split(key, 3)
        scale = float(fin) ** -0.5
        w = jax.random.uniform(kw, (fin, fout), jnp.float32,
                               minval=-scale, maxval=scale)
        b = jax.random.uniform(kb, (fout,), jnp.float32,
                               minval=-scale, maxval=scale)
        w_pad = jnp.zeros((pin, pout), jnp.float32).at[:fin, :fout].set(w)
        weights.append(w_pad.astype(jnp.bfloat16))
        if i < len(HIDDEN):
            vec = vec.at[3 * i, :fout].set(b)          # bias
            vec = vec.at[3 * i + 1, :fout].set(1.0)    # gamma
            # beta row stays 0
        else:
            vec = vec.at[3 * len(HIDDEN), :fout].set(b)  # final bias
    return weights, vec


def _reference_forward(x, weights, vec, output_size):
    """Pure-JAX reference with identical (padded, bf16-activation) semantics."""
    in_pad = weights[0].shape[0]
    h = jnp.pad(x, ((0, 0), (0, in_pad - x.shape[1]))).astype(jnp.bfloat16)
    n_hidden = len(weights) - 1
    for i in range(n_hidden):
        w = weights[i]
        width = w.shape[1]
        b = vec[3 * i, :width]
        gamma = vec[3 * i + 1, :width]
        beta = vec[3 * i + 2, :width]
        h = jnp.dot(h, w, preferred_element_type=jnp.float32) + b
        h = jnp.maximum(h, LEAKY_SLOPE * h)
        mean = jnp.mean(h, axis=0, keepdims=True)
        var = jnp.mean(jnp.square(h - mean), axis=0, keepdims=True)
        h = ((h - mean) * jax.lax.rsqrt(var + BN_EPS) * gamma
             + beta).astype(jnp.bfloat16)
    w = weights[-1]
    b = vec[3 * n_hidden, :w.shape[1]]
    logits = jnp.dot(h, w, preferred_element_type=jnp.float32) + b
    return jax.nn.softmax(logits[:, :output_size], axis=-1)


if __name__ == "__main__":
    INPUT_SIZE = 64
    OUTPUT_SIZE = 10
    # Full batch stays resident in one block so training-mode BN stats are
    # exact.  128 rows fill the MXU on v5e; use 256 on v6e/v7x (256-row MXU)
    # for higher utilization — the kernel does not assume a particular batch.
    BATCH = 128

    key = jax.random.PRNGKey(0)
    key, kx = jax.random.split(key)
    x = jax.random.normal(kx, (BATCH, INPUT_SIZE), jnp.float32)
    weights, vec = init_params(key, INPUT_SIZE, OUTPUT_SIZE)

    y = jax.block_until_ready(
        image_classifier_forward(x, weights, vec, OUTPUT_SIZE))

    assert y.shape == (BATCH, OUTPUT_SIZE)
    # Exact softmax divide -> rows sum to 1 to f32 precision.
    assert jnp.allclose(jnp.sum(y, axis=-1), 1.0, atol=1e-3)

    y_ref = jax.block_until_ready(
        _reference_forward(x, weights, vec, OUTPUT_SIZE))
    assert jnp.allclose(y, y_ref, atol=5e-3), float(jnp.max(jnp.abs(y - y_ref)))

    print("KERNEL_OK")
</pallas_src>

<mosaic_0001>
module attributes {stable_mosaic.version = 11 : i64} {
  func.func @_mlp_kernel(%arg0: memref<128x128xbf16, #tpu.memory_space<vmem>>, %arg1: memref<22x640xf32, #tpu.memory_space<vmem>>, %arg2: memref<128x640xbf16, #tpu.memory_space<any>>, %arg3: memref<640x512xbf16, #tpu.memory_space<any>>, %arg4: memref<512x512xbf16, #tpu.memory_space<any>>, %arg5: memref<512x384xbf16, #tpu.memory_space<any>>, %arg6: memref<384x256xbf16, #tpu.memory_space<any>>, %arg7: memref<256x128xbf16, #tpu.memory_space<any>>, %arg8: memref<128x128xbf16, #tpu.memory_space<any>>, %arg9: memref<128x128xbf16, #tpu.memory_space<any>>, %arg10: memref<128x128xf32, #tpu.memory_space<vmem>>, %arg11: memref<128x640xbf16, #tpu.memory_space<vmem>>, %arg12: memref<640x512xbf16, #tpu.memory_space<vmem>>, %arg13: memref<512x512xbf16, #tpu.memory_space<vmem>>, %arg14: memref<512x384xbf16, #tpu.memory_space<vmem>>, %arg15: memref<384x256xbf16, #tpu.memory_space<vmem>>, %arg16: memref<256x128xbf16, #tpu.memory_space<vmem>>, %arg17: memref<128x128xbf16, #tpu.memory_space<vmem>>, %arg18: memref<128x128xbf16, #tpu.memory_space<vmem>>, %arg19: memref<8x!tpu.dma_semaphore, #tpu.memory_space<semaphore_mem>>) attributes {dimension_semantics = [], scalar_prefetch = 0 : i64, scratch_operands = 9 : i64, tpu.core_type = #tpu.core_type<tc>} {
    %c0_i32 = arith.constant 0 : i32
    %0 = tpu.memref_slice %arg19[%c0_i32] : memref<8x!tpu.dma_semaphore, #tpu.memory_space<semaphore_mem>> -> memref<1x!tpu.dma_semaphore, #tpu.memory_space<semaphore_mem>>
    %1 = tpu.memref_squeeze %0 : memref<1x!tpu.dma_semaphore, #tpu.memory_space<semaphore_mem>> -> memref<!tpu.dma_semaphore, #tpu.memory_space<semaphore_mem>>
    tpu.enqueue_dma source(%arg2 : memref<128x640xbf16, #tpu.memory_space<any>>) target(%arg11 : memref<128x640xbf16, #tpu.memory_space<vmem>>) target_semaphore(%1 : memref<!tpu.dma_semaphore, #tpu.memory_space<semaphore_mem>>)
    %c1_i32 = arith.constant 1 : i32
    %2 = tpu.memref_slice %arg19[%c1_i32] : memref<8x!tpu.dma_semaphore, #tpu.memory_space<semaphore_mem>> -> memref<1x!tpu.dma_semaphore, #tpu.memory_space<semaphore_mem>>
    %3 = tpu.memref_squeeze %2 : memref<1x!tpu.dma_semaphore, #tpu.memory_space<semaphore_mem>> -> memref<!tpu.dma_semaphore, #tpu.memory_space<semaphore_mem>>
    tpu.enqueue_dma source(%arg3 : memref<640x512xbf16, #tpu.memory_space<any>>) target(%arg12 : memref<640x512xbf16, #tpu.memory_space<vmem>>) target_semaphore(%3 : memref<!tpu.dma_semaphore, #tpu.memory_space<semaphore_mem>>)
    %c2_i32 = arith.constant 2 : i32
    %4 = tpu.memref_slice %arg19[%c2_i32] : memref<8x!tpu.dma_semaphore, #tpu.memory_space<semaphore_mem>> -> memref<1x!tpu.dma_semaphore, #tpu.memory_space<semaphore_mem>>
    %5 = tpu.memref_squeeze %4 : memref<1x!tpu.dma_semaphore, #tpu.memory_space<semaphore_mem>> -> memref<!tpu.dma_semaphore, #tpu.memory_space<semaphore_mem>>
    tpu.enqueue_dma source(%arg4 : memref<512x512xbf16, #tpu.memory_space<any>>) target(%arg13 : memref<512x512xbf16, #tpu.memory_space<vmem>>) target_semaphore(%5 : memref<!tpu.dma_semaphore, #tpu.memory_space<semaphore_mem>>)
    %c3_i32 = arith.constant 3 : i32
    %6 = tpu.memref_slice %arg19[%c3_i32] : memref<8x!tpu.dma_semaphore, #tpu.memory_space<semaphore_mem>> -> memref<1x!tpu.dma_semaphore, #tpu.memory_space<semaphore_mem>>
    %7 = tpu.memref_squeeze %6 : memref<1x!tpu.dma_semaphore, #tpu.memory_space<semaphore_mem>> -> memref<!tpu.dma_semaphore, #tpu.memory_space<semaphore_mem>>
    tpu.enqueue_dma source(%arg5 : memref<512x384xbf16, #tpu.memory_space<any>>) target(%arg14 : memref<512x384xbf16, #tpu.memory_space<vmem>>) target_semaphore(%7 : memref<!tpu.dma_semaphore, #tpu.memory_space<semaphore_mem>>)
    %c4_i32 = arith.constant 4 : i32
    %8 = tpu.memref_slice %arg19[%c4_i32] : memref<8x!tpu.dma_semaphore, #tpu.memory_space<semaphore_mem>> -> memref<1x!tpu.dma_semaphore, #tpu.memory_space<semaphore_mem>>
    %9 = tpu.memref_squeeze %8 : memref<1x!tpu.dma_semaphore, #tpu.memory_space<semaphore_mem>> -> memref<!tpu.dma_semaphore, #tpu.memory_space<semaphore_mem>>
    tpu.enqueue_dma source(%arg6 : memref<384x256xbf16, #tpu.memory_space<any>>) target(%arg15 : memref<384x256xbf16, #tpu.memory_space<vmem>>) target_semaphore(%9 : memref<!tpu.dma_semaphore, #tpu.memory_space<semaphore_mem>>)
    %c5_i32 = arith.constant 5 : i32
    %10 = tpu.memref_slice %arg19[%c5_i32] : memref<8x!tpu.dma_semaphore, #tpu.memory_space<semaphore_mem>> -> memref<1x!tpu.dma_semaphore, #tpu.memory_space<semaphore_mem>>
    %11 = tpu.memref_squeeze %10 : memref<1x!tpu.dma_semaphore, #tpu.memory_space<semaphore_mem>> -> memref<!tpu.dma_semaphore, #tpu.memory_space<semaphore_mem>>
    tpu.enqueue_dma source(%arg7 : memref<256x128xbf16, #tpu.memory_space<any>>) target(%arg16 : memref<256x128xbf16, #tpu.memory_space<vmem>>) target_semaphore(%11 : memref<!tpu.dma_semaphore, #tpu.memory_space<semaphore_mem>>)
    %c6_i32 = arith.constant 6 : i32
    %12 = tpu.memref_slice %arg19[%c6_i32] : memref<8x!tpu.dma_semaphore, #tpu.memory_space<semaphore_mem>> -> memref<1x!tpu.dma_semaphore, #tpu.memory_space<semaphore_mem>>
    %13 = tpu.memref_squeeze %12 : memref<1x!tpu.dma_semaphore, #tpu.memory_space<semaphore_mem>> -> memref<!tpu.dma_semaphore, #tpu.memory_space<semaphore_mem>>
    tpu.enqueue_dma source(%arg8 : memref<128x128xbf16, #tpu.memory_space<any>>) target(%arg17 : memref<128x128xbf16, #tpu.memory_space<vmem>>) target_semaphore(%13 : memref<!tpu.dma_semaphore, #tpu.memory_space<semaphore_mem>>)
    %c7_i32 = arith.constant 7 : i32
    %14 = tpu.memref_slice %arg19[%c7_i32] : memref<8x!tpu.dma_semaphore, #tpu.memory_space<semaphore_mem>> -> memref<1x!tpu.dma_semaphore, #tpu.memory_space<semaphore_mem>>
    %15 = tpu.memref_squeeze %14 : memref<1x!tpu.dma_semaphore, #tpu.memory_space<semaphore_mem>> -> memref<!tpu.dma_semaphore, #tpu.memory_space<semaphore_mem>>
    tpu.enqueue_dma source(%arg9 : memref<128x128xbf16, #tpu.memory_space<any>>) target(%arg18 : memref<128x128xbf16, #tpu.memory_space<vmem>>) target_semaphore(%15 : memref<!tpu.dma_semaphore, #tpu.memory_space<semaphore_mem>>)
    %c0 = arith.constant 0 : index
    %c0_0 = arith.constant 0 : index
    %16 = vector.load %arg0[%c0, %c0_0] : memref<128x128xbf16, #tpu.memory_space<vmem>>, vector<128x128xbf16>
    %c0_1 = arith.constant 0 : index
    %c0_2 = arith.constant 0 : index
    %17 = vector.load %arg1[%c0_1, %c0_2] : memref<22x640xf32, #tpu.memory_space<vmem>>, vector<1x640xf32>
    %c1 = arith.constant 1 : index
    %c0_3 = arith.constant 0 : index
    %18 = vector.load %arg1[%c1, %c0_3] : memref<22x640xf32, #tpu.memory_space<vmem>>, vector<1x640xf32>
    %c2 = arith.constant 2 : index
    %c0_4 = arith.constant 0 : index
    %19 = vector.load %arg1[%c2, %c0_4] : memref<22x640xf32, #tpu.memory_space<vmem>>, vector<1x640xf32>
    %c0_i32_5 = arith.constant 0 : i32
    %20 = tpu.memref_slice %arg19[%c0_i32_5] : memref<8x!tpu.dma_semaphore, #tpu.memory_space<semaphore_mem>> -> memref<1x!tpu.dma_semaphore, #tpu.memory_space<semaphore_mem>>
    %21 = tpu.memref_squeeze %20 : memref<1x!tpu.dma_semaphore, #tpu.memory_space<semaphore_mem>> -> memref<!tpu.dma_semaphore, #tpu.memory_space<semaphore_mem>>
    tpu.wait_dma2 semaphore(%21 : memref<!tpu.dma_semaphore, #tpu.memory_space<semaphore_mem>>) src(%arg2 : memref<128x640xbf16, #tpu.memory_space<any>>) dst(%arg11 : memref<128x640xbf16, #tpu.memory_space<vmem>>)
    %c0_6 = arith.constant 0 : index
    %c0_7 = arith.constant 0 : index
    %22 = vector.load %arg11[%c0_6, %c0_7] : memref<128x640xbf16, #tpu.memory_space<vmem>>, vector<128x640xbf16>
    %cst = arith.constant dense<0.000000e+00> : vector<128x640xf32>
    %23 = tpu.matmul %16, %22, %cst {dimension_numbers = #tpu.dot_dimension_numbers<[1], [0], [0], [1], [0, 0, 1, 1], [], []>} : vector<128x128xbf16>, vector<128x640xbf16>, vector<128x640xf32> -> vector<128x640xf32>
    %24 = vector.broadcast %17 : vector<1x640xf32> to vector<128x640xf32>
    %25 = arith.addf %23, %24 : vector<128x640xf32>
    %cst_8 = arith.constant 0.00999999977 : f32
    %26 = vector.broadcast %cst_8 : f32 to vector<128x640xf32>
    %27 = arith.mulf %26, %25 : vector<128x640xf32>
    %28 = arith.maximumf %25, %27 : vector<128x640xf32>
    %cst_9 = arith.constant dense<0.000000e+00> : vector<640xf32>
    %29 = vector.multi_reduction <add>, %28, %cst_9 [0] : vector<128x640xf32> to vector<640xf32>
    %30 = vector.shape_cast %29 : vector<640xf32> to vector<1x640xf32>
    %cst_10 = arith.constant 7.812500e-03 : f32
    %31 = vector.broadcast %cst_10 : f32 to vector<1x640xf32>
    %32 = arith.mulf %30, %31 : vector<1x640xf32>
    %33 = vector.broadcast %32 : vector<1x640xf32> to vector<128x640xf32>
    %34 = arith.subf %28, %33 : vector<128x640xf32>
    %35 = arith.mulf %34, %34 : vector<128x640xf32>
    %cst_11 = arith.constant dense<0.000000e+00> : vector<640xf32>
    %36 = vector.multi_reduction <add>, %35, %cst_11 [0] : vector<128x640xf32> to vector<640xf32>
    %37 = vector.shape_cast %36 : vector<640xf32> to vector<1x640xf32>
    %cst_12 = arith.constant 7.812500e-03 : f32
    %38 = vector.broadcast %cst_12 : f32 to vector<1x640xf32>
    %39 = arith.mulf %37, %38 : vector<1x640xf32>
    %cst_13 = arith.constant 9.99999974E-6 : f32
    %40 = vector.broadcast %cst_13 : f32 to vector<1x640xf32>
    %41 = arith.addf %39, %40 : vector<1x640xf32>
    %42 = math.rsqrt %41 : vector<1x640xf32>
    %43 = arith.mulf %18, %42 : vector<1x640xf32>
    %44 = vector.broadcast %43 : vector<1x640xf32> to vector<128x640xf32>
    %45 = arith.mulf %34, %44 : vector<128x640xf32>
    %46 = vector.broadcast %19 : vector<1x640xf32> to vector<128x640xf32>
    %47 = arith.addf %45, %46 : vector<128x640xf32>
    %48 = arith.truncf %47 : vector<128x640xf32> to vector<128x640xbf16>
    %c3 = arith.constant 3 : index
    %c0_14 = arith.constant 0 : index
    %49 = vector.load %arg1[%c3, %c0_14] : memref<22x640xf32, #tpu.memory_space<vmem>>, vector<1x512xf32>
    %c4 = arith.constant 4 : index
    %c0_15 = arith.constant 0 : index
    %50 = vector.load %arg1[%c4, %c0_15] : memref<22x640xf32, #tpu.memory_space<vmem>>, vector<1x512xf32>
    %c5 = arith.constant 5 : index
    %c0_16 = arith.constant 0 : index
    %51 = vector.load %arg1[%c5, %c0_16] : memref<22x640xf32, #tpu.memory_space<vmem>>, vector<1x512xf32>
    %c1_i32_17 = arith.constant 1 : i32
    %52 = tpu.memref_slice %arg19[%c1_i32_17] : memref<8x!tpu.dma_semaphore, #tpu.memory_space<semaphore_mem>> -> memref<1x!tpu.dma_semaphore, #tpu.memory_space<semaphore_mem>>
    %53 = tpu.memref_squeeze %52 : memref<1x!tpu.dma_semaphore, #tpu.memory_space<semaphore_mem>> -> memref<!tpu.dma_semaphore, #tpu.memory_space<semaphore_mem>>
    tpu.wait_dma2 semaphore(%53 : memref<!tpu.dma_semaphore, #tpu.memory_space<semaphore_mem>>) src(%arg3 : memref<640x512xbf16, #tpu.memory_space<any>>) dst(%arg12 : memref<640x512xbf16, #tpu.memory_space<vmem>>)
    %c0_18 = arith.constant 0 : index
    %c0_19 = arith.constant 0 : index
    %54 = vector.load %arg12[%c0_18, %c0_19] : memref<640x512xbf16, #tpu.memory_space<vmem>>, vector<640x512xbf16>
    %cst_20 = arith.constant dense<0.000000e+00> : vector<128x512xf32>
    %55 = tpu.matmul %48, %54, %cst_20 {dimension_numbers = #tpu.dot_dimension_numbers<[1], [0], [0], [1], [0, 0, 1, 1], [], []>} : vector<128x640xbf16>, vector<640x512xbf16>, vector<128x512xf32> -> vector<128x512xf32>
    %56 = vector.broadcast %49 : vector<1x512xf32> to vector<128x512xf32>
    %57 = arith.addf %55, %56 : vector<128x512xf32>
    %cst_21 = arith.constant 0.00999999977 : f32
    %58 = vector.broadcast %cst_21 : f32 to vector<128x512xf32>
    %59 = arith.mulf %58, %57 : vector<128x512xf32>
    %60 = arith.maximumf %57, %59 : vector<128x512xf32>
    %cst_22 = arith.constant dense<0.000000e+00> : vector<512xf32>
    %61 = vector.multi_reduction <add>, %60, %cst_22 [0] : vector<128x512xf32> to vector<512xf32>
    %62 = vector.shape_cast %61 : vector<512xf32> to vector<1x512xf32>
    %cst_23 = arith.constant 7.812500e-03 : f32
    %63 = vector.broadcast %cst_23 : f32 to vector<1x512xf32>
    %64 = arith.mulf %62, %63 : vector<1x512xf32>
    %65 = vector.broadcast %64 : vector<1x512xf32> to vector<128x512xf32>
    %66 = arith.subf %60, %65 : vector<128x512xf32>
    %67 = arith.mulf %66, %66 : vector<128x512xf32>
    %cst_24 = arith.constant dense<0.000000e+00> : vector<512xf32>
    %68 = vector.multi_reduction <add>, %67, %cst_24 [0] : vector<128x512xf32> to vector<512xf32>
    %69 = vector.shape_cast %68 : vector<512xf32> to vector<1x512xf32>
    %cst_25 = arith.constant 7.812500e-03 : f32
    %70 = vector.broadcast %cst_25 : f32 to vector<1x512xf32>
    %71 = arith.mulf %69, %70 : vector<1x512xf32>
    %cst_26 = arith.constant 9.99999974E-6 : f32
    %72 = vector.broadcast %cst_26 : f32 to vector<1x512xf32>
    %73 = arith.addf %71, %72 : vector<1x512xf32>
    %74 = math.rsqrt %73 : vector<1x512xf32>
    %75 = arith.mulf %50, %74 : vector<1x512xf32>
    %76 = vector.broadcast %75 : vector<1x512xf32> to vector<128x512xf32>
    %77 = arith.mulf %66, %76 : vector<128x512xf32>
    %78 = vector.broadcast %51 : vector<1x512xf32> to vector<128x512xf32>
    %79 = arith.addf %77, %78 : vector<128x512xf32>
    %80 = arith.truncf %79 : vector<128x512xf32> to vector<128x512xbf16>
    %c6 = arith.constant 6 : index
    %c0_27 = arith.constant 0 : index
    %81 = vector.load %arg1[%c6, %c0_27] : memref<22x640xf32, #tpu.memory_space<vmem>>, vector<1x512xf32>
    %c7 = arith.constant 7 : index
    %c0_28 = arith.constant 0 : index
    %82 = vector.load %arg1[%c7, %c0_28] : memref<22x640xf32, #tpu.memory_space<vmem>>, vector<1x512xf32>
    %c8 = arith.constant 8 : index
    %c0_29 = arith.constant 0 : index
    %83 = vector.load %arg1[%c8, %c0_29] : memref<22x640xf32, #tpu.memory_space<vmem>>, vector<1x512xf32>
    %c2_i32_30 = arith.constant 2 : i32
    %84 = tpu.memref_slice %arg19[%c2_i32_30] : memref<8x!tpu.dma_semaphore, #tpu.memory_space<semaphore_mem>> -> memref<1x!tpu.dma_semaphore, #tpu.memory_space<semaphore_mem>>
    %85 = tpu.memref_squeeze %84 : memref<1x!tpu.dma_semaphore, #tpu.memory_space<semaphore_mem>> -> memref<!tpu.dma_semaphore, #tpu.memory_space<semaphore_mem>>
    tpu.wait_dma2 semaphore(%85 : memref<!tpu.dma_semaphore, #tpu.memory_space<semaphore_mem>>) src(%arg4 : memref<512x512xbf16, #tpu.memory_space<any>>) dst(%arg13 : memref<512x512xbf16, #tpu.memory_space<vmem>>)
    %c0_31 = arith.constant 0 : index
    %c0_32 = arith.constant 0 : index
    %86 = vector.load %arg13[%c0_31, %c0_32] : memref<512x512xbf16, #tpu.memory_space<vmem>>, vector<512x512xbf16>
    %cst_33 = arith.constant dense<0.000000e+00> : vector<128x512xf32>
    %87 = tpu.matmul %80, %86, %cst_33 {dimension_numbers = #tpu.dot_dimension_numbers<[1], [0], [0], [1], [0, 0, 1, 1], [], []>} : vector<128x512xbf16>, vector<512x512xbf16>, vector<128x512xf32> -> vector<128x512xf32>
    %88 = vector.broadcast %81 : vector<1x512xf32> to vector<128x512xf32>
    %89 = arith.addf %87, %88 : vector<128x512xf32>
    %cst_34 = arith.constant 0.00999999977 : f32
    %90 = vector.broadcast %cst_34 : f32 to vector<128x512xf32>
    %91 = arith.mulf %90, %89 : vector<128x512xf32>
    %92 = arith.maximumf %89, %91 : vector<128x512xf32>
    %cst_35 = arith.constant dense<0.000000e+00> : vector<512xf32>
    %93 = vector.multi_reduction <add>, %92, %cst_35 [0] : vector<128x512xf32> to vector<512xf32>
    %94 = vector.shape_cast %93 : vector<512xf32> to vector<1x512xf32>
    %cst_36 = arith.constant 7.812500e-03 : f32
    %95 = vector.broadcast %cst_36 : f32 to vector<1x512xf32>
    %96 = arith.mulf %94, %95 : vector<1x512xf32>
    %97 = vector.broadcast %96 : vector<1x512xf32> to vector<128x512xf32>
    %98 = arith.subf %92, %97 : vector<128x512xf32>
    %99 = arith.mulf %98, %98 : vector<128x512xf32>
    %cst_37 = arith.constant dense<0.000000e+00> : vector<512xf32>
    %100 = vector.multi_reduction <add>, %99, %cst_37 [0] : vector<128x512xf32> to vector<512xf32>
    %101 = vector.shape_cast %100 : vector<512xf32> to vector<1x512xf32>
    %cst_38 = arith.constant 7.812500e-03 : f32
    %102 = vector.broadcast %cst_38 : f32 to vector<1x512xf32>
    %103 = arith.mulf %101, %102 : vector<1x512xf32>
    %cst_39 = arith.constant 9.99999974E-6 : f32
    %104 = vector.broadcast %cst_39 : f32 to vector<1x512xf32>
    %105 = arith.addf %103, %104 : vector<1x512xf32>
    %106 = math.rsqrt %105 : vector<1x512xf32>
    %107 = arith.mulf %82, %106 : vector<1x512xf32>
    %108 = vector.broadcast %107 : vector<1x512xf32> to vector<128x512xf32>
    %109 = arith.mulf %98, %108 : vector<128x512xf32>
    %110 = vector.broadcast %83 : vector<1x512xf32> to vector<128x512xf32>
    %111 = arith.addf %109, %110 : vector<128x512xf32>
    %112 = arith.truncf %111 : vector<128x512xf32> to vector<128x512xbf16>
    %c9 = arith.constant 9 : index
    %c0_40 = arith.constant 0 : index
    %113 = vector.load %arg1[%c9, %c0_40] : memref<22x640xf32, #tpu.memory_space<vmem>>, vector<1x384xf32>
    %c10 = arith.constant 10 : index
    %c0_41 = arith.constant 0 : index
    %114 = vector.load %arg1[%c10, %c0_41] : memref<22x640xf32, #tpu.memory_space<vmem>>, vector<1x384xf32>
    %c11 = arith.constant 11 : index
    %c0_42 = arith.constant 0 : index
    %115 = vector.load %arg1[%c11, %c0_42] : memref<22x640xf32, #tpu.memory_space<vmem>>, vector<1x384xf32>
    %c3_i32_43 = arith.constant 3 : i32
    %116 = tpu.memref_slice %arg19[%c3_i32_43] : memref<8x!tpu.dma_semaphore, #tpu.memory_space<semaphore_mem>> -> memref<1x!tpu.dma_semaphore, #tpu.memory_space<semaphore_mem>>
    %117 = tpu.memref_squeeze %116 : memref<1x!tpu.dma_semaphore, #tpu.memory_space<semaphore_mem>> -> memref<!tpu.dma_semaphore, #tpu.memory_space<semaphore_mem>>
    tpu.wait_dma2 semaphore(%117 : memref<!tpu.dma_semaphore, #tpu.memory_space<semaphore_mem>>) src(%arg5 : memref<512x384xbf16, #tpu.memory_space<any>>) dst(%arg14 : memref<512x384xbf16, #tpu.memory_space<vmem>>)
    %c0_44 = arith.constant 0 : index
    %c0_45 = arith.constant 0 : index
    %118 = vector.load %arg14[%c0_44, %c0_45] : memref<512x384xbf16, #tpu.memory_space<vmem>>, vector<512x384xbf16>
    %cst_46 = arith.constant dense<0.000000e+00> : vector<128x384xf32>
    %119 = tpu.matmul %112, %118, %cst_46 {dimension_numbers = #tpu.dot_dimension_numbers<[1], [0], [0], [1], [0, 0, 1, 1], [], []>} : vector<128x512xbf16>, vector<512x384xbf16>, vector<128x384xf32> -> vector<128x384xf32>
    %120 = vector.broadcast %113 : vector<1x384xf32> to vector<128x384xf32>
    %121 = arith.addf %119, %120 : vector<128x384xf32>
    %cst_47 = arith.constant 0.00999999977 : f32
    %122 = vector.broadcast %cst_47 : f32 to vector<128x384xf32>
    %123 = arith.mulf %122, %121 : vector<128x384xf32>
    %124 = arith.maximumf %121, %123 : vector<128x384xf32>
    %cst_48 = arith.constant dense<0.000000e+00> : vector<384xf32>
    %125 = vector.multi_reduction <add>, %124, %cst_48 [0] : vector<128x384xf32> to vector<384xf32>
    %126 = vector.shape_cast %125 : vector<384xf32> to vector<1x384xf32>
    %cst_49 = arith.constant 7.812500e-03 : f32
    %127 = vector.broadcast %cst_49 : f32 to vector<1x384xf32>
    %128 = arith.mulf %126, %127 : vector<1x384xf32>
    %129 = vector.broadcast %128 : vector<1x384xf32> to vector<128x384xf32>
    %130 = arith.subf %124, %129 : vector<128x384xf32>
    %131 = arith.mulf %130, %130 : vector<128x384xf32>
    %cst_50 = arith.constant dense<0.000000e+00> : vector<384xf32>
    %132 = vector.multi_reduction <add>, %131, %cst_50 [0] : vector<128x384xf32> to vector<384xf32>
    %133 = vector.shape_cast %132 : vector<384xf32> to vector<1x384xf32>
    %cst_51 = arith.constant 7.812500e-03 : f32
    %134 = vector.broadcast %cst_51 : f32 to vector<1x384xf32>
    %135 = arith.mulf %133, %134 : vector<1x384xf32>
    %cst_52 = arith.constant 9.99999974E-6 : f32
    %136 = vector.broadcast %cst_52 : f32 to vector<1x384xf32>
    %137 = arith.addf %135, %136 : vector<1x384xf32>
    %138 = math.rsqrt %137 : vector<1x384xf32>
    %139 = arith.mulf %114, %138 : vector<1x384xf32>
    %140 = vector.broadcast %139 : vector<1x384xf32> to vector<128x384xf32>
    %141 = arith.mulf %130, %140 : vector<128x384xf32>
    %142 = vector.broadcast %115 : vector<1x384xf32> to vector<128x384xf32>
    %143 = arith.addf %141, %142 : vector<128x384xf32>
    %144 = arith.truncf %143 : vector<128x384xf32> to vector<128x384xbf16>
    %c12 = arith.constant 12 : index
    %c0_53 = arith.constant 0 : index
    %145 = vector.load %arg1[%c12, %c0_53] : memref<22x640xf32, #tpu.memory_space<vmem>>, vector<1x256xf32>
    %c13 = arith.constant 13 : index
    %c0_54 = arith.constant 0 : index
    %146 = vector.load %arg1[%c13, %c0_54] : memref<22x640xf32, #tpu.memory_space<vmem>>, vector<1x256xf32>
    %c14 = arith.constant 14 : index
    %c0_55 = arith.constant 0 : index
    %147 = vector.load %arg1[%c14, %c0_55] : memref<22x640xf32, #tpu.memory_space<vmem>>, vector<1x256xf32>
    %c4_i32_56 = arith.constant 4 : i32
    %148 = tpu.memref_slice %arg19[%c4_i32_56] : memref<8x!tpu.dma_semaphore, #tpu.memory_space<semaphore_mem>> -> memref<1x!tpu.dma_semaphore, #tpu.memory_space<semaphore_mem>>
    %149 = tpu.memref_squeeze %148 : memref<1x!tpu.dma_semaphore, #tpu.memory_space<semaphore_mem>> -> memref<!tpu.dma_semaphore, #tpu.memory_space<semaphore_mem>>
    tpu.wait_dma2 semaphore(%149 : memref<!tpu.dma_semaphore, #tpu.memory_space<semaphore_mem>>) src(%arg6 : memref<384x256xbf16, #tpu.memory_space<any>>) dst(%arg15 : memref<384x256xbf16, #tpu.memory_space<vmem>>)
    %c0_57 = arith.constant 0 : index
    %c0_58 = arith.constant 0 : index
    %150 = vector.load %arg15[%c0_57, %c0_58] : memref<384x256xbf16, #tpu.memory_space<vmem>>, vector<384x256xbf16>
    %cst_59 = arith.constant dense<0.000000e+00> : vector<128x256xf32>
    %151 = tpu.matmul %144, %150, %cst_59 {dimension_numbers = #tpu.dot_dimension_numbers<[1], [0], [0], [1], [0, 0, 1, 1], [], []>} : vector<128x384xbf16>, vector<384x256xbf16>, vector<128x256xf32> -> vector<128x256xf32>
    %152 = vector.broadcast %145 : vector<1x256xf32> to vector<128x256xf32>
    %153 = arith.addf %151, %152 : vector<128x256xf32>
    %cst_60 = arith.constant 0.00999999977 : f32
    %154 = vector.broadcast %cst_60 : f32 to vector<128x256xf32>
    %155 = arith.mulf %154, %153 : vector<128x256xf32>
    %156 = arith.maximumf %153, %155 : vector<128x256xf32>
    %cst_61 = arith.constant dense<0.000000e+00> : vector<256xf32>
    %157 = vector.multi_reduction <add>, %156, %cst_61 [0] : vector<128x256xf32> to vector<256xf32>
    %158 = vector.shape_cast %157 : vector<256xf32> to vector<1x256xf32>
    %cst_62 = arith.constant 7.812500e-03 : f32
    %159 = vector.broadcast %cst_62 : f32 to vector<1x256xf32>
    %160 = arith.mulf %158, %159 : vector<1x256xf32>
    %161 = vector.broadcast %160 : vector<1x256xf32> to vector<128x256xf32>
    %162 = arith.subf %156, %161 : vector<128x256xf32>
    %163 = arith.mulf %162, %162 : vector<128x256xf32>
    %cst_63 = arith.constant dense<0.000000e+00> : vector<256xf32>
    %164 = vector.multi_reduction <add>, %163, %cst_63 [0] : vector<128x256xf32> to vector<256xf32>
    %165 = vector.shape_cast %164 : vector<256xf32> to vector<1x256xf32>
    %cst_64 = arith.constant 7.812500e-03 : f32
    %166 = vector.broadcast %cst_64 : f32 to vector<1x256xf32>
    %167 = arith.mulf %165, %166 : vector<1x256xf32>
    %cst_65 = arith.constant 9.99999974E-6 : f32
    %168 = vector.broadcast %cst_65 : f32 to vector<1x256xf32>
    %169 = arith.addf %167, %168 : vector<1x256xf32>
    %170 = math.rsqrt %169 : vector<1x256xf32>
    %171 = arith.mulf %146, %170 : vector<1x256xf32>
    %172 = vector.broadcast %171 : vector<1x256xf32> to vector<128x256xf32>
    %173 = arith.mulf %162, %172 : vector<128x256xf32>
    %174 = vector.broadcast %147 : vector<1x256xf32> to vector<128x256xf32>
    %175 = arith.addf %173, %174 : vector<128x256xf32>
    %176 = arith.truncf %175 : vector<128x256xf32> to vector<128x256xbf16>
    %c15 = arith.constant 15 : index
    %c0_66 = arith.constant 0 : index
    %177 = vector.load %arg1[%c15, %c0_66] : memref<22x640xf32, #tpu.memory_space<vmem>>, vector<1x128xf32>
    %c16 = arith.constant 16 : index
    %c0_67 = arith.constant 0 : index
    %178 = vector.load %arg1[%c16, %c0_67] : memref<22x640xf32, #tpu.memory_space<vmem>>, vector<1x128xf32>
    %c17 = arith.constant 17 : index
    %c0_68 = arith.constant 0 : index
    %179 = vector.load %arg1[%c17, %c0_68] : memref<22x640xf32, #tpu.memory_space<vmem>>, vector<1x128xf32>
    %c5_i32_69 = arith.constant 5 : i32
    %180 = tpu.memref_slice %arg19[%c5_i32_69] : memref<8x!tpu.dma_semaphore, #tpu.memory_space<semaphore_mem>> -> memref<1x!tpu.dma_semaphore, #tpu.memory_space<semaphore_mem>>
    %181 = tpu.memref_squeeze %180 : memref<1x!tpu.dma_semaphore, #tpu.memory_space<semaphore_mem>> -> memref<!tpu.dma_semaphore, #tpu.memory_space<semaphore_mem>>
    tpu.wait_dma2 semaphore(%181 : memref<!tpu.dma_semaphore, #tpu.memory_space<semaphore_mem>>) src(%arg7 : memref<256x128xbf16, #tpu.memory_space<any>>) dst(%arg16 : memref<256x128xbf16, #tpu.memory_space<vmem>>)
    %c0_70 = arith.constant 0 : index
    %c0_71 = arith.constant 0 : index
    %182 = vector.load %arg16[%c0_70, %c0_71] : memref<256x128xbf16, #tpu.memory_space<vmem>>, vector<256x128xbf16>
    %cst_72 = arith.constant dense<0.000000e+00> : vector<128x128xf32>
    %183 = tpu.matmul %176, %182, %cst_72 {dimension_numbers = #tpu.dot_dimension_numbers<[1], [0], [0], [1], [0, 0, 1, 1], [], []>} : vector<128x256xbf16>, vector<256x128xbf16>, vector<128x128xf32> -> vector<128x128xf32>
    %184 = vector.broadcast %177 : vector<1x128xf32> to vector<128x128xf32>
    %185 = arith.addf %183, %184 : vector<128x128xf32>
    %cst_73 = arith.constant 0.00999999977 : f32
    %186 = vector.broadcast %cst_73 : f32 to vector<128x128xf32>
    %187 = arith.mulf %186, %185 : vector<128x128xf32>
    %188 = arith.maximumf %185, %187 : vector<128x128xf32>
    %cst_74 = arith.constant dense<0.000000e+00> : vector<128xf32>
    %189 = vector.multi_reduction <add>, %188, %cst_74 [0] : vector<128x128xf32> to vector<128xf32>
    %190 = vector.shape_cast %189 : vector<128xf32> to vector<1x128xf32>
    %cst_75 = arith.constant 7.812500e-03 : f32
    %191 = vector.broadcast %cst_75 : f32 to vector<1x128xf32>
    %192 = arith.mulf %190, %191 : vector<1x128xf32>
    %193 = vector.broadcast %192 : vector<1x128xf32> to vector<128x128xf32>
    %194 = arith.subf %188, %193 : vector<128x128xf32>
    %195 = arith.mulf %194, %194 : vector<128x128xf32>
    %cst_76 = arith.constant dense<0.000000e+00> : vector<128xf32>
    %196 = vector.multi_reduction <add>, %195, %cst_76 [0] : vector<128x128xf32> to vector<128xf32>
    %197 = vector.shape_cast %196 : vector<128xf32> to vector<1x128xf32>
    %cst_77 = arith.constant 7.812500e-03 : f32
    %198 = vector.broadcast %cst_77 : f32 to vector<1x128xf32>
    %199 = arith.mulf %197, %198 : vector<1x128xf32>
    %cst_78 = arith.constant 9.99999974E-6 : f32
    %200 = vector.broadcast %cst_78 : f32 to vector<1x128xf32>
    %201 = arith.addf %199, %200 : vector<1x128xf32>
    %202 = math.rsqrt %201 : vector<1x128xf32>
    %203 = arith.mulf %178, %202 : vector<1x128xf32>
    %204 = vector.broadcast %203 : vector<1x128xf32> to vector<128x128xf32>
    %205 = arith.mulf %194, %204 : vector<128x128xf32>
    %206 = vector.broadcast %179 : vector<1x128xf32> to vector<128x128xf32>
    %207 = arith.addf %205, %206 : vector<128x128xf32>
    %208 = arith.truncf %207 : vector<128x128xf32> to vector<128x128xbf16>
    %c18 = arith.constant 18 : index
    %c0_79 = arith.constant 0 : index
    %209 = vector.load %arg1[%c18, %c0_79] : memref<22x640xf32, #tpu.memory_space<vmem>>, vector<1x128xf32>
    %c19 = arith.constant 19 : index
    %c0_80 = arith.constant 0 : index
    %210 = vector.load %arg1[%c19, %c0_80] : memref<22x640xf32, #tpu.memory_space<vmem>>, vector<1x128xf32>
    %c20 = arith.constant 20 : index
    %c0_81 = arith.constant 0 : index
    %211 = vector.load %arg1[%c20, %c0_81] : memref<22x640xf32, #tpu.memory_space<vmem>>, vector<1x128xf32>
    %c6_i32_82 = arith.constant 6 : i32
    %212 = tpu.memref_slice %arg19[%c6_i32_82] : memref<8x!tpu.dma_semaphore, #tpu.memory_space<semaphore_mem>> -> memref<1x!tpu.dma_semaphore, #tpu.memory_space<semaphore_mem>>
    %213 = tpu.memref_squeeze %212 : memref<1x!tpu.dma_semaphore, #tpu.memory_space<semaphore_mem>> -> memref<!tpu.dma_semaphore, #tpu.memory_space<semaphore_mem>>
    tpu.wait_dma2 semaphore(%213 : memref<!tpu.dma_semaphore, #tpu.memory_space<semaphore_mem>>) src(%arg8 : memref<128x128xbf16, #tpu.memory_space<any>>) dst(%arg17 : memref<128x128xbf16, #tpu.memory_space<vmem>>)
    %c0_83 = arith.constant 0 : index
    %c0_84 = arith.constant 0 : index
    %214 = vector.load %arg17[%c0_83, %c0_84] : memref<128x128xbf16, #tpu.memory_space<vmem>>, vector<128x128xbf16>
    %cst_85 = arith.constant dense<0.000000e+00> : vector<128x128xf32>
    %215 = tpu.matmul %208, %214, %cst_85 {dimension_numbers = #tpu.dot_dimension_numbers<[1], [0], [0], [1], [0, 0, 1, 1], [], []>} : vector<128x128xbf16>, vector<128x128xbf16>, vector<128x128xf32> -> vector<128x128xf32>
    %216 = vector.broadcast %209 : vector<1x128xf32> to vector<128x128xf32>
    %217 = arith.addf %215, %216 : vector<128x128xf32>
    %cst_86 = arith.constant 0.00999999977 : f32
    %218 = vector.broadcast %cst_86 : f32 to vector<128x128xf32>
    %219 = arith.mulf %218, %217 : vector<128x128xf32>
    %220 = arith.maximumf %217, %219 : vector<128x128xf32>
    %cst_87 = arith.constant dense<0.000000e+00> : vector<128xf32>
    %221 = vector.multi_reduction <add>, %220, %cst_87 [0] : vector<128x128xf32> to vector<128xf32>
    %222 = vector.shape_cast %221 : vector<128xf32> to vector<1x128xf32>
    %cst_88 = arith.constant 7.812500e-03 : f32
    %223 = vector.broadcast %cst_88 : f32 to vector<1x128xf32>
    %224 = arith.mulf %222, %223 : vector<1x128xf32>
    %225 = vector.broadcast %224 : vector<1x128xf32> to vector<128x128xf32>
    %226 = arith.subf %220, %225 : vector<128x128xf32>
    %227 = arith.mulf %226, %226 : vector<128x128xf32>
    %cst_89 = arith.constant dense<0.000000e+00> : vector<128xf32>
    %228 = vector.multi_reduction <add>, %227, %cst_89 [0] : vector<128x128xf32> to vector<128xf32>
    %229 = vector.shape_cast %228 : vector<128xf32> to vector<1x128xf32>
    %cst_90 = arith.constant 7.812500e-03 : f32
    %230 = vector.broadcast %cst_90 : f32 to vector<1x128xf32>
    %231 = arith.mulf %229, %230 : vector<1x128xf32>
    %cst_91 = arith.constant 9.99999974E-6 : f32
    %232 = vector.broadcast %cst_91 : f32 to vector<1x128xf32>
    %233 = arith.addf %231, %232 : vector<1x128xf32>
    %234 = math.rsqrt %233 : vector<1x128xf32>
    %235 = arith.mulf %210, %234 : vector<1x128xf32>
    %236 = vector.broadcast %235 : vector<1x128xf32> to vector<128x128xf32>
    %237 = arith.mulf %226, %236 : vector<128x128xf32>
    %238 = vector.broadcast %211 : vector<1x128xf32> to vector<128x128xf32>
    %239 = arith.addf %237, %238 : vector<128x128xf32>
    %240 = arith.truncf %239 : vector<128x128xf32> to vector<128x128xbf16>
    %c7_i32_92 = arith.constant 7 : i32
    %241 = tpu.memref_slice %arg19[%c7_i32_92] : memref<8x!tpu.dma_semaphore, #tpu.memory_space<semaphore_mem>> -> memref<1x!tpu.dma_semaphore, #tpu.memory_space<semaphore_mem>>
    %242 = tpu.memref_squeeze %241 : memref<1x!tpu.dma_semaphore, #tpu.memory_space<semaphore_mem>> -> memref<!tpu.dma_semaphore, #tpu.memory_space<semaphore_mem>>
    tpu.wait_dma2 semaphore(%242 : memref<!tpu.dma_semaphore, #tpu.memory_space<semaphore_mem>>) src(%arg9 : memref<128x128xbf16, #tpu.memory_space<any>>) dst(%arg18 : memref<128x128xbf16, #tpu.memory_space<vmem>>)
    %c0_93 = arith.constant 0 : index
    %c0_94 = arith.constant 0 : index
    %243 = vector.load %arg18[%c0_93, %c0_94] : memref<128x128xbf16, #tpu.memory_space<vmem>>, vector<128x128xbf16>
    %c21 = arith.constant 21 : index
    %c0_95 = arith.constant 0 : index
    %244 = vector.load %arg1[%c21, %c0_95] : memref<22x640xf32, #tpu.memory_space<vmem>>, vector<1x128xf32>
    %cst_96 = arith.constant dense<0.000000e+00> : vector<128x128xf32>
    %245 = tpu.matmul %240, %243, %cst_96 {dimension_numbers = #tpu.dot_dimension_numbers<[1], [0], [0], [1], [0, 0, 1, 1], [], []>} : vector<128x128xbf16>, vector<128x128xbf16>, vector<128x128xf32> -> vector<128x128xf32>
    %246 = vector.broadcast %244 : vector<1x128xf32> to vector<128x128xf32>
    %247 = arith.addf %245, %246 : vector<128x128xf32>
    %248 = tpu.iota {dimensions = array<i32: 1>} : vector<128x128xi32>
    %c10_i32 = arith.constant 10 : i32
    %249 = vector.broadcast %c10_i32 : i32 to vector<128x128xi32>
    %250 = arith.cmpi slt, %248, %249 : vector<128x128xi32>
    %cst_97 = arith.constant -1.000000e+30 : f32
    %251 = vector.broadcast %cst_97 : f32 to vector<128x128xf32>
    %252 = arith.select %250, %247, %251 : vector<128x128xi1>, vector<128x128xf32>
    %cst_98 = arith.constant dense<0xFF800000> : vector<128xf32>
    %253 = vector.multi_reduction <maximumf>, %252, %cst_98 [1] : vector<128x128xf32> to vector<128xf32>
    %254 = vector.shape_cast %253 : vector<128xf32> to vector<128x1xf32>
    %255 = vector.broadcast %254 : vector<128x1xf32> to vector<128x128xf32>
    %256 = arith.subf %252, %255 : vector<128x128xf32>
    %257 = math.exp %256 : vector<128x128xf32>
    %cst_99 = arith.constant dense<0.000000e+00> : vector<128xf32>
    %258 = vector.multi_reduction <add>, %257, %cst_99 [1] : vector<128x128xf32> to vector<128xf32>
    %259 = vector.shape_cast %258 : vector<128xf32> to vector<128x1xf32>
    %260 = vector.broadcast %259 : vector<128x1xf32> to vector<128x128xf32>
    %261 = arith.divf %257, %260 : vector<128x128xf32>
    %c0_100 = arith.constant 0 : index
    %c0_101 = arith.constant 0 : index
    %262 = vector.load %arg10[%c0_100, %c0_101] : memref<128x128xf32, #tpu.memory_space<vmem>>, vector<128x128xf32>
    tpu.vector_store %arg10[%c0_100, %c0_101], %261 {strides = array<i32>} : memref<128x128xf32, #tpu.memory_space<vmem>>, vector<128x128xf32>,
    return
  }
}

</mosaic_0001>

<llo_original>
// kernel: tpu_custom_call.1
$region0: #{tpu_custom_call.1}
  #allocation0 [shape = 'u32[]', space=smem, size = 0x4, offset = 0x4, fixed_abs, tag = 'smem constant byte address 0x4 - core index']
  #allocation1 [shape = 'u32[144,128]{1,0:T(1,128)}', space=vmem, size = 0x12000, scoped, tag = 'internal scratch']
  #allocation2 [shape = 'bf16[128,640]{1,0:T(16,128)(2,1)}', space=vmem, size = 0x28000, scoped, tag = 'scratch operand']
  #allocation3 [shape = 'bf16[640,512]{1,0:T(16,128)(2,1)}', space=vmem, size = 0xa0000, scoped, tag = 'scratch operand']
  #allocation4 [shape = 'bf16[512,512]{1,0:T(16,128)(2,1)}', space=vmem, size = 0x80000, scoped, tag = 'scratch operand']
  #allocation5 [shape = 'bf16[512,384]{1,0:T(16,128)(2,1)}', space=vmem, size = 0x60000, scoped, tag = 'scratch operand']
  #allocation6 [shape = 'bf16[384,256]{1,0:T(16,128)(2,1)}', space=vmem, size = 0x30000, scoped, tag = 'scratch operand']
  #allocation7 [shape = 'bf16[256,128]{1,0:T(16,128)(2,1)}', space=vmem, size = 0x10000, scoped, tag = 'scratch operand']
  #allocation8 [shape = 'bf16[128,128]{1,0:T(16,128)(2,1)}', space=vmem, size = 0x8000, scoped, tag = 'scratch operand']
  #allocation9 [shape = 'bf16[128,128]{1,0:T(16,128)(2,1)}', space=vmem, size = 0x8000, scoped, tag = 'scratch operand']
  #allocation10 [shape = 's32[8]{0}', space=sflag, size = 0x20, scoped, tag = 'scratch operand']
  #allocation17 [shape = 's32[]', space=sflag, size = 0x4, offset = 0, fixed_abs, tag = 'sflag constant byte address 0x0 - dummy sync flag']
  #allocation19 [shape = 's32[]', space=sflag, size = 0x4, offset = 0, fixed_abs, tag = 'sflag constant byte address 0x0 - dummy sync flag']
  #allocation21 [shape = 's32[]', space=sflag, size = 0x4, offset = 0, fixed_abs, tag = 'sflag constant byte address 0x0 - dummy sync flag']
  #allocation23 [shape = 's32[]', space=sflag, size = 0x4, offset = 0, fixed_abs, tag = 'sflag constant byte address 0x0 - dummy sync flag']
  #allocation25 [shape = 's32[]', space=sflag, size = 0x4, offset = 0, fixed_abs, tag = 'sflag constant byte address 0x0 - dummy sync flag']
  #allocation27 [shape = 's32[]', space=sflag, size = 0x4, offset = 0, fixed_abs, tag = 'sflag constant byte address 0x0 - dummy sync flag']
  #allocation28 [shape = 's32[]', space=sflag, size = 0x4, offset = 0, fixed_abs, tag = 'sflag constant byte address 0x0 - dummy sync flag']
  #allocation29 [shape = 'u32[]', space=smem, size = 0x4, offset = 0x44, fixed_abs, tag = 'smem constant byte address 0x44 - assertion arg 0']
  #allocation30 [shape = 'u32[]', space=smem, size = 0x4, offset = 0x48, fixed_abs, tag = 'smem constant byte address 0x48 - assertion arg 1']
  #allocation31 [shape = 's32[]', space=sflag, size = 0x4, offset = 0, fixed_abs, tag = 'sflag constant byte address 0x0 - dummy sync flag']
  #allocation32 [shape = 's32[]', space=sflag, size = 0x4, offset = 0, fixed_abs, tag = 'sflag constant byte address 0x0 - dummy sync flag']
  #allocation33 [shape = 's32[]', space=sflag, size = 0x4, offset = 0, fixed_abs, tag = 'sflag constant byte address 0x0 - dummy sync flag']
  #allocation34 [shape = 's32[]', space=sflag, size = 0x4, offset = 0, fixed_abs, tag = 'sflag constant byte address 0x0 - dummy sync flag']
  %s0 = inlined_call_operand.hbm [shape: bf16[128,128], index: 0, kind: input, shape index: {}]
  %s1 = inlined_call_operand.hbm [shape: f32[22,640], index: 1, kind: input, shape index: {}]
  %s2 = inlined_call_operand.hbm [shape: bf16[128,640], index: 2, kind: input, shape index: {}]
  %s3 = inlined_call_operand.hbm [shape: bf16[640,512], index: 3, kind: input, shape index: {}]
  %s4 = inlined_call_operand.hbm [shape: bf16[512,512], index: 4, kind: input, shape index: {}]
  %s5 = inlined_call_operand.hbm [shape: bf16[512,384], index: 5, kind: input, shape index: {}]
  %s6 = inlined_call_operand.hbm [shape: bf16[384,256], index: 6, kind: input, shape index: {}]
  %s7 = inlined_call_operand.hbm [shape: bf16[256,128], index: 7, kind: input, shape index: {}]
  %s8 = inlined_call_operand.hbm [shape: bf16[128,128], index: 8, kind: input, shape index: {}]
  %s9 = inlined_call_operand.hbm [shape: bf16[128,128], index: 9, kind: input, shape index: {}]
  %s10 = inlined_call_operand.hbm [shape: f32[128,128], index: 10, kind: output, shape index: {}]
  %s11 = sld [smem:[#allocation0]]
  $region38: #{tpu_custom_call.1} parent=0
    _
  %s13 = ssub.s32 1, %s11
  %s14 = scalar_select 0, %s13, %s11
  $region1: #{tpu_custom_call.1} parent=0
    #allocation11 [shape = 'u8[32768]{0}', space=vmem, size = 0x8000, scoped, tag = 'input window, operand 0, single buffered']
    #allocation12 [shape = 's32[1]{0}', space=sflag, size = 0x4, scoped, tag = 'scoped memory for tpu_custom_call.1']
    #allocation13 [shape = 's32[1]{0}', space=sflag, size = 0x4, scoped, tag = 'scoped memory for tpu_custom_call.1']
    #allocation14 [shape = 'u8[61440]{0}', space=vmem, size = 0xf000, scoped, tag = 'input window, operand 1, single buffered']
    #allocation15 [shape = 's32[1]{0}', space=sflag, size = 0x4, scoped, tag = 'scoped memory for tpu_custom_call.1']
    #allocation16 [shape = 'u8[65536]{0}', space=vmem, size = 0x10000, scoped, tag = 'output window, operand 0, single buffered']
    #allocation18 [shape = 'u32[9]{0}', space=smem, size = 0x24, scoped, tag = 'DMA stride descriptor']
    #allocation20 [shape = 'u32[9]{0}', space=smem, size = 0x24, scoped, tag = 'DMA stride descriptor']
    #allocation22 [shape = 'u32[9]{0}', space=smem, size = 0x24, scoped, tag = 'DMA stride descriptor']
    #allocation24 [shape = 'u32[9]{0}', space=smem, size = 0x24, scoped, tag = 'DMA stride descriptor']
    #allocation26 [shape = 'u32[9]{0}', space=smem, size = 0x24, scoped, tag = 'DMA stride descriptor']
    %15 = vsyncpa [#allocation12], 0
    %16 = vsyncpa [#allocation15], 0
    %17 = vsyncpa [#allocation13], 0
    // Predicated region
    $region2: #{tpu_custom_call.1} parent=1 // pred_check
      _
    $region3: #{tpu_custom_call.1} parent=1 // pred_check_branch
      %19 = sbr.rel (0) target = $region5
    $region4: #{tpu_custom_call.1} parent=1 // pred_region
      %s21 = ssub.s32 1024, 1024
      %22 = vsyncadd [#allocation12], %s21
      %s23 = sshll.u32 [#allocation11], 4
      %s24 = int_to_ptr.vmem [resolvable:$true] %s23
      %29 = dma.hbm_to_vmem [thread:$0]  %s0, 1024, %s24, [#allocation12], 64, 64, 4
    $region5: #{tpu_custom_call.1} parent=1 // pred_fallthru
      _
    // Predicated region
    $region6: #{tpu_custom_call.1} parent=1 // pred_check
      _
    $region7: #{tpu_custom_call.1} parent=1 // pred_check_branch
      %31 = sbr.rel (0) target = $region9
    $region8: #{tpu_custom_call.1} parent=1 // pred_region
      %s33 = ssub.s32 1920, 1920
      %34 = vsyncadd [#allocation15], %s33
      %s35 = sshll.u32 [#allocation14], 4
      %s36 = int_to_ptr.vmem [resolvable:$true] %s35
      %41 = dma.hbm_to_vmem [thread:$0]  %s1, 1920, %s36, [#allocation15], 640, 640, 40
    $region9: #{tpu_custom_call.1} parent=1 // pred_fallthru
      _
    // Predicated region
    $region10: #{tpu_custom_call.1} parent=1 // pred_check
      _
    $region11: #{tpu_custom_call.1} parent=1 // pred_check_branch
      %43 = sbr.rel (0) target = $region13
    $region12: #{tpu_custom_call.1} parent=1 // pred_region
      %44 = dma.done [#allocation12], 1024
    $region13: #{tpu_custom_call.1} parent=1 // pred_fallthru
      _
    // Predicated region
    $region14: #{tpu_custom_call.1} parent=1 // pred_check
      _
    $region15: #{tpu_custom_call.1} parent=1 // pred_check_branch
      %46 = sbr.rel (0) target = $region17
    $region16: #{tpu_custom_call.1} parent=1 // pred_region
      %47 = dma.done [#allocation15], 1920
    $region17: #{tpu_custom_call.1} parent=1 // pred_fallthru
      _
    %s50 = sshll.u32 1, 14
    %s51 = sxor.u32 4294967295, %s50
    %s53 = sld [smem:[#allocation0]]
    %s54 = sadd.s32 2, %s53
    %s56 = sshll.u32 7, 26
    %s57 = sxor.u32 4294967295, %s56
    %s58 = sand.u32 0, %s57
    %s59 = sshll.u32 %s54, 26
    %s60 = sor.u32 %s58, %s59
    %s61 = sshll.u32 [#allocation2], 4
    %s62 = int_to_ptr.vmem [resolvable:$true] %s61
    %65 = sst [smem:[#allocation18]] 640
    %s66 = scalar_lea.smem [#allocation18], 1
    %67 = sst [smem:[%s66]] 640
    %s68 = scalar_lea.smem [#allocation18], 2
    %69 = sst [smem:[%s68]] 5
    %s70 = scalar_lea.smem [#allocation18], 3
    %71 = sst [smem:[%s70]] 64
    %s72 = scalar_lea.smem [#allocation18], 4
    %73 = sst [smem:[%s72]] 128
    %s74 = scalar_lea.smem [#allocation18], 5
    %75 = sst [smem:[%s74]] 2
    %s76 = scalar_lea.smem [#allocation18], 6
    %77 = sst [smem:[%s76]] 320
    %s78 = scalar_lea.smem [#allocation18], 7
    %79 = sst [smem:[%s78]] 64
    %s80 = scalar_lea.smem [#allocation18], 8
    %81 = sst [smem:[%s80]] 4
    %83 = dma.general %s2, 5120, %s62, [#allocation10], [#allocation17], [#allocation18], %s60, 0
    %s84 = scalar_lea.sflag [#allocation10], 1
    %s86 = sshll.u32 1, 14
    %s87 = sxor.u32 4294967295, %s86
    %s89 = sadd.s32 2, %s53
    %s91 = sshll.u32 7, 26
    %s92 = sxor.u32 4294967295, %s91
    %s93 = sand.u32 0, %s92
    %s94 = sshll.u32 %s89, 26
    %s95 = sor.u32 %s93, %s94
    %s96 = sshll.u32 [#allocation3], 4
    %s97 = int_to_ptr.vmem [resolvable:$true] %s96
    %100 = sst [smem:[#allocation20]] 512
    %s101 = scalar_lea.smem [#allocation20], 1
    %102 = sst [smem:[%s101]] 512
    %s103 = scalar_lea.smem [#allocation20], 2
    %104 = sst [smem:[%s103]] 4
    %s105 = scalar_lea.smem [#allocation20], 3
    %106 = sst [smem:[%s105]] 64
    %s107 = scalar_lea.smem [#allocation20], 4
    %108 = sst [smem:[%s107]] 128
    %s109 = scalar_lea.smem [#allocation20], 5
    %110 = sst [smem:[%s109]] 2
    %s111 = scalar_lea.smem [#allocation20], 6
    %112 = sst [smem:[%s111]] 256
    %s113 = scalar_lea.smem [#allocation20], 7
    %114 = sst [smem:[%s113]] 64
    %s115 = scalar_lea.smem [#allocation20], 8
    %116 = sst [smem:[%s115]] 4
    %118 = dma.general %s3, 20480, %s97, %s84, [#allocation19], [#allocation20], %s95, 0
    %s119 = scalar_lea.sflag [#allocation10], 2
    %s121 = sshll.u32 1, 14
    %s122 = sxor.u32 4294967295, %s121
    %s124 = sadd.s32 2, %s53
    %s126 = sshll.u32 7, 26
    %s127 = sxor.u32 4294967295, %s126
    %s128 = sand.u32 0, %s127
    %s129 = sshll.u32 %s124, 26
    %s130 = sor.u32 %s128, %s129
    %s131 = sshll.u32 [#allocation4], 4
    %s132 = int_to_ptr.vmem [resolvable:$true] %s131
    %135 = sst [smem:[#allocation22]] 512
    %s136 = scalar_lea.smem [#allocation22], 1
    %137 = sst [smem:[%s136]] 512
    %s138 = scalar_lea.smem [#allocation22], 2
    %139 = sst [smem:[%s138]] 4
    %s140 = scalar_lea.smem [#allocation22], 3
    %141 = sst [smem:[%s140]] 64
    %s142 = scalar_lea.smem [#allocation22], 4
    %143 = sst [smem:[%s142]] 128
    %s144 = scalar_lea.smem [#allocation22], 5
    %145 = sst [smem:[%s144]] 2
    %s146 = scalar_lea.smem [#allocation22], 6
    %147 = sst [smem:[%s146]] 256
    %s148 = scalar_lea.smem [#allocation22], 7
    %149 = sst [smem:[%s148]] 64
    %s150 = scalar_lea.smem [#allocation22], 8
    %151 = sst [smem:[%s150]] 4
    %153 = dma.general %s4, 16384, %s132, %s119, [#allocation21], [#allocation22], %s130, 0
    %s154 = scalar_lea.sflag [#allocation10], 3
    %s156 = sshll.u32 1, 14
    %s157 = sxor.u32 4294967295, %s156
    %s159 = sadd.s32 2, %s53
    %s161 = sshll.u32 7, 26
    %s162 = sxor.u32 4294967295, %s161
    %s163 = sand.u32 0, %s162
    %s164 = sshll.u32 %s159, 26
    %s165 = sor.u32 %s163, %s164
    %s166 = sshll.u32 [#allocation5], 4
    %s167 = int_to_ptr.vmem [resolvable:$true] %s166
    %170 = sst [smem:[#allocation24]] 384
    %s171 = scalar_lea.smem [#allocation24], 1
    %172 = sst [smem:[%s171]] 384
    %s173 = scalar_lea.smem [#allocation24], 2
    %174 = sst [smem:[%s173]] 3
    %s175 = scalar_lea.smem [#allocation24], 3
    %176 = sst [smem:[%s175]] 64
    %s177 = scalar_lea.smem [#allocation24], 4
    %178 = sst [smem:[%s177]] 128
    %s179 = scalar_lea.smem [#allocation24], 5
    %180 = sst [smem:[%s179]] 2
    %s181 = scalar_lea.smem [#allocation24], 6
    %182 = sst [smem:[%s181]] 192
    %s183 = scalar_lea.smem [#allocation24], 7
    %184 = sst [smem:[%s183]] 64
    %s185 = scalar_lea.smem [#allocation24], 8
    %186 = sst [smem:[%s185]] 4
    %188 = dma.general %s5, 12288, %s167, %s154, [#allocation23], [#allocation24], %s165, 0
    %s189 = scalar_lea.sflag [#allocation10], 4
    %s191 = sshll.u32 1, 14
    %s192 = sxor.u32 4294967295, %s191
    %s194 = sadd.s32 2, %s53
    %s196 = sshll.u32 7, 26
    %s197 = sxor.u32 4294967295, %s196
    %s198 = sand.u32 0, %s197
    %s199 = sshll.u32 %s194, 26
    %s200 = sor.u32 %s198, %s199
    %s201 = sshll.u32 [#allocation6], 4
    %s202 = int_to_ptr.vmem [resolvable:$true] %s201
    %205 = sst [smem:[#allocation26]] 256
    %s206 = scalar_lea.smem [#allocation26], 1
    %207 = sst [smem:[%s206]] 256
    %s208 = scalar_lea.smem [#allocation26], 2
    %209 = sst [smem:[%s208]] 2
    %s210 = scalar_lea.smem [#allocation26], 3
    %211 = sst [smem:[%s210]] 64
    %s212 = scalar_lea.smem [#allocation26], 4
    %213 = sst [smem:[%s212]] 128
    %s214 = scalar_lea.smem [#allocation26], 5
    %215 = sst [smem:[%s214]] 2
    %s216 = scalar_lea.smem [#allocation26], 6
    %217 = sst [smem:[%s216]] 128
    %s218 = scalar_lea.smem [#allocation26], 7
    %219 = sst [smem:[%s218]] 64
    %s220 = scalar_lea.smem [#allocation26], 8
    %221 = sst [smem:[%s220]] 4
    %223 = dma.general %s6, 6144, %s202, %s189, [#allocation25], [#allocation26], %s200, 0
    %s224 = scalar_lea.sflag [#allocation10], 5
    // Predicated region
    $region18: #{tpu_custom_call.1} parent=1 // pred_check
      _
    $region19: #{tpu_custom_call.1} parent=1 // pred_check_branch
      %226 = sbr.rel target = $region21
    $region20: #{tpu_custom_call.1} parent=1 // pred_region
      %227 = sst [smem:[#allocation29]] [#allocation28]
      %228 = sst [smem:[#allocation30]] [#allocation27]
    $region21: #{tpu_custom_call.1} parent=1 // pred_fallthru
      _
    %230 = shalt.err (0)
    %s232 = sshll.u32 [#allocation7], 4
    %s233 = int_to_ptr.vmem [resolvable:$true] %s232
    %235 = dma.hbm_to_vmem [thread:$0]  %s7, 2048, %s233, %s224
    %s236 = scalar_lea.sflag [#allocation10], 6
    // Predicated region
    $region22: #{tpu_custom_call.1} parent=1 // pred_check
      _
    $region23: #{tpu_custom_call.1} parent=1 // pred_check_branch
      %238 = sbr.rel target = $region25
    $region24: #{tpu_custom_call.1} parent=1 // pred_region
      %239 = sst [smem:[#allocation29]] [#allocation32]
      %240 = sst [smem:[#allocation30]] [#allocation31]
    $region25: #{tpu_custom_call.1} parent=1 // pred_fallthru
      _
    %242 = shalt.err (0)
    %s244 = sshll.u32 [#allocation8], 4
    %s245 = int_to_ptr.vmem [resolvable:$true] %s244
    %247 = dma.hbm_to_vmem [thread:$0]  %s8, 1024, %s245, %s236
    %s248 = scalar_lea.sflag [#allocation10], 7
    // Predicated region
    $region26: #{tpu_custom_call.1} parent=1 // pred_check
      _
    $region27: #{tpu_custom_call.1} parent=1 // pred_check_branch
      %250 = sbr.rel target = $region29
    $region28: #{tpu_custom_call.1} parent=1 // pred_region
      %251 = sst [smem:[#allocation29]] [#allocation34]
      %252 = sst [smem:[#allocation30]] [#allocation33]
    $region29: #{tpu_custom_call.1} parent=1 // pred_fallthru
      _
    %254 = shalt.err (0)
    %s256 = sshll.u32 [#allocation9], 4
    %s257 = int_to_ptr.vmem [resolvable:$true] %s256
    %259 = dma.hbm_to_vmem [thread:$0]  %s9, 1024, %s257, %s248
    %v260 = vld [vmem:[#allocation11] sm:$0xf]
    %v261 = vld [vmem:[#allocation11 + $0x4] sm:$0xf]
    %v262 = vld [vmem:[#allocation11 + $0x8] sm:$0xf]
    %v263 = vld [vmem:[#allocation11 + $0xc] sm:$0xf]
    %v264 = vld [vmem:[#allocation11 + $0x10] sm:$0xf]
    %v265 = vld [vmem:[#allocation11 + $0x14] sm:$0xf]
    %v266 = vld [vmem:[#allocation11 + $0x18] sm:$0xf]
    %v267 = vld [vmem:[#allocation11 + $0x1c] sm:$0xf]
    %v268 = vld [vmem:[#allocation11 + $0x20] sm:$0xf]
    %v269 = vld [vmem:[#allocation11 + $0x24] sm:$0xf]
    %v270 = vld [vmem:[#allocation11 + $0x28] sm:$0xf]
    %v271 = vld [vmem:[#allocation11 + $0x2c] sm:$0xf]
    %v272 = vld [vmem:[#allocation11 + $0x30] sm:$0xf]
    %v273 = vld [vmem:[#allocation11 + $0x34] sm:$0xf]
    %v274 = vld [vmem:[#allocation11 + $0x38] sm:$0xf]
    %v275 = vld [vmem:[#allocation11 + $0x3c] sm:$0xf]
    %v276 = vld [vmem:[#allocation14] ss:$8 sm:$0xf]
    %v277 = vld [vmem:[#allocation14] ss:$8 sm:$0x10]
    %v278 = vor.u32 %v276, %v277
    %s279 = scalar_lea.vmem [#allocation14], 1
    %v280 = vld [vmem:[%s279] ss:$8 sm:$0xf]
    %v281 = vld [vmem:[%s279] ss:$8 sm:$0x10]
    %v282 = vor.u32 %v280, %v281
    %s283 = scalar_lea.vmem [#allocation14], 2
    %v284 = vld [vmem:[%s283] ss:$8 sm:$0xf]
    %v285 = vld [vmem:[%s283] ss:$8 sm:$0x10]
    %v286 = vor.u32 %v284, %v285
    %s287 = smul.u32 4, 16
    %s288 = smul.u32 %s287, 5
    %s289 = sshll.u32 %s288, 4
    %290 = dma.done [#allocation10], %s289
    %v291 = vld [vmem:[#allocation2] sm:$0xff]
    %v292 = vld [vmem:[#allocation2 + $0x8] sm:$0xff]
    %v293 = vld [vmem:[#allocation2 + $0x10] sm:$0xff]
    %v294 = vld [vmem:[#allocation2 + $0x18] sm:$0xff]
    %v295 = vld [vmem:[#allocation2 + $0x20] sm:$0xff]
    %v296 = vld [vmem:[#allocation2 + $0x28] sm:$0xff]
    %v297 = vld [vmem:[#allocation2 + $0x30] sm:$0xff]
    %v298 = vld [vmem:[#allocation2 + $0x38] sm:$0xff]
    %v299 = vld [vmem:[#allocation2 + $0x40] sm:$0xff]
    %v300 = vld [vmem:[#allocation2 + $0x48] sm:$0xff]
    %v301 = vld [vmem:[#allocation2 + $0x50] sm:$0xff]
    %v302 = vld [vmem:[#allocation2 + $0x58] sm:$0xff]
    %v303 = vld [vmem:[#allocation2 + $0x60] sm:$0xff]
    %v304 = vld [vmem:[#allocation2 + $0x68] sm:$0xff]
    %v305 = vld [vmem:[#allocation2 + $0x70] sm:$0xff]
    %v306 = vld [vmem:[#allocation2 + $0x78] sm:$0xff]
    %v307 = vld [vmem:[#allocation2 + $0x80] sm:$0xff]
    %v308 = vld [vmem:[#allocation2 + $0x88] sm:$0xff]
    %v309 = vld [vmem:[#allocation2 + $0x90] sm:$0xff]
    %v310 = vld [vmem:[#allocation2 + $0x98] sm:$0xff]
    %v311 = vld [vmem:[#allocation2 + $0xa0] sm:$0xff]
    %v312 = vld [vmem:[#allocation2 + $0xa8] sm:$0xff]
    %v313 = vld [vmem:[#allocation2 + $0xb0] sm:$0xff]
    %v314 = vld [vmem:[#allocation2 + $0xb8] sm:$0xff]
    %v315 = vld [vmem:[#allocation2 + $0xc0] sm:$0xff]
    %v316 = vld [vmem:[#allocation2 + $0xc8] sm:$0xff]
    %v317 = vld [vmem:[#allocation2 + $0xd0] sm:$0xff]
    %v318 = vld [vmem:[#allocation2 + $0xd8] sm:$0xff]
    %v319 = vld [vmem:[#allocation2 + $0xe0] sm:$0xff]
    %v320 = vld [vmem:[#allocation2 + $0xe8] sm:$0xff]
    %v321 = vld [vmem:[#allocation2 + $0xf0] sm:$0xff]
    %v322 = vld [vmem:[#allocation2 + $0xf8] sm:$0xff]
    %v323 = vld [vmem:[#allocation2 + $0x100] sm:$0xff]
    %v324 = vld [vmem:[#allocation2 + $0x108] sm:$0xff]
    %v325 = vld [vmem:[#allocation2 + $0x110] sm:$0xff]
    %v326 = vld [vmem:[#allocation2 + $0x118] sm:$0xff]
    %v327 = vld [vmem:[#allocation2 + $0x120] sm:$0xff]
    %v328 = vld [vmem:[#allocation2 + $0x128] sm:$0xff]
    %v329 = vld [vmem:[#allocation2 + $0x130] sm:$0xff]
    %v330 = vld [vmem:[#allocation2 + $0x138] sm:$0xff]
    %v332 = vlaneseq
    %v333 = vshrl.u32 %v332, 7
    %v334 = vsub.s32 0, %v333
    %v335 = vrot.slane %v278, %v334
    %v336 = vlaneseq
    %v337 = vshrl.u32 %v336, 7
    %v338 = vsub.s32 1, %v337
    %v339 = vrot.slane %v278, %v338
    %v340 = vlaneseq
    %v341 = vshrl.u32 %v340, 7
    %v342 = vsub.s32 2, %v341
    %v343 = vrot.slane %v278, %v342
    %v344 = vlaneseq
    %v345 = vshrl.u32 %v344, 7
    %v346 = vsub.s32 3, %v345
    %v347 = vrot.slane %v278, %v346
    %v348 = vlaneseq
    %v349 = vshrl.u32 %v348, 7
    %v350 = vsub.s32 4, %v349
    %v351 = vrot.slane %v278, %v350
    %v373 = vunpack.c.l.b16 %v260
    %v374 = vunpack.c.l.b16 %v261
    %v375 = vunpack.c.l.b16 %v262
    %v376 = vunpack.c.l.b16 %v263
    %v377 = vunpack.c.l.b16 %v264
    %v378 = vunpack.c.l.b16 %v265
    %v379 = vunpack.c.l.b16 %v266
    %v380 = vunpack.c.l.b16 %v267
    %v381 = vunpack.c.l.b16 %v268
    %v382 = vunpack.c.l.b16 %v269
    %v383 = vunpack.c.l.b16 %v270
    %v384 = vunpack.c.l.b16 %v271
    %v385 = vunpack.c.l.b16 %v272
    %v386 = vunpack.c.l.b16 %v273
    %v387 = vunpack.c.l.b16 %v274
    %v388 = vunpack.c.l.b16 %v275
    %v389 = vpack.c.b16 %v374, %v373
    %v390 = vpack.c.b16 %v376, %v375
    %v391 = vpack.c.b16 %v378, %v377
    %v392 = vpack.c.b16 %v380, %v379
    %v393 = vpack.c.b16 %v382, %v381
    %v394 = vpack.c.b16 %v384, %v383
    %v395 = vpack.c.b16 %v386, %v385
    %v396 = vpack.c.b16 %v388, %v387
    %405 = vmatprep.subr.bf16.mxu0 %v292
    %406 = vmatpush1.bf16.msra.mxu0 %v291
    %407 = vmatprep.subr.bf16.mxu0 %v297
    %408 = vmatpush1.bf16.msra.mxu0 %v296
    %409 = vmatprep.subr.bf16.mxu0 %v302
    %410 = vmatpush1.bf16.msra.mxu0 %v301
    %411 = vmatprep.subr.bf16.mxu0 %v307
    %412 = vmatpush1.bf16.msra.mxu0 %v306
    %413 = vmatprep.subr.bf16.mxu0 %v312
    %414 = vmatpush1.bf16.msra.mxu0 %v311
    %415 = vmatprep.subr.bf16.mxu0 %v317
    %416 = vmatpush1.bf16.msra.mxu0 %v316
    %417 = vmatprep.subr.bf16.mxu0 %v322
    %418 = vmatpush1.bf16.msra.mxu0 %v321
    %419 = vmatprep.subr.bf16.mxu0 %v327
    %420 = vmatpush1.bf16.msra.mxu0 %v326
    %421 = vmatprep.subr.bf16.mxu0 0
    %422 = vmatpush1.bf16.msra.mxu0 0
    %423 = vmatprep.subr.bf16.mxu0 0
    %424 = vmatpush1.bf16.msra.mxu0 0
    %425 = vmatprep.subr.bf16.mxu0 0
    %426 = vmatpush1.bf16.msra.mxu0 0
    %427 = vmatprep.subr.bf16.mxu0 0
    %428 = vmatpush1.bf16.msra.mxu0 0
    %429 = vmatprep.subr.bf16.mxu0 0
    %430 = vmatpush1.bf16.msra.mxu0 0
    %431 = vmatprep.subr.bf16.mxu0 0
    %432 = vmatpush1.bf16.msra.mxu0 0
    %433 = vmatprep.subr.bf16.mxu0 0
    %434 = vmatpush1.bf16.msra.mxu0 0
    %435 = vmatprep.subr.bf16.mxu0 0
    %436 = vmatpush1.bf16.msra.mxu0 0
    %437 = vmatprep.mubr.bf16.mxu0 0
    %438 = vmatmul.mubr.bf16.gmra.mrb[0].mxu0 %v389
    %v439 = vpop.f32.mrb[0].mxu0
    %v440 = vadd.f32 %v335, %v439
    %v441 = vpop.f32.mrb[0].mxu0
    %v442 = vadd.f32 %v339, %v441
    %v443 = vpop.f32.mrb[0].mxu0
    %v444 = vadd.f32 %v335, %v443
    %v445 = vpop.f32.mrb[0].mxu0
    %v446 = vadd.f32 %v339, %v445
    %447 = vmatprep.mubr.bf16.mxu0 0
    %448 = vmatmul.mubr.bf16.gmra.mrb[0].mxu0 %v390
    %v449 = vpop.f32.mrb[0].mxu0
    %v450 = vadd.f32 %v335, %v449
    %v451 = vpop.f32.mrb[0].mxu0
    %v452 = vadd.f32 %v339, %v451
    %v453 = vpop.f32.mrb[0].mxu0
    %v454 = vadd.f32 %v335, %v453
    %v455 = vpop.f32.mrb[0].mxu0
    %v456 = vadd.f32 %v339, %v455
    %457 = vmatprep.mubr.bf16.mxu0 0
    %458 = vmatmul.mubr.bf16.gmra.mrb[0].mxu0 %v391
    %v459 = vpop.f32.mrb[0].mxu0
    %v460 = vadd.f32 %v335, %v459
    %v461 = vpop.f32.mrb[0].mxu0
    %v462 = vadd.f32 %v339, %v461
    %v463 = vpop.f32.mrb[0].mxu0
    %v464 = vadd.f32 %v335, %v463
    %v465 = vpop.f32.mrb[0].mxu0
    %v466 = vadd.f32 %v339, %v465
    %467 = vmatprep.mubr.bf16.mxu0 0
    %468 = vmatmul.mubr.bf16.gmra.mrb[0].mxu0 %v392
    %v469 = vpop.f32.mrb[0].mxu0
    %v470 = vadd.f32 %v335, %v469
    %v471 = vpop.f32.mrb[0].mxu0
    %v472 = vadd.f32 %v339, %v471
    %v473 = vpop.f32.mrb[0].mxu0
    %v474 = vadd.f32 %v335, %v473
    %v475 = vpop.f32.mrb[0].mxu0
    %v476 = vadd.f32 %v339, %v475
    %477 = vmatprep.mubr.bf16.mxu0 0
    %478 = vmatmul.mubr.bf16.gmra.mrb[0].mxu0 %v393
    %v479 = vpop.f32.mrb[0].mxu0
    %v480 = vadd.f32 %v335, %v479
    %v481 = vpop.f32.mrb[0].mxu0
    %v482 = vadd.f32 %v339, %v481
    %v483 = vpop.f32.mrb[0].mxu0
    %v484 = vadd.f32 %v335, %v483
    %v485 = vpop.f32.mrb[0].mxu0
    %v486 = vadd.f32 %v339, %v485
    %487 = vmatprep.mubr.bf16.mxu0 0
    %488 = vmatmul.mubr.bf16.gmra.mrb[0].mxu0 %v394
    %v489 = vpop.f32.mrb[0].mxu0
    %v490 = vadd.f32 %v335, %v489
    %v491 = vpop.f32.mrb[0].mxu0
    %v492 = vadd.f32 %v339, %v491
    %v493 = vpop.f32.mrb[0].mxu0
    %v494 = vadd.f32 %v335, %v493
    %v495 = vpop.f32.mrb[0].mxu0
    %v496 = vadd.f32 %v339, %v495
    %497 = vmatprep.mubr.bf16.mxu0 0
    %498 = vmatmul.mubr.bf16.gmra.mrb[0].mxu0 %v395
    %v499 = vpop.f32.mrb[0].mxu0
    %v500 = vadd.f32 %v335, %v499
    %v501 = vpop.f32.mrb[0].mxu0
    %v502 = vadd.f32 %v339, %v501
    %v503 = vpop.f32.mrb[0].mxu0
    %v504 = vadd.f32 %v335, %v503
    %v505 = vpop.f32.mrb[0].mxu0
    %v506 = vadd.f32 %v339, %v505
    %507 = vmatprep.mubr.bf16.mxu0 0
    %508 = vmatmul.mubr.bf16.gmra.mrb[0].mxu0 %v396
    %v509 = vpop.f32.mrb[0].mxu0
    %v510 = vadd.f32 %v335, %v509
    %v511 = vpop.f32.mrb[0].mxu0
    %v512 = vadd.f32 %v339, %v511
    %v513 = vpop.f32.mrb[0].mxu0
    %v514 = vadd.f32 %v335, %v513
    %v515 = vpop.f32.mrb[0].mxu0
    %v516 = vadd.f32 %v339, %v515
    %517 = vdwg.mxu0
    %518 = vmatprep.subr.bf16.mxu0 %v294
    %519 = vmatpush1.bf16.msra.mxu0 %v293
    %520 = vmatprep.subr.bf16.mxu0 %v299
    %521 = vmatpush1.bf16.msra.mxu0 %v298
    %522 = vmatprep.subr.bf16.mxu0 %v304
    %523 = vmatpush1.bf16.msra.mxu0 %v303
    %524 = vmatprep.subr.bf16.mxu0 %v309
    %525 = vmatpush1.bf16.msra.mxu0 %v308
    %526 = vmatprep.subr.bf16.mxu0 %v314
    %527 = vmatpush1.bf16.msra.mxu0 %v313
    %528 = vmatprep.subr.bf16.mxu0 %v319
    %529 = vmatpush1.bf16.msra.mxu0 %v318
    %530 = vmatprep.subr.bf16.mxu0 %v324
    %531 = vmatpush1.bf16.msra.mxu0 %v323
    %532 = vmatprep.subr.bf16.mxu0 %v329
    %533 = vmatpush1.bf16.msra.mxu0 %v328
    %534 = vmatprep.subr.bf16.mxu0 0
    %535 = vmatpush1.bf16.msra.mxu0 0
    %536 = vmatprep.subr.bf16.mxu0 0
    %537 = vmatpush1.bf16.msra.mxu0 0
    %538 = vmatprep.subr.bf16.mxu0 0
    %539 = vmatpush1.bf16.msra.mxu0 0
    %540 = vmatprep.subr.bf16.mxu0 0
    %541 = vmatpush1.bf16.msra.mxu0 0
    %542 = vmatprep.subr.bf16.mxu0 0
    %543 = vmatpush1.bf16.msra.mxu0 0
    %544 = vmatprep.subr.bf16.mxu0 0
    %545 = vmatpush1.bf16.msra.mxu0 0
    %546 = vmatprep.subr.bf16.mxu0 0
    %547 = vmatpush1.bf16.msra.mxu0 0
    %548 = vmatprep.subr.bf16.mxu0 0
    %549 = vmatpush1.bf16.msra.mxu0 0
    %550 = vmatprep.mubr.bf16.mxu0 0
    %551 = vmatmul.mubr.bf16.gmra.mrb[0].mxu0 %v389
    %v552 = vpop.f32.mrb[0].mxu0
    %v553 = vadd.f32 %v343, %v552
    %v554 = vpop.f32.mrb[0].mxu0
    %v555 = vadd.f32 %v347, %v554
    %v556 = vpop.f32.mrb[0].mxu0
    %v557 = vadd.f32 %v343, %v556
    %v558 = vpop.f32.mrb[0].mxu0
    %v559 = vadd.f32 %v347, %v558
    %560 = vmatprep.mubr.bf16.mxu0 0
    %561 = vmatmul.mubr.bf16.gmra.mrb[0].mxu0 %v390
    %v562 = vpop.f32.mrb[0].mxu0
    %v563 = vadd.f32 %v343, %v562
    %v564 = vpop.f32.mrb[0].mxu0
    %v565 = vadd.f32 %v347, %v564
    %v566 = vpop.f32.mrb[0].mxu0
    %v567 = vadd.f32 %v343, %v566
    %v568 = vpop.f32.mrb[0].mxu0
    %v569 = vadd.f32 %v347, %v568
    %570 = vmatprep.mubr.bf16.mxu0 0
    %571 = vmatmul.mubr.bf16.gmra.mrb[0].mxu0 %v391
    %v572 = vpop.f32.mrb[0].mxu0
    %v573 = vadd.f32 %v343, %v572
    %v574 = vpop.f32.mrb[0].mxu0
    %v575 = vadd.f32 %v347, %v574
    %v576 = vpop.f32.mrb[0].mxu0
    %v577 = vadd.f32 %v343, %v576
    %v578 = vpop.f32.mrb[0].mxu0
    %v579 = vadd.f32 %v347, %v578
    %580 = vmatprep.mubr.bf16.mxu0 0
    %581 = vmatmul.mubr.bf16.gmra.mrb[0].mxu0 %v392
    %v582 = vpop.f32.mrb[0].mxu0
    %v583 = vadd.f32 %v343, %v582
    %v584 = vpop.f32.mrb[0].mxu0
    %v585 = vadd.f32 %v347, %v584
    %v586 = vpop.f32.mrb[0].mxu0
    %v587 = vadd.f32 %v343, %v586
    %v588 = vpop.f32.mrb[0].mxu0
    %v589 = vadd.f32 %v347, %v588
    %590 = vmatprep.mubr.bf16.mxu0 0
    %591 = vmatmul.mubr.bf16.gmra.mrb[0].mxu0 %v393
    %v592 = vpop.f32.mrb[0].mxu0
    %v593 = vadd.f32 %v343, %v592
    %v594 = vpop.f32.mrb[0].mxu0
    %v595 = vadd.f32 %v347, %v594
    %v596 = vpop.f32.mrb[0].mxu0
    %v597 = vadd.f32 %v343, %v596
    %v598 = vpop.f32.mrb[0].mxu0
    %v599 = vadd.f32 %v347, %v598
    %600 = vmatprep.mubr.bf16.mxu0 0
    %601 = vmatmul.mubr.bf16.gmra.mrb[0].mxu0 %v394
    %v602 = vpop.f32.mrb[0].mxu0
    %v603 = vadd.f32 %v343, %v602
    %v604 = vpop.f32.mrb[0].mxu0
    %v605 = vadd.f32 %v347, %v604
    %v606 = vpop.f32.mrb[0].mxu0
    %v607 = vadd.f32 %v343, %v606
    %v608 = vpop.f32.mrb[0].mxu0
    %v609 = vadd.f32 %v347, %v608
    %610 = vmatprep.mubr.bf16.mxu0 0
    %611 = vmatmul.mubr.bf16.gmra.mrb[0].mxu0 %v395
    %v612 = vpop.f32.mrb[0].mxu0
    %v613 = vadd.f32 %v343, %v612
    %v614 = vpop.f32.mrb[0].mxu0
    %v615 = vadd.f32 %v347, %v614
    %v616 = vpop.f32.mrb[0].mxu0
    %v617 = vadd.f32 %v343, %v616
    %v618 = vpop.f32.mrb[0].mxu0
    %v619 = vadd.f32 %v347, %v618
    %620 = vmatprep.mubr.bf16.mxu0 0
    %621 = vmatmul.mubr.bf16.gmra.mrb[0].mxu0 %v396
    %v622 = vpop.f32.mrb[0].mxu0
    %v623 = vadd.f32 %v343, %v622
    %v624 = vpop.f32.mrb[0].mxu0
    %v625 = vadd.f32 %v347, %v624
    %v626 = vpop.f32.mrb[0].mxu0
    %v627 = vadd.f32 %v343, %v626
    %v628 = vpop.f32.mrb[0].mxu0
    %v629 = vadd.f32 %v347, %v628
    %630 = vdwg.mxu0
    %631 = vmatprep.subr.bf16.mxu0 0
    %632 = vmatpush1.bf16.msra.mxu0 %v295
    %633 = vmatprep.subr.bf16.mxu0 0
    %634 = vmatpush1.bf16.msra.mxu0 %v300
    %635 = vmatprep.subr.bf16.mxu0 0
    %636 = vmatpush1.bf16.msra.mxu0 %v305
    %637 = vmatprep.subr.bf16.mxu0 0
    %638 = vmatpush1.bf16.msra.mxu0 %v310
    %639 = vmatprep.subr.bf16.mxu0 0
    %640 = vmatpush1.bf16.msra.mxu0 %v315
    %641 = vmatprep.subr.bf16.mxu0 0
    %642 = vmatpush1.bf16.msra.mxu0 %v320
    %643 = vmatprep.subr.bf16.mxu0 0
    %644 = vmatpush1.bf16.msra.mxu0 %v325
    %645 = vmatprep.subr.bf16.mxu0 0
    %646 = vmatpush1.bf16.msra.mxu0 %v330
    %647 = vmatprep.subr.bf16.mxu0 0
    %648 = vmatpush1.bf16.msra.mxu0 0
    %649 = vmatprep.subr.bf16.mxu0 0
    %650 = vmatpush1.bf16.msra.mxu0 0
    %651 = vmatprep.subr.bf16.mxu0 0
    %652 = vmatpush1.bf16.msra.mxu0 0
    %653 = vmatprep.subr.bf16.mxu0 0
    %654 = vmatpush1.bf16.msra.mxu0 0
    %655 = vmatprep.subr.bf16.mxu0 0
    %656 = vmatpush1.bf16.msra.mxu0 0
    %657 = vmatprep.subr.bf16.mxu0 0
    %658 = vmatpush1.bf16.msra.mxu0 0
    %659 = vmatprep.subr.bf16.mxu0 0
    %660 = vmatpush1.bf16.msra.mxu0 0
    %661 = vmatprep.subr.bf16.mxu0 0
    %662 = vmatpush1.bf16.msra.mxu0 0
    %663 = vmatprep.mubr.bf16.mxu0 0
    %664 = vmatmul.mubr.bf16.gmra.mrb[0].mxu0 %v389
    %v665 = vpop.f32.mrb[0].mxu0
    %v666 = vadd.f32 %v351, %v665
    %v667 = vpop.f32.mrb[0].mxu0
    %v668 = vpop.f32.mrb[0].mxu0
    %v669 = vadd.f32 %v351, %v668
    %v670 = vpop.f32.mrb[0].mxu0
    %671 = vmatprep.mubr.bf16.mxu0 0
    %672 = vmatmul.mubr.bf16.gmra.mrb[0].mxu0 %v390
    %v673 = vpop.f32.mrb[0].mxu0
    %v674 = vadd.f32 %v351, %v673
    %v675 = vpop.f32.mrb[0].mxu0
    %v676 = vpop.f32.mrb[0].mxu0
    %v677 = vadd.f32 %v351, %v676
    %v678 = vpop.f32.mrb[0].mxu0
    %679 = vmatprep.mubr.bf16.mxu0 0
    %680 = vmatmul.mubr.bf16.gmra.mrb[0].mxu0 %v391
    %v681 = vpop.f32.mrb[0].mxu0
    %v682 = vadd.f32 %v351, %v681
    %v683 = vpop.f32.mrb[0].mxu0
    %v684 = vpop.f32.mrb[0].mxu0
    %v685 = vadd.f32 %v351, %v684
    %v686 = vpop.f32.mrb[0].mxu0
    %687 = vmatprep.mubr.bf16.mxu0 0
    %688 = vmatmul.mubr.bf16.gmra.mrb[0].mxu0 %v392
    %v689 = vpop.f32.mrb[0].mxu0
    %v690 = vadd.f32 %v351, %v689
    %v691 = vpop.f32.mrb[0].mxu0
    %v692 = vpop.f32.mrb[0].mxu0
    %v693 = vadd.f32 %v351, %v692
    %v694 = vpop.f32.mrb[0].mxu0
    %695 = vmatprep.mubr.bf16.mxu0 0
    %696 = vmatmul.mubr.bf16.gmra.mrb[0].mxu0 %v393
    %v697 = vpop.f32.mrb[0].mxu0
    %v698 = vadd.f32 %v351, %v697
    %v699 = vpop.f32.mrb[0].mxu0
    %v700 = vpop.f32.mrb[0].mxu0
    %v701 = vadd.f32 %v351, %v700
    %v702 = vpop.f32.mrb[0].mxu0
    %703 = vmatprep.mubr.bf16.mxu0 0
    %704 = vmatmul.mubr.bf16.gmra.mrb[0].mxu0 %v394
    %v705 = vpop.f32.mrb[0].mxu0
    %v706 = vadd.f32 %v351, %v705
    %v707 = vpop.f32.mrb[0].mxu0
    %v708 = vpop.f32.mrb[0].mxu0
    %v709 = vadd.f32 %v351, %v708
    %v710 = vpop.f32.mrb[0].mxu0
    %711 = vmatprep.mubr.bf16.mxu0 0
    %712 = vmatmul.mubr.bf16.gmra.mrb[0].mxu0 %v395
    %v713 = vpop.f32.mrb[0].mxu0
    %v714 = vadd.f32 %v351, %v713
    %v715 = vpop.f32.mrb[0].mxu0
    %v716 = vpop.f32.mrb[0].mxu0
    %v717 = vadd.f32 %v351, %v716
    %v718 = vpop.f32.mrb[0].mxu0
    %719 = vmatprep.mubr.bf16.mxu0 0
    %720 = vmatmul.mubr.bf16.gmra.mrb[0].mxu0 %v396
    %v721 = vpop.f32.mrb[0].mxu0
    %v722 = vadd.f32 %v351, %v721
    %v723 = vpop.f32.mrb[0].mxu0
    %v724 = vpop.f32.mrb[0].mxu0
    %v725 = vadd.f32 %v351, %v724
    %v726 = vpop.f32.mrb[0].mxu0
    %727 = vdwg.mxu0
    %v728 = vmul.f32 %v440, 0.01
    %v729 = vmul.f32 %v442, 0.01
    %v730 = vmul.f32 %v553, 0.01
    %v731 = vmul.f32 %v555, 0.01
    %v732 = vmul.f32 %v666, 0.01
    %v733 = vmul.f32 %v444, 0.01
    %v734 = vmul.f32 %v446, 0.01
    %v735 = vmul.f32 %v557, 0.01
    %v736 = vmul.f32 %v559, 0.01
    %v737 = vmul.f32 %v669, 0.01
    %v738 = vmul.f32 %v450, 0.01
    %v739 = vmul.f32 %v452, 0.01
    %v740 = vmul.f32 %v563, 0.01
    %v741 = vmul.f32 %v565, 0.01
    %v742 = vmul.f32 %v674, 0.01
    %v743 = vmul.f32 %v454, 0.01
    %v744 = vmul.f32 %v456, 0.01
    %v745 = vmul.f32 %v567, 0.01
    %v746 = vmul.f32 %v569, 0.01
    %v747 = vmul.f32 %v677, 0.01
    %v748 = vmul.f32 %v460, 0.01
    %v749 = vmul.f32 %v462, 0.01
    %v750 = vmul.f32 %v573, 0.01
    %v751 = vmul.f32 %v575, 0.01
    %v752 = vmul.f32 %v682, 0.01
    %v753 = vmul.f32 %v464, 0.01
    %v754 = vmul.f32 %v466, 0.01
    %v755 = vmul.f32 %v577, 0.01
    %v756 = vmul.f32 %v579, 0.01
    %v757 = vmul.f32 %v685, 0.01
    %v758 = vmul.f32 %v470, 0.01
    %v759 = vmul.f32 %v472, 0.01
    %v760 = vmul.f32 %v583, 0.01
    %v761 = vmul.f32 %v585, 0.01
    %v762 = vmul.f32 %v690, 0.01
    %v763 = vmul.f32 %v474, 0.01
    %v764 = vmul.f32 %v476, 0.01
    %v765 = vmul.f32 %v587, 0.01
    %v766 = vmul.f32 %v589, 0.01
    %v767 = vmul.f32 %v693, 0.01
    %v768 = vmul.f32 %v480, 0.01
    %v769 = vmul.f32 %v482, 0.01
    %v770 = vmul.f32 %v593, 0.01
    %v771 = vmul.f32 %v595, 0.01
    %v772 = vmul.f32 %v698, 0.01
    %v773 = vmul.f32 %v484, 0.01
    %v774 = vmul.f32 %v486, 0.01
    %v775 = vmul.f32 %v597, 0.01
    %v776 = vmul.f32 %v599, 0.01
    %v777 = vmul.f32 %v701, 0.01
    %v778 = vmul.f32 %v490, 0.01
    %v779 = vmul.f32 %v492, 0.01
    %v780 = vmul.f32 %v603, 0.01
    %v781 = vmul.f32 %v605, 0.01
    %v782 = vmul.f32 %v706, 0.01
    %v783 = vmul.f32 %v494, 0.01
    %v784 = vmul.f32 %v496, 0.01
    %v785 = vmul.f32 %v607, 0.01
    %v786 = vmul.f32 %v609, 0.01
    %v787 = vmul.f32 %v709, 0.01
    %v788 = vmul.f32 %v500, 0.01
    %v789 = vmul.f32 %v502, 0.01
    %v790 = vmul.f32 %v613, 0.01
    %v791 = vmul.f32 %v615, 0.01
    %v792 = vmul.f32 %v714, 0.01
    %v793 = vmul.f32 %v504, 0.01
    %v794 = vmul.f32 %v506, 0.01
    %v795 = vmul.f32 %v617, 0.01
    %v796 = vmul.f32 %v619, 0.01
    %v797 = vmul.f32 %v717, 0.01
    %v798 = vmul.f32 %v510, 0.01
    %v799 = vmul.f32 %v512, 0.01
    %v800 = vmul.f32 %v623, 0.01
    %v801 = vmul.f32 %v625, 0.01
    %v802 = vmul.f32 %v722, 0.01
    %v803 = vmul.f32 %v514, 0.01
    %v804 = vmul.f32 %v516, 0.01
    %v805 = vmul.f32 %v627, 0.01
    %v806 = vmul.f32 %v629, 0.01
    %v807 = vmul.f32 %v725, 0.01
    %v808 = vmax.f32 %v440, %v728
    %v809 = vmax.f32 %v442, %v729
    %v810 = vmax.f32 %v553, %v730
    %v811 = vmax.f32 %v555, %v731
    %v812 = vmax.f32 %v666, %v732
    %v813 = vmax.f32 %v444, %v733
    %v814 = vmax.f32 %v446, %v734
    %v815 = vmax.f32 %v557, %v735
    %v816 = vmax.f32 %v559, %v736
    %v817 = vmax.f32 %v669, %v737
    %v818 = vmax.f32 %v450, %v738
    %v819 = vmax.f32 %v452, %v739
    %v820 = vmax.f32 %v563, %v740
    %v821 = vmax.f32 %v565, %v741
    %v822 = vmax.f32 %v674, %v742
    %v823 = vmax.f32 %v454, %v743
    %v824 = vmax.f32 %v456, %v744
    %v825 = vmax.f32 %v567, %v745
    %v826 = vmax.f32 %v569, %v746
    %v827 = vmax.f32 %v677, %v747
    %v828 = vmax.f32 %v460, %v748
    %v829 = vmax.f32 %v462, %v749
    %v830 = vmax.f32 %v573, %v750
    %v831 = vmax.f32 %v575, %v751
    %v832 = vmax.f32 %v682, %v752
    %v833 = vmax.f32 %v464, %v753
    %v834 = vmax.f32 %v466, %v754
    %v835 = vmax.f32 %v577, %v755
    %v836 = vmax.f32 %v579, %v756
    %v837 = vmax.f32 %v685, %v757
    %v838 = vmax.f32 %v470, %v758
    %v839 = vmax.f32 %v472, %v759
    %v840 = vmax.f32 %v583, %v760
    %v841 = vmax.f32 %v585, %v761
    %v842 = vmax.f32 %v690, %v762
    %v843 = vmax.f32 %v474, %v763
    %v844 = vmax.f32 %v476, %v764
    %v845 = vmax.f32 %v587, %v765
    %v846 = vmax.f32 %v589, %v766
    %v847 = vmax.f32 %v693, %v767
    %v848 = vmax.f32 %v480, %v768
    %v849 = vmax.f32 %v482, %v769
    %v850 = vmax.f32 %v593, %v770
    %v851 = vmax.f32 %v595, %v771
    %v852 = vmax.f32 %v698, %v772
    %v853 = vmax.f32 %v484, %v773
    %v854 = vmax.f32 %v486, %v774
    %v855 = vmax.f32 %v597, %v775
    %v856 = vmax.f32 %v599, %v776
    %v857 = vmax.f32 %v701, %v777
    %v858 = vmax.f32 %v490, %v778
    %v859 = vmax.f32 %v492, %v779
    %v860 = vmax.f32 %v603, %v780
    %v861 = vmax.f32 %v605, %v781
    %v862 = vmax.f32 %v706, %v782
    %v863 = vmax.f32 %v494, %v783
    %v864 = vmax.f32 %v496, %v784
    %v865 = vmax.f32 %v607, %v785
    %v866 = vmax.f32 %v609, %v786
    %v867 = vmax.f32 %v709, %v787
    %v868 = vmax.f32 %v500, %v788
    %v869 = vmax.f32 %v502, %v789
    %v870 = vmax.f32 %v613, %v790
    %v871 = vmax.f32 %v615, %v791
    %v872 = vmax.f32 %v714, %v792
    %v873 = vmax.f32 %v504, %v793
    %v874 = vmax.f32 %v506, %v794
    %v875 = vmax.f32 %v617, %v795
    %v876 = vmax.f32 %v619, %v796
    %v877 = vmax.f32 %v717, %v797
    %v878 = vmax.f32 %v510, %v798
    %v879 = vmax.f32 %v512, %v799
    %v880 = vmax.f32 %v623, %v800
    %v881 = vmax.f32 %v625, %v801
    %v882 = vmax.f32 %v722, %v802
    %v883 = vmax.f32 %v514, %v803
    %v884 = vmax.f32 %v516, %v804
    %v885 = vmax.f32 %v627, %v805
    %v886 = vmax.f32 %v629, %v806
    %v887 = vmax.f32 %v725, %v807
    %v888 = vadd.f32 %v808, %v813
    %v889 = vadd.f32 %v888, %v818
    %v890 = vadd.f32 %v889, %v823
    %v891 = vadd.f32 %v890, %v828
    %v892 = vadd.f32 %v891, %v833
    %v893 = vadd.f32 %v892, %v838
    %v894 = vadd.f32 %v893, %v843
    %v895 = vadd.f32 %v894, %v848
    %v896 = vadd.f32 %v895, %v853
    %v897 = vadd.f32 %v896, %v858
    %v898 = vadd.f32 %v897, %v863
    %v899 = vadd.f32 %v898, %v868
    %v900 = vadd.f32 %v899, %v873
    %v901 = vadd.f32 %v900, %v878
    %v902 = vadd.f32 %v901, %v883
    %v903 = vrot.slane %v902, 4
    %v904 = vadd.f32 %v902, %v903
    %v905 = vrot.slane %v904, 2
    %v906 = vadd.f32 %v904, %v905
    %v907 = vrot.slane %v906, 1
    %v908 = vadd.f32 %v906, %v907
    %v909 = vadd.f32 %v809, %v814
    %v910 = vadd.f32 %v909, %v819
    %v911 = vadd.f32 %v910, %v824
    %v912 = vadd.f32 %v911, %v829
    %v913 = vadd.f32 %v912, %v834
    %v914 = vadd.f32 %v913, %v839
    %v915 = vadd.f32 %v914, %v844
    %v916 = vadd.f32 %v915, %v849
    %v917 = vadd.f32 %v916, %v854
    %v918 = vadd.f32 %v917, %v859
    %v919 = vadd.f32 %v918, %v864
    %v920 = vadd.f32 %v919, %v869
    %v921 = vadd.f32 %v920, %v874
    %v922 = vadd.f32 %v921, %v879
    %v923 = vadd.f32 %v922, %v884
    %v924 = vrot.slane %v923, 4
    %v925 = vadd.f32 %v923, %v924
    %v926 = vrot.slane %v925, 2
    %v927 = vadd.f32 %v925, %v926
    %v928 = vrot.slane %v927, 1
    %v929 = vadd.f32 %v927, %v928
    %v930 = vadd.f32 %v810, %v815
    %v931 = vadd.f32 %v930, %v820
    %v932 = vadd.f32 %v931, %v825
    %v933 = vadd.f32 %v932, %v830
    %v934 = vadd.f32 %v933, %v835
    %v935 = vadd.f32 %v934, %v840
    %v936 = vadd.f32 %v935, %v845
    %v937 = vadd.f32 %v936, %v850
    %v938 = vadd.f32 %v937, %v855
    %v939 = vadd.f32 %v938, %v860
    %v940 = vadd.f32 %v939, %v865
    %v941 = vadd.f32 %v940, %v870
    %v942 = vadd.f32 %v941, %v875
    %v943 = vadd.f32 %v942, %v880
    %v944 = vadd.f32 %v943, %v885
    %v945 = vrot.slane %v944, 4
    %v946 = vadd.f32 %v944, %v945
    %v947 = vrot.slane %v946, 2
    %v948 = vadd.f32 %v946, %v947
    %v949 = vrot.slane %v948, 1
    %v950 = vadd.f32 %v948, %v949
    %v951 = vadd.f32 %v811, %v816
    %v952 = vadd.f32 %v951, %v821
    %v953 = vadd.f32 %v952, %v826
    %v954 = vadd.f32 %v953, %v831
    %v955 = vadd.f32 %v954, %v836
    %v956 = vadd.f32 %v955, %v841
    %v957 = vadd.f32 %v956, %v846
    %v958 = vadd.f32 %v957, %v851
    %v959 = vadd.f32 %v958, %v856
    %v960 = vadd.f32 %v959, %v861
    %v961 = vadd.f32 %v960, %v866
    %v962 = vadd.f32 %v961, %v871
    %v963 = vadd.f32 %v962, %v876
    %v964 = vadd.f32 %v963, %v881
    %v965 = vadd.f32 %v964, %v886
    %v966 = vrot.slane %v965, 4
    %v967 = vadd.f32 %v965, %v966
    %v968 = vrot.slane %v967, 2
    %v969 = vadd.f32 %v967, %v968
    %v970 = vrot.slane %v969, 1
    %v971 = vadd.f32 %v969, %v970
    %v972 = vadd.f32 %v812, %v817
    %v973 = vadd.f32 %v972, %v822
    %v974 = vadd.f32 %v973, %v827
    %v975 = vadd.f32 %v974, %v832
    %v976 = vadd.f32 %v975, %v837
    %v977 = vadd.f32 %v976, %v842
    %v978 = vadd.f32 %v977, %v847
    %v979 = vadd.f32 %v978, %v852
    %v980 = vadd.f32 %v979, %v857
    %v981 = vadd.f32 %v980, %v862
    %v982 = vadd.f32 %v981, %v867
    %v983 = vadd.f32 %v982, %v872
    %v984 = vadd.f32 %v983, %v877
    %v985 = vadd.f32 %v984, %v882
    %v986 = vadd.f32 %v985, %v887
    %v987 = vrot.slane %v986, 4
    %v988 = vadd.f32 %v986, %v987
    %v989 = vrot.slane %v988, 2
    %v990 = vadd.f32 %v988, %v989
    %v991 = vrot.slane %v990, 1
    %v992 = vadd.f32 %v990, %v991
    %v993 = vmul.f32 %v908, 0.0078125
    %v994 = vmul.f32 %v929, 0.0078125
    %v995 = vmul.f32 %v950, 0.0078125
    %v996 = vmul.f32 %v971, 0.0078125
    %v997 = vmul.f32 %v992, 0.0078125
    %v998 = vsub.f32 %v808, %v993
    %v999 = vsub.f32 %v809, %v994
    %v1000 = vsub.f32 %v810, %v995
    %v1001 = vsub.f32 %v811, %v996
    %v1002 = vsub.f32 %v812, %v997
    %v1003 = vsub.f32 %v813, %v993
    %v1004 = vsub.f32 %v814, %v994
    %v1005 = vsub.f32 %v815, %v995
    %v1006 = vsub.f32 %v816, %v996
    %v1007 = vsub.f32 %v817, %v997
    %v1008 = vsub.f32 %v818, %v993
    %v1009 = vsub.f32 %v819, %v994
    %v1010 = vsub.f32 %v820, %v995
    %v1011 = vsub.f32 %v821, %v996
    %v1012 = vsub.f32 %v822, %v997
    %v1013 = vsub.f32 %v823, %v993
    %v1014 = vsub.f32 %v824, %v994
    %v1015 = vsub.f32 %v825, %v995
    %v1016 = vsub.f32 %v826, %v996
    %v1017 = vsub.f32 %v827, %v997
    %v1018 = vsub.f32 %v828, %v993
    %v1019 = vsub.f32 %v829, %v994
    %v1020 = vsub.f32 %v830, %v995
    %v1021 = vsub.f32 %v831, %v996
    %v1022 = vsub.f32 %v832, %v997
    %v1023 = vsub.f32 %v833, %v993
    %v1024 = vsub.f32 %v834, %v994
    %v1025 = vsub.f32 %v835, %v995
    %v1026 = vsub.f32 %v836, %v996
    %v1027 = vsub.f32 %v837, %v997
    %v1028 = vsub.f32 %v838, %v993
    %v1029 = vsub.f32 %v839, %v994
    %v1030 = vsub.f32 %v840, %v995
    %v1031 = vsub.f32 %v841, %v996
    %v1032 = vsub.f32 %v842, %v997
    %v1033 = vsub.f32 %v843, %v993
    %v1034 = vsub.f32 %v844, %v994
    %v1035 = vsub.f32 %v845, %v995
    %v1036 = vsub.f32 %v846, %v996
    %v1037 = vsub.f32 %v847, %v997
    %v1038 = vsub.f32 %v848, %v993
    %v1039 = vsub.f32 %v849, %v994
    %v1040 = vsub.f32 %v850, %v995
    %v1041 = vsub.f32 %v851, %v996
    %v1042 = vsub.f32 %v852, %v997
    %v1043 = vsub.f32 %v853, %v993
    %v1044 = vsub.f32 %v854, %v994
    %v1045 = vsub.f32 %v855, %v995
    %v1046 = vsub.f32 %v856, %v996
    %v1047 = vsub.f32 %v857, %v997
    %v1048 = vsub.f32 %v858, %v993
    %v1049 = vsub.f32 %v859, %v994
    %v1050 = vsub.f32 %v860, %v995
    %v1051 = vsub.f32 %v861, %v996
    %v1052 = vsub.f32 %v862, %v997
    %v1053 = vsub.f32 %v863, %v993
    %v1054 = vsub.f32 %v864, %v994
    %v1055 = vsub.f32 %v865, %v995
    %v1056 = vsub.f32 %v866, %v996
    %v1057 = vsub.f32 %v867, %v997
    %v1058 = vsub.f32 %v868, %v993
    %v1059 = vsub.f32 %v869, %v994
    %v1060 = vsub.f32 %v870, %v995
    %v1061 = vsub.f32 %v871, %v996
    %v1062 = vsub.f32 %v872, %v997
    %v1063 = vsub.f32 %v873, %v993
    %v1064 = vsub.f32 %v874, %v994
    %v1065 = vsub.f32 %v875, %v995
    %v1066 = vsub.f32 %v876, %v996
    %v1067 = vsub.f32 %v877, %v997
    %v1068 = vsub.f32 %v878, %v993
    %v1069 = vsub.f32 %v879, %v994
    %v1070 = vsub.f32 %v880, %v995
    %v1071 = vsub.f32 %v881, %v996
    %v1072 = vsub.f32 %v882, %v997
    %v1073 = vsub.f32 %v883, %v993
    %v1074 = vsub.f32 %v884, %v994
    %v1075 = vsub.f32 %v885, %v995
    %v1076 = vsub.f32 %v886, %v996
    %v1077 = vsub.f32 %v887, %v997
    %v1078 = vmul.f32 %v998, %v998
    %v1079 = vmul.f32 %v999, %v999
    %v1080 = vmul.f32 %v1000, %v1000
    %v1081 = vmul.f32 %v1001, %v1001
    %v1082 = vmul.f32 %v1002, %v1002
    %v1083 = vmul.f32 %v1003, %v1003
    %v1084 = vmul.f32 %v1004, %v1004
    %v1085 = vmul.f32 %v1005, %v1005
    %v1086 = vmul.f32 %v1006, %v1006
    %v1087 = vmul.f32 %v1007, %v1007
    %v1088 = vmul.f32 %v1008, %v1008
    %v1089 = vmul.f32 %v1009, %v1009
    %v1090 = vmul.f32 %v1010, %v1010
    %v1091 = vmul.f32 %v1011, %v1011
    %v1092 = vmul.f32 %v1012, %v1012
    %v1093 = vmul.f32 %v1013, %v1013
    %v1094 = vmul.f32 %v1014, %v1014
    %v1095 = vmul.f32 %v1015, %v1015
    %v1096 = vmul.f32 %v1016, %v1016
    %v1097 = vmul.f32 %v1017, %v1017
    %v1098 = vmul.f32 %v1018, %v1018
    %v1099 = vmul.f32 %v1019, %v1019
    %v1100 = vmul.f32 %v1020, %v1020
    %v1101 = vmul.f32 %v1021, %v1021
    %v1102 = vmul.f32 %v1022, %v1022
    %v1103 = vmul.f32 %v1023, %v1023
    %v1104 = vmul.f32 %v1024, %v1024
    %v1105 = vmul.f32 %v1025, %v1025
    %v1106 = vmul.f32 %v1026, %v1026
    %v1107 = vmul.f32 %v1027, %v1027
    %v1108 = vmul.f32 %v1028, %v1028
    %v1109 = vmul.f32 %v1029, %v1029
    %v1110 = vmul.f32 %v1030, %v1030
    %v1111 = vmul.f32 %v1031, %v1031
    %v1112 = vmul.f32 %v1032, %v1032
    %v1113 = vmul.f32 %v1033, %v1033
    %v1114 = vmul.f32 %v1034, %v1034
    %v1115 = vmul.f32 %v1035, %v1035
    %v1116 = vmul.f32 %v1036, %v1036
    %v1117 = vmul.f32 %v1037, %v1037
    %v1118 = vmul.f32 %v1038, %v1038
    %v1119 = vmul.f32 %v1039, %v1039
    %v1120 = vmul.f32 %v1040, %v1040
    %v1121 = vmul.f32 %v1041, %v1041
    %v1122 = vmul.f32 %v1042, %v1042
    %v1123 = vmul.f32 %v1043, %v1043
    %v1124 = vmul.f32 %v1044, %v1044
    %v1125 = vmul.f32 %v1045, %v1045
    %v1126 = vmul.f32 %v1046, %v1046
    %v1127 = vmul.f32 %v1047, %v1047
    %v1128 = vmul.f32 %v1048, %v1048
    %v1129 = vmul.f32 %v1049, %v1049
    %v1130 = vmul.f32 %v1050, %v1050
    %v1131 = vmul.f32 %v1051, %v1051
    %v1132 = vmul.f32 %v1052, %v1052
    %v1133 = vmul.f32 %v1053, %v1053
    %v1134 = vmul.f32 %v1054, %v1054
    %v1135 = vmul.f32 %v1055, %v1055
    %v1136 = vmul.f32 %v1056, %v1056
    %v1137 = vmul.f32 %v1057, %v1057
    %v1138 = vmul.f32 %v1058, %v1058
    %v1139 = vmul.f32 %v1059, %v1059
    %v1140 = vmul.f32 %v1060, %v1060
    %v1141 = vmul.f32 %v1061, %v1061
    %v1142 = vmul.f32 %v1062, %v1062
    %v1143 = vmul.f32 %v1063, %v1063
    %v1144 = vmul.f32 %v1064, %v1064
    %v1145 = vmul.f32 %v1065, %v1065
    %v1146 = vmul.f32 %v1066, %v1066
    %v1147 = vmul.f32 %v1067, %v1067
    %v1148 = vmul.f32 %v1068, %v1068
    %v1149 = vmul.f32 %v1069, %v1069
    %v1150 = vmul.f32 %v1070, %v1070
    %v1151 = vmul.f32 %v1071, %v1071
    %v1152 = vmul.f32 %v1072, %v1072
    %v1153 = vmul.f32 %v1073, %v1073
    %v1154 = vmul.f32 %v1074, %v1074
    %v1155 = vmul.f32 %v1075, %v1075
    %v1156 = vmul.f32 %v1076, %v1076
    %v1157 = vmul.f32 %v1077, %v1077
    %v1158 = vadd.f32 %v1078, %v1083
    %v1159 = vadd.f32 %v1158, %v1088
    %v1160 = vadd.f32 %v1159, %v1093
    %v1161 = vadd.f32 %v1160, %v1098
    %v1162 = vadd.f32 %v1161, %v1103
    %v1163 = vadd.f32 %v1162, %v1108
    %v1164 = vadd.f32 %v1163, %v1113
    %v1165 = vadd.f32 %v1164, %v1118
    %v1166 = vadd.f32 %v1165, %v1123
    %v1167 = vadd.f32 %v1166, %v1128
    %v1168 = vadd.f32 %v1167, %v1133
    %v1169 = vadd.f32 %v1168, %v1138
    %v1170 = vadd.f32 %v1169, %v1143
    %v1171 = vadd.f32 %v1170, %v1148
    %v1172 = vadd.f32 %v1171, %v1153
    %v1173 = vrot.slane %v1172, 4
    %v1174 = vadd.f32 %v1172, %v1173
    %v1175 = vrot.slane %v1174, 2
    %v1176 = vadd.f32 %v1174, %v1175
    %v1177 = vrot.slane %v1176, 1
    %v1178 = vadd.f32 %v1176, %v1177
    %v1179 = vadd.f32 %v1079, %v1084
    %v1180 = vadd.f32 %v1179, %v1089
    %v1181 = vadd.f32 %v1180, %v1094
    %v1182 = vadd.f32 %v1181, %v1099
    %v1183 = vadd.f32 %v1182, %v1104
    %v1184 = vadd.f32 %v1183, %v1109
    %v1185 = vadd.f32 %v1184, %v1114
    %v1186 = vadd.f32 %v1185, %v1119
    %v1187 = vadd.f32 %v1186, %v1124
    %v1188 = vadd.f32 %v1187, %v1129
    %v1189 = vadd.f32 %v1188, %v1134
    %v1190 = vadd.f32 %v1189, %v1139
    %v1191 = vadd.f32 %v1190, %v1144
    %v1192 = vadd.f32 %v1191, %v1149
    %v1193 = vadd.f32 %v1192, %v1154
    %v1194 = vrot.slane %v1193, 4
    %v1195 = vadd.f32 %v1193, %v1194
    %v1196 = vrot.slane %v1195, 2
    %v1197 = vadd.f32 %v1195, %v1196
    %v1198 = vrot.slane %v1197, 1
    %v1199 = vadd.f32 %v1197, %v1198
    %v1200 = vadd.f32 %v1080, %v1085
    %v1201 = vadd.f32 %v1200, %v1090
    %v1202 = vadd.f32 %v1201, %v1095
    %v1203 = vadd.f32 %v1202, %v1100
    %v1204 = vadd.f32 %v1203, %v1105
    %v1205 = vadd.f32 %v1204, %v1110
    %v1206 = vadd.f32 %v1205, %v1115
    %v1207 = vadd.f32 %v1206, %v1120
    %v1208 = vadd.f32 %v1207, %v1125
    %v1209 = vadd.f32 %v1208, %v1130
    %v1210 = vadd.f32 %v1209, %v1135
    %v1211 = vadd.f32 %v1210, %v1140
    %v1212 = vadd.f32 %v1211, %v1145
    %v1213 = vadd.f32 %v1212, %v1150
    %v1214 = vadd.f32 %v1213, %v1155
    %v1215 = vrot.slane %v1214, 4
    %v1216 = vadd.f32 %v1214, %v1215
    %v1217 = vrot.slane %v1216, 2
    %v1218 = vadd.f32 %v1216, %v1217
    %v1219 = vrot.slane %v1218, 1
    %v1220 = vadd.f32 %v1218, %v1219
    %v1221 = vadd.f32 %v1081, %v1086
    %v1222 = vadd.f32 %v1221, %v1091
    %v1223 = vadd.f32 %v1222, %v1096
    %v1224 = vadd.f32 %v1223, %v1101
    %v1225 = vadd.f32 %v1224, %v1106
    %v1226 = vadd.f32 %v1225, %v1111
    %v1227 = vadd.f32 %v1226, %v1116
    %v1228 = vadd.f32 %v1227, %v1121
    %v1229 = vadd.f32 %v1228, %v1126
    %v1230 = vadd.f32 %v1229, %v1131
    %v1231 = vadd.f32 %v1230, %v1136
    %v1232 = vadd.f32 %v1231, %v1141
    %v1233 = vadd.f32 %v1232, %v1146
    %v1234 = vadd.f32 %v1233, %v1151
    %v1235 = vadd.f32 %v1234, %v1156
    %v1236 = vrot.slane %v1235, 4
    %v1237 = vadd.f32 %v1235, %v1236
    %v1238 = vrot.slane %v1237, 2
    %v1239 = vadd.f32 %v1237, %v1238
    %v1240 = vrot.slane %v1239, 1
    %v1241 = vadd.f32 %v1239, %v1240
    %v1242 = vadd.f32 %v1082, %v1087
    %v1243 = vadd.f32 %v1242, %v1092
    %v1244 = vadd.f32 %v1243, %v1097
    %v1245 = vadd.f32 %v1244, %v1102
    %v1246 = vadd.f32 %v1245, %v1107
    %v1247 = vadd.f32 %v1246, %v1112
    %v1248 = vadd.f32 %v1247, %v1117
    %v1249 = vadd.f32 %v1248, %v1122
    %v1250 = vadd.f32 %v1249, %v1127
    %v1251 = vadd.f32 %v1250, %v1132
    %v1252 = vadd.f32 %v1251, %v1137
    %v1253 = vadd.f32 %v1252, %v1142
    %v1254 = vadd.f32 %v1253, %v1147
    %v1255 = vadd.f32 %v1254, %v1152
    %v1256 = vadd.f32 %v1255, %v1157
    %v1257 = vrot.slane %v1256, 4
    %v1258 = vadd.f32 %v1256, %v1257
    %v1259 = vrot.slane %v1258, 2
    %v1260 = vadd.f32 %v1258, %v1259
    %v1261 = vrot.slane %v1260, 1
    %v1262 = vadd.f32 %v1260, %v1261
    %v1263 = vmul.f32 %v1178, 0.0078125
    %v1264 = vmul.f32 %v1199, 0.0078125
    %v1265 = vmul.f32 %v1220, 0.0078125
    %v1266 = vmul.f32 %v1241, 0.0078125
    %v1267 = vmul.f32 %v1262, 0.0078125
    %v1268 = vadd.f32 %v1263, 1e-05
    %v1269 = vadd.f32 %v1264, 1e-05
    %v1270 = vadd.f32 %v1265, 1e-05
    %v1271 = vadd.f32 %v1266, 1e-05
    %v1272 = vadd.f32 %v1267, 1e-05
    %v1273 = vrsqrt.pop %v1268
    %v1274 = vrsqrt.pop %v1269
    %v1275 = vrsqrt.pop %v1270
    %v1276 = vrsqrt.pop %v1271
    %v1277 = vrsqrt.pop %v1272
    %v1283 = vcombine.low %v1273, %v1274
    %v1284 = vcombine.low %v1275, %v1276
    %v1286 = vunpack.c.l.s4 1966171168
    %v1287 = vunpack.c.0.s8 %v1286
    %v1288 = vlaneseq
    %v1289 = vshrl.u32 %v1288, 7
    %v1290 = vsub.s32 %v1287, %v1289
    %v1291 = vrot.slane %v1283, %v1290
    %v1293 = vunpack.c.l.s4 1966171168
    %v1294 = vunpack.c.0.s8 %v1293
    %v1295 = vlaneseq
    %v1296 = vshrl.u32 %v1295, 7
    %v1297 = vsub.s32 %v1294, %v1296
    %v1298 = vrot.slane %v1284, %v1297
    %v1300 = vunpack.c.l.s4 1966171168
    %v1301 = vunpack.c.0.s8 %v1300
    %v1302 = vlaneseq
    %v1303 = vshrl.u32 %v1302, 7
    %v1304 = vsub.s32 %v1301, %v1303
    %v1305 = vrot.slane %v1277, %v1304
    %v1306 = vcombine.low %v1291, %v1298
    %v1308 = vunpack.c.l.s4 1966171168
    %v1309 = vunpack.c.0.s8 %v1308
    %v1310 = vlaneseq
    %v1311 = vshrl.u32 %v1310, 7
    %v1312 = vsub.s32 %v1309, %v1311
    %v1313 = vrot.slane %v1306, %v1312
    %v1315 = vunpack.c.l.s4 1966171168
    %v1316 = vunpack.c.0.s8 %v1315
    %v1317 = vlaneseq
    %v1318 = vshrl.u32 %v1317, 7
    %v1319 = vsub.s32 %v1316, %v1318
    %v1320 = vrot.slane %v1305, %v1319
    %v1321 = vcombine.low %v1313, %v1320
    %v1323 = vmul.f32 %v282, %v1321
    %v1325 = vlaneseq
    %v1326 = vshrl.u32 %v1325, 7
    %v1327 = vsub.s32 0, %v1326
    %v1328 = vrot.slane %v1323, %v1327
    %v1329 = vlaneseq
    %v1330 = vshrl.u32 %v1329, 7
    %v1331 = vsub.s32 1, %v1330
    %v1332 = vrot.slane %v1323, %v1331
    %v1333 = vlaneseq
    %v1334 = vshrl.u32 %v1333, 7
    %v1335 = vsub.s32 2, %v1334
    %v1336 = vrot.slane %v1323, %v1335
    %v1337 = vlaneseq
    %v1338 = vshrl.u32 %v1337, 7
    %v1339 = vsub.s32 3, %v1338
    %v1340 = vrot.slane %v1323, %v1339
    %v1341 = vlaneseq
    %v1342 = vshrl.u32 %v1341, 7
    %v1343 = vsub.s32 4, %v1342
    %v1344 = vrot.slane %v1323, %v1343
    %v1350 = vmul.f32 %v998, %v1328
    %v1351 = vmul.f32 %v999, %v1332
    %v1352 = vmul.f32 %v1000, %v1336
    %v1353 = vmul.f32 %v1001, %v1340
    %v1354 = vmul.f32 %v1002, %v1344
    %v1355 = vmul.f32 %v1003, %v1328
    %v1356 = vmul.f32 %v1004, %v1332
    %v1357 = vmul.f32 %v1005, %v1336
    %v1358 = vmul.f32 %v1006, %v1340
    %v1359 = vmul.f32 %v1007, %v1344
    %v1360 = vmul.f32 %v1008, %v1328
    %v1361 = vmul.f32 %v1009, %v1332
    %v1362 = vmul.f32 %v1010, %v1336
    %v1363 = vmul.f32 %v1011, %v1340
    %v1364 = vmul.f32 %v1012, %v1344
    %v1365 = vmul.f32 %v1013, %v1328
    %v1366 = vmul.f32 %v1014, %v1332
    %v1367 = vmul.f32 %v1015, %v1336
    %v1368 = vmul.f32 %v1016, %v1340
    %v1369 = vmul.f32 %v1017, %v1344
    %v1370 = vmul.f32 %v1018, %v1328
    %v1371 = vmul.f32 %v1019, %v1332
    %v1372 = vmul.f32 %v1020, %v1336
    %v1373 = vmul.f32 %v1021, %v1340
    %v1374 = vmul.f32 %v1022, %v1344
    %v1375 = vmul.f32 %v1023, %v1328
    %v1376 = vmul.f32 %v1024, %v1332
    %v1377 = vmul.f32 %v1025, %v1336
    %v1378 = vmul.f32 %v1026, %v1340
    %v1379 = vmul.f32 %v1027, %v1344
    %v1380 = vmul.f32 %v1028, %v1328
    %v1381 = vmul.f32 %v1029, %v1332
    %v1382 = vmul.f32 %v1030, %v1336
    %v1383 = vmul.f32 %v1031, %v1340
    %v1384 = vmul.f32 %v1032, %v1344
    %v1385 = vmul.f32 %v1033, %v1328
    %v1386 = vmul.f32 %v1034, %v1332
    %v1387 = vmul.f32 %v1035, %v1336
    %v1388 = vmul.f32 %v1036, %v1340
    %v1389 = vmul.f32 %v1037, %v1344
    %v1390 = vmul.f32 %v1038, %v1328
    %v1391 = vmul.f32 %v1039, %v1332
    %v1392 = vmul.f32 %v1040, %v1336
    %v1393 = vmul.f32 %v1041, %v1340
    %v1394 = vmul.f32 %v1042, %v1344
    %v1395 = vmul.f32 %v1043, %v1328
    %v1396 = vmul.f32 %v1044, %v1332
    %v1397 = vmul.f32 %v1045, %v1336
    %v1398 = vmul.f32 %v1046, %v1340
    %v1399 = vmul.f32 %v1047, %v1344
    %v1400 = vmul.f32 %v1048, %v1328
    %v1401 = vmul.f32 %v1049, %v1332
    %v1402 = vmul.f32 %v1050, %v1336
    %v1403 = vmul.f32 %v1051, %v1340
    %v1404 = vmul.f32 %v1052, %v1344
    %v1405 = vmul.f32 %v1053, %v1328
    %v1406 = vmul.f32 %v1054, %v1332
    %v1407 = vmul.f32 %v1055, %v1336
    %v1408 = vmul.f32 %v1056, %v1340
    %v1409 = vmul.f32 %v1057, %v1344
    %v1410 = vmul.f32 %v1058, %v1328
    %v1411 = vmul.f32 %v1059, %v1332
    %v1412 = vmul.f32 %v1060, %v1336
    %v1413 = vmul.f32 %v1061, %v1340
    %v1414 = vmul.f32 %v1062, %v1344
    %v1415 = vmul.f32 %v1063, %v1328
    %v1416 = vmul.f32 %v1064, %v1332
    %v1417 = vmul.f32 %v1065, %v1336
    %v1418 = vmul.f32 %v1066, %v1340
    %v1419 = vmul.f32 %v1067, %v1344
    %v1420 = vmul.f32 %v1068, %v1328
    %v1421 = vmul.f32 %v1069, %v1332
    %v1422 = vmul.f32 %v1070, %v1336
    %v1423 = vmul.f32 %v1071, %v1340
    %v1424 = vmul.f32 %v1072, %v1344
    %v1425 = vmul.f32 %v1073, %v1328
    %v1426 = vmul.f32 %v1074, %v1332
    %v1427 = vmul.f32 %v1075, %v1336
    %v1428 = vmul.f32 %v1076, %v1340
    %v1429 = vmul.f32 %v1077, %v1344
    %v1431 = vlaneseq
    %v1432 = vshrl.u32 %v1431, 7
    %v1433 = vsub.s32 0, %v1432
    %v1434 = vrot.slane %v286, %v1433
    %v1435 = vlaneseq
    %v1436 = vshrl.u32 %v1435, 7
    %v1437 = vsub.s32 1, %v1436
    %v1438 = vrot.slane %v286, %v1437
    %v1439 = vlaneseq
    %v1440 = vshrl.u32 %v1439, 7
    %v1441 = vsub.s32 2, %v1440
    %v1442 = vrot.slane %v286, %v1441
    %v1443 = vlaneseq
    %v1444 = vshrl.u32 %v1443, 7
    %v1445 = vsub.s32 3, %v1444
    %v1446 = vrot.slane %v286, %v1445
    %v1447 = vlaneseq
    %v1448 = vshrl.u32 %v1447, 7
    %v1449 = vsub.s32 4, %v1448
    %v1450 = vrot.slane %v286, %v1449
    %v1456 = vadd.f32 %v1350, %v1434
    %v1457 = vadd.f32 %v1351, %v1438
    %v1458 = vadd.f32 %v1352, %v1442
    %v1459 = vadd.f32 %v1353, %v1446
    %v1460 = vadd.f32 %v1354, %v1450
    %v1461 = vadd.f32 %v1355, %v1434
    %v1462 = vadd.f32 %v1356, %v1438
    %v1463 = vadd.f32 %v1357, %v1442
    %v1464 = vadd.f32 %v1358, %v1446
    %v1465 = vadd.f32 %v1359, %v1450
    %v1466 = vadd.f32 %v1360, %v1434
    %v1467 = vadd.f32 %v1361, %v1438
    %v1468 = vadd.f32 %v1362, %v1442
    %v1469 = vadd.f32 %v1363, %v1446
    %v1470 = vadd.f32 %v1364, %v1450
    %v1471 = vadd.f32 %v1365, %v1434
    %v1472 = vadd.f32 %v1366, %v1438
    %v1473 = vadd.f32 %v1367, %v1442
    %v1474 = vadd.f32 %v1368, %v1446
    %v1475 = vadd.f32 %v1369, %v1450
    %v1476 = vadd.f32 %v1370, %v1434
    %v1477 = vadd.f32 %v1371, %v1438
    %v1478 = vadd.f32 %v1372, %v1442
    %v1479 = vadd.f32 %v1373, %v1446
    %v1480 = vadd.f32 %v1374, %v1450
    %v1481 = vadd.f32 %v1375, %v1434
    %v1482 = vadd.f32 %v1376, %v1438
    %v1483 = vadd.f32 %v1377, %v1442
    %v1484 = vadd.f32 %v1378, %v1446
    %v1485 = vadd.f32 %v1379, %v1450
    %v1486 = vadd.f32 %v1380, %v1434
    %v1487 = vadd.f32 %v1381, %v1438
    %v1488 = vadd.f32 %v1382, %v1442
    %v1489 = vadd.f32 %v1383, %v1446
    %v1490 = vadd.f32 %v1384, %v1450
    %v1491 = vadd.f32 %v1385, %v1434
    %v1492 = vadd.f32 %v1386, %v1438
    %v1493 = vadd.f32 %v1387, %v1442
    %v1494 = vadd.f32 %v1388, %v1446
    %v1495 = vadd.f32 %v1389, %v1450
    %v1496 = vadd.f32 %v1390, %v1434
    %v1497 = vadd.f32 %v1391, %v1438
    %v1498 = vadd.f32 %v1392, %v1442
    %v1499 = vadd.f32 %v1393, %v1446
    %v1500 = vadd.f32 %v1394, %v1450
    %v1501 = vadd.f32 %v1395, %v1434
    %v1502 = vadd.f32 %v1396, %v1438
    %v1503 = vadd.f32 %v1397, %v1442
    %v1504 = vadd.f32 %v1398, %v1446
    %v1505 = vadd.f32 %v1399, %v1450
    %v1506 = vadd.f32 %v1400, %v1434
    %v1507 = vadd.f32 %v1401, %v1438
    %v1508 = vadd.f32 %v1402, %v1442
    %v1509 = vadd.f32 %v1403, %v1446
    %v1510 = vadd.f32 %v1404, %v1450
    %v1511 = vadd.f32 %v1405, %v1434
    %v1512 = vadd.f32 %v1406, %v1438
    %v1513 = vadd.f32 %v1407, %v1442
    %v1514 = vadd.f32 %v1408, %v1446
    %v1515 = vadd.f32 %v1409, %v1450
    %v1516 = vadd.f32 %v1410, %v1434
    %v1517 = vadd.f32 %v1411, %v1438
    %v1518 = vadd.f32 %v1412, %v1442
    %v1519 = vadd.f32 %v1413, %v1446
    %v1520 = vadd.f32 %v1414, %v1450
    %v1521 = vadd.f32 %v1415, %v1434
    %v1522 = vadd.f32 %v1416, %v1438
    %v1523 = vadd.f32 %v1417, %v1442
    %v1524 = vadd.f32 %v1418, %v1446
    %v1525 = vadd.f32 %v1419, %v1450
    %v1526 = vadd.f32 %v1420, %v1434
    %v1527 = vadd.f32 %v1421, %v1438
    %v1528 = vadd.f32 %v1422, %v1442
    %v1529 = vadd.f32 %v1423, %v1446
    %v1530 = vadd.f32 %v1424, %v1450
    %v1531 = vadd.f32 %v1425, %v1434
    %v1532 = vadd.f32 %v1426, %v1438
    %v1533 = vadd.f32 %v1427, %v1442
    %v1534 = vadd.f32 %v1428, %v1446
    %v1535 = vadd.f32 %v1429, %v1450
    %v1536 = vpack.c.bf16 %v1461, %v1456
    %v1537 = vpack.c.bf16 %v1462, %v1457
    %v1538 = vpack.c.bf16 %v1463, %v1458
    %v1539 = vpack.c.bf16 %v1464, %v1459
    %v1540 = vpack.c.bf16 %v1465, %v1460
    %v1541 = vpack.c.bf16 %v1471, %v1466
    %v1542 = vpack.c.bf16 %v1472, %v1467
    %v1543 = vpack.c.bf16 %v1473, %v1468
    %v1544 = vpack.c.bf16 %v1474, %v1469
    %v1545 = vpack.c.bf16 %v1475, %v1470
    %v1546 = vpack.c.bf16 %v1481, %v1476
    %v1547 = vpack.c.bf16 %v1482, %v1477
    %v1548 = vpack.c.bf16 %v1483, %v1478
    %v1549 = vpack.c.bf16 %v1484, %v1479
    %v1550 = vpack.c.bf16 %v1485, %v1480
    %v1551 = vpack.c.bf16 %v1491, %v1486
    %v1552 = vpack.c.bf16 %v1492, %v1487
    %v1553 = vpack.c.bf16 %v1493, %v1488
    %v1554 = vpack.c.bf16 %v1494, %v1489
    %v1555 = vpack.c.bf16 %v1495, %v1490
    %v1556 = vpack.c.bf16 %v1501, %v1496
    %v1557 = vpack.c.bf16 %v1502, %v1497
    %v1558 = vpack.c.bf16 %v1503, %v1498
    %v1559 = vpack.c.bf16 %v1504, %v1499
    %v1560 = vpack.c.bf16 %v1505, %v1500
    %v1561 = vpack.c.bf16 %v1511, %v1506
    %v1562 = vpack.c.bf16 %v1512, %v1507
    %v1563 = vpack.c.bf16 %v1513, %v1508
    %v1564 = vpack.c.bf16 %v1514, %v1509
    %v1565 = vpack.c.bf16 %v1515, %v1510
    %v1566 = vpack.c.bf16 %v1521, %v1516
    %v1567 = vpack.c.bf16 %v1522, %v1517
    %v1568 = vpack.c.bf16 %v1523, %v1518
    %v1569 = vpack.c.bf16 %v1524, %v1519
    %v1570 = vpack.c.bf16 %v1525, %v1520
    %v1571 = vpack.c.bf16 %v1531, %v1526
    %v1572 = vpack.c.bf16 %v1532, %v1527
    %v1573 = vpack.c.bf16 %v1533, %v1528
    %v1574 = vpack.c.bf16 %v1534, %v1529
    %v1575 = vpack.c.bf16 %v1535, %v1530
    %s1576 = scalar_lea.vmem [#allocation14], 3
    %v1577 = vld [vmem:[%s1576] ss:$8 sm:$0xf]
    %s1578 = scalar_lea.vmem [#allocation14], 4
    %v1579 = vld [vmem:[%s1578] ss:$8 sm:$0xf]
    %s1580 = scalar_lea.vmem [#allocation14], 5
    %v1581 = vld [vmem:[%s1580] ss:$8 sm:$0xf]
    %s1582 = smul.u32 4, 80
    %s1583 = smul.u32 %s1582, 4
    %s1584 = sshll.u32 %s1583, 4
    %1585 = dma.done %s84, %s1584
    %v1586 = vld [vmem:[#allocation3] sm:$0xff]
    %v1587 = vld [vmem:[#allocation3 + $0x8] sm:$0xff]
    %v1588 = vld [vmem:[#allocation3 + $0x10] sm:$0xff]
    %v1589 = vld [vmem:[#allocation3 + $0x18] sm:$0xff]
    %v1590 = vld [vmem:[#allocation3 + $0x20] sm:$0xff]
    %v1591 = vld [vmem:[#allocation3 + $0x28] sm:$0xff]
    %v1592 = vld [vmem:[#allocation3 + $0x30] sm:$0xff]
    %v1593 = vld [vmem:[#allocation3 + $0x38] sm:$0xff]
    %v1594 = vld [vmem:[#allocation3 + $0x40] sm:$0xff]
    %v1595 = vld [vmem:[#allocation3 + $0x48] sm:$0xff]
    %v1596 = vld [vmem:[#allocation3 + $0x50] sm:$0xff]
    %v1597 = vld [vmem:[#allocation3 + $0x58] sm:$0xff]
    %v1598 = vld [vmem:[#allocation3 + $0x60] sm:$0xff]
    %v1599 = vld [vmem:[#allocation3 + $0x68] sm:$0xff]
    %v1600 = vld [vmem:[#allocation3 + $0x70] sm:$0xff]
    %v1601 = vld [vmem:[#allocation3 + $0x78] sm:$0xff]
    %v1602 = vld [vmem:[#allocation3 + $0x80] sm:$0xff]
    %v1603 = vld [vmem:[#allocation3 + $0x88] sm:$0xff]
    %v1604 = vld [vmem:[#allocation3 + $0x90] sm:$0xff]
    %v1605 = vld [vmem:[#allocation3 + $0x98] sm:$0xff]
    %v1606 = vld [vmem:[#allocation3 + $0xa0] sm:$0xff]
    %v1607 = vld [vmem:[#allocation3 + $0xa8] sm:$0xff]
    %v1608 = vld [vmem:[#allocation3 + $0xb0] sm:$0xff]
    %v1609 = vld [vmem:[#allocation3 + $0xb8] sm:$0xff]
    %v1610 = vld [vmem:[#allocation3 + $0xc0] sm:$0xff]
    %v1611 = vld [vmem:[#allocation3 + $0xc8] sm:$0xff]
    %v1612 = vld [vmem:[#allocation3 + $0xd0] sm:$0xff]
    %v1613 = vld [vmem:[#allocation3 + $0xd8] sm:$0xff]
    %v1614 = vld [vmem:[#allocation3 + $0xe0] sm:$0xff]
    %v1615 = vld [vmem:[#allocation3 + $0xe8] sm:$0xff]
    %v1616 = vld [vmem:[#allocation3 + $0xf0] sm:$0xff]
    %v1617 = vld [vmem:[#allocation3 + $0xf8] sm:$0xff]
    %v1618 = vld [vmem:[#allocation3 + $0x100] sm:$0xff]
    %v1619 = vld [vmem:[#allocation3 + $0x108] sm:$0xff]
    %v1620 = vld [vmem:[#allocation3 + $0x110] sm:$0xff]
    %v1621 = vld [vmem:[#allocation3 + $0x118] sm:$0xff]
    %v1622 = vld [vmem:[#allocation3 + $0x120] sm:$0xff]
    %v1623 = vld [vmem:[#allocation3 + $0x128] sm:$0xff]
    %v1624 = vld [vmem:[#allocation3 + $0x130] sm:$0xff]
    %v1625 = vld [vmem:[#allocation3 + $0x138] sm:$0xff]
    %v1626 = vld [vmem:[#allocation3 + $0x140] sm:$0xff]
    %v1627 = vld [vmem:[#allocation3 + $0x148] sm:$0xff]
    %v1628 = vld [vmem:[#allocation3 + $0x150] sm:$0xff]
    %v1629 = vld [vmem:[#allocation3 + $0x158] sm:$0xff]
    %v1630 = vld [vmem:[#allocation3 + $0x160] sm:$0xff]
    %v1631 = vld [vmem:[#allocation3 + $0x168] sm:$0xff]
    %v1632 = vld [vmem:[#allocation3 + $0x170] sm:$0xff]
    %v1633 = vld [vmem:[#allocation3 + $0x178] sm:$0xff]
    %v1634 = vld [vmem:[#allocation3 + $0x180] sm:$0xff]
    %v1635 = vld [vmem:[#allocation3 + $0x188] sm:$0xff]
    %v1636 = vld [vmem:[#allocation3 + $0x190] sm:$0xff]
    %v1637 = vld [vmem:[#allocation3 + $0x198] sm:$0xff]
    %v1638 = vld [vmem:[#allocation3 + $0x1a0] sm:$0xff]
    %v1639 = vld [vmem:[#allocation3 + $0x1a8] sm:$0xff]
    %v1640 = vld [vmem:[#allocation3 + $0x1b0] sm:$0xff]
    %v1641 = vld [vmem:[#allocation3 + $0x1b8] sm:$0xff]
    %v1642 = vld [vmem:[#allocation3 + $0x1c0] sm:$0xff]
    %v1643 = vld [vmem:[#allocation3 + $0x1c8] sm:$0xff]
    %v1644 = vld [vmem:[#allocation3 + $0x1d0] sm:$0xff]
    %v1645 = vld [vmem:[#allocation3 + $0x1d8] sm:$0xff]
    %v1646 = vld [vmem:[#allocation3 + $0x1e0] sm:$0xff]
    %v1647 = vld [vmem:[#allocation3 + $0x1e8] sm:$0xff]
    %v1648 = vld [vmem:[#allocation3 + $0x1f0] sm:$0xff]
    %v1649 = vld [vmem:[#allocation3 + $0x1f8] sm:$0xff]
    %v1650 = vld [vmem:[#allocation3 + $0x200] sm:$0xff]
    %v1651 = vld [vmem:[#allocation3 + $0x208] sm:$0xff]
    %v1652 = vld [vmem:[#allocation3 + $0x210] sm:$0xff]
    %v1653 = vld [vmem:[#allocation3 + $0x218] sm:$0xff]
    %v1654 = vld [vmem:[#allocation3 + $0x220] sm:$0xff]
    %v1655 = vld [vmem:[#allocation3 + $0x228] sm:$0xff]
    %v1656 = vld [vmem:[#allocation3 + $0x230] sm:$0xff]
    %v1657 = vld [vmem:[#allocation3 + $0x238] sm:$0xff]
    %v1658 = vld [vmem:[#allocation3 + $0x240] sm:$0xff]
    %v1659 = vld [vmem:[#allocation3 + $0x248] sm:$0xff]
    %v1660 = vld [vmem:[#allocation3 + $0x250] sm:$0xff]
    %v1661 = vld [vmem:[#allocation3 + $0x258] sm:$0xff]
    %v1662 = vld [vmem:[#allocation3 + $0x260] sm:$0xff]
    %v1663 = vld [vmem:[#allocation3 + $0x268] sm:$0xff]
    %v1664 = vld [vmem:[#allocation3 + $0x270] sm:$0xff]
    %v1665 = vld [vmem:[#allocation3 + $0x278] sm:$0xff]
    %v1666 = vld [vmem:[#allocation3 + $0x280] sm:$0xff]
    %v1667 = vld [vmem:[#allocation3 + $0x288] sm:$0xff]
    %v1668 = vld [vmem:[#allocation3 + $0x290] sm:$0xff]
    %v1669 = vld [vmem:[#allocation3 + $0x298] sm:$0xff]
    %v1670 = vld [vmem:[#allocation3 + $0x2a0] sm:$0xff]
    %v1671 = vld [vmem:[#allocation3 + $0x2a8] sm:$0xff]
    %v1672 = vld [vmem:[#allocation3 + $0x2b0] sm:$0xff]
    %v1673 = vld [vmem:[#allocation3 + $0x2b8] sm:$0xff]
    %v1674 = vld [vmem:[#allocation3 + $0x2c0] sm:$0xff]
    %v1675 = vld [vmem:[#allocation3 + $0x2c8] sm:$0xff]
    %v1676 = vld [vmem:[#allocation3 + $0x2d0] sm:$0xff]
    %v1677 = vld [vmem:[#allocation3 + $0x2d8] sm:$0xff]
    %v1678 = vld [vmem:[#allocation3 + $0x2e0] sm:$0xff]
    %v1679 = vld [vmem:[#allocation3 + $0x2e8] sm:$0xff]
    %v1680 = vld [vmem:[#allocation3 + $0x2f0] sm:$0xff]
    %v1681 = vld [vmem:[#allocation3 + $0x2f8] sm:$0xff]
    %v1682 = vld [vmem:[#allocation3 + $0x300] sm:$0xff]
    %v1683 = vld [vmem:[#allocation3 + $0x308] sm:$0xff]
    %v1684 = vld [vmem:[#allocation3 + $0x310] sm:$0xff]
    %v1685 = vld [vmem:[#allocation3 + $0x318] sm:$0xff]
    %v1686 = vld [vmem:[#allocation3 + $0x320] sm:$0xff]
    %v1687 = vld [vmem:[#allocation3 + $0x328] sm:$0xff]
    %v1688 = vld [vmem:[#allocation3 + $0x330] sm:$0xff]
    %v1689 = vld [vmem:[#allocation3 + $0x338] sm:$0xff]
    %v1690 = vld [vmem:[#allocation3 + $0x340] sm:$0xff]
    %v1691 = vld [vmem:[#allocation3 + $0x348] sm:$0xff]
    %v1692 = vld [vmem:[#allocation3 + $0x350] sm:$0xff]
    %v1693 = vld [vmem:[#allocation3 + $0x358] sm:$0xff]
    %v1694 = vld [vmem:[#allocation3 + $0x360] sm:$0xff]
    %v1695 = vld [vmem:[#allocation3 + $0x368] sm:$0xff]
    %v1696 = vld [vmem:[#allocation3 + $0x370] sm:$0xff]
    %v1697 = vld [vmem:[#allocation3 + $0x378] sm:$0xff]
    %v1698 = vld [vmem:[#allocation3 + $0x380] sm:$0xff]
    %v1699 = vld [vmem:[#allocation3 + $0x388] sm:$0xff]
    %v1700 = vld [vmem:[#allocation3 + $0x390] sm:$0xff]
    %v1701 = vld [vmem:[#allocation3 + $0x398] sm:$0xff]
    %v1702 = vld [vmem:[#allocation3 + $0x3a0] sm:$0xff]
    %v1703 = vld [vmem:[#allocation3 + $0x3a8] sm:$0xff]
    %v1704 = vld [vmem:[#allocation3 + $0x3b0] sm:$0xff]
    %v1705 = vld [vmem:[#allocation3 + $0x3b8] sm:$0xff]
    %v1706 = vld [vmem:[#allocation3 + $0x3c0] sm:$0xff]
    %v1707 = vld [vmem:[#allocation3 + $0x3c8] sm:$0xff]
    %v1708 = vld [vmem:[#allocation3 + $0x3d0] sm:$0xff]
    %v1709 = vld [vmem:[#allocation3 + $0x3d8] sm:$0xff]
    %v1710 = vld [vmem:[#allocation3 + $0x3e0] sm:$0xff]
    %v1711 = vld [vmem:[#allocation3 + $0x3e8] sm:$0xff]
    %v1712 = vld [vmem:[#allocation3 + $0x3f0] sm:$0xff]
    %v1713 = vld [vmem:[#allocation3 + $0x3f8] sm:$0xff]
    %v1714 = vld [vmem:[#allocation3 + $0x400] sm:$0xff]
    %v1715 = vld [vmem:[#allocation3 + $0x408] sm:$0xff]
    %v1716 = vld [vmem:[#allocation3 + $0x410] sm:$0xff]
    %v1717 = vld [vmem:[#allocation3 + $0x418] sm:$0xff]
    %v1718 = vld [vmem:[#allocation3 + $0x420] sm:$0xff]
    %v1719 = vld [vmem:[#allocation3 + $0x428] sm:$0xff]
    %v1720 = vld [vmem:[#allocation3 + $0x430] sm:$0xff]
    %v1721 = vld [vmem:[#allocation3 + $0x438] sm:$0xff]
    %v1722 = vld [vmem:[#allocation3 + $0x440] sm:$0xff]
    %v1723 = vld [vmem:[#allocation3 + $0x448] sm:$0xff]
    %v1724 = vld [vmem:[#allocation3 + $0x450] sm:$0xff]
    %v1725 = vld [vmem:[#allocation3 + $0x458] sm:$0xff]
    %v1726 = vld [vmem:[#allocation3 + $0x460] sm:$0xff]
    %v1727 = vld [vmem:[#allocation3 + $0x468] sm:$0xff]
    %v1728 = vld [vmem:[#allocation3 + $0x470] sm:$0xff]
    %v1729 = vld [vmem:[#allocation3 + $0x478] sm:$0xff]
    %v1730 = vld [vmem:[#allocation3 + $0x480] sm:$0xff]
    %v1731 = vld [vmem:[#allocation3 + $0x488] sm:$0xff]
    %v1732 = vld [vmem:[#allocation3 + $0x490] sm:$0xff]
    %v1733 = vld [vmem:[#allocation3 + $0x498] sm:$0xff]
    %v1734 = vld [vmem:[#allocation3 + $0x4a0] sm:$0xff]
    %v1735 = vld [vmem:[#allocation3 + $0x4a8] sm:$0xff]
    %v1736 = vld [vmem:[#allocation3 + $0x4b0] sm:$0xff]
    %v1737 = vld [vmem:[#allocation3 + $0x4b8] sm:$0xff]
    %v1738 = vld [vmem:[#allocation3 + $0x4c0] sm:$0xff]
    %v1739 = vld [vmem:[#allocation3 + $0x4c8] sm:$0xff]
    %v1740 = vld [vmem:[#allocation3 + $0x4d0] sm:$0xff]
    %v1741 = vld [vmem:[#allocation3 + $0x4d8] sm:$0xff]
    %v1742 = vld [vmem:[#allocation3 + $0x4e0] sm:$0xff]
    %v1743 = vld [vmem:[#allocation3 + $0x4e8] sm:$0xff]
    %v1744 = vld [vmem:[#allocation3 + $0x4f0] sm:$0xff]
    %v1745 = vld [vmem:[#allocation3 + $0x4f8] sm:$0xff]
    %v1747 = vlaneseq
    %v1748 = vshrl.u32 %v1747, 7
    %v1749 = vsub.s32 0, %v1748
    %v1750 = vrot.slane %v1577, %v1749
    %v1751 = vlaneseq
    %v1752 = vshrl.u32 %v1751, 7
    %v1753 = vsub.s32 1, %v1752
    %v1754 = vrot.slane %v1577, %v1753
    %v1755 = vlaneseq
    %v1756 = vshrl.u32 %v1755, 7
    %v1757 = vsub.s32 2, %v1756
    %v1758 = vrot.slane %v1577, %v1757
    %v1759 = vlaneseq
    %v1760 = vshrl.u32 %v1759, 7
    %v1761 = vsub.s32 3, %v1760
    %v1762 = vrot.slane %v1577, %v1761
    %1767 = vmatprep.subr.bf16.mxu0 %v1587
    %1768 = vmatpush1.bf16.msra.mxu0 %v1586
    %1769 = vmatprep.subr.bf16.mxu0 %v1591
    %1770 = vmatpush1.bf16.msra.mxu0 %v1590
    %1771 = vmatprep.subr.bf16.mxu0 %v1595
    %1772 = vmatpush1.bf16.msra.mxu0 %v1594
    %1773 = vmatprep.subr.bf16.mxu0 %v1599
    %1774 = vmatpush1.bf16.msra.mxu0 %v1598
    %1775 = vmatprep.subr.bf16.mxu0 %v1603
    %1776 = vmatpush1.bf16.msra.mxu0 %v1602
    %1777 = vmatprep.subr.bf16.mxu0 %v1607
    %1778 = vmatpush1.bf16.msra.mxu0 %v1606
    %1779 = vmatprep.subr.bf16.mxu0 %v1611
    %1780 = vmatpush1.bf16.msra.mxu0 %v1610
    %1781 = vmatprep.subr.bf16.mxu0 %v1615
    %1782 = vmatpush1.bf16.msra.mxu0 %v1614
    %1783 = vmatprep.subr.bf16.mxu0 %v1619
    %1784 = vmatpush1.bf16.msra.mxu0 %v1618
    %1785 = vmatprep.subr.bf16.mxu0 %v1623
    %1786 = vmatpush1.bf16.msra.mxu0 %v1622
    %1787 = vmatprep.subr.bf16.mxu0 %v1627
    %1788 = vmatpush1.bf16.msra.mxu0 %v1626
    %1789 = vmatprep.subr.bf16.mxu0 %v1631
    %1790 = vmatpush1.bf16.msra.mxu0 %v1630
    %1791 = vmatprep.subr.bf16.mxu0 %v1635
    %1792 = vmatpush1.bf16.msra.mxu0 %v1634
    %1793 = vmatprep.subr.bf16.mxu0 %v1639
    %1794 = vmatpush1.bf16.msra.mxu0 %v1638
    %1795 = vmatprep.subr.bf16.mxu0 %v1643
    %1796 = vmatpush1.bf16.msra.mxu0 %v1642
    %1797 = vmatprep.subr.bf16.mxu0 %v1647
    %1798 = vmatpush1.bf16.msra.mxu0 %v1646
    %1799 = vmatprep.mubr.bf16.mxu0 %v1537
    %1800 = vmatmul.mubr.bf16.gmra.mrb[0].mxu0 %v1536
    %v1801 = vpop.f32.mrb[0].mxu0
    %v1802 = vadd.f32 %v1750, %v1801
    %v1803 = vpop.f32.mrb[0].mxu0
    %v1804 = vadd.f32 %v1754, %v1803
    %v1805 = vpop.f32.mrb[0].mxu0
    %v1806 = vadd.f32 %v1750, %v1805
    %v1807 = vpop.f32.mrb[0].mxu0
    %v1808 = vadd.f32 %v1754, %v1807
    %1809 = vmatprep.mubr.bf16.mxu0 %v1542
    %1810 = vmatmul.mubr.bf16.gmra.mrb[0].mxu0 %v1541
    %v1811 = vpop.f32.mrb[0].mxu0
    %v1812 = vadd.f32 %v1750, %v1811
    %v1813 = vpop.f32.mrb[0].mxu0
    %v1814 = vadd.f32 %v1754, %v1813
    %v1815 = vpop.f32.mrb[0].mxu0
    %v1816 = vadd.f32 %v1750, %v1815
    %v1817 = vpop.f32.mrb[0].mxu0
    %v1818 = vadd.f32 %v1754, %v1817
    %1819 = vmatprep.mubr.bf16.mxu0 %v1547
    %1820 = vmatmul.mubr.bf16.gmra.mrb[0].mxu0 %v1546
    %v1821 = vpop.f32.mrb[0].mxu0
    %v1822 = vadd.f32 %v1750, %v1821
    %v1823 = vpop.f32.mrb[0].mxu0
    %v1824 = vadd.f32 %v1754, %v1823
    %v1825 = vpop.f32.mrb[0].mxu0
    %v1826 = vadd.f32 %v1750, %v1825
    %v1827 = vpop.f32.mrb[0].mxu0
    %v1828 = vadd.f32 %v1754, %v1827
    %1829 = vmatprep.mubr.bf16.mxu0 %v1552
    %1830 = vmatmul.mubr.bf16.gmra.mrb[0].mxu0 %v1551
    %v1831 = vpop.f32.mrb[0].mxu0
    %v1832 = vadd.f32 %v1750, %v1831
    %v1833 = vpop.f32.mrb[0].mxu0
    %v1834 = vadd.f32 %v1754, %v1833
    %v1835 = vpop.f32.mrb[0].mxu0
    %v1836 = vadd.f32 %v1750, %v1835
    %v1837 = vpop.f32.mrb[0].mxu0
    %v1838 = vadd.f32 %v1754, %v1837
    %1839 = vmatprep.mubr.bf16.mxu0 %v1557
    %1840 = vmatmul.mubr.bf16.gmra.mrb[0].mxu0 %v1556
    %v1841 = vpop.f32.mrb[0].mxu0
    %v1842 = vadd.f32 %v1750, %v1841
    %v1843 = vpop.f32.mrb[0].mxu0
    %v1844 = vadd.f32 %v1754, %v1843
    %v1845 = vpop.f32.mrb[0].mxu0
    %v1846 = vadd.f32 %v1750, %v1845
    %v1847 = vpop.f32.mrb[0].mxu0
    %v1848 = vadd.f32 %v1754, %v1847
    %1849 = vmatprep.mubr.bf16.mxu0 %v1562
    %1850 = vmatmul.mubr.bf16.gmra.mrb[0].mxu0 %v1561
    %v1851 = vpop.f32.mrb[0].mxu0
    %v1852 = vadd.f32 %v1750, %v1851
    %v1853 = vpop.f32.mrb[0].mxu0
    %v1854 = vadd.f32 %v1754, %v1853
    %v1855 = vpop.f32.mrb[0].mxu0
    %v1856 = vadd.f32 %v1750, %v1855
    %v1857 = vpop.f32.mrb[0].mxu0
    %v1858 = vadd.f32 %v1754, %v1857
    %1859 = vmatprep.mubr.bf16.mxu0 %v1567
    %1860 = vmatmul.mubr.bf16.gmra.mrb[0].mxu0 %v1566
    %v1861 = vpop.f32.mrb[0].mxu0
    %v1862 = vadd.f32 %v1750, %v1861
    %v1863 = vpop.f32.mrb[0].mxu0
    %v1864 = vadd.f32 %v1754, %v1863
    %v1865 = vpop.f32.mrb[0].mxu0
    %v1866 = vadd.f32 %v1750, %v1865
    %v1867 = vpop.f32.mrb[0].mxu0
    %v1868 = vadd.f32 %v1754, %v1867
    %1869 = vmatprep.mubr.bf16.mxu0 %v1572
    %1870 = vmatmul.mubr.bf16.gmra.mrb[0].mxu0 %v1571
    %v1871 = vpop.f32.mrb[0].mxu0
    %v1872 = vadd.f32 %v1750, %v1871
    %v1873 = vpop.f32.mrb[0].mxu0
    %v1874 = vadd.f32 %v1754, %v1873
    %v1875 = vpop.f32.mrb[0].mxu0
    %v1876 = vadd.f32 %v1750, %v1875
    %v1877 = vpop.f32.mrb[0].mxu0
    %v1878 = vadd.f32 %v1754, %v1877
    %1879 = vdwg.mxu0
    %1880 = vmatprep.subr.bf16.mxu0 %v1651
    %1881 = vmatpush1.bf16.msra.mxu0 %v1650
    %1882 = vmatprep.subr.bf16.mxu0 %v1655
    %1883 = vmatpush1.bf16.msra.mxu0 %v1654
    %1884 = vmatprep.subr.bf16.mxu0 %v1659
    %1885 = vmatpush1.bf16.msra.mxu0 %v1658
    %1886 = vmatprep.subr.bf16.mxu0 %v1663
    %1887 = vmatpush1.bf16.msra.mxu0 %v1662
    %1888 = vmatprep.subr.bf16.mxu0 %v1667
    %1889 = vmatpush1.bf16.msra.mxu0 %v1666
    %1890 = vmatprep.subr.bf16.mxu0 %v1671
    %1891 = vmatpush1.bf16.msra.mxu0 %v1670
    %1892 = vmatprep.subr.bf16.mxu0 %v1675
    %1893 = vmatpush1.bf16.msra.mxu0 %v1674
    %1894 = vmatprep.subr.bf16.mxu0 %v1679
    %1895 = vmatpush1.bf16.msra.mxu0 %v1678
    %1896 = vmatprep.subr.bf16.mxu0 %v1683
    %1897 = vmatpush1.bf16.msra.mxu0 %v1682
    %1898 = vmatprep.subr.bf16.mxu0 %v1687
    %1899 = vmatpush1.bf16.msra.mxu0 %v1686
    %1900 = vmatprep.subr.bf16.mxu0 %v1691
    %1901 = vmatpush1.bf16.msra.mxu0 %v1690
    %1902 = vmatprep.subr.bf16.mxu0 %v1695
    %1903 = vmatpush1.bf16.msra.mxu0 %v1694
    %1904 = vmatprep.subr.bf16.mxu0 %v1699
    %1905 = vmatpush1.bf16.msra.mxu0 %v1698
    %1906 = vmatprep.subr.bf16.mxu0 %v1703
    %1907 = vmatpush1.bf16.msra.mxu0 %v1702
    %1908 = vmatprep.subr.bf16.mxu0 %v1707
    %1909 = vmatpush1.bf16.msra.mxu0 %v1706
    %1910 = vmatprep.subr.bf16.mxu0 %v1711
    %1911 = vmatpush1.bf16.msra.mxu0 %v1710
    %1912 = vmatprep.mubr.bf16.mxu0 %v1539
    %1913 = vmatmul.mubr.bf16.gmra.mrb[0].mxu0 %v1538
    %v1914 = vpop.f32.mrb[0].mxu0
    %v1915 = vadd.f32 %v1802, %v1914
    %v1916 = vpop.f32.mrb[0].mxu0
    %v1917 = vadd.f32 %v1804, %v1916
    %v1918 = vpop.f32.mrb[0].mxu0
    %v1919 = vadd.f32 %v1806, %v1918
    %v1920 = vpop.f32.mrb[0].mxu0
    %v1921 = vadd.f32 %v1808, %v1920
    %1922 = vmatprep.mubr.bf16.mxu0 %v1544
    %1923 = vmatmul.mubr.bf16.gmra.mrb[0].mxu0 %v1543
    %v1924 = vpop.f32.mrb[0].mxu0
    %v1925 = vadd.f32 %v1812, %v1924
    %v1926 = vpop.f32.mrb[0].mxu0
    %v1927 = vadd.f32 %v1814, %v1926
    %v1928 = vpop.f32.mrb[0].mxu0
    %v1929 = vadd.f32 %v1816, %v1928
    %v1930 = vpop.f32.mrb[0].mxu0
    %v1931 = vadd.f32 %v1818, %v1930
    %1932 = vmatprep.mubr.bf16.mxu0 %v1549
    %1933 = vmatmul.mubr.bf16.gmra.mrb[0].mxu0 %v1548
    %v1934 = vpop.f32.mrb[0].mxu0
    %v1935 = vadd.f32 %v1822, %v1934
    %v1936 = vpop.f32.mrb[0].mxu0
    %v1937 = vadd.f32 %v1824, %v1936
    %v1938 = vpop.f32.mrb[0].mxu0
    %v1939 = vadd.f32 %v1826, %v1938
    %v1940 = vpop.f32.mrb[0].mxu0
    %v1941 = vadd.f32 %v1828, %v1940
    %1942 = vmatprep.mubr.bf16.mxu0 %v1554
    %1943 = vmatmul.mubr.bf16.gmra.mrb[0].mxu0 %v1553
    %v1944 = vpop.f32.mrb[0].mxu0
    %v1945 = vadd.f32 %v1832, %v1944
    %v1946 = vpop.f32.mrb[0].mxu0
    %v1947 = vadd.f32 %v1834, %v1946
    %v1948 = vpop.f32.mrb[0].mxu0
    %v1949 = vadd.f32 %v1836, %v1948
    %v1950 = vpop.f32.mrb[0].mxu0
    %v1951 = vadd.f32 %v1838, %v1950
    %1952 = vmatprep.mubr.bf16.mxu0 %v1559
    %1953 = vmatmul.mubr.bf16.gmra.mrb[0].mxu0 %v1558
    %v1954 = vpop.f32.mrb[0].mxu0
    %v1955 = vadd.f32 %v1842, %v1954
    %v1956 = vpop.f32.mrb[0].mxu0
    %v1957 = vadd.f32 %v1844, %v1956
    %v1958 = vpop.f32.mrb[0].mxu0
    %v1959 = vadd.f32 %v1846, %v1958
    %v1960 = vpop.f32.mrb[0].mxu0
    %v1961 = vadd.f32 %v1848, %v1960
    %1962 = vmatprep.mubr.bf16.mxu0 %v1564
    %1963 = vmatmul.mubr.bf16.gmra.mrb[0].mxu0 %v1563
    %v1964 = vpop.f32.mrb[0].mxu0
    %v1965 = vadd.f32 %v1852, %v1964
    %v1966 = vpop.f32.mrb[0].mxu0
    %v1967 = vadd.f32 %v1854, %v1966
    %v1968 = vpop.f32.mrb[0].mxu0
    %v1969 = vadd.f32 %v1856, %v1968
    %v1970 = vpop.f32.mrb[0].mxu0
    %v1971 = vadd.f32 %v1858, %v1970
    %1972 = vmatprep.mubr.bf16.mxu0 %v1569
    %1973 = vmatmul.mubr.bf16.gmra.mrb[0].mxu0 %v1568
    %v1974 = vpop.f32.mrb[0].mxu0
    %v1975 = vadd.f32 %v1862, %v1974
    %v1976 = vpop.f32.mrb[0].mxu0
    %v1977 = vadd.f32 %v1864, %v1976
    %v1978 = vpop.f32.mrb[0].mxu0
    %v1979 = vadd.f32 %v1866, %v1978
    %v1980 = vpop.f32.mrb[0].mxu0
    %v1981 = vadd.f32 %v1868, %v1980
    %1982 = vmatprep.mubr.bf16.mxu0 %v1574
    %1983 = vmatmul.mubr.bf16.gmra.mrb[0].mxu0 %v1573
    %v1984 = vpop.f32.mrb[0].mxu0
    %v1985 = vadd.f32 %v1872, %v1984
    %v1986 = vpop.f32.mrb[0].mxu0
    %v1987 = vadd.f32 %v1874, %v1986
    %v1988 = vpop.f32.mrb[0].mxu0
    %v1989 = vadd.f32 %v1876, %v1988
    %v1990 = vpop.f32.mrb[0].mxu0
    %v1991 = vadd.f32 %v1878, %v1990
    %1992 = vdwg.mxu0
    %1993 = vmatprep.subr.bf16.mxu0 %v1715
    %1994 = vmatpush1.bf16.msra.mxu0 %v1714
    %1995 = vmatprep.subr.bf16.mxu0 %v1719
    %1996 = vmatpush1.bf16.msra.mxu0 %v1718
    %1997 = vmatprep.subr.bf16.mxu0 %v1723
    %1998 = vmatpush1.bf16.msra.mxu0 %v1722
    %1999 = vmatprep.subr.bf16.mxu0 %v1727
    %2000 = vmatpush1.bf16.msra.mxu0 %v1726
    %2001 = vmatprep.subr.bf16.mxu0 %v1731
    %2002 = vmatpush1.bf16.msra.mxu0 %v1730
    %2003 = vmatprep.subr.bf16.mxu0 %v1735
    %2004 = vmatpush1.bf16.msra.mxu0 %v1734
    %2005 = vmatprep.subr.bf16.mxu0 %v1739
    %2006 = vmatpush1.bf16.msra.mxu0 %v1738
    %2007 = vmatprep.subr.bf16.mxu0 %v1743
    %2008 = vmatpush1.bf16.msra.mxu0 %v1742
    %2009 = vmatprep.subr.bf16.mxu0 0
    %2010 = vmatpush1.bf16.msra.mxu0 0
    %2011 = vmatprep.subr.bf16.mxu0 0
    %2012 = vmatpush1.bf16.msra.mxu0 0
    %2013 = vmatprep.subr.bf16.mxu0 0
    %2014 = vmatpush1.bf16.msra.mxu0 0
    %2015 = vmatprep.subr.bf16.mxu0 0
    %2016 = vmatpush1.bf16.msra.mxu0 0
    %2017 = vmatprep.subr.bf16.mxu0 0
    %2018 = vmatpush1.bf16.msra.mxu0 0
    %2019 = vmatprep.subr.bf16.mxu0 0
    %2020 = vmatpush1.bf16.msra.mxu0 0
    %2021 = vmatprep.subr.bf16.mxu0 0
    %2022 = vmatpush1.bf16.msra.mxu0 0
    %2023 = vmatprep.subr.bf16.mxu0 0
    %2024 = vmatpush1.bf16.msra.mxu0 0
    %2025 = vmatprep.mubr.bf16.mxu0 0
    %2026 = vmatmul.mubr.bf16.gmra.mrb[0].mxu0 %v1540
    %v2027 = vpop.f32.mrb[0].mxu0
    %v2028 = vadd.f32 %v1915, %v2027
    %v2029 = vpop.f32.mrb[0].mxu0
    %v2030 = vadd.f32 %v1917, %v2029
    %v2031 = vpop.f32.mrb[0].mxu0
    %v2032 = vadd.f32 %v1919, %v2031
    %v2033 = vpop.f32.mrb[0].mxu0
    %v2034 = vadd.f32 %v1921, %v2033
    %2035 = vmatprep.mubr.bf16.mxu0 0
    %2036 = vmatmul.mubr.bf16.gmra.mrb[0].mxu0 %v1545
    %v2037 = vpop.f32.mrb[0].mxu0
    %v2038 = vadd.f32 %v1925, %v2037
    %v2039 = vpop.f32.mrb[0].mxu0
    %v2040 = vadd.f32 %v1927, %v2039
    %v2041 = vpop.f32.mrb[0].mxu0
    %v2042 = vadd.f32 %v1929, %v2041
    %v2043 = vpop.f32.mrb[0].mxu0
    %v2044 = vadd.f32 %v1931, %v2043
    %2045 = vmatprep.mubr.bf16.mxu0 0
    %2046 = vmatmul.mubr.bf16.gmra.mrb[0].mxu0 %v1550
    %v2047 = vpop.f32.mrb[0].mxu0
    %v2048 = vadd.f32 %v1935, %v2047
    %v2049 = vpop.f32.mrb[0].mxu0
    %v2050 = vadd.f32 %v1937, %v2049
    %v2051 = vpop.f32.mrb[0].mxu0
    %v2052 = vadd.f32 %v1939, %v2051
    %v2053 = vpop.f32.mrb[0].mxu0
    %v2054 = vadd.f32 %v1941, %v2053
    %2055 = vmatprep.mubr.bf16.mxu0 0
    %2056 = vmatmul.mubr.bf16.gmra.mrb[0].mxu0 %v1555
    %v2057 = vpop.f32.mrb[0].mxu0
    %v2058 = vadd.f32 %v1945, %v2057
    %v2059 = vpop.f32.mrb[0].mxu0
    %v2060 = vadd.f32 %v1947, %v2059
    %v2061 = vpop.f32.mrb[0].mxu0
    %v2062 = vadd.f32 %v1949, %v2061
    %v2063 = vpop.f32.mrb[0].mxu0
    %v2064 = vadd.f32 %v1951, %v2063
    %2065 = vmatprep.mubr.bf16.mxu0 0
    %2066 = vmatmul.mubr.bf16.gmra.mrb[0].mxu0 %v1560
    %v2067 = vpop.f32.mrb[0].mxu0
    %v2068 = vadd.f32 %v1955, %v2067
    %v2069 = vpop.f32.mrb[0].mxu0
    %v2070 = vadd.f32 %v1957, %v2069
    %v2071 = vpop.f32.mrb[0].mxu0
    %v2072 = vadd.f32 %v1959, %v2071
    %v2073 = vpop.f32.mrb[0].mxu0
    %v2074 = vadd.f32 %v1961, %v2073
    %2075 = vmatprep.mubr.bf16.mxu0 0
    %2076 = vmatmul.mubr.bf16.gmra.mrb[0].mxu0 %v1565
    %v2077 = vpop.f32.mrb[0].mxu0
    %v2078 = vadd.f32 %v1965, %v2077
    %v2079 = vpop.f32.mrb[0].mxu0
    %v2080 = vadd.f32 %v1967, %v2079
    %v2081 = vpop.f32.mrb[0].mxu0
    %v2082 = vadd.f32 %v1969, %v2081
    %v2083 = vpop.f32.mrb[0].mxu0
    %v2084 = vadd.f32 %v1971, %v2083
    %2085 = vmatprep.mubr.bf16.mxu0 0
    %2086 = vmatmul.mubr.bf16.gmra.mrb[0].mxu0 %v1570
    %v2087 = vpop.f32.mrb[0].mxu0
    %v2088 = vadd.f32 %v1975, %v2087
    %v2089 = vpop.f32.mrb[0].mxu0
    %v2090 = vadd.f32 %v1977, %v2089
    %v2091 = vpop.f32.mrb[0].mxu0
    %v2092 = vadd.f32 %v1979, %v2091
    %v2093 = vpop.f32.mrb[0].mxu0
    %v2094 = vadd.f32 %v1981, %v2093
    %2095 = vmatprep.mubr.bf16.mxu0 0
    %2096 = vmatmul.mubr.bf16.gmra.mrb[0].mxu0 %v1575
    %v2097 = vpop.f32.mrb[0].mxu0
    %v2098 = vadd.f32 %v1985, %v2097
    %v2099 = vpop.f32.mrb[0].mxu0
    %v2100 = vadd.f32 %v1987, %v2099
    %v2101 = vpop.f32.mrb[0].mxu0
    %v2102 = vadd.f32 %v1989, %v2101
    %v2103 = vpop.f32.mrb[0].mxu0
    %v2104 = vadd.f32 %v1991, %v2103
    %2105 = vdwg.mxu0
    %2106 = vmatprep.subr.bf16.mxu0 %v1589
    %2107 = vmatpush1.bf16.msra.mxu0 %v1588
    %2108 = vmatprep.subr.bf16.mxu0 %v1593
    %2109 = vmatpush1.bf16.msra.mxu0 %v1592
    %2110 = vmatprep.subr.bf16.mxu0 %v1597
    %2111 = vmatpush1.bf16.msra.mxu0 %v1596
    %2112 = vmatprep.subr.bf16.mxu0 %v1601
    %2113 = vmatpush1.bf16.msra.mxu0 %v1600
    %2114 = vmatprep.subr.bf16.mxu0 %v1605
    %2115 = vmatpush1.bf16.msra.mxu0 %v1604
    %2116 = vmatprep.subr.bf16.mxu0 %v1609
    %2117 = vmatpush1.bf16.msra.mxu0 %v1608
    %2118 = vmatprep.subr.bf16.mxu0 %v1613
    %2119 = vmatpush1.bf16.msra.mxu0 %v1612
    %2120 = vmatprep.subr.bf16.mxu0 %v1617
    %2121 = vmatpush1.bf16.msra.mxu0 %v1616
    %2122 = vmatprep.subr.bf16.mxu0 %v1621
    %2123 = vmatpush1.bf16.msra.mxu0 %v1620
    %2124 = vmatprep.subr.bf16.mxu0 %v1625
    %2125 = vmatpush1.bf16.msra.mxu0 %v1624
    %2126 = vmatprep.subr.bf16.mxu0 %v1629
    %2127 = vmatpush1.bf16.msra.mxu0 %v1628
    %2128 = vmatprep.subr.bf16.mxu0 %v1633
    %2129 = vmatpush1.bf16.msra.mxu0 %v1632
    %2130 = vmatprep.subr.bf16.mxu0 %v1637
    %2131 = vmatpush1.bf16.msra.mxu0 %v1636
    %2132 = vmatprep.subr.bf16.mxu0 %v1641
    %2133 = vmatpush1.bf16.msra.mxu0 %v1640
    %2134 = vmatprep.subr.bf16.mxu0 %v1645
    %2135 = vmatpush1.bf16.msra.mxu0 %v1644
    %2136 = vmatprep.subr.bf16.mxu0 %v1649
    %2137 = vmatpush1.bf16.msra.mxu0 %v1648
    %2138 = vmatprep.mubr.bf16.mxu0 %v1537
    %2139 = vmatmul.mubr.bf16.gmra.mrb[0].mxu0 %v1536
    %v2140 = vpop.f32.mrb[0].mxu0
    %v2141 = vadd.f32 %v1758, %v2140
    %v2142 = vpop.f32.mrb[0].mxu0
    %v2143 = vadd.f32 %v1762, %v2142
    %v2144 = vpop.f32.mrb[0].mxu0
    %v2145 = vadd.f32 %v1758, %v2144
    %v2146 = vpop.f32.mrb[0].mxu0
    %v2147 = vadd.f32 %v1762, %v2146
    %2148 = vmatprep.mubr.bf16.mxu0 %v1542
    %2149 = vmatmul.mubr.bf16.gmra.mrb[0].mxu0 %v1541
    %v2150 = vpop.f32.mrb[0].mxu0
    %v2151 = vadd.f32 %v1758, %v2150
    %v2152 = vpop.f32.mrb[0].mxu0
    %v2153 = vadd.f32 %v1762, %v2152
    %v2154 = vpop.f32.mrb[0].mxu0
    %v2155 = vadd.f32 %v1758, %v2154
    %v2156 = vpop.f32.mrb[0].mxu0
    %v2157 = vadd.f32 %v1762, %v2156
    %2158 = vmatprep.mubr.bf16.mxu0 %v1547
    %2159 = vmatmul.mubr.bf16.gmra.mrb[0].mxu0 %v1546
    %v2160 = vpop.f32.mrb[0].mxu0
    %v2161 = vadd.f32 %v1758, %v2160
    %v2162 = vpop.f32.mrb[0].mxu0
    %v2163 = vadd.f32 %v1762, %v2162
    %v2164 = vpop.f32.mrb[0].mxu0
    %v2165 = vadd.f32 %v1758, %v2164
    %v2166 = vpop.f32.mrb[0].mxu0
    %v2167 = vadd.f32 %v1762, %v2166
    %2168 = vmatprep.mubr.bf16.mxu0 %v1552
    %2169 = vmatmul.mubr.bf16.gmra.mrb[0].mxu0 %v1551
    %v2170 = vpop.f32.mrb[0].mxu0
    %v2171 = vadd.f32 %v1758, %v2170
    %v2172 = vpop.f32.mrb[0].mxu0
    %v2173 = vadd.f32 %v1762, %v2172
    %v2174 = vpop.f32.mrb[0].mxu0
    %v2175 = vadd.f32 %v1758, %v2174
    %v2176 = vpop.f32.mrb[0].mxu0
    %v2177 = vadd.f32 %v1762, %v2176
    %2178 = vmatprep.mubr.bf16.mxu0 %v1557
    %2179 = vmatmul.mubr.bf16.gmra.mrb[0].mxu0 %v1556
    %v2180 = vpop.f32.mrb[0].mxu0
    %v2181 = vadd.f32 %v1758, %v2180
    %v2182 = vpop.f32.mrb[0].mxu0
    %v2183 = vadd.f32 %v1762, %v2182
    %v2184 = vpop.f32.mrb[0].mxu0
    %v2185 = vadd.f32 %v1758, %v2184
    %v2186 = vpop.f32.mrb[0].mxu0
    %v2187 = vadd.f32 %v1762, %v2186
    %2188 = vmatprep.mubr.bf16.mxu0 %v1562
    %2189 = vmatmul.mubr.bf16.gmra.mrb[0].mxu0 %v1561
    %v2190 = vpop.f32.mrb[0].mxu0
    %v2191 = vadd.f32 %v1758, %v2190
    %v2192 = vpop.f32.mrb[0].mxu0
    %v2193 = vadd.f32 %v1762, %v2192
    %v2194 = vpop.f32.mrb[0].mxu0
    %v2195 = vadd.f32 %v1758, %v2194
    %v2196 = vpop.f32.mrb[0].mxu0
    %v2197 = vadd.f32 %v1762, %v2196
    %2198 = vmatprep.mubr.bf16.mxu0 %v1567
    %2199 = vmatmul.mubr.bf16.gmra.mrb[0].mxu0 %v1566
    %v2200 = vpop.f32.mrb[0].mxu0
    %v2201 = vadd.f32 %v1758, %v2200
    %v2202 = vpop.f32.mrb[0].mxu0
    %v2203 = vadd.f32 %v1762, %v2202
    %v2204 = vpop.f32.mrb[0].mxu0
    %v2205 = vadd.f32 %v1758, %v2204
    %v2206 = vpop.f32.mrb[0].mxu0
    %v2207 = vadd.f32 %v1762, %v2206
    %2208 = vmatprep.mubr.bf16.mxu0 %v1572
    %2209 = vmatmul.mubr.bf16.gmra.mrb[0].mxu0 %v1571
    %v2210 = vpop.f32.mrb[0].mxu0
    %v2211 = vadd.f32 %v1758, %v2210
    %v2212 = vpop.f32.mrb[0].mxu0
    %v2213 = vadd.f32 %v1762, %v2212
    %v2214 = vpop.f32.mrb[0].mxu0
    %v2215 = vadd.f32 %v1758, %v2214
    %v2216 = vpop.f32.mrb[0].mxu0
    %v2217 = vadd.f32 %v1762, %v2216
    %2218 = vdwg.mxu0
    %2219 = vmatprep.subr.bf16.mxu0 %v1653
    %2220 = vmatpush1.bf16.msra.mxu0 %v1652
    %2221 = vmatprep.subr.bf16.mxu0 %v1657
    %2222 = vmatpush1.bf16.msra.mxu0 %v1656
    %2223 = vmatprep.subr.bf16.mxu0 %v1661
    %2224 = vmatpush1.bf16.msra.mxu0 %v1660
    %2225 = vmatprep.subr.bf16.mxu0 %v1665
    %2226 = vmatpush1.bf16.msra.mxu0 %v1664
    %2227 = vmatprep.subr.bf16.mxu0 %v1669
    %2228 = vmatpush1.bf16.msra.mxu0 %v1668
    %2229 = vmatprep.subr.bf16.mxu0 %v1673
    %2230 = vmatpush1.bf16.msra.mxu0 %v1672
    %2231 = vmatprep.subr.bf16.mxu0 %v1677
    %2232 = vmatpush1.bf16.msra.mxu0 %v1676
    %2233 = vmatprep.subr.bf16.mxu0 %v1681
    %2234 = vmatpush1.bf16.msra.mxu0 %v1680
    %2235 = vmatprep.subr.bf16.mxu0 %v1685
    %2236 = vmatpush1.bf16.msra.mxu0 %v1684
    %2237 = vmatprep.subr.bf16.mxu0 %v1689
    %2238 = vmatpush1.bf16.msra.mxu0 %v1688
    %2239 = vmatprep.subr.bf16.mxu0 %v1693
    %2240 = vmatpush1.bf16.msra.mxu0 %v1692
    %2241 = vmatprep.subr.bf16.mxu0 %v1697
    %2242 = vmatpush1.bf16.msra.mxu0 %v1696
    %2243 = vmatprep.subr.bf16.mxu0 %v1701
    %2244 = vmatpush1.bf16.msra.mxu0 %v1700
    %2245 = vmatprep.subr.bf16.mxu0 %v1705
    %2246 = vmatpush1.bf16.msra.mxu0 %v1704
    %2247 = vmatprep.subr.bf16.mxu0 %v1709
    %2248 = vmatpush1.bf16.msra.mxu0 %v1708
    %2249 = vmatprep.subr.bf16.mxu0 %v1713
    %2250 = vmatpush1.bf16.msra.mxu0 %v1712
    %2251 = vmatprep.mubr.bf16.mxu0 %v1539
    %2252 = vmatmul.mubr.bf16.gmra.mrb[0].mxu0 %v1538
    %v2253 = vpop.f32.mrb[0].mxu0
    %v2254 = vadd.f32 %v2141, %v2253
    %v2255 = vpop.f32.mrb[0].mxu0
    %v2256 = vadd.f32 %v2143, %v2255
    %v2257 = vpop.f32.mrb[0].mxu0
    %v2258 = vadd.f32 %v2145, %v2257
    %v2259 = vpop.f32.mrb[0].mxu0
    %v2260 = vadd.f32 %v2147, %v2259
    %2261 = vmatprep.mubr.bf16.mxu0 %v1544
    %2262 = vmatmul.mubr.bf16.gmra.mrb[0].mxu0 %v1543
    %v2263 = vpop.f32.mrb[0].mxu0
    %v2264 = vadd.f32 %v2151, %v2263
    %v2265 = vpop.f32.mrb[0].mxu0
    %v2266 = vadd.f32 %v2153, %v2265
    %v2267 = vpop.f32.mrb[0].mxu0
    %v2268 = vadd.f32 %v2155, %v2267
    %v2269 = vpop.f32.mrb[0].mxu0
    %v2270 = vadd.f32 %v2157, %v2269
    %2271 = vmatprep.mubr.bf16.mxu0 %v1549
    %2272 = vmatmul.mubr.bf16.gmra.mrb[0].mxu0 %v1548
    %v2273 = vpop.f32.mrb[0].mxu0
    %v2274 = vadd.f32 %v2161, %v2273
    %v2275 = vpop.f32.mrb[0].mxu0
    %v2276 = vadd.f32 %v2163, %v2275
    %v2277 = vpop.f32.mrb[0].mxu0
    %v2278 = vadd.f32 %v2165, %v2277
    %v2279 = vpop.f32.mrb[0].mxu0
    %v2280 = vadd.f32 %v2167, %v2279
    %2281 = vmatprep.mubr.bf16.mxu0 %v1554
    %2282 = vmatmul.mubr.bf16.gmra.mrb[0].mxu0 %v1553
    %v2283 = vpop.f32.mrb[0].mxu0
    %v2284 = vadd.f32 %v2171, %v2283
    %v2285 = vpop.f32.mrb[0].mxu0
    %v2286 = vadd.f32 %v2173, %v2285
    %v2287 = vpop.f32.mrb[0].mxu0
    %v2288 = vadd.f32 %v2175, %v2287
    %v2289 = vpop.f32.mrb[0].mxu0
    %v2290 = vadd.f32 %v2177, %v2289
    %2291 = vmatprep.mubr.bf16.mxu0 %v1559
    %2292 = vmatmul.mubr.bf16.gmra.mrb[0].mxu0 %v1558
    %v2293 = vpop.f32.mrb[0].mxu0
    %v2294 = vadd.f32 %v2181, %v2293
    %v2295 = vpop.f32.mrb[0].mxu0
    %v2296 = vadd.f32 %v2183, %v2295
    %v2297 = vpop.f32.mrb[0].mxu0
    %v2298 = vadd.f32 %v2185, %v2297
    %v2299 = vpop.f32.mrb[0].mxu0
    %v2300 = vadd.f32 %v2187, %v2299
    %2301 = vmatprep.mubr.bf16.mxu0 %v1564
    %2302 = vmatmul.mubr.bf16.gmra.mrb[0].mxu0 %v1563
    %v2303 = vpop.f32.mrb[0].mxu0
    %v2304 = vadd.f32 %v2191, %v2303
    %v2305 = vpop.f32.mrb[0].mxu0
    %v2306 = vadd.f32 %v2193, %v2305
    %v2307 = vpop.f32.mrb[0].mxu0
    %v2308 = vadd.f32 %v2195, %v2307
    %v2309 = vpop.f32.mrb[0].mxu0
    %v2310 = vadd.f32 %v2197, %v2309
    %2311 = vmatprep.mubr.bf16.mxu0 %v1569
    %2312 = vmatmul.mubr.bf16.gmra.mrb[0].mxu0 %v1568
    %v2313 = vpop.f32.mrb[0].mxu0
    %v2314 = vadd.f32 %v2201, %v2313
    %v2315 = vpop.f32.mrb[0].mxu0
    %v2316 = vadd.f32 %v2203, %v2315
    %v2317 = vpop.f32.mrb[0].mxu0
    %v2318 = vadd.f32 %v2205, %v2317
    %v2319 = vpop.f32.mrb[0].mxu0
    %v2320 = vadd.f32 %v2207, %v2319
    %2321 = vmatprep.mubr.bf16.mxu0 %v1574
    %2322 = vmatmul.mubr.bf16.gmra.mrb[0].mxu0 %v1573
    %v2323 = vpop.f32.mrb[0].mxu0
    %v2324 = vadd.f32 %v2211, %v2323
    %v2325 = vpop.f32.mrb[0].mxu0
    %v2326 = vadd.f32 %v2213, %v2325
    %v2327 = vpop.f32.mrb[0].mxu0
    %v2328 = vadd.f32 %v2215, %v2327
    %v2329 = vpop.f32.mrb[0].mxu0
    %v2330 = vadd.f32 %v2217, %v2329
    %2331 = vdwg.mxu0
    %2332 = vmatprep.subr.bf16.mxu0 %v1717
    %2333 = vmatpush1.bf16.msra.mxu0 %v1716
    %2334 = vmatprep.subr.bf16.mxu0 %v1721
    %2335 = vmatpush1.bf16.msra.mxu0 %v1720
    %2336 = vmatprep.subr.bf16.mxu0 %v1725
    %2337 = vmatpush1.bf16.msra.mxu0 %v1724
    %2338 = vmatprep.subr.bf16.mxu0 %v1729
    %2339 = vmatpush1.bf16.msra.mxu0 %v1728
    %2340 = vmatprep.subr.bf16.mxu0 %v1733
    %2341 = vmatpush1.bf16.msra.mxu0 %v1732
    %2342 = vmatprep.subr.bf16.mxu0 %v1737
    %2343 = vmatpush1.bf16.msra.mxu0 %v1736
    %2344 = vmatprep.subr.bf16.mxu0 %v1741
    %2345 = vmatpush1.bf16.msra.mxu0 %v1740
    %2346 = vmatprep.subr.bf16.mxu0 %v1745
    %2347 = vmatpush1.bf16.msra.mxu0 %v1744
    %2348 = vmatprep.subr.bf16.mxu0 0
    %2349 = vmatpush1.bf16.msra.mxu0 0
    %2350 = vmatprep.subr.bf16.mxu0 0
    %2351 = vmatpush1.bf16.msra.mxu0 0
    %2352 = vmatprep.subr.bf16.mxu0 0
    %2353 = vmatpush1.bf16.msra.mxu0 0
    %2354 = vmatprep.subr.bf16.mxu0 0
    %2355 = vmatpush1.bf16.msra.mxu0 0
    %2356 = vmatprep.subr.bf16.mxu0 0
    %2357 = vmatpush1.bf16.msra.mxu0 0
    %2358 = vmatprep.subr.bf16.mxu0 0
    %2359 = vmatpush1.bf16.msra.mxu0 0
    %2360 = vmatprep.subr.bf16.mxu0 0
    %2361 = vmatpush1.bf16.msra.mxu0 0
    %2362 = vmatprep.subr.bf16.mxu0 0
    %2363 = vmatpush1.bf16.msra.mxu0 0
    %2364 = vmatprep.mubr.bf16.mxu0 0
    %2365 = vmatmul.mubr.bf16.gmra.mrb[0].mxu0 %v1540
    %v2366 = vpop.f32.mrb[0].mxu0
    %v2367 = vadd.f32 %v2254, %v2366
    %v2368 = vpop.f32.mrb[0].mxu0
    %v2369 = vadd.f32 %v2256, %v2368
    %v2370 = vpop.f32.mrb[0].mxu0
    %v2371 = vadd.f32 %v2258, %v2370
    %v2372 = vpop.f32.mrb[0].mxu0
    %v2373 = vadd.f32 %v2260, %v2372
    %2374 = vmatprep.mubr.bf16.mxu0 0
    %2375 = vmatmul.mubr.bf16.gmra.mrb[0].mxu0 %v1545
    %v2376 = vpop.f32.mrb[0].mxu0
    %v2377 = vadd.f32 %v2264, %v2376
    %v2378 = vpop.f32.mrb[0].mxu0
    %v2379 = vadd.f32 %v2266, %v2378
    %v2380 = vpop.f32.mrb[0].mxu0
    %v2381 = vadd.f32 %v2268, %v2380
    %v2382 = vpop.f32.mrb[0].mxu0
    %v2383 = vadd.f32 %v2270, %v2382
    %2384 = vmatprep.mubr.bf16.mxu0 0
    %2385 = vmatmul.mubr.bf16.gmra.mrb[0].mxu0 %v1550
    %v2386 = vpop.f32.mrb[0].mxu0
    %v2387 = vadd.f32 %v2274, %v2386
    %v2388 = vpop.f32.mrb[0].mxu0
    %v2389 = vadd.f32 %v2276, %v2388
    %v2390 = vpop.f32.mrb[0].mxu0
    %v2391 = vadd.f32 %v2278, %v2390
    %v2392 = vpop.f32.mrb[0].mxu0
    %v2393 = vadd.f32 %v2280, %v2392
    %2394 = vmatprep.mubr.bf16.mxu0 0
    %2395 = vmatmul.mubr.bf16.gmra.mrb[0].mxu0 %v1555
    %v2396 = vpop.f32.mrb[0].mxu0
    %v2397 = vadd.f32 %v2284, %v2396
    %v2398 = vpop.f32.mrb[0].mxu0
    %v2399 = vadd.f32 %v2286, %v2398
    %v2400 = vpop.f32.mrb[0].mxu0
    %v2401 = vadd.f32 %v2288, %v2400
    %v2402 = vpop.f32.mrb[0].mxu0
    %v2403 = vadd.f32 %v2290, %v2402
    %2404 = vmatprep.mubr.bf16.mxu0 0
    %2405 = vmatmul.mubr.bf16.gmra.mrb[0].mxu0 %v1560
    %v2406 = vpop.f32.mrb[0].mxu0
    %v2407 = vadd.f32 %v2294, %v2406
    %v2408 = vpop.f32.mrb[0].mxu0
    %v2409 = vadd.f32 %v2296, %v2408
    %v2410 = vpop.f32.mrb[0].mxu0
    %v2411 = vadd.f32 %v2298, %v2410
    %v2412 = vpop.f32.mrb[0].mxu0
    %v2413 = vadd.f32 %v2300, %v2412
    %2414 = vmatprep.mubr.bf16.mxu0 0
    %2415 = vmatmul.mubr.bf16.gmra.mrb[0].mxu0 %v1565
    %v2416 = vpop.f32.mrb[0].mxu0
    %v2417 = vadd.f32 %v2304, %v2416
    %v2418 = vpop.f32.mrb[0].mxu0
    %v2419 = vadd.f32 %v2306, %v2418
    %v2420 = vpop.f32.mrb[0].mxu0
    %v2421 = vadd.f32 %v2308, %v2420
    %v2422 = vpop.f32.mrb[0].mxu0
    %v2423 = vadd.f32 %v2310, %v2422
    %2424 = vmatprep.mubr.bf16.mxu0 0
    %2425 = vmatmul.mubr.bf16.gmra.mrb[0].mxu0 %v1570
    %v2426 = vpop.f32.mrb[0].mxu0
    %v2427 = vadd.f32 %v2314, %v2426
    %v2428 = vpop.f32.mrb[0].mxu0
    %v2429 = vadd.f32 %v2316, %v2428
    %v2430 = vpop.f32.mrb[0].mxu0
    %v2431 = vadd.f32 %v2318, %v2430
    %v2432 = vpop.f32.mrb[0].mxu0
    %v2433 = vadd.f32 %v2320, %v2432
    %2434 = vmatprep.mubr.bf16.mxu0 0
    %2435 = vmatmul.mubr.bf16.gmra.mrb[0].mxu0 %v1575
    %v2436 = vpop.f32.mrb[0].mxu0
    %v2437 = vadd.f32 %v2324, %v2436
    %v2438 = vpop.f32.mrb[0].mxu0
    %v2439 = vadd.f32 %v2326, %v2438
    %v2440 = vpop.f32.mrb[0].mxu0
    %v2441 = vadd.f32 %v2328, %v2440
    %v2442 = vpop.f32.mrb[0].mxu0
    %v2443 = vadd.f32 %v2330, %v2442
    %2444 = vdwg.mxu0
    %v2445 = vmul.f32 %v2028, 0.01
    %v2446 = vmul.f32 %v2030, 0.01
    %v2447 = vmul.f32 %v2367, 0.01
    %v2448 = vmul.f32 %v2369, 0.01
    %v2449 = vmul.f32 %v2032, 0.01
    %v2450 = vmul.f32 %v2034, 0.01
    %v2451 = vmul.f32 %v2371, 0.01
    %v2452 = vmul.f32 %v2373, 0.01
    %v2453 = vmul.f32 %v2038, 0.01
    %v2454 = vmul.f32 %v2040, 0.01
    %v2455 = vmul.f32 %v2377, 0.01
    %v2456 = vmul.f32 %v2379, 0.01
    %v2457 = vmul.f32 %v2042, 0.01
    %v2458 = vmul.f32 %v2044, 0.01
    %v2459 = vmul.f32 %v2381, 0.01
    %v2460 = vmul.f32 %v2383, 0.01
    %v2461 = vmul.f32 %v2048, 0.01
    %v2462 = vmul.f32 %v2050, 0.01
    %v2463 = vmul.f32 %v2387, 0.01
    %v2464 = vmul.f32 %v2389, 0.01
    %v2465 = vmul.f32 %v2052, 0.01
    %v2466 = vmul.f32 %v2054, 0.01
    %v2467 = vmul.f32 %v2391, 0.01
    %v2468 = vmul.f32 %v2393, 0.01
    %v2469 = vmul.f32 %v2058, 0.01
    %v2470 = vmul.f32 %v2060, 0.01
    %v2471 = vmul.f32 %v2397, 0.01
    %v2472 = vmul.f32 %v2399, 0.01
    %v2473 = vmul.f32 %v2062, 0.01
    %v2474 = vmul.f32 %v2064, 0.01
    %v2475 = vmul.f32 %v2401, 0.01
    %v2476 = vmul.f32 %v2403, 0.01
    %v2477 = vmul.f32 %v2068, 0.01
    %v2478 = vmul.f32 %v2070, 0.01
    %v2479 = vmul.f32 %v2407, 0.01
    %v2480 = vmul.f32 %v2409, 0.01
    %v2481 = vmul.f32 %v2072, 0.01
    %v2482 = vmul.f32 %v2074, 0.01
    %v2483 = vmul.f32 %v2411, 0.01
    %v2484 = vmul.f32 %v2413, 0.01
    %v2485 = vmul.f32 %v2078, 0.01
    %v2486 = vmul.f32 %v2080, 0.01
    %v2487 = vmul.f32 %v2417, 0.01
    %v2488 = vmul.f32 %v2419, 0.01
    %v2489 = vmul.f32 %v2082, 0.01
    %v2490 = vmul.f32 %v2084, 0.01
    %v2491 = vmul.f32 %v2421, 0.01
    %v2492 = vmul.f32 %v2423, 0.01
    %v2493 = vmul.f32 %v2088, 0.01
    %v2494 = vmul.f32 %v2090, 0.01
    %v2495 = vmul.f32 %v2427, 0.01
    %v2496 = vmul.f32 %v2429, 0.01
    %v2497 = vmul.f32 %v2092, 0.01
    %v2498 = vmul.f32 %v2094, 0.01
    %v2499 = vmul.f32 %v2431, 0.01
    %v2500 = vmul.f32 %v2433, 0.01
    %v2501 = vmul.f32 %v2098, 0.01
    %v2502 = vmul.f32 %v2100, 0.01
    %v2503 = vmul.f32 %v2437, 0.01
    %v2504 = vmul.f32 %v2439, 0.01
    %v2505 = vmul.f32 %v2102, 0.01
    %v2506 = vmul.f32 %v2104, 0.01
    %v2507 = vmul.f32 %v2441, 0.01
    %v2508 = vmul.f32 %v2443, 0.01
    %v2509 = vmax.f32 %v2028, %v2445
    %v2510 = vmax.f32 %v2030, %v2446
    %v2511 = vmax.f32 %v2367, %v2447
    %v2512 = vmax.f32 %v2369, %v2448
    %v2513 = vmax.f32 %v2032, %v2449
    %v2514 = vmax.f32 %v2034, %v2450
    %v2515 = vmax.f32 %v2371, %v2451
    %v2516 = vmax.f32 %v2373, %v2452
    %v2517 = vmax.f32 %v2038, %v2453
    %v2518 = vmax.f32 %v2040, %v2454
    %v2519 = vmax.f32 %v2377, %v2455
    %v2520 = vmax.f32 %v2379, %v2456
    %v2521 = vmax.f32 %v2042, %v2457
    %v2522 = vmax.f32 %v2044, %v2458
    %v2523 = vmax.f32 %v2381, %v2459
    %v2524 = vmax.f32 %v2383, %v2460
    %v2525 = vmax.f32 %v2048, %v2461
    %v2526 = vmax.f32 %v2050, %v2462
    %v2527 = vmax.f32 %v2387, %v2463
    %v2528 = vmax.f32 %v2389, %v2464
    %v2529 = vmax.f32 %v2052, %v2465
    %v2530 = vmax.f32 %v2054, %v2466
    %v2531 = vmax.f32 %v2391, %v2467
    %v2532 = vmax.f32 %v2393, %v2468
    %v2533 = vmax.f32 %v2058, %v2469
    %v2534 = vmax.f32 %v2060, %v2470
    %v2535 = vmax.f32 %v2397, %v2471
    %v2536 = vmax.f32 %v2399, %v2472
    %v2537 = vmax.f32 %v2062, %v2473
    %v2538 = vmax.f32 %v2064, %v2474
    %v2539 = vmax.f32 %v2401, %v2475
    %v2540 = vmax.f32 %v2403, %v2476
    %v2541 = vmax.f32 %v2068, %v2477
    %v2542 = vmax.f32 %v2070, %v2478
    %v2543 = vmax.f32 %v2407, %v2479
    %v2544 = vmax.f32 %v2409, %v2480
    %v2545 = vmax.f32 %v2072, %v2481
    %v2546 = vmax.f32 %v2074, %v2482
    %v2547 = vmax.f32 %v2411, %v2483
    %v2548 = vmax.f32 %v2413, %v2484
    %v2549 = vmax.f32 %v2078, %v2485
    %v2550 = vmax.f32 %v2080, %v2486
    %v2551 = vmax.f32 %v2417, %v2487
    %v2552 = vmax.f32 %v2419, %v2488
    %v2553 = vmax.f32 %v2082, %v2489
    %v2554 = vmax.f32 %v2084, %v2490
    %v2555 = vmax.f32 %v2421, %v2491
    %v2556 = vmax.f32 %v2423, %v2492
    %v2557 = vmax.f32 %v2088, %v2493
    %v2558 = vmax.f32 %v2090, %v2494
    %v2559 = vmax.f32 %v2427, %v2495
    %v2560 = vmax.f32 %v2429, %v2496
    %v2561 = vmax.f32 %v2092, %v2497
    %v2562 = vmax.f32 %v2094, %v2498
    %v2563 = vmax.f32 %v2431, %v2499
    %v2564 = vmax.f32 %v2433, %v2500
    %v2565 = vmax.f32 %v2098, %v2501
    %v2566 = vmax.f32 %v2100, %v2502
    %v2567 = vmax.f32 %v2437, %v2503
    %v2568 = vmax.f32 %v2439, %v2504
    %v2569 = vmax.f32 %v2102, %v2505
    %v2570 = vmax.f32 %v2104, %v2506
    %v2571 = vmax.f32 %v2441, %v2507
    %v2572 = vmax.f32 %v2443, %v2508
    %v2573 = vadd.f32 %v2509, %v2513
    %v2574 = vadd.f32 %v2573, %v2517
    %v2575 = vadd.f32 %v2574, %v2521
    %v2576 = vadd.f32 %v2575, %v2525
    %v2577 = vadd.f32 %v2576, %v2529
    %v2578 = vadd.f32 %v2577, %v2533
    %v2579 = vadd.f32 %v2578, %v2537
    %v2580 = vadd.f32 %v2579, %v2541
    %v2581 = vadd.f32 %v2580, %v2545
    %v2582 = vadd.f32 %v2581, %v2549
    %v2583 = vadd.f32 %v2582, %v2553
    %v2584 = vadd.f32 %v2583, %v2557
    %v2585 = vadd.f32 %v2584, %v2561
    %v2586 = vadd.f32 %v2585, %v2565
    %v2587 = vadd.f32 %v2586, %v2569
    %v2588 = vrot.slane %v2587, 4
    %v2589 = vadd.f32 %v2587, %v2588
    %v2590 = vrot.slane %v2589, 2
    %v2591 = vadd.f32 %v2589, %v2590
    %v2592 = vrot.slane %v2591, 1
    %v2593 = vadd.f32 %v2591, %v2592
    %v2594 = vadd.f32 %v2510, %v2514
    %v2595 = vadd.f32 %v2594, %v2518
    %v2596 = vadd.f32 %v2595, %v2522
    %v2597 = vadd.f32 %v2596, %v2526
    %v2598 = vadd.f32 %v2597, %v2530
    %v2599 = vadd.f32 %v2598, %v2534
    %v2600 = vadd.f32 %v2599, %v2538
    %v2601 = vadd.f32 %v2600, %v2542
    %v2602 = vadd.f32 %v2601, %v2546
    %v2603 = vadd.f32 %v2602, %v2550
    %v2604 = vadd.f32 %v2603, %v2554
    %v2605 = vadd.f32 %v2604, %v2558
    %v2606 = vadd.f32 %v2605, %v2562
    %v2607 = vadd.f32 %v2606, %v2566
    %v2608 = vadd.f32 %v2607, %v2570
    %v2609 = vrot.slane %v2608, 4
    %v2610 = vadd.f32 %v2608, %v2609
    %v2611 = vrot.slane %v2610, 2
    %v2612 = vadd.f32 %v2610, %v2611
    %v2613 = vrot.slane %v2612, 1
    %v2614 = vadd.f32 %v2612, %v2613
    %v2615 = vadd.f32 %v2511, %v2515
    %v2616 = vadd.f32 %v2615, %v2519
    %v2617 = vadd.f32 %v2616, %v2523
    %v2618 = vadd.f32 %v2617, %v2527
    %v2619 = vadd.f32 %v2618, %v2531
    %v2620 = vadd.f32 %v2619, %v2535
    %v2621 = vadd.f32 %v2620, %v2539
    %v2622 = vadd.f32 %v2621, %v2543
    %v2623 = vadd.f32 %v2622, %v2547
    %v2624 = vadd.f32 %v2623, %v2551
    %v2625 = vadd.f32 %v2624, %v2555
    %v2626 = vadd.f32 %v2625, %v2559
    %v2627 = vadd.f32 %v2626, %v2563
    %v2628 = vadd.f32 %v2627, %v2567
    %v2629 = vadd.f32 %v2628, %v2571
    %v2630 = vrot.slane %v2629, 4
    %v2631 = vadd.f32 %v2629, %v2630
    %v2632 = vrot.slane %v2631, 2
    %v2633 = vadd.f32 %v2631, %v2632
    %v2634 = vrot.slane %v2633, 1
    %v2635 = vadd.f32 %v2633, %v2634
    %v2636 = vadd.f32 %v2512, %v2516
    %v2637 = vadd.f32 %v2636, %v2520
    %v2638 = vadd.f32 %v2637, %v2524
    %v2639 = vadd.f32 %v2638, %v2528
    %v2640 = vadd.f32 %v2639, %v2532
    %v2641 = vadd.f32 %v2640, %v2536
    %v2642 = vadd.f32 %v2641, %v2540
    %v2643 = vadd.f32 %v2642, %v2544
    %v2644 = vadd.f32 %v2643, %v2548
    %v2645 = vadd.f32 %v2644, %v2552
    %v2646 = vadd.f32 %v2645, %v2556
    %v2647 = vadd.f32 %v2646, %v2560
    %v2648 = vadd.f32 %v2647, %v2564
    %v2649 = vadd.f32 %v2648, %v2568
    %v2650 = vadd.f32 %v2649, %v2572
    %v2651 = vrot.slane %v2650, 4
    %v2652 = vadd.f32 %v2650, %v2651
    %v2653 = vrot.slane %v2652, 2
    %v2654 = vadd.f32 %v2652, %v2653
    %v2655 = vrot.slane %v2654, 1
    %v2656 = vadd.f32 %v2654, %v2655
    %v2657 = vmul.f32 %v2593, 0.0078125
    %v2658 = vmul.f32 %v2614, 0.0078125
    %v2659 = vmul.f32 %v2635, 0.0078125
    %v2660 = vmul.f32 %v2656, 0.0078125
    %v2661 = vsub.f32 %v2509, %v2657
    %v2662 = vsub.f32 %v2510, %v2658
    %v2663 = vsub.f32 %v2511, %v2659
    %v2664 = vsub.f32 %v2512, %v2660
    %v2665 = vsub.f32 %v2513, %v2657
    %v2666 = vsub.f32 %v2514, %v2658
    %v2667 = vsub.f32 %v2515, %v2659
    %v2668 = vsub.f32 %v2516, %v2660
    %v2669 = vsub.f32 %v2517, %v2657
    %v2670 = vsub.f32 %v2518, %v2658
    %v2671 = vsub.f32 %v2519, %v2659
    %v2672 = vsub.f32 %v2520, %v2660
    %v2673 = vsub.f32 %v2521, %v2657
    %v2674 = vsub.f32 %v2522, %v2658
    %v2675 = vsub.f32 %v2523, %v2659
    %v2676 = vsub.f32 %v2524, %v2660
    %v2677 = vsub.f32 %v2525, %v2657
    %v2678 = vsub.f32 %v2526, %v2658
    %v2679 = vsub.f32 %v2527, %v2659
    %v2680 = vsub.f32 %v2528, %v2660
    %v2681 = vsub.f32 %v2529, %v2657
    %v2682 = vsub.f32 %v2530, %v2658
    %v2683 = vsub.f32 %v2531, %v2659
    %v2684 = vsub.f32 %v2532, %v2660
    %v2685 = vsub.f32 %v2533, %v2657
    %v2686 = vsub.f32 %v2534, %v2658
    %v2687 = vsub.f32 %v2535, %v2659
    %v2688 = vsub.f32 %v2536, %v2660
    %v2689 = vsub.f32 %v2537, %v2657
    %v2690 = vsub.f32 %v2538, %v2658
    %v2691 = vsub.f32 %v2539, %v2659
    %v2692 = vsub.f32 %v2540, %v2660
    %v2693 = vsub.f32 %v2541, %v2657
    %v2694 = vsub.f32 %v2542, %v2658
    %v2695 = vsub.f32 %v2543, %v2659
    %v2696 = vsub.f32 %v2544, %v2660
    %v2697 = vsub.f32 %v2545, %v2657
    %v2698 = vsub.f32 %v2546, %v2658
    %v2699 = vsub.f32 %v2547, %v2659
    %v2700 = vsub.f32 %v2548, %v2660
    %v2701 = vsub.f32 %v2549, %v2657
    %v2702 = vsub.f32 %v2550, %v2658
    %v2703 = vsub.f32 %v2551, %v2659
    %v2704 = vsub.f32 %v2552, %v2660
    %v2705 = vsub.f32 %v2553, %v2657
    %v2706 = vsub.f32 %v2554, %v2658
    %v2707 = vsub.f32 %v2555, %v2659
    %v2708 = vsub.f32 %v2556, %v2660
    %v2709 = vsub.f32 %v2557, %v2657
    %v2710 = vsub.f32 %v2558, %v2658
    %v2711 = vsub.f32 %v2559, %v2659
    %v2712 = vsub.f32 %v2560, %v2660
    %v2713 = vsub.f32 %v2561, %v2657
    %v2714 = vsub.f32 %v2562, %v2658
    %v2715 = vsub.f32 %v2563, %v2659
    %v2716 = vsub.f32 %v2564, %v2660
    %v2717 = vsub.f32 %v2565, %v2657
    %v2718 = vsub.f32 %v2566, %v2658
    %v2719 = vsub.f32 %v2567, %v2659
    %v2720 = vsub.f32 %v2568, %v2660
    %v2721 = vsub.f32 %v2569, %v2657
    %v2722 = vsub.f32 %v2570, %v2658
    %v2723 = vsub.f32 %v2571, %v2659
    %v2724 = vsub.f32 %v2572, %v2660
    %v2725 = vmul.f32 %v2661, %v2661
    %v2726 = vmul.f32 %v2662, %v2662
    %v2727 = vmul.f32 %v2663, %v2663
    %v2728 = vmul.f32 %v2664, %v2664
    %v2729 = vmul.f32 %v2665, %v2665
    %v2730 = vmul.f32 %v2666, %v2666
    %v2731 = vmul.f32 %v2667, %v2667
    %v2732 = vmul.f32 %v2668, %v2668
    %v2733 = vmul.f32 %v2669, %v2669
    %v2734 = vmul.f32 %v2670, %v2670
    %v2735 = vmul.f32 %v2671, %v2671
    %v2736 = vmul.f32 %v2672, %v2672
    %v2737 = vmul.f32 %v2673, %v2673
    %v2738 = vmul.f32 %v2674, %v2674
    %v2739 = vmul.f32 %v2675, %v2675
    %v2740 = vmul.f32 %v2676, %v2676
    %v2741 = vmul.f32 %v2677, %v2677
    %v2742 = vmul.f32 %v2678, %v2678
    %v2743 = vmul.f32 %v2679, %v2679
    %v2744 = vmul.f32 %v2680, %v2680
    %v2745 = vmul.f32 %v2681, %v2681
    %v2746 = vmul.f32 %v2682, %v2682
    %v2747 = vmul.f32 %v2683, %v2683
    %v2748 = vmul.f32 %v2684, %v2684
    %v2749 = vmul.f32 %v2685, %v2685
    %v2750 = vmul.f32 %v2686, %v2686
    %v2751 = vmul.f32 %v2687, %v2687
    %v2752 = vmul.f32 %v2688, %v2688
    %v2753 = vmul.f32 %v2689, %v2689
    %v2754 = vmul.f32 %v2690, %v2690
    %v2755 = vmul.f32 %v2691, %v2691
    %v2756 = vmul.f32 %v2692, %v2692
    %v2757 = vmul.f32 %v2693, %v2693
    %v2758 = vmul.f32 %v2694, %v2694
    %v2759 = vmul.f32 %v2695, %v2695
    %v2760 = vmul.f32 %v2696, %v2696
    %v2761 = vmul.f32 %v2697, %v2697
    %v2762 = vmul.f32 %v2698, %v2698
    %v2763 = vmul.f32 %v2699, %v2699
    %v2764 = vmul.f32 %v2700, %v2700
    %v2765 = vmul.f32 %v2701, %v2701
    %v2766 = vmul.f32 %v2702, %v2702
    %v2767 = vmul.f32 %v2703, %v2703
    %v2768 = vmul.f32 %v2704, %v2704
    %v2769 = vmul.f32 %v2705, %v2705
    %v2770 = vmul.f32 %v2706, %v2706
    %v2771 = vmul.f32 %v2707, %v2707
    %v2772 = vmul.f32 %v2708, %v2708
    %v2773 = vmul.f32 %v2709, %v2709
    %v2774 = vmul.f32 %v2710, %v2710
    %v2775 = vmul.f32 %v2711, %v2711
    %v2776 = vmul.f32 %v2712, %v2712
    %v2777 = vmul.f32 %v2713, %v2713
    %v2778 = vmul.f32 %v2714, %v2714
    %v2779 = vmul.f32 %v2715, %v2715
    %v2780 = vmul.f32 %v2716, %v2716
    %v2781 = vmul.f32 %v2717, %v2717
    %v2782 = vmul.f32 %v2718, %v2718
    %v2783 = vmul.f32 %v2719, %v2719
    %v2784 = vmul.f32 %v2720, %v2720
    %v2785 = vmul.f32 %v2721, %v2721
    %v2786 = vmul.f32 %v2722, %v2722
    %v2787 = vmul.f32 %v2723, %v2723
    %v2788 = vmul.f32 %v2724, %v2724
    %v2789 = vadd.f32 %v2725, %v2729
    %v2790 = vadd.f32 %v2789, %v2733
    %v2791 = vadd.f32 %v2790, %v2737
    %v2792 = vadd.f32 %v2791, %v2741
    %v2793 = vadd.f32 %v2792, %v2745
    %v2794 = vadd.f32 %v2793, %v2749
    %v2795 = vadd.f32 %v2794, %v2753
    %v2796 = vadd.f32 %v2795, %v2757
    %v2797 = vadd.f32 %v2796, %v2761
    %v2798 = vadd.f32 %v2797, %v2765
    %v2799 = vadd.f32 %v2798, %v2769
    %v2800 = vadd.f32 %v2799, %v2773
    %v2801 = vadd.f32 %v2800, %v2777
    %v2802 = vadd.f32 %v2801, %v2781
    %v2803 = vadd.f32 %v2802, %v2785
    %v2804 = vrot.slane %v2803, 4
    %v2805 = vadd.f32 %v2803, %v2804
    %v2806 = vrot.slane %v2805, 2
    %v2807 = vadd.f32 %v2805, %v2806
    %v2808 = vrot.slane %v2807, 1
    %v2809 = vadd.f32 %v2807, %v2808
    %v2810 = vadd.f32 %v2726, %v2730
    %v2811 = vadd.f32 %v2810, %v2734
    %v2812 = vadd.f32 %v2811, %v2738
    %v2813 = vadd.f32 %v2812, %v2742
    %v2814 = vadd.f32 %v2813, %v2746
    %v2815 = vadd.f32 %v2814, %v2750
    %v2816 = vadd.f32 %v2815, %v2754
    %v2817 = vadd.f32 %v2816, %v2758
    %v2818 = vadd.f32 %v2817, %v2762
    %v2819 = vadd.f32 %v2818, %v2766
    %v2820 = vadd.f32 %v2819, %v2770
    %v2821 = vadd.f32 %v2820, %v2774
    %v2822 = vadd.f32 %v2821, %v2778
    %v2823 = vadd.f32 %v2822, %v2782
    %v2824 = vadd.f32 %v2823, %v2786
    %v2825 = vrot.slane %v2824, 4
    %v2826 = vadd.f32 %v2824, %v2825
    %v2827 = vrot.slane %v2826, 2
    %v2828 = vadd.f32 %v2826, %v2827
    %v2829 = vrot.slane %v2828, 1
    %v2830 = vadd.f32 %v2828, %v2829
    %v2831 = vadd.f32 %v2727, %v2731
    %v2832 = vadd.f32 %v2831, %v2735
    %v2833 = vadd.f32 %v2832, %v2739
    %v2834 = vadd.f32 %v2833, %v2743
    %v2835 = vadd.f32 %v2834, %v2747
    %v2836 = vadd.f32 %v2835, %v2751
    %v2837 = vadd.f32 %v2836, %v2755
    %v2838 = vadd.f32 %v2837, %v2759
    %v2839 = vadd.f32 %v2838, %v2763
    %v2840 = vadd.f32 %v2839, %v2767
    %v2841 = vadd.f32 %v2840, %v2771
    %v2842 = vadd.f32 %v2841, %v2775
    %v2843 = vadd.f32 %v2842, %v2779
    %v2844 = vadd.f32 %v2843, %v2783
    %v2845 = vadd.f32 %v2844, %v2787
    %v2846 = vrot.slane %v2845, 4
    %v2847 = vadd.f32 %v2845, %v2846
    %v2848 = vrot.slane %v2847, 2
    %v2849 = vadd.f32 %v2847, %v2848
    %v2850 = vrot.slane %v2849, 1
    %v2851 = vadd.f32 %v2849, %v2850
    %v2852 = vadd.f32 %v2728, %v2732
    %v2853 = vadd.f32 %v2852, %v2736
    %v2854 = vadd.f32 %v2853, %v2740
    %v2855 = vadd.f32 %v2854, %v2744
    %v2856 = vadd.f32 %v2855, %v2748
    %v2857 = vadd.f32 %v2856, %v2752
    %v2858 = vadd.f32 %v2857, %v2756
    %v2859 = vadd.f32 %v2858, %v2760
    %v2860 = vadd.f32 %v2859, %v2764
    %v2861 = vadd.f32 %v2860, %v2768
    %v2862 = vadd.f32 %v2861, %v2772
    %v2863 = vadd.f32 %v2862, %v2776
    %v2864 = vadd.f32 %v2863, %v2780
    %v2865 = vadd.f32 %v2864, %v2784
    %v2866 = vadd.f32 %v2865, %v2788
    %v2867 = vrot.slane %v2866, 4
    %v2868 = vadd.f32 %v2866, %v2867
    %v2869 = vrot.slane %v2868, 2
    %v2870 = vadd.f32 %v2868, %v2869
    %v2871 = vrot.slane %v2870, 1
    %v2872 = vadd.f32 %v2870, %v2871
    %v2873 = vmul.f32 %v2809, 0.0078125
    %v2874 = vmul.f32 %v2830, 0.0078125
    %v2875 = vmul.f32 %v2851, 0.0078125
    %v2876 = vmul.f32 %v2872, 0.0078125
    %v2877 = vadd.f32 %v2873, 1e-05
    %v2878 = vadd.f32 %v2874, 1e-05
    %v2879 = vadd.f32 %v2875, 1e-05
    %v2880 = vadd.f32 %v2876, 1e-05
    %v2881 = vrsqrt.pop %v2877
    %v2882 = vrsqrt.pop %v2878
    %v2883 = vrsqrt.pop %v2879
    %v2884 = vrsqrt.pop %v2880
    %v2889 = vcombine.low %v2881, %v2882
    %v2890 = vcombine.low %v2883, %v2884
    %v2892 = vunpack.c.l.s4 1966171168
    %v2893 = vunpack.c.0.s8 %v2892
    %v2894 = vlaneseq
    %v2895 = vshrl.u32 %v2894, 7
    %v2896 = vsub.s32 %v2893, %v2895
    %v2897 = vrot.slane %v2889, %v2896
    %v2899 = vunpack.c.l.s4 1966171168
    %v2900 = vunpack.c.0.s8 %v2899
    %v2901 = vlaneseq
    %v2902 = vshrl.u32 %v2901, 7
    %v2903 = vsub.s32 %v2900, %v2902
    %v2904 = vrot.slane %v2890, %v2903
    %v2905 = vcombine.low %v2897, %v2904
    %v2907 = vunpack.c.l.s4 1966171168
    %v2908 = vunpack.c.0.s8 %v2907
    %v2909 = vlaneseq
    %v2910 = vshrl.u32 %v2909, 7
    %v2911 = vsub.s32 %v2908, %v2910
    %v2912 = vrot.slane %v2905, %v2911
    %v2914 = vmul.f32 %v1579, %v2912
    %v2916 = vlaneseq
    %v2917 = vshrl.u32 %v2916, 7
    %v2918 = vsub.s32 0, %v2917
    %v2919 = vrot.slane %v2914, %v2918
    %v2920 = vlaneseq
    %v2921 = vshrl.u32 %v2920, 7
    %v2922 = vsub.s32 1, %v2921
    %v2923 = vrot.slane %v2914, %v2922
    %v2924 = vlaneseq
    %v2925 = vshrl.u32 %v2924, 7
    %v2926 = vsub.s32 2, %v2925
    %v2927 = vrot.slane %v2914, %v2926
    %v2928 = vlaneseq
    %v2929 = vshrl.u32 %v2928, 7
    %v2930 = vsub.s32 3, %v2929
    %v2931 = vrot.slane %v2914, %v2930
    %v2936 = vmul.f32 %v2661, %v2919
    %v2937 = vmul.f32 %v2662, %v2923
    %v2938 = vmul.f32 %v2663, %v2927
    %v2939 = vmul.f32 %v2664, %v2931
    %v2940 = vmul.f32 %v2665, %v2919
    %v2941 = vmul.f32 %v2666, %v2923
    %v2942 = vmul.f32 %v2667, %v2927
    %v2943 = vmul.f32 %v2668, %v2931
    %v2944 = vmul.f32 %v2669, %v2919
    %v2945 = vmul.f32 %v2670, %v2923
    %v2946 = vmul.f32 %v2671, %v2927
    %v2947 = vmul.f32 %v2672, %v2931
    %v2948 = vmul.f32 %v2673, %v2919
    %v2949 = vmul.f32 %v2674, %v2923
    %v2950 = vmul.f32 %v2675, %v2927
    %v2951 = vmul.f32 %v2676, %v2931
    %v2952 = vmul.f32 %v2677, %v2919
    %v2953 = vmul.f32 %v2678, %v2923
    %v2954 = vmul.f32 %v2679, %v2927
    %v2955 = vmul.f32 %v2680, %v2931
    %v2956 = vmul.f32 %v2681, %v2919
    %v2957 = vmul.f32 %v2682, %v2923
    %v2958 = vmul.f32 %v2683, %v2927
    %v2959 = vmul.f32 %v2684, %v2931
    %v2960 = vmul.f32 %v2685, %v2919
    %v2961 = vmul.f32 %v2686, %v2923
    %v2962 = vmul.f32 %v2687, %v2927
    %v2963 = vmul.f32 %v2688, %v2931
    %v2964 = vmul.f32 %v2689, %v2919
    %v2965 = vmul.f32 %v2690, %v2923
    %v2966 = vmul.f32 %v2691, %v2927
    %v2967 = vmul.f32 %v2692, %v2931
    %v2968 = vmul.f32 %v2693, %v2919
    %v2969 = vmul.f32 %v2694, %v2923
    %v2970 = vmul.f32 %v2695, %v2927
    %v2971 = vmul.f32 %v2696, %v2931
    %v2972 = vmul.f32 %v2697, %v2919
    %v2973 = vmul.f32 %v2698, %v2923
    %v2974 = vmul.f32 %v2699, %v2927
    %v2975 = vmul.f32 %v2700, %v2931
    %v2976 = vmul.f32 %v2701, %v2919
    %v2977 = vmul.f32 %v2702, %v2923
    %v2978 = vmul.f32 %v2703, %v2927
    %v2979 = vmul.f32 %v2704, %v2931
    %v2980 = vmul.f32 %v2705, %v2919
    %v2981 = vmul.f32 %v2706, %v2923
    %v2982 = vmul.f32 %v2707, %v2927
    %v2983 = vmul.f32 %v2708, %v2931
    %v2984 = vmul.f32 %v2709, %v2919
    %v2985 = vmul.f32 %v2710, %v2923
    %v2986 = vmul.f32 %v2711, %v2927
    %v2987 = vmul.f32 %v2712, %v2931
    %v2988 = vmul.f32 %v2713, %v2919
    %v2989 = vmul.f32 %v2714, %v2923
    %v2990 = vmul.f32 %v2715, %v2927
    %v2991 = vmul.f32 %v2716, %v2931
    %v2992 = vmul.f32 %v2717, %v2919
    %v2993 = vmul.f32 %v2718, %v2923
    %v2994 = vmul.f32 %v2719, %v2927
    %v2995 = vmul.f32 %v2720, %v2931
    %v2996 = vmul.f32 %v2721, %v2919
    %v2997 = vmul.f32 %v2722, %v2923
    %v2998 = vmul.f32 %v2723, %v2927
    %v2999 = vmul.f32 %v2724, %v2931
    %v3001 = vlaneseq
    %v3002 = vshrl.u32 %v3001, 7
    %v3003 = vsub.s32 0, %v3002
    %v3004 = vrot.slane %v1581, %v3003
    %v3005 = vlaneseq
    %v3006 = vshrl.u32 %v3005, 7
    %v3007 = vsub.s32 1, %v3006
    %v3008 = vrot.slane %v1581, %v3007
    %v3009 = vlaneseq
    %v3010 = vshrl.u32 %v3009, 7
    %v3011 = vsub.s32 2, %v3010
    %v3012 = vrot.slane %v1581, %v3011
    %v3013 = vlaneseq
    %v3014 = vshrl.u32 %v3013, 7
    %v3015 = vsub.s32 3, %v3014
    %v3016 = vrot.slane %v1581, %v3015
    %v3021 = vadd.f32 %v2936, %v3004
    %v3022 = vadd.f32 %v2937, %v3008
    %v3023 = vadd.f32 %v2938, %v3012
    %v3024 = vadd.f32 %v2939, %v3016
    %v3025 = vadd.f32 %v2940, %v3004
    %v3026 = vadd.f32 %v2941, %v3008
    %v3027 = vadd.f32 %v2942, %v3012
    %v3028 = vadd.f32 %v2943, %v3016
    %v3029 = vadd.f32 %v2944, %v3004
    %v3030 = vadd.f32 %v2945, %v3008
    %v3031 = vadd.f32 %v2946, %v3012
    %v3032 = vadd.f32 %v2947, %v3016
    %v3033 = vadd.f32 %v2948, %v3004
    %v3034 = vadd.f32 %v2949, %v3008
    %v3035 = vadd.f32 %v2950, %v3012
    %v3036 = vadd.f32 %v2951, %v3016
    %v3037 = vadd.f32 %v2952, %v3004
    %v3038 = vadd.f32 %v2953, %v3008
    %v3039 = vadd.f32 %v2954, %v3012
    %v3040 = vadd.f32 %v2955, %v3016
    %v3041 = vadd.f32 %v2956, %v3004
    %v3042 = vadd.f32 %v2957, %v3008
    %v3043 = vadd.f32 %v2958, %v3012
    %v3044 = vadd.f32 %v2959, %v3016
    %v3045 = vadd.f32 %v2960, %v3004
    %v3046 = vadd.f32 %v2961, %v3008
    %v3047 = vadd.f32 %v2962, %v3012
    %v3048 = vadd.f32 %v2963, %v3016
    %v3049 = vadd.f32 %v2964, %v3004
    %v3050 = vadd.f32 %v2965, %v3008
    %v3051 = vadd.f32 %v2966, %v3012
    %v3052 = vadd.f32 %v2967, %v3016
    %v3053 = vadd.f32 %v2968, %v3004
    %v3054 = vadd.f32 %v2969, %v3008
    %v3055 = vadd.f32 %v2970, %v3012
    %v3056 = vadd.f32 %v2971, %v3016
    %v3057 = vadd.f32 %v2972, %v3004
    %v3058 = vadd.f32 %v2973, %v3008
    %v3059 = vadd.f32 %v2974, %v3012
    %v3060 = vadd.f32 %v2975, %v3016
    %v3061 = vadd.f32 %v2976, %v3004
    %v3062 = vadd.f32 %v2977, %v3008
    %v3063 = vadd.f32 %v2978, %v3012
    %v3064 = vadd.f32 %v2979, %v3016
    %v3065 = vadd.f32 %v2980, %v3004
    %v3066 = vadd.f32 %v2981, %v3008
    %v3067 = vadd.f32 %v2982, %v3012
    %v3068 = vadd.f32 %v2983, %v3016
    %v3069 = vadd.f32 %v2984, %v3004
    %v3070 = vadd.f32 %v2985, %v3008
    %v3071 = vadd.f32 %v2986, %v3012
    %v3072 = vadd.f32 %v2987, %v3016
    %v3073 = vadd.f32 %v2988, %v3004
    %v3074 = vadd.f32 %v2989, %v3008
    %v3075 = vadd.f32 %v2990, %v3012
    %v3076 = vadd.f32 %v2991, %v3016
    %v3077 = vadd.f32 %v2992, %v3004
    %v3078 = vadd.f32 %v2993, %v3008
    %v3079 = vadd.f32 %v2994, %v3012
    %v3080 = vadd.f32 %v2995, %v3016
    %v3081 = vadd.f32 %v2996, %v3004
    %v3082 = vadd.f32 %v2997, %v3008
    %v3083 = vadd.f32 %v2998, %v3012
    %v3084 = vadd.f32 %v2999, %v3016
    %v3085 = vpack.c.bf16 %v3025, %v3021
    %v3086 = vpack.c.bf16 %v3026, %v3022
    %v3087 = vpack.c.bf16 %v3027, %v3023
    %v3088 = vpack.c.bf16 %v3028, %v3024
    %v3089 = vpack.c.bf16 %v3033, %v3029
    %v3090 = vpack.c.bf16 %v3034, %v3030
    %v3091 = vpack.c.bf16 %v3035, %v3031
    %v3092 = vpack.c.bf16 %v3036, %v3032
    %v3093 = vpack.c.bf16 %v3041, %v3037
    %v3094 = vpack.c.bf16 %v3042, %v3038
    %v3095 = vpack.c.bf16 %v3043, %v3039
    %v3096 = vpack.c.bf16 %v3044, %v3040
    %v3097 = vpack.c.bf16 %v3049, %v3045
    %v3098 = vpack.c.bf16 %v3050, %v3046
    %v3099 = vpack.c.bf16 %v3051, %v3047
    %v3100 = vpack.c.bf16 %v3052, %v3048
    %v3101 = vpack.c.bf16 %v3057, %v3053
    %v3102 = vpack.c.bf16 %v3058, %v3054
    %v3103 = vpack.c.bf16 %v3059, %v3055
    %v3104 = vpack.c.bf16 %v3060, %v3056
    %v3105 = vpack.c.bf16 %v3065, %v3061
    %v3106 = vpack.c.bf16 %v3066, %v3062
    %v3107 = vpack.c.bf16 %v3067, %v3063
    %v3108 = vpack.c.bf16 %v3068, %v3064
    %v3109 = vpack.c.bf16 %v3073, %v3069
    %v3110 = vpack.c.bf16 %v3074, %v3070
    %v3111 = vpack.c.bf16 %v3075, %v3071
    %v3112 = vpack.c.bf16 %v3076, %v3072
    %v3113 = vpack.c.bf16 %v3081, %v3077
    %v3114 = vpack.c.bf16 %v3082, %v3078
    %v3115 = vpack.c.bf16 %v3083, %v3079
    %v3116 = vpack.c.bf16 %v3084, %v3080
    %s3117 = scalar_lea.vmem [#allocation14], 6
    %v3118 = vld [vmem:[%s3117] ss:$8 sm:$0xf]
    %s3119 = scalar_lea.vmem [#allocation14], 7
    %v3120 = vld [vmem:[%s3119] ss:$8 sm:$0xf]
    %s3121 = scalar_lea.vmem [#allocation14], 40
    %v3122 = vld [vmem:[%s3121] ss:$8 sm:$0xf]
    %s3123 = smul.u32 4, 64
    %s3124 = smul.u32 %s3123, 4
    %s3125 = sshll.u32 %s3124, 4
    %3126 = dma.done %s119, %s3125
    %v3127 = vld [vmem:[#allocation4] sm:$0xff]
    %v3128 = vld [vmem:[#allocation4 + $0x8] sm:$0xff]
    %v3129 = vld [vmem:[#allocation4 + $0x10] sm:$0xff]
    %v3130 = vld [vmem:[#allocation4 + $0x18] sm:$0xff]
    %v3131 = vld [vmem:[#allocation4 + $0x20] sm:$0xff]
    %v3132 = vld [vmem:[#allocation4 + $0x28] sm:$0xff]
    %v3133 = vld [vmem:[#allocation4 + $0x30] sm:$0xff]
    %v3134 = vld [vmem:[#allocation4 + $0x38] sm:$0xff]
    %v3135 = vld [vmem:[#allocation4 + $0x40] sm:$0xff]
    %v3136 = vld [vmem:[#allocation4 + $0x48] sm:$0xff]
    %v3137 = vld [vmem:[#allocation4 + $0x50] sm:$0xff]
    %v3138 = vld [vmem:[#allocation4 + $0x58] sm:$0xff]
    %v3139 = vld [vmem:[#allocation4 + $0x60] sm:$0xff]
    %v3140 = vld [vmem:[#allocation4 + $0x68] sm:$0xff]
    %v3141 = vld [vmem:[#allocation4 + $0x70] sm:$0xff]
    %v3142 = vld [vmem:[#allocation4 + $0x78] sm:$0xff]
    %v3143 = vld [vmem:[#allocation4 + $0x80] sm:$0xff]
    %v3144 = vld [vmem:[#allocation4 + $0x88] sm:$0xff]
    %v3145 = vld [vmem:[#allocation4 + $0x90] sm:$0xff]
    %v3146 = vld [vmem:[#allocation4 + $0x98] sm:$0xff]
    %v3147 = vld [vmem:[#allocation4 + $0xa0] sm:$0xff]
    %v3148 = vld [vmem:[#allocation4 + $0xa8] sm:$0xff]
    %v3149 = vld [vmem:[#allocation4 + $0xb0] sm:$0xff]
    %v3150 = vld [vmem:[#allocation4 + $0xb8] sm:$0xff]
    %v3151 = vld [vmem:[#allocation4 + $0xc0] sm:$0xff]
    %v3152 = vld [vmem:[#allocation4 + $0xc8] sm:$0xff]
    %v3153 = vld [vmem:[#allocation4 + $0xd0] sm:$0xff]
    %v3154 = vld [vmem:[#allocation4 + $0xd8] sm:$0xff]
    %v3155 = vld [vmem:[#allocation4 + $0xe0] sm:$0xff]
    %v3156 = vld [vmem:[#allocation4 + $0xe8] sm:$0xff]
    %v3157 = vld [vmem:[#allocation4 + $0xf0] sm:$0xff]
    %v3158 = vld [vmem:[#allocation4 + $0xf8] sm:$0xff]
    %v3159 = vld [vmem:[#allocation4 + $0x100] sm:$0xff]
    %v3160 = vld [vmem:[#allocation4 + $0x108] sm:$0xff]
    %v3161 = vld [vmem:[#allocation4 + $0x110] sm:$0xff]
    %v3162 = vld [vmem:[#allocation4 + $0x118] sm:$0xff]
    %v3163 = vld [vmem:[#allocation4 + $0x120] sm:$0xff]
    %v3164 = vld [vmem:[#allocation4 + $0x128] sm:$0xff]
    %v3165 = vld [vmem:[#allocation4 + $0x130] sm:$0xff]
    %v3166 = vld [vmem:[#allocation4 + $0x138] sm:$0xff]
    %v3167 = vld [vmem:[#allocation4 + $0x140] sm:$0xff]
    %v3168 = vld [vmem:[#allocation4 + $0x148] sm:$0xff]
    %v3169 = vld [vmem:[#allocation4 + $0x150] sm:$0xff]
    %v3170 = vld [vmem:[#allocation4 + $0x158] sm:$0xff]
    %v3171 = vld [vmem:[#allocation4 + $0x160] sm:$0xff]
    %v3172 = vld [vmem:[#allocation4 + $0x168] sm:$0xff]
    %v3173 = vld [vmem:[#allocation4 + $0x170] sm:$0xff]
    %v3174 = vld [vmem:[#allocation4 + $0x178] sm:$0xff]
    %v3175 = vld [vmem:[#allocation4 + $0x180] sm:$0xff]
    %v3176 = vld [vmem:[#allocation4 + $0x188] sm:$0xff]
    %v3177 = vld [vmem:[#allocation4 + $0x190] sm:$0xff]
    %v3178 = vld [vmem:[#allocation4 + $0x198] sm:$0xff]
    %v3179 = vld [vmem:[#allocation4 + $0x1a0] sm:$0xff]
    %v3180 = vld [vmem:[#allocation4 + $0x1a8] sm:$0xff]
    %v3181 = vld [vmem:[#allocation4 + $0x1b0] sm:$0xff]
    %v3182 = vld [vmem:[#allocation4 + $0x1b8] sm:$0xff]
    %v3183 = vld [vmem:[#allocation4 + $0x1c0] sm:$0xff]
    %v3184 = vld [vmem:[#allocation4 + $0x1c8] sm:$0xff]
    %v3185 = vld [vmem:[#allocation4 + $0x1d0] sm:$0xff]
    %v3186 = vld [vmem:[#allocation4 + $0x1d8] sm:$0xff]
    %v3187 = vld [vmem:[#allocation4 + $0x1e0] sm:$0xff]
    %v3188 = vld [vmem:[#allocation4 + $0x1e8] sm:$0xff]
    %v3189 = vld [vmem:[#allocation4 + $0x1f0] sm:$0xff]
    %v3190 = vld [vmem:[#allocation4 + $0x1f8] sm:$0xff]
    %v3191 = vld [vmem:[#allocation4 + $0x200] sm:$0xff]
    %v3192 = vld [vmem:[#allocation4 + $0x208] sm:$0xff]
    %v3193 = vld [vmem:[#allocation4 + $0x210] sm:$0xff]
    %v3194 = vld [vmem:[#allocation4 + $0x218] sm:$0xff]
    %v3195 = vld [vmem:[#allocation4 + $0x220] sm:$0xff]
    %v3196 = vld [vmem:[#allocation4 + $0x228] sm:$0xff]
    %v3197 = vld [vmem:[#allocation4 + $0x230] sm:$0xff]
    %v3198 = vld [vmem:[#allocation4 + $0x238] sm:$0xff]
    %v3199 = vld [vmem:[#allocation4 + $0x240] sm:$0xff]
    %v3200 = vld [vmem:[#allocation4 + $0x248] sm:$0xff]
    %v3201 = vld [vmem:[#allocation4 + $0x250] sm:$0xff]
    %v3202 = vld [vmem:[#allocation4 + $0x258] sm:$0xff]
    %v3203 = vld [vmem:[#allocation4 + $0x260] sm:$0xff]
    %v3204 = vld [vmem:[#allocation4 + $0x268] sm:$0xff]
    %v3205 = vld [vmem:[#allocation4 + $0x270] sm:$0xff]
    %v3206 = vld [vmem:[#allocation4 + $0x278] sm:$0xff]
    %v3207 = vld [vmem:[#allocation4 + $0x280] sm:$0xff]
    %v3208 = vld [vmem:[#allocation4 + $0x288] sm:$0xff]
    %v3209 = vld [vmem:[#allocation4 + $0x290] sm:$0xff]
    %v3210 = vld [vmem:[#allocation4 + $0x298] sm:$0xff]
    %v3211 = vld [vmem:[#allocation4 + $0x2a0] sm:$0xff]
    %v3212 = vld [vmem:[#allocation4 + $0x2a8] sm:$0xff]
    %v3213 = vld [vmem:[#allocation4 + $0x2b0] sm:$0xff]
    %v3214 = vld [vmem:[#allocation4 + $0x2b8] sm:$0xff]
    %v3215 = vld [vmem:[#allocation4 + $0x2c0] sm:$0xff]
    %v3216 = vld [vmem:[#allocation4 + $0x2c8] sm:$0xff]
    %v3217 = vld [vmem:[#allocation4 + $0x2d0] sm:$0xff]
    %v3218 = vld [vmem:[#allocation4 + $0x2d8] sm:$0xff]
    %v3219 = vld [vmem:[#allocation4 + $0x2e0] sm:$0xff]
    %v3220 = vld [vmem:[#allocation4 + $0x2e8] sm:$0xff]
    %v3221 = vld [vmem:[#allocation4 + $0x2f0] sm:$0xff]
    %v3222 = vld [vmem:[#allocation4 + $0x2f8] sm:$0xff]
    %v3223 = vld [vmem:[#allocation4 + $0x300] sm:$0xff]
    %v3224 = vld [vmem:[#allocation4 + $0x308] sm:$0xff]
    %v3225 = vld [vmem:[#allocation4 + $0x310] sm:$0xff]
    %v3226 = vld [vmem:[#allocation4 + $0x318] sm:$0xff]
    %v3227 = vld [vmem:[#allocation4 + $0x320] sm:$0xff]
    %v3228 = vld [vmem:[#allocation4 + $0x328] sm:$0xff]
    %v3229 = vld [vmem:[#allocation4 + $0x330] sm:$0xff]
    %v3230 = vld [vmem:[#allocation4 + $0x338] sm:$0xff]
    %v3231 = vld [vmem:[#allocation4 + $0x340] sm:$0xff]
    %v3232 = vld [vmem:[#allocation4 + $0x348] sm:$0xff]
    %v3233 = vld [vmem:[#allocation4 + $0x350] sm:$0xff]
    %v3234 = vld [vmem:[#allocation4 + $0x358] sm:$0xff]
    %v3235 = vld [vmem:[#allocation4 + $0x360] sm:$0xff]
    %v3236 = vld [vmem:[#allocation4 + $0x368] sm:$0xff]
    %v3237 = vld [vmem:[#allocation4 + $0x370] sm:$0xff]
    %v3238 = vld [vmem:[#allocation4 + $0x378] sm:$0xff]
    %v3239 = vld [vmem:[#allocation4 + $0x380] sm:$0xff]
    %v3240 = vld [vmem:[#allocation4 + $0x388] sm:$0xff]
    %v3241 = vld [vmem:[#allocation4 + $0x390] sm:$0xff]
    %v3242 = vld [vmem:[#allocation4 + $0x398] sm:$0xff]
    %v3243 = vld [vmem:[#allocation4 + $0x3a0] sm:$0xff]
    %v3244 = vld [vmem:[#allocation4 + $0x3a8] sm:$0xff]
    %v3245 = vld [vmem:[#allocation4 + $0x3b0] sm:$0xff]
    %v3246 = vld [vmem:[#allocation4 + $0x3b8] sm:$0xff]
    %v3247 = vld [vmem:[#allocation4 + $0x3c0] sm:$0xff]
    %v3248 = vld [vmem:[#allocation4 + $0x3c8] sm:$0xff]
    %v3249 = vld [vmem:[#allocation4 + $0x3d0] sm:$0xff]
    %v3250 = vld [vmem:[#allocation4 + $0x3d8] sm:$0xff]
    %v3251 = vld [vmem:[#allocation4 + $0x3e0] sm:$0xff]
    %v3252 = vld [vmem:[#allocation4 + $0x3e8] sm:$0xff]
    %v3253 = vld [vmem:[#allocation4 + $0x3f0] sm:$0xff]
    %v3254 = vld [vmem:[#allocation4 + $0x3f8] sm:$0xff]
    %v3256 = vlaneseq
    %v3257 = vshrl.u32 %v3256, 7
    %v3258 = vsub.s32 0, %v3257
    %v3259 = vrot.slane %v3118, %v3258
    %v3260 = vlaneseq
    %v3261 = vshrl.u32 %v3260, 7
    %v3262 = vsub.s32 1, %v3261
    %v3263 = vrot.slane %v3118, %v3262
    %v3264 = vlaneseq
    %v3265 = vshrl.u32 %v3264, 7
    %v3266 = vsub.s32 2, %v3265
    %v3267 = vrot.slane %v3118, %v3266
    %v3268 = vlaneseq
    %v3269 = vshrl.u32 %v3268, 7
    %v3270 = vsub.s32 3, %v3269
    %v3271 = vrot.slane %v3118, %v3270
    %3276 = vmatprep.subr.bf16.mxu0 %v3128
    %3277 = vmatpush1.bf16.msra.mxu0 %v3127
    %3278 = vmatprep.subr.bf16.mxu0 %v3132
    %3279 = vmatpush1.bf16.msra.mxu0 %v3131
    %3280 = vmatprep.subr.bf16.mxu0 %v3136
    %3281 = vmatpush1.bf16.msra.mxu0 %v3135
    %3282 = vmatprep.subr.bf16.mxu0 %v3140
    %3283 = vmatpush1.bf16.msra.mxu0 %v3139
    %3284 = vmatprep.subr.bf16.mxu0 %v3144
    %3285 = vmatpush1.bf16.msra.mxu0 %v3143
    %3286 = vmatprep.subr.bf16.mxu0 %v3148
    %3287 = vmatpush1.bf16.msra.mxu0 %v3147
    %3288 = vmatprep.subr.bf16.mxu0 %v3152
    %3289 = vmatpush1.bf16.msra.mxu0 %v3151
    %3290 = vmatprep.subr.bf16.mxu0 %v3156
    %3291 = vmatpush1.bf16.msra.mxu0 %v3155
    %3292 = vmatprep.subr.bf16.mxu0 %v3160
    %3293 = vmatpush1.bf16.msra.mxu0 %v3159
    %3294 = vmatprep.subr.bf16.mxu0 %v3164
    %3295 = vmatpush1.bf16.msra.mxu0 %v3163
    %3296 = vmatprep.subr.bf16.mxu0 %v3168
    %3297 = vmatpush1.bf16.msra.mxu0 %v3167
    %3298 = vmatprep.subr.bf16.mxu0 %v3172
    %3299 = vmatpush1.bf16.msra.mxu0 %v3171
    %3300 = vmatprep.subr.bf16.mxu0 %v3176
    %3301 = vmatpush1.bf16.msra.mxu0 %v3175
    %3302 = vmatprep.subr.bf16.mxu0 %v3180
    %3303 = vmatpush1.bf16.msra.mxu0 %v3179
    %3304 = vmatprep.subr.bf16.mxu0 %v3184
    %3305 = vmatpush1.bf16.msra.mxu0 %v3183
    %3306 = vmatprep.subr.bf16.mxu0 %v3188
    %3307 = vmatpush1.bf16.msra.mxu0 %v3187
    %3308 = vmatprep.mubr.bf16.mxu0 %v3086
    %3309 = vmatmul.mubr.bf16.gmra.mrb[0].mxu0 %v3085
    %v3310 = vpop.f32.mrb[0].mxu0
    %v3311 = vadd.f32 %v3259, %v3310
    %v3312 = vpop.f32.mrb[0].mxu0
    %v3313 = vadd.f32 %v3263, %v3312
    %v3314 = vpop.f32.mrb[0].mxu0
    %v3315 = vadd.f32 %v3259, %v3314
    %v3316 = vpop.f32.mrb[0].mxu0
    %v3317 = vadd.f32 %v3263, %v3316
    %3318 = vmatprep.mubr.bf16.mxu0 %v3090
    %3319 = vmatmul.mubr.bf16.gmra.mrb[0].mxu0 %v3089
    %v3320 = vpop.f32.mrb[0].mxu0
    %v3321 = vadd.f32 %v3259, %v3320
    %v3322 = vpop.f32.mrb[0].mxu0
    %v3323 = vadd.f32 %v3263, %v3322
    %v3324 = vpop.f32.mrb[0].mxu0
    %v3325 = vadd.f32 %v3259, %v3324
    %v3326 = vpop.f32.mrb[0].mxu0
    %v3327 = vadd.f32 %v3263, %v3326
    %3328 = vmatprep.mubr.bf16.mxu0 %v3094
    %3329 = vmatmul.mubr.bf16.gmra.mrb[0].mxu0 %v3093
    %v3330 = vpop.f32.mrb[0].mxu0
    %v3331 = vadd.f32 %v3259, %v3330
    %v3332 = vpop.f32.mrb[0].mxu0
    %v3333 = vadd.f32 %v3263, %v3332
    %v3334 = vpop.f32.mrb[0].mxu0
    %v3335 = vadd.f32 %v3259, %v3334
    %v3336 = vpop.f32.mrb[0].mxu0
    %v3337 = vadd.f32 %v3263, %v3336
    %3338 = vmatprep.mubr.bf16.mxu0 %v3098
    %3339 = vmatmul.mubr.bf16.gmra.mrb[0].mxu0 %v3097
    %v3340 = vpop.f32.mrb[0].mxu0
    %v3341 = vadd.f32 %v3259, %v3340
    %v3342 = vpop.f32.mrb[0].mxu0
    %v3343 = vadd.f32 %v3263, %v3342
    %v3344 = vpop.f32.mrb[0].mxu0
    %v3345 = vadd.f32 %v3259, %v3344
    %v3346 = vpop.f32.mrb[0].mxu0
    %v3347 = vadd.f32 %v3263, %v3346
    %3348 = vmatprep.mubr.bf16.mxu0 %v3102
    %3349 = vmatmul.mubr.bf16.gmra.mrb[0].mxu0 %v3101
    %v3350 = vpop.f32.mrb[0].mxu0
    %v3351 = vadd.f32 %v3259, %v3350
    %v3352 = vpop.f32.mrb[0].mxu0
    %v3353 = vadd.f32 %v3263, %v3352
    %v3354 = vpop.f32.mrb[0].mxu0
    %v3355 = vadd.f32 %v3259, %v3354
    %v3356 = vpop.f32.mrb[0].mxu0
    %v3357 = vadd.f32 %v3263, %v3356
    %3358 = vmatprep.mubr.bf16.mxu0 %v3106
    %3359 = vmatmul.mubr.bf16.gmra.mrb[0].mxu0 %v3105
    %v3360 = vpop.f32.mrb[0].mxu0
    %v3361 = vadd.f32 %v3259, %v3360
    %v3362 = vpop.f32.mrb[0].mxu0
    %v3363 = vadd.f32 %v3263, %v3362
    %v3364 = vpop.f32.mrb[0].mxu0
    %v3365 = vadd.f32 %v3259, %v3364
    %v3366 = vpop.f32.mrb[0].mxu0
    %v3367 = vadd.f32 %v3263, %v3366
    %3368 = vmatprep.mubr.bf16.mxu0 %v3110
    %3369 = vmatmul.mubr.bf16.gmra.mrb[0].mxu0 %v3109
    %v3370 = vpop.f32.mrb[0].mxu0
    %v3371 = vadd.f32 %v3259, %v3370
    %v3372 = vpop.f32.mrb[0].mxu0
    %v3373 = vadd.f32 %v3263, %v3372
    %v3374 = vpop.f32.mrb[0].mxu0
    %v3375 = vadd.f32 %v3259, %v3374
    %v3376 = vpop.f32.mrb[0].mxu0
    %v3377 = vadd.f32 %v3263, %v3376
    %3378 = vmatprep.mubr.bf16.mxu0 %v3114
    %3379 = vmatmul.mubr.bf16.gmra.mrb[0].mxu0 %v3113
    %v3380 = vpop.f32.mrb[0].mxu0
    %v3381 = vadd.f32 %v3259, %v3380
    %v3382 = vpop.f32.mrb[0].mxu0
    %v3383 = vadd.f32 %v3263, %v3382
    %v3384 = vpop.f32.mrb[0].mxu0
    %v3385 = vadd.f32 %v3259, %v3384
    %v3386 = vpop.f32.mrb[0].mxu0
    %v3387 = vadd.f32 %v3263, %v3386
    %3388 = vdwg.mxu0
    %3389 = vmatprep.subr.bf16.mxu0 %v3192
    %3390 = vmatpush1.bf16.msra.mxu0 %v3191
    %3391 = vmatprep.subr.bf16.mxu0 %v3196
    %3392 = vmatpush1.bf16.msra.mxu0 %v3195
    %3393 = vmatprep.subr.bf16.mxu0 %v3200
    %3394 = vmatpush1.bf16.msra.mxu0 %v3199
    %3395 = vmatprep.subr.bf16.mxu0 %v3204
    %3396 = vmatpush1.bf16.msra.mxu0 %v3203
    %3397 = vmatprep.subr.bf16.mxu0 %v3208
    %3398 = vmatpush1.bf16.msra.mxu0 %v3207
    %3399 = vmatprep.subr.bf16.mxu0 %v3212
    %3400 = vmatpush1.bf16.msra.mxu0 %v3211
    %3401 = vmatprep.subr.bf16.mxu0 %v3216
    %3402 = vmatpush1.bf16.msra.mxu0 %v3215
    %3403 = vmatprep.subr.bf16.mxu0 %v3220
    %3404 = vmatpush1.bf16.msra.mxu0 %v3219
    %3405 = vmatprep.subr.bf16.mxu0 %v3224
    %3406 = vmatpush1.bf16.msra.mxu0 %v3223
    %3407 = vmatprep.subr.bf16.mxu0 %v3228
    %3408 = vmatpush1.bf16.msra.mxu0 %v3227
    %3409 = vmatprep.subr.bf16.mxu0 %v3232
    %3410 = vmatpush1.bf16.msra.mxu0 %v3231
    %3411 = vmatprep.subr.bf16.mxu0 %v3236
    %3412 = vmatpush1.bf16.msra.mxu0 %v3235
    %3413 = vmatprep.subr.bf16.mxu0 %v3240
    %3414 = vmatpush1.bf16.msra.mxu0 %v3239
    %3415 = vmatprep.subr.bf16.mxu0 %v3244
    %3416 = vmatpush1.bf16.msra.mxu0 %v3243
    %3417 = vmatprep.subr.bf16.mxu0 %v3248
    %3418 = vmatpush1.bf16.msra.mxu0 %v3247
    %3419 = vmatprep.subr.bf16.mxu0 %v3252
    %3420 = vmatpush1.bf16.msra.mxu0 %v3251
    %3421 = vmatprep.mubr.bf16.mxu0 %v3088
    %3422 = vmatmul.mubr.bf16.gmra.mrb[0].mxu0 %v3087
    %v3423 = vpop.f32.mrb[0].mxu0
    %v3424 = vadd.f32 %v3311, %v3423
    %v3425 = vpop.f32.mrb[0].mxu0
    %v3426 = vadd.f32 %v3313, %v3425
    %v3427 = vpop.f32.mrb[0].mxu0
    %v3428 = vadd.f32 %v3315, %v3427
    %v3429 = vpop.f32.mrb[0].mxu0
    %v3430 = vadd.f32 %v3317, %v3429
    %3431 = vmatprep.mubr.bf16.mxu0 %v3092
    %3432 = vmatmul.mubr.bf16.gmra.mrb[0].mxu0 %v3091
    %v3433 = vpop.f32.mrb[0].mxu0
    %v3434 = vadd.f32 %v3321, %v3433
    %v3435 = vpop.f32.mrb[0].mxu0
    %v3436 = vadd.f32 %v3323, %v3435
    %v3437 = vpop.f32.mrb[0].mxu0
    %v3438 = vadd.f32 %v3325, %v3437
    %v3439 = vpop.f32.mrb[0].mxu0
    %v3440 = vadd.f32 %v3327, %v3439
    %3441 = vmatprep.mubr.bf16.mxu0 %v3096
    %3442 = vmatmul.mubr.bf16.gmra.mrb[0].mxu0 %v3095
    %v3443 = vpop.f32.mrb[0].mxu0
    %v3444 = vadd.f32 %v3331, %v3443
    %v3445 = vpop.f32.mrb[0].mxu0
    %v3446 = vadd.f32 %v3333, %v3445
    %v3447 = vpop.f32.mrb[0].mxu0
    %v3448 = vadd.f32 %v3335, %v3447
    %v3449 = vpop.f32.mrb[0].mxu0
    %v3450 = vadd.f32 %v3337, %v3449
    %3451 = vmatprep.mubr.bf16.mxu0 %v3100
    %3452 = vmatmul.mubr.bf16.gmra.mrb[0].mxu0 %v3099
    %v3453 = vpop.f32.mrb[0].mxu0
    %v3454 = vadd.f32 %v3341, %v3453
    %v3455 = vpop.f32.mrb[0].mxu0
    %v3456 = vadd.f32 %v3343, %v3455
    %v3457 = vpop.f32.mrb[0].mxu0
    %v3458 = vadd.f32 %v3345, %v3457
    %v3459 = vpop.f32.mrb[0].mxu0
    %v3460 = vadd.f32 %v3347, %v3459
    %3461 = vmatprep.mubr.bf16.mxu0 %v3104
    %3462 = vmatmul.mubr.bf16.gmra.mrb[0].mxu0 %v3103
    %v3463 = vpop.f32.mrb[0].mxu0
    %v3464 = vadd.f32 %v3351, %v3463
    %v3465 = vpop.f32.mrb[0].mxu0
    %v3466 = vadd.f32 %v3353, %v3465
    %v3467 = vpop.f32.mrb[0].mxu0
    %v3468 = vadd.f32 %v3355, %v3467
    %v3469 = vpop.f32.mrb[0].mxu0
    %v3470 = vadd.f32 %v3357, %v3469
    %3471 = vmatprep.mubr.bf16.mxu0 %v3108
    %3472 = vmatmul.mubr.bf16.gmra.mrb[0].mxu0 %v3107
    %v3473 = vpop.f32.mrb[0].mxu0
    %v3474 = vadd.f32 %v3361, %v3473
    %v3475 = vpop.f32.mrb[0].mxu0
    %v3476 = vadd.f32 %v3363, %v3475
    %v3477 = vpop.f32.mrb[0].mxu0
    %v3478 = vadd.f32 %v3365, %v3477
    %v3479 = vpop.f32.mrb[0].mxu0
    %v3480 = vadd.f32 %v3367, %v3479
    %3481 = vmatprep.mubr.bf16.mxu0 %v3112
    %3482 = vmatmul.mubr.bf16.gmra.mrb[0].mxu0 %v3111
    %v3483 = vpop.f32.mrb[0].mxu0
    %v3484 = vadd.f32 %v3371, %v3483
    %v3485 = vpop.f32.mrb[0].mxu0
    %v3486 = vadd.f32 %v3373, %v3485
    %v3487 = vpop.f32.mrb[0].mxu0
    %v3488 = vadd.f32 %v3375, %v3487
    %v3489 = vpop.f32.mrb[0].mxu0
    %v3490 = vadd.f32 %v3377, %v3489
    %3491 = vmatprep.mubr.bf16.mxu0 %v3116
    %3492 = vmatmul.mubr.bf16.gmra.mrb[0].mxu0 %v3115
    %v3493 = vpop.f32.mrb[0].mxu0
    %v3494 = vadd.f32 %v3381, %v3493
    %v3495 = vpop.f32.mrb[0].mxu0
    %v3496 = vadd.f32 %v3383, %v3495
    %v3497 = vpop.f32.mrb[0].mxu0
    %v3498 = vadd.f32 %v3385, %v3497
    %v3499 = vpop.f32.mrb[0].mxu0
    %v3500 = vadd.f32 %v3387, %v3499
    %3501 = vdwg.mxu0
    %3502 = vmatprep.subr.bf16.mxu0 %v3130
    %3503 = vmatpush1.bf16.msra.mxu0 %v3129
    %3504 = vmatprep.subr.bf16.mxu0 %v3134
    %3505 = vmatpush1.bf16.msra.mxu0 %v3133
    %3506 = vmatprep.subr.bf16.mxu0 %v3138
    %3507 = vmatpush1.bf16.msra.mxu0 %v3137
    %3508 = vmatprep.subr.bf16.mxu0 %v3142
    %3509 = vmatpush1.bf16.msra.mxu0 %v3141
    %3510 = vmatprep.subr.bf16.mxu0 %v3146
    %3511 = vmatpush1.bf16.msra.mxu0 %v3145
    %3512 = vmatprep.subr.bf16.mxu0 %v3150
    %3513 = vmatpush1.bf16.msra.mxu0 %v3149
    %3514 = vmatprep.subr.bf16.mxu0 %v3154
    %3515 = vmatpush1.bf16.msra.mxu0 %v3153
    %3516 = vmatprep.subr.bf16.mxu0 %v3158
    %3517 = vmatpush1.bf16.msra.mxu0 %v3157
    %3518 = vmatprep.subr.bf16.mxu0 %v3162
    %3519 = vmatpush1.bf16.msra.mxu0 %v3161
    %3520 = vmatprep.subr.bf16.mxu0 %v3166
    %3521 = vmatpush1.bf16.msra.mxu0 %v3165
    %3522 = vmatprep.subr.bf16.mxu0 %v3170
    %3523 = vmatpush1.bf16.msra.mxu0 %v3169
    %3524 = vmatprep.subr.bf16.mxu0 %v3174
    %3525 = vmatpush1.bf16.msra.mxu0 %v3173
    %3526 = vmatprep.subr.bf16.mxu0 %v3178
    %3527 = vmatpush1.bf16.msra.mxu0 %v3177
    %3528 = vmatprep.subr.bf16.mxu0 %v3182
    %3529 = vmatpush1.bf16.msra.mxu0 %v3181
    %3530 = vmatprep.subr.bf16.mxu0 %v3186
    %3531 = vmatpush1.bf16.msra.mxu0 %v3185
    %3532 = vmatprep.subr.bf16.mxu0 %v3190
    %3533 = vmatpush1.bf16.msra.mxu0 %v3189
    %3534 = vmatprep.mubr.bf16.mxu0 %v3086
    %3535 = vmatmul.mubr.bf16.gmra.mrb[0].mxu0 %v3085
    %v3536 = vpop.f32.mrb[0].mxu0
    %v3537 = vadd.f32 %v3267, %v3536
    %v3538 = vpop.f32.mrb[0].mxu0
    %v3539 = vadd.f32 %v3271, %v3538
    %v3540 = vpop.f32.mrb[0].mxu0
    %v3541 = vadd.f32 %v3267, %v3540
    %v3542 = vpop.f32.mrb[0].mxu0
    %v3543 = vadd.f32 %v3271, %v3542
    %3544 = vmatprep.mubr.bf16.mxu0 %v3090
    %3545 = vmatmul.mubr.bf16.gmra.mrb[0].mxu0 %v3089
    %v3546 = vpop.f32.mrb[0].mxu0
    %v3547 = vadd.f32 %v3267, %v3546
    %v3548 = vpop.f32.mrb[0].mxu0
    %v3549 = vadd.f32 %v3271, %v3548
    %v3550 = vpop.f32.mrb[0].mxu0
    %v3551 = vadd.f32 %v3267, %v3550
    %v3552 = vpop.f32.mrb[0].mxu0
    %v3553 = vadd.f32 %v3271, %v3552
    %3554 = vmatprep.mubr.bf16.mxu0 %v3094
    %3555 = vmatmul.mubr.bf16.gmra.mrb[0].mxu0 %v3093
    %v3556 = vpop.f32.mrb[0].mxu0
    %v3557 = vadd.f32 %v3267, %v3556
    %v3558 = vpop.f32.mrb[0].mxu0
    %v3559 = vadd.f32 %v3271, %v3558
    %v3560 = vpop.f32.mrb[0].mxu0
    %v3561 = vadd.f32 %v3267, %v3560
    %v3562 = vpop.f32.mrb[0].mxu0
    %v3563 = vadd.f32 %v3271, %v3562
    %3564 = vmatprep.mubr.bf16.mxu0 %v3098
    %3565 = vmatmul.mubr.bf16.gmra.mrb[0].mxu0 %v3097
    %v3566 = vpop.f32.mrb[0].mxu0
    %v3567 = vadd.f32 %v3267, %v3566
    %v3568 = vpop.f32.mrb[0].mxu0
    %v3569 = vadd.f32 %v3271, %v3568
    %v3570 = vpop.f32.mrb[0].mxu0
    %v3571 = vadd.f32 %v3267, %v3570
    %v3572 = vpop.f32.mrb[0].mxu0
    %v3573 = vadd.f32 %v3271, %v3572
    %3574 = vmatprep.mubr.bf16.mxu0 %v3102
    %3575 = vmatmul.mubr.bf16.gmra.mrb[0].mxu0 %v3101
    %v3576 = vpop.f32.mrb[0].mxu0
    %v3577 = vadd.f32 %v3267, %v3576
    %v3578 = vpop.f32.mrb[0].mxu0
    %v3579 = vadd.f32 %v3271, %v3578
    %v3580 = vpop.f32.mrb[0].mxu0
    %v3581 = vadd.f32 %v3267, %v3580
    %v3582 = vpop.f32.mrb[0].mxu0
    %v3583 = vadd.f32 %v3271, %v3582
    %3584 = vmatprep.mubr.bf16.mxu0 %v3106
    %3585 = vmatmul.mubr.bf16.gmra.mrb[0].mxu0 %v3105
    %v3586 = vpop.f32.mrb[0].mxu0
    %v3587 = vadd.f32 %v3267, %v3586
    %v3588 = vpop.f32.mrb[0].mxu0
    %v3589 = vadd.f32 %v3271, %v3588
    %v3590 = vpop.f32.mrb[0].mxu0
    %v3591 = vadd.f32 %v3267, %v3590
    %v3592 = vpop.f32.mrb[0].mxu0
    %v3593 = vadd.f32 %v3271, %v3592
    %3594 = vmatprep.mubr.bf16.mxu0 %v3110
    %3595 = vmatmul.mubr.bf16.gmra.mrb[0].mxu0 %v3109
    %v3596 = vpop.f32.mrb[0].mxu0
    %v3597 = vadd.f32 %v3267, %v3596
    %v3598 = vpop.f32.mrb[0].mxu0
    %v3599 = vadd.f32 %v3271, %v3598
    %v3600 = vpop.f32.mrb[0].mxu0
    %v3601 = vadd.f32 %v3267, %v3600
    %v3602 = vpop.f32.mrb[0].mxu0
    %v3603 = vadd.f32 %v3271, %v3602
    %3604 = vmatprep.mubr.bf16.mxu0 %v3114
    %3605 = vmatmul.mubr.bf16.gmra.mrb[0].mxu0 %v3113
    %v3606 = vpop.f32.mrb[0].mxu0
    %v3607 = vadd.f32 %v3267, %v3606
    %v3608 = vpop.f32.mrb[0].mxu0
    %v3609 = vadd.f32 %v3271, %v3608
    %v3610 = vpop.f32.mrb[0].mxu0
    %v3611 = vadd.f32 %v3267, %v3610
    %v3612 = vpop.f32.mrb[0].mxu0
    %v3613 = vadd.f32 %v3271, %v3612
    %3614 = vdwg.mxu0
    %3615 = vmatprep.subr.bf16.mxu0 %v3194
    %3616 = vmatpush1.bf16.msra.mxu0 %v3193
    %3617 = vmatprep.subr.bf16.mxu0 %v3198
    %3618 = vmatpush1.bf16.msra.mxu0 %v3197
    %3619 = vmatprep.subr.bf16.mxu0 %v3202
    %3620 = vmatpush1.bf16.msra.mxu0 %v3201
    %3621 = vmatprep.subr.bf16.mxu0 %v3206
    %3622 = vmatpush1.bf16.msra.mxu0 %v3205
    %3623 = vmatprep.subr.bf16.mxu0 %v3210
    %3624 = vmatpush1.bf16.msra.mxu0 %v3209
    %3625 = vmatprep.subr.bf16.mxu0 %v3214
    %3626 = vmatpush1.bf16.msra.mxu0 %v3213
    %3627 = vmatprep.subr.bf16.mxu0 %v3218
    %3628 = vmatpush1.bf16.msra.mxu0 %v3217
    %3629 = vmatprep.subr.bf16.mxu0 %v3222
    %3630 = vmatpush1.bf16.msra.mxu0 %v3221
    %3631 = vmatprep.subr.bf16.mxu0 %v3226
    %3632 = vmatpush1.bf16.msra.mxu0 %v3225
    %3633 = vmatprep.subr.bf16.mxu0 %v3230
    %3634 = vmatpush1.bf16.msra.mxu0 %v3229
    %3635 = vmatprep.subr.bf16.mxu0 %v3234
    %3636 = vmatpush1.bf16.msra.mxu0 %v3233
    %3637 = vmatprep.subr.bf16.mxu0 %v3238
    %3638 = vmatpush1.bf16.msra.mxu0 %v3237
    %3639 = vmatprep.subr.bf16.mxu0 %v3242
    %3640 = vmatpush1.bf16.msra.mxu0 %v3241
    %3641 = vmatprep.subr.bf16.mxu0 %v3246
    %3642 = vmatpush1.bf16.msra.mxu0 %v3245
    %3643 = vmatprep.subr.bf16.mxu0 %v3250
    %3644 = vmatpush1.bf16.msra.mxu0 %v3249
    %3645 = vmatprep.subr.bf16.mxu0 %v3254
    %3646 = vmatpush1.bf16.msra.mxu0 %v3253
    %3647 = vmatprep.mubr.bf16.mxu0 %v3088
    %3648 = vmatmul.mubr.bf16.gmra.mrb[0].mxu0 %v3087
    %v3649 = vpop.f32.mrb[0].mxu0
    %v3650 = vadd.f32 %v3537, %v3649
    %v3651 = vpop.f32.mrb[0].mxu0
    %v3652 = vadd.f32 %v3539, %v3651
    %v3653 = vpop.f32.mrb[0].mxu0
    %v3654 = vadd.f32 %v3541, %v3653
    %v3655 = vpop.f32.mrb[0].mxu0
    %v3656 = vadd.f32 %v3543, %v3655
    %3657 = vmatprep.mubr.bf16.mxu0 %v3092
    %3658 = vmatmul.mubr.bf16.gmra.mrb[0].mxu0 %v3091
    %v3659 = vpop.f32.mrb[0].mxu0
    %v3660 = vadd.f32 %v3547, %v3659
    %v3661 = vpop.f32.mrb[0].mxu0
    %v3662 = vadd.f32 %v3549, %v3661
    %v3663 = vpop.f32.mrb[0].mxu0
    %v3664 = vadd.f32 %v3551, %v3663
    %v3665 = vpop.f32.mrb[0].mxu0
    %v3666 = vadd.f32 %v3553, %v3665
    %3667 = vmatprep.mubr.bf16.mxu0 %v3096
    %3668 = vmatmul.mubr.bf16.gmra.mrb[0].mxu0 %v3095
    %v3669 = vpop.f32.mrb[0].mxu0
    %v3670 = vadd.f32 %v3557, %v3669
    %v3671 = vpop.f32.mrb[0].mxu0
    %v3672 = vadd.f32 %v3559, %v3671
    %v3673 = vpop.f32.mrb[0].mxu0
    %v3674 = vadd.f32 %v3561, %v3673
    %v3675 = vpop.f32.mrb[0].mxu0
    %v3676 = vadd.f32 %v3563, %v3675
    %3677 = vmatprep.mubr.bf16.mxu0 %v3100
    %3678 = vmatmul.mubr.bf16.gmra.mrb[0].mxu0 %v3099
    %v3679 = vpop.f32.mrb[0].mxu0
    %v3680 = vadd.f32 %v3567, %v3679
    %v3681 = vpop.f32.mrb[0].mxu0
    %v3682 = vadd.f32 %v3569, %v3681
    %v3683 = vpop.f32.mrb[0].mxu0
    %v3684 = vadd.f32 %v3571, %v3683
    %v3685 = vpop.f32.mrb[0].mxu0
    %v3686 = vadd.f32 %v3573, %v3685
    %3687 = vmatprep.mubr.bf16.mxu0 %v3104
    %3688 = vmatmul.mubr.bf16.gmra.mrb[0].mxu0 %v3103
    %v3689 = vpop.f32.mrb[0].mxu0
    %v3690 = vadd.f32 %v3577, %v3689
    %v3691 = vpop.f32.mrb[0].mxu0
    %v3692 = vadd.f32 %v3579, %v3691
    %v3693 = vpop.f32.mrb[0].mxu0
    %v3694 = vadd.f32 %v3581, %v3693
    %v3695 = vpop.f32.mrb[0].mxu0
    %v3696 = vadd.f32 %v3583, %v3695
    %3697 = vmatprep.mubr.bf16.mxu0 %v3108
    %3698 = vmatmul.mubr.bf16.gmra.mrb[0].mxu0 %v3107
    %v3699 = vpop.f32.mrb[0].mxu0
    %v3700 = vadd.f32 %v3587, %v3699
    %v3701 = vpop.f32.mrb[0].mxu0
    %v3702 = vadd.f32 %v3589, %v3701
    %v3703 = vpop.f32.mrb[0].mxu0
    %v3704 = vadd.f32 %v3591, %v3703
    %v3705 = vpop.f32.mrb[0].mxu0
    %v3706 = vadd.f32 %v3593, %v3705
    %3707 = vmatprep.mubr.bf16.mxu0 %v3112
    %3708 = vmatmul.mubr.bf16.gmra.mrb[0].mxu0 %v3111
    %v3709 = vpop.f32.mrb[0].mxu0
    %v3710 = vadd.f32 %v3597, %v3709
    %v3711 = vpop.f32.mrb[0].mxu0
    %v3712 = vadd.f32 %v3599, %v3711
    %v3713 = vpop.f32.mrb[0].mxu0
    %v3714 = vadd.f32 %v3601, %v3713
    %v3715 = vpop.f32.mrb[0].mxu0
    %v3716 = vadd.f32 %v3603, %v3715
    %3717 = vmatprep.mubr.bf16.mxu0 %v3116
    %3718 = vmatmul.mubr.bf16.gmra.mrb[0].mxu0 %v3115
    %v3719 = vpop.f32.mrb[0].mxu0
    %v3720 = vadd.f32 %v3607, %v3719
    %v3721 = vpop.f32.mrb[0].mxu0
    %v3722 = vadd.f32 %v3609, %v3721
    %v3723 = vpop.f32.mrb[0].mxu0
    %v3724 = vadd.f32 %v3611, %v3723
    %v3725 = vpop.f32.mrb[0].mxu0
    %v3726 = vadd.f32 %v3613, %v3725
    %3727 = vdwg.mxu0
    %v3728 = vmul.f32 %v3424, 0.01
    %v3729 = vmul.f32 %v3426, 0.01
    %v3730 = vmul.f32 %v3650, 0.01
    %v3731 = vmul.f32 %v3652, 0.01
    %v3732 = vmul.f32 %v3428, 0.01
    %v3733 = vmul.f32 %v3430, 0.01
    %v3734 = vmul.f32 %v3654, 0.01
    %v3735 = vmul.f32 %v3656, 0.01
    %v3736 = vmul.f32 %v3434, 0.01
    %v3737 = vmul.f32 %v3436, 0.01
    %v3738 = vmul.f32 %v3660, 0.01
    %v3739 = vmul.f32 %v3662, 0.01
    %v3740 = vmul.f32 %v3438, 0.01
    %v3741 = vmul.f32 %v3440, 0.01
    %v3742 = vmul.f32 %v3664, 0.01
    %v3743 = vmul.f32 %v3666, 0.01
    %v3744 = vmul.f32 %v3444, 0.01
    %v3745 = vmul.f32 %v3446, 0.01
    %v3746 = vmul.f32 %v3670, 0.01
    %v3747 = vmul.f32 %v3672, 0.01
    %v3748 = vmul.f32 %v3448, 0.01
    %v3749 = vmul.f32 %v3450, 0.01
    %v3750 = vmul.f32 %v3674, 0.01
    %v3751 = vmul.f32 %v3676, 0.01
    %v3752 = vmul.f32 %v3454, 0.01
    %v3753 = vmul.f32 %v3456, 0.01
    %v3754 = vmul.f32 %v3680, 0.01
    %v3755 = vmul.f32 %v3682, 0.01
    %v3756 = vmul.f32 %v3458, 0.01
    %v3757 = vmul.f32 %v3460, 0.01
    %v3758 = vmul.f32 %v3684, 0.01
    %v3759 = vmul.f32 %v3686, 0.01
    %v3760 = vmul.f32 %v3464, 0.01
    %v3761 = vmul.f32 %v3466, 0.01
    %v3762 = vmul.f32 %v3690, 0.01
    %v3763 = vmul.f32 %v3692, 0.01
    %v3764 = vmul.f32 %v3468, 0.01
    %v3765 = vmul.f32 %v3470, 0.01
    %v3766 = vmul.f32 %v3694, 0.01
    %v3767 = vmul.f32 %v3696, 0.01
    %v3768 = vmul.f32 %v3474, 0.01
    %v3769 = vmul.f32 %v3476, 0.01
    %v3770 = vmul.f32 %v3700, 0.01
    %v3771 = vmul.f32 %v3702, 0.01
    %v3772 = vmul.f32 %v3478, 0.01
    %v3773 = vmul.f32 %v3480, 0.01
    %v3774 = vmul.f32 %v3704, 0.01
    %v3775 = vmul.f32 %v3706, 0.01
    %v3776 = vmul.f32 %v3484, 0.01
    %v3777 = vmul.f32 %v3486, 0.01
    %v3778 = vmul.f32 %v3710, 0.01
    %v3779 = vmul.f32 %v3712, 0.01
    %v3780 = vmul.f32 %v3488, 0.01
    %v3781 = vmul.f32 %v3490, 0.01
    %v3782 = vmul.f32 %v3714, 0.01
    %v3783 = vmul.f32 %v3716, 0.01
    %v3784 = vmul.f32 %v3494, 0.01
    %v3785 = vmul.f32 %v3496, 0.01
    %v3786 = vmul.f32 %v3720, 0.01
    %v3787 = vmul.f32 %v3722, 0.01
    %v3788 = vmul.f32 %v3498, 0.01
    %v3789 = vmul.f32 %v3500, 0.01
    %v3790 = vmul.f32 %v3724, 0.01
    %v3791 = vmul.f32 %v3726, 0.01
    %v3792 = vmax.f32 %v3424, %v3728
    %v3793 = vmax.f32 %v3426, %v3729
    %v3794 = vmax.f32 %v3650, %v3730
    %v3795 = vmax.f32 %v3652, %v3731
    %v3796 = vmax.f32 %v3428, %v3732
    %v3797 = vmax.f32 %v3430, %v3733
    %v3798 = vmax.f32 %v3654, %v3734
    %v3799 = vmax.f32 %v3656, %v3735
    %v3800 = vmax.f32 %v3434, %v3736
    %v3801 = vmax.f32 %v3436, %v3737
    %v3802 = vmax.f32 %v3660, %v3738
    %v3803 = vmax.f32 %v3662, %v3739
    %v3804 = vmax.f32 %v3438, %v3740
    %v3805 = vmax.f32 %v3440, %v3741
    %v3806 = vmax.f32 %v3664, %v3742
    %v3807 = vmax.f32 %v3666, %v3743
    %v3808 = vmax.f32 %v3444, %v3744
    %v3809 = vmax.f32 %v3446, %v3745
    %v3810 = vmax.f32 %v3670, %v3746
    %v3811 = vmax.f32 %v3672, %v3747
    %v3812 = vmax.f32 %v3448, %v3748
    %v3813 = vmax.f32 %v3450, %v3749
    %v3814 = vmax.f32 %v3674, %v3750
    %v3815 = vmax.f32 %v3676, %v3751
    %v3816 = vmax.f32 %v3454, %v3752
    %v3817 = vmax.f32 %v3456, %v3753
    %v3818 = vmax.f32 %v3680, %v3754
    %v3819 = vmax.f32 %v3682, %v3755
    %v3820 = vmax.f32 %v3458, %v3756
    %v3821 = vmax.f32 %v3460, %v3757
    %v3822 = vmax.f32 %v3684, %v3758
    %v3823 = vmax.f32 %v3686, %v3759
    %v3824 = vmax.f32 %v3464, %v3760
    %v3825 = vmax.f32 %v3466, %v3761
    %v3826 = vmax.f32 %v3690, %v3762
    %v3827 = vmax.f32 %v3692, %v3763
    %v3828 = vmax.f32 %v3468, %v3764
    %v3829 = vmax.f32 %v3470, %v3765
    %v3830 = vmax.f32 %v3694, %v3766
    %v3831 = vmax.f32 %v3696, %v3767
    %v3832 = vmax.f32 %v3474, %v3768
    %v3833 = vmax.f32 %v3476, %v3769
    %v3834 = vmax.f32 %v3700, %v3770
    %v3835 = vmax.f32 %v3702, %v3771
    %v3836 = vmax.f32 %v3478, %v3772
    %v3837 = vmax.f32 %v3480, %v3773
    %v3838 = vmax.f32 %v3704, %v3774
    %v3839 = vmax.f32 %v3706, %v3775
    %v3840 = vmax.f32 %v3484, %v3776
    %v3841 = vmax.f32 %v3486, %v3777
    %v3842 = vmax.f32 %v3710, %v3778
    %v3843 = vmax.f32 %v3712, %v3779
    %v3844 = vmax.f32 %v3488, %v3780
    %v3845 = vmax.f32 %v3490, %v3781
    %v3846 = vmax.f32 %v3714, %v3782
    %v3847 = vmax.f32 %v3716, %v3783
    %v3848 = vmax.f32 %v3494, %v3784
    %v3849 = vmax.f32 %v3496, %v3785
    %v3850 = vmax.f32 %v3720, %v3786
    %v3851 = vmax.f32 %v3722, %v3787
    %v3852 = vmax.f32 %v3498, %v3788
    %v3853 = vmax.f32 %v3500, %v3789
    %v3854 = vmax.f32 %v3724, %v3790
    %v3855 = vmax.f32 %v3726, %v3791
    %v3856 = vadd.f32 %v3792, %v3796
    %v3857 = vadd.f32 %v3856, %v3800
    %v3858 = vadd.f32 %v3857, %v3804
    %v3859 = vadd.f32 %v3858, %v3808
    %v3860 = vadd.f32 %v3859, %v3812
    %v3861 = vadd.f32 %v3860, %v3816
    %v3862 = vadd.f32 %v3861, %v3820
    %v3863 = vadd.f32 %v3862, %v3824
    %v3864 = vadd.f32 %v3863, %v3828
    %v3865 = vadd.f32 %v3864, %v3832
    %v3866 = vadd.f32 %v3865, %v3836
    %v3867 = vadd.f32 %v3866, %v3840
    %v3868 = vadd.f32 %v3867, %v3844
    %v3869 = vadd.f32 %v3868, %v3848
    %v3870 = vadd.f32 %v3869, %v3852
    %v3871 = vrot.slane %v3870, 4
    %v3872 = vadd.f32 %v3870, %v3871
    %v3873 = vrot.slane %v3872, 2
    %v3874 = vadd.f32 %v3872, %v3873
    %v3875 = vrot.slane %v3874, 1
    %v3876 = vadd.f32 %v3874, %v3875
    %v3877 = vadd.f32 %v3793, %v3797
    %v3878 = vadd.f32 %v3877, %v3801
    %v3879 = vadd.f32 %v3878, %v3805
    %v3880 = vadd.f32 %v3879, %v3809
    %v3881 = vadd.f32 %v3880, %v3813
    %v3882 = vadd.f32 %v3881, %v3817
    %v3883 = vadd.f32 %v3882, %v3821
    %v3884 = vadd.f32 %v3883, %v3825
    %v3885 = vadd.f32 %v3884, %v3829
    %v3886 = vadd.f32 %v3885, %v3833
    %v3887 = vadd.f32 %v3886, %v3837
    %v3888 = vadd.f32 %v3887, %v3841
    %v3889 = vadd.f32 %v3888, %v3845
    %v3890 = vadd.f32 %v3889, %v3849
    %v3891 = vadd.f32 %v3890, %v3853
    %v3892 = vrot.slane %v3891, 4
    %v3893 = vadd.f32 %v3891, %v3892
    %v3894 = vrot.slane %v3893, 2
    %v3895 = vadd.f32 %v3893, %v3894
    %v3896 = vrot.slane %v3895, 1
    %v3897 = vadd.f32 %v3895, %v3896
    %v3898 = vadd.f32 %v3794, %v3798
    %v3899 = vadd.f32 %v3898, %v3802
    %v3900 = vadd.f32 %v3899, %v3806
    %v3901 = vadd.f32 %v3900, %v3810
    %v3902 = vadd.f32 %v3901, %v3814
    %v3903 = vadd.f32 %v3902, %v3818
    %v3904 = vadd.f32 %v3903, %v3822
    %v3905 = vadd.f32 %v3904, %v3826
    %v3906 = vadd.f32 %v3905, %v3830
    %v3907 = vadd.f32 %v3906, %v3834
    %v3908 = vadd.f32 %v3907, %v3838
    %v3909 = vadd.f32 %v3908, %v3842
    %v3910 = vadd.f32 %v3909, %v3846
    %v3911 = vadd.f32 %v3910, %v3850
    %v3912 = vadd.f32 %v3911, %v3854
    %v3913 = vrot.slane %v3912, 4
    %v3914 = vadd.f32 %v3912, %v3913
    %v3915 = vrot.slane %v3914, 2
    %v3916 = vadd.f32 %v3914, %v3915
    %v3917 = vrot.slane %v3916, 1
    %v3918 = vadd.f32 %v3916, %v3917
    %v3919 = vadd.f32 %v3795, %v3799
    %v3920 = vadd.f32 %v3919, %v3803
    %v3921 = vadd.f32 %v3920, %v3807
    %v3922 = vadd.f32 %v3921, %v3811
    %v3923 = vadd.f32 %v3922, %v3815
    %v3924 = vadd.f32 %v3923, %v3819
    %v3925 = vadd.f32 %v3924, %v3823
    %v3926 = vadd.f32 %v3925, %v3827
    %v3927 = vadd.f32 %v3926, %v3831
    %v3928 = vadd.f32 %v3927, %v3835
    %v3929 = vadd.f32 %v3928, %v3839
    %v3930 = vadd.f32 %v3929, %v3843
    %v3931 = vadd.f32 %v3930, %v3847
    %v3932 = vadd.f32 %v3931, %v3851
    %v3933 = vadd.f32 %v3932, %v3855
    %v3934 = vrot.slane %v3933, 4
    %v3935 = vadd.f32 %v3933, %v3934
    %v3936 = vrot.slane %v3935, 2
    %v3937 = vadd.f32 %v3935, %v3936
    %v3938 = vrot.slane %v3937, 1
    %v3939 = vadd.f32 %v3937, %v3938
    %v3940 = vmul.f32 %v3876, 0.0078125
    %v3941 = vmul.f32 %v3897, 0.0078125
    %v3942 = vmul.f32 %v3918, 0.0078125
    %v3943 = vmul.f32 %v3939, 0.0078125
    %v3944 = vsub.f32 %v3792, %v3940
    %v3945 = vsub.f32 %v3793, %v3941
    %v3946 = vsub.f32 %v3794, %v3942
    %v3947 = vsub.f32 %v3795, %v3943
    %v3948 = vsub.f32 %v3796, %v3940
    %v3949 = vsub.f32 %v3797, %v3941
    %v3950 = vsub.f32 %v3798, %v3942
    %v3951 = vsub.f32 %v3799, %v3943
    %v3952 = vsub.f32 %v3800, %v3940
    %v3953 = vsub.f32 %v3801, %v3941
    %v3954 = vsub.f32 %v3802, %v3942
    %v3955 = vsub.f32 %v3803, %v3943
    %v3956 = vsub.f32 %v3804, %v3940
    %v3957 = vsub.f32 %v3805, %v3941
    %v3958 = vsub.f32 %v3806, %v3942
    %v3959 = vsub.f32 %v3807, %v3943
    %v3960 = vsub.f32 %v3808, %v3940
    %v3961 = vsub.f32 %v3809, %v3941
    %v3962 = vsub.f32 %v3810, %v3942
    %v3963 = vsub.f32 %v3811, %v3943
    %v3964 = vsub.f32 %v3812, %v3940
    %v3965 = vsub.f32 %v3813, %v3941
    %v3966 = vsub.f32 %v3814, %v3942
    %v3967 = vsub.f32 %v3815, %v3943
    %v3968 = vsub.f32 %v3816, %v3940
    %v3969 = vsub.f32 %v3817, %v3941
    %v3970 = vsub.f32 %v3818, %v3942
    %v3971 = vsub.f32 %v3819, %v3943
    %v3972 = vsub.f32 %v3820, %v3940
    %v3973 = vsub.f32 %v3821, %v3941
    %v3974 = vsub.f32 %v3822, %v3942
    %v3975 = vsub.f32 %v3823, %v3943
    %v3976 = vsub.f32 %v3824, %v3940
    %v3977 = vsub.f32 %v3825, %v3941
    %v3978 = vsub.f32 %v3826, %v3942
    %v3979 = vsub.f32 %v3827, %v3943
    %v3980 = vsub.f32 %v3828, %v3940
    %v3981 = vsub.f32 %v3829, %v3941
    %v3982 = vsub.f32 %v3830, %v3942
    %v3983 = vsub.f32 %v3831, %v3943
    %v3984 = vsub.f32 %v3832, %v3940
    %v3985 = vsub.f32 %v3833, %v3941
    %v3986 = vsub.f32 %v3834, %v3942
    %v3987 = vsub.f32 %v3835, %v3943
    %v3988 = vsub.f32 %v3836, %v3940
    %v3989 = vsub.f32 %v3837, %v3941
    %v3990 = vsub.f32 %v3838, %v3942
    %v3991 = vsub.f32 %v3839, %v3943
    %v3992 = vsub.f32 %v3840, %v3940
    %v3993 = vsub.f32 %v3841, %v3941
    %v3994 = vsub.f32 %v3842, %v3942
    %v3995 = vsub.f32 %v3843, %v3943
    %v3996 = vsub.f32 %v3844, %v3940
    %v3997 = vsub.f32 %v3845, %v3941
    %v3998 = vsub.f32 %v3846, %v3942
    %v3999 = vsub.f32 %v3847, %v3943
    %v4000 = vsub.f32 %v3848, %v3940
    %v4001 = vsub.f32 %v3849, %v3941
    %v4002 = vsub.f32 %v3850, %v3942
    %v4003 = vsub.f32 %v3851, %v3943
    %v4004 = vsub.f32 %v3852, %v3940
    %v4005 = vsub.f32 %v3853, %v3941
    %v4006 = vsub.f32 %v3854, %v3942
    %v4007 = vsub.f32 %v3855, %v3943
    %v4008 = vmul.f32 %v3944, %v3944
    %v4009 = vmul.f32 %v3945, %v3945
    %v4010 = vmul.f32 %v3946, %v3946
    %v4011 = vmul.f32 %v3947, %v3947
    %v4012 = vmul.f32 %v3948, %v3948
    %v4013 = vmul.f32 %v3949, %v3949
    %v4014 = vmul.f32 %v3950, %v3950
    %v4015 = vmul.f32 %v3951, %v3951
    %v4016 = vmul.f32 %v3952, %v3952
    %v4017 = vmul.f32 %v3953, %v3953
    %v4018 = vmul.f32 %v3954, %v3954
    %v4019 = vmul.f32 %v3955, %v3955
    %v4020 = vmul.f32 %v3956, %v3956
    %v4021 = vmul.f32 %v3957, %v3957
    %v4022 = vmul.f32 %v3958, %v3958
    %v4023 = vmul.f32 %v3959, %v3959
    %v4024 = vmul.f32 %v3960, %v3960
    %v4025 = vmul.f32 %v3961, %v3961
    %v4026 = vmul.f32 %v3962, %v3962
    %v4027 = vmul.f32 %v3963, %v3963
    %v4028 = vmul.f32 %v3964, %v3964
    %v4029 = vmul.f32 %v3965, %v3965
    %v4030 = vmul.f32 %v3966, %v3966
    %v4031 = vmul.f32 %v3967, %v3967
    %v4032 = vmul.f32 %v3968, %v3968
    %v4033 = vmul.f32 %v3969, %v3969
    %v4034 = vmul.f32 %v3970, %v3970
    %v4035 = vmul.f32 %v3971, %v3971
    %v4036 = vmul.f32 %v3972, %v3972
    %v4037 = vmul.f32 %v3973, %v3973
    %v4038 = vmul.f32 %v3974, %v3974
    %v4039 = vmul.f32 %v3975, %v3975
    %v4040 = vmul.f32 %v3976, %v3976
    %v4041 = vmul.f32 %v3977, %v3977
    %v4042 = vmul.f32 %v3978, %v3978
    %v4043 = vmul.f32 %v3979, %v3979
    %v4044 = vmul.f32 %v3980, %v3980
    %v4045 = vmul.f32 %v3981, %v3981
    %v4046 = vmul.f32 %v3982, %v3982
    %v4047 = vmul.f32 %v3983, %v3983
    %v4048 = vmul.f32 %v3984, %v3984
    %v4049 = vmul.f32 %v3985, %v3985
    %v4050 = vmul.f32 %v3986, %v3986
    %v4051 = vmul.f32 %v3987, %v3987
    %v4052 = vmul.f32 %v3988, %v3988
    %v4053 = vmul.f32 %v3989, %v3989
    %v4054 = vmul.f32 %v3990, %v3990
    %v4055 = vmul.f32 %v3991, %v3991
    %v4056 = vmul.f32 %v3992, %v3992
    %v4057 = vmul.f32 %v3993, %v3993
    %v4058 = vmul.f32 %v3994, %v3994
    %v4059 = vmul.f32 %v3995, %v3995
    %v4060 = vmul.f32 %v3996, %v3996
    %v4061 = vmul.f32 %v3997, %v3997
    %v4062 = vmul.f32 %v3998, %v3998
    %v4063 = vmul.f32 %v3999, %v3999
    %v4064 = vmul.f32 %v4000, %v4000
    %v4065 = vmul.f32 %v4001, %v4001
    %v4066 = vmul.f32 %v4002, %v4002
    %v4067 = vmul.f32 %v4003, %v4003
    %v4068 = vmul.f32 %v4004, %v4004
    %v4069 = vmul.f32 %v4005, %v4005
    %v4070 = vmul.f32 %v4006, %v4006
    %v4071 = vmul.f32 %v4007, %v4007
    %v4072 = vadd.f32 %v4008, %v4012
    %v4073 = vadd.f32 %v4072, %v4016
    %v4074 = vadd.f32 %v4073, %v4020
    %v4075 = vadd.f32 %v4074, %v4024
    %v4076 = vadd.f32 %v4075, %v4028
    %v4077 = vadd.f32 %v4076, %v4032
    %v4078 = vadd.f32 %v4077, %v4036
    %v4079 = vadd.f32 %v4078, %v4040
    %v4080 = vadd.f32 %v4079, %v4044
    %v4081 = vadd.f32 %v4080, %v4048
    %v4082 = vadd.f32 %v4081, %v4052
    %v4083 = vadd.f32 %v4082, %v4056
    %v4084 = vadd.f32 %v4083, %v4060
    %v4085 = vadd.f32 %v4084, %v4064
    %v4086 = vadd.f32 %v4085, %v4068
    %v4087 = vrot.slane %v4086, 4
    %v4088 = vadd.f32 %v4086, %v4087
    %v4089 = vrot.slane %v4088, 2
    %v4090 = vadd.f32 %v4088, %v4089
    %v4091 = vrot.slane %v4090, 1
    %v4092 = vadd.f32 %v4090, %v4091
    %v4093 = vadd.f32 %v4009, %v4013
    %v4094 = vadd.f32 %v4093, %v4017
    %v4095 = vadd.f32 %v4094, %v4021
    %v4096 = vadd.f32 %v4095, %v4025
    %v4097 = vadd.f32 %v4096, %v4029
    %v4098 = vadd.f32 %v4097, %v4033
    %v4099 = vadd.f32 %v4098, %v4037
    %v4100 = vadd.f32 %v4099, %v4041
    %v4101 = vadd.f32 %v4100, %v4045
    %v4102 = vadd.f32 %v4101, %v4049
    %v4103 = vadd.f32 %v4102, %v4053
    %v4104 = vadd.f32 %v4103, %v4057
    %v4105 = vadd.f32 %v4104, %v4061
    %v4106 = vadd.f32 %v4105, %v4065
    %v4107 = vadd.f32 %v4106, %v4069
    %v4108 = vrot.slane %v4107, 4
    %v4109 = vadd.f32 %v4107, %v4108
    %v4110 = vrot.slane %v4109, 2
    %v4111 = vadd.f32 %v4109, %v4110
    %v4112 = vrot.slane %v4111, 1
    %v4113 = vadd.f32 %v4111, %v4112
    %v4114 = vadd.f32 %v4010, %v4014
    %v4115 = vadd.f32 %v4114, %v4018
    %v4116 = vadd.f32 %v4115, %v4022
    %v4117 = vadd.f32 %v4116, %v4026
    %v4118 = vadd.f32 %v4117, %v4030
    %v4119 = vadd.f32 %v4118, %v4034
    %v4120 = vadd.f32 %v4119, %v4038
    %v4121 = vadd.f32 %v4120, %v4042
    %v4122 = vadd.f32 %v4121, %v4046
    %v4123 = vadd.f32 %v4122, %v4050
    %v4124 = vadd.f32 %v4123, %v4054
    %v4125 = vadd.f32 %v4124, %v4058
    %v4126 = vadd.f32 %v4125, %v4062
    %v4127 = vadd.f32 %v4126, %v4066
    %v4128 = vadd.f32 %v4127, %v4070
    %v4129 = vrot.slane %v4128, 4
    %v4130 = vadd.f32 %v4128, %v4129
    %v4131 = vrot.slane %v4130, 2
    %v4132 = vadd.f32 %v4130, %v4131
    %v4133 = vrot.slane %v4132, 1
    %v4134 = vadd.f32 %v4132, %v4133
    %v4135 = vadd.f32 %v4011, %v4015
    %v4136 = vadd.f32 %v4135, %v4019
    %v4137 = vadd.f32 %v4136, %v4023
    %v4138 = vadd.f32 %v4137, %v4027
    %v4139 = vadd.f32 %v4138, %v4031
    %v4140 = vadd.f32 %v4139, %v4035
    %v4141 = vadd.f32 %v4140, %v4039
    %v4142 = vadd.f32 %v4141, %v4043
    %v4143 = vadd.f32 %v4142, %v4047
    %v4144 = vadd.f32 %v4143, %v4051
    %v4145 = vadd.f32 %v4144, %v4055
    %v4146 = vadd.f32 %v4145, %v4059
    %v4147 = vadd.f32 %v4146, %v4063
    %v4148 = vadd.f32 %v4147, %v4067
    %v4149 = vadd.f32 %v4148, %v4071
    %v4150 = vrot.slane %v4149, 4
    %v4151 = vadd.f32 %v4149, %v4150
    %v4152 = vrot.slane %v4151, 2
    %v4153 = vadd.f32 %v4151, %v4152
    %v4154 = vrot.slane %v4153, 1
    %v4155 = vadd.f32 %v4153, %v4154
    %v4156 = vmul.f32 %v4092, 0.0078125
    %v4157 = vmul.f32 %v4113, 0.0078125
    %v4158 = vmul.f32 %v4134, 0.0078125
    %v4159 = vmul.f32 %v4155, 0.0078125
    %v4160 = vadd.f32 %v4156, 1e-05
    %v4161 = vadd.f32 %v4157, 1e-05
    %v4162 = vadd.f32 %v4158, 1e-05
    %v4163 = vadd.f32 %v4159, 1e-05
    %v4164 = vrsqrt.pop %v4160
    %v4165 = vrsqrt.pop %v4161
    %v4166 = vrsqrt.pop %v4162
    %v4167 = vrsqrt.pop %v4163
    %v4172 = vcombine.low %v4164, %v4165
    %v4173 = vcombine.low %v4166, %v4167
    %v4175 = vunpack.c.l.s4 1966171168
    %v4176 = vunpack.c.0.s8 %v4175
    %v4177 = vlaneseq
    %v4178 = vshrl.u32 %v4177, 7
    %v4179 = vsub.s32 %v4176, %v4178
    %v4180 = vrot.slane %v4172, %v4179
    %v4182 = vunpack.c.l.s4 1966171168
    %v4183 = vunpack.c.0.s8 %v4182
    %v4184 = vlaneseq
    %v4185 = vshrl.u32 %v4184, 7
    %v4186 = vsub.s32 %v4183, %v4185
    %v4187 = vrot.slane %v4173, %v4186
    %v4188 = vcombine.low %v4180, %v4187
    %v4190 = vunpack.c.l.s4 1966171168
    %v4191 = vunpack.c.0.s8 %v4190
    %v4192 = vlaneseq
    %v4193 = vshrl.u32 %v4192, 7
    %v4194 = vsub.s32 %v4191, %v4193
    %v4195 = vrot.slane %v4188, %v4194
    %v4197 = vmul.f32 %v3120, %v4195
    %v4199 = vlaneseq
    %v4200 = vshrl.u32 %v4199, 7
    %v4201 = vsub.s32 0, %v4200
    %v4202 = vrot.slane %v4197, %v4201
    %v4203 = vlaneseq
    %v4204 = vshrl.u32 %v4203, 7
    %v4205 = vsub.s32 1, %v4204
    %v4206 = vrot.slane %v4197, %v4205
    %v4207 = vlaneseq
    %v4208 = vshrl.u32 %v4207, 7
    %v4209 = vsub.s32 2, %v4208
    %v4210 = vrot.slane %v4197, %v4209
    %v4211 = vlaneseq
    %v4212 = vshrl.u32 %v4211, 7
    %v4213 = vsub.s32 3, %v4212
    %v4214 = vrot.slane %v4197, %v4213
    %v4219 = vmul.f32 %v3944, %v4202
    %v4220 = vmul.f32 %v3945, %v4206
    %v4221 = vmul.f32 %v3946, %v4210
    %v4222 = vmul.f32 %v3947, %v4214
    %v4223 = vmul.f32 %v3948, %v4202
    %v4224 = vmul.f32 %v3949, %v4206
    %v4225 = vmul.f32 %v3950, %v4210
    %v4226 = vmul.f32 %v3951, %v4214
    %v4227 = vmul.f32 %v3952, %v4202
    %v4228 = vmul.f32 %v3953, %v4206
    %v4229 = vmul.f32 %v3954, %v4210
    %v4230 = vmul.f32 %v3955, %v4214
    %v4231 = vmul.f32 %v3956, %v4202
    %v4232 = vmul.f32 %v3957, %v4206
    %v4233 = vmul.f32 %v3958, %v4210
    %v4234 = vmul.f32 %v3959, %v4214
    %v4235 = vmul.f32 %v3960, %v4202
    %v4236 = vmul.f32 %v3961, %v4206
    %v4237 = vmul.f32 %v3962, %v4210
    %v4238 = vmul.f32 %v3963, %v4214
    %v4239 = vmul.f32 %v3964, %v4202
    %v4240 = vmul.f32 %v3965, %v4206
    %v4241 = vmul.f32 %v3966, %v4210
    %v4242 = vmul.f32 %v3967, %v4214
    %v4243 = vmul.f32 %v3968, %v4202
    %v4244 = vmul.f32 %v3969, %v4206
    %v4245 = vmul.f32 %v3970, %v4210
    %v4246 = vmul.f32 %v3971, %v4214
    %v4247 = vmul.f32 %v3972, %v4202
    %v4248 = vmul.f32 %v3973, %v4206
    %v4249 = vmul.f32 %v3974, %v4210
    %v4250 = vmul.f32 %v3975, %v4214
    %v4251 = vmul.f32 %v3976, %v4202
    %v4252 = vmul.f32 %v3977, %v4206
    %v4253 = vmul.f32 %v3978, %v4210
    %v4254 = vmul.f32 %v3979, %v4214
    %v4255 = vmul.f32 %v3980, %v4202
    %v4256 = vmul.f32 %v3981, %v4206
    %v4257 = vmul.f32 %v3982, %v4210
    %v4258 = vmul.f32 %v3983, %v4214
    %v4259 = vmul.f32 %v3984, %v4202
    %v4260 = vmul.f32 %v3985, %v4206
    %v4261 = vmul.f32 %v3986, %v4210
    %v4262 = vmul.f32 %v3987, %v4214
    %v4263 = vmul.f32 %v3988, %v4202
    %v4264 = vmul.f32 %v3989, %v4206
    %v4265 = vmul.f32 %v3990, %v4210
    %v4266 = vmul.f32 %v3991, %v4214
    %v4267 = vmul.f32 %v3992, %v4202
    %v4268 = vmul.f32 %v3993, %v4206
    %v4269 = vmul.f32 %v3994, %v4210
    %v4270 = vmul.f32 %v3995, %v4214
    %v4271 = vmul.f32 %v3996, %v4202
    %v4272 = vmul.f32 %v3997, %v4206
    %v4273 = vmul.f32 %v3998, %v4210
    %v4274 = vmul.f32 %v3999, %v4214
    %v4275 = vmul.f32 %v4000, %v4202
    %v4276 = vmul.f32 %v4001, %v4206
    %v4277 = vmul.f32 %v4002, %v4210
    %v4278 = vmul.f32 %v4003, %v4214
    %v4279 = vmul.f32 %v4004, %v4202
    %v4280 = vmul.f32 %v4005, %v4206
    %v4281 = vmul.f32 %v4006, %v4210
    %v4282 = vmul.f32 %v4007, %v4214
    %v4284 = vlaneseq
    %v4285 = vshrl.u32 %v4284, 7
    %v4286 = vsub.s32 0, %v4285
    %v4287 = vrot.slane %v3122, %v4286
    %v4288 = vlaneseq
    %v4289 = vshrl.u32 %v4288, 7
    %v4290 = vsub.s32 1, %v4289
    %v4291 = vrot.slane %v3122, %v4290
    %v4292 = vlaneseq
    %v4293 = vshrl.u32 %v4292, 7
    %v4294 = vsub.s32 2, %v4293
    %v4295 = vrot.slane %v3122, %v4294
    %v4296 = vlaneseq
    %v4297 = vshrl.u32 %v4296, 7
    %v4298 = vsub.s32 3, %v4297
    %v4299 = vrot.slane %v3122, %v4298
    %v4304 = vadd.f32 %v4219, %v4287
    %v4305 = vadd.f32 %v4220, %v4291
    %v4306 = vadd.f32 %v4221, %v4295
    %v4307 = vadd.f32 %v4222, %v4299
    %v4308 = vadd.f32 %v4223, %v4287
    %v4309 = vadd.f32 %v4224, %v4291
    %v4310 = vadd.f32 %v4225, %v4295
    %v4311 = vadd.f32 %v4226, %v4299
    %v4312 = vadd.f32 %v4227, %v4287
    %v4313 = vadd.f32 %v4228, %v4291
    %v4314 = vadd.f32 %v4229, %v4295
    %v4315 = vadd.f32 %v4230, %v4299
    %v4316 = vadd.f32 %v4231, %v4287
    %v4317 = vadd.f32 %v4232, %v4291
    %v4318 = vadd.f32 %v4233, %v4295
    %v4319 = vadd.f32 %v4234, %v4299
    %v4320 = vadd.f32 %v4235, %v4287
    %v4321 = vadd.f32 %v4236, %v4291
    %v4322 = vadd.f32 %v4237, %v4295
    %v4323 = vadd.f32 %v4238, %v4299
    %v4324 = vadd.f32 %v4239, %v4287
    %v4325 = vadd.f32 %v4240, %v4291
    %v4326 = vadd.f32 %v4241, %v4295
    %v4327 = vadd.f32 %v4242, %v4299
    %v4328 = vadd.f32 %v4243, %v4287
    %v4329 = vadd.f32 %v4244, %v4291
    %v4330 = vadd.f32 %v4245, %v4295
    %v4331 = vadd.f32 %v4246, %v4299
    %v4332 = vadd.f32 %v4247, %v4287
    %v4333 = vadd.f32 %v4248, %v4291
    %v4334 = vadd.f32 %v4249, %v4295
    %v4335 = vadd.f32 %v4250, %v4299
    %v4336 = vadd.f32 %v4251, %v4287
    %v4337 = vadd.f32 %v4252, %v4291
    %v4338 = vadd.f32 %v4253, %v4295
    %v4339 = vadd.f32 %v4254, %v4299
    %v4340 = vadd.f32 %v4255, %v4287
    %v4341 = vadd.f32 %v4256, %v4291
    %v4342 = vadd.f32 %v4257, %v4295
    %v4343 = vadd.f32 %v4258, %v4299
    %v4344 = vadd.f32 %v4259, %v4287
    %v4345 = vadd.f32 %v4260, %v4291
    %v4346 = vadd.f32 %v4261, %v4295
    %v4347 = vadd.f32 %v4262, %v4299
    %v4348 = vadd.f32 %v4263, %v4287
    %v4349 = vadd.f32 %v4264, %v4291
    %v4350 = vadd.f32 %v4265, %v4295
    %v4351 = vadd.f32 %v4266, %v4299
    %v4352 = vadd.f32 %v4267, %v4287
    %v4353 = vadd.f32 %v4268, %v4291
    %v4354 = vadd.f32 %v4269, %v4295
    %v4355 = vadd.f32 %v4270, %v4299
    %v4356 = vadd.f32 %v4271, %v4287
    %v4357 = vadd.f32 %v4272, %v4291
    %v4358 = vadd.f32 %v4273, %v4295
    %v4359 = vadd.f32 %v4274, %v4299
    %v4360 = vadd.f32 %v4275, %v4287
    %v4361 = vadd.f32 %v4276, %v4291
    %v4362 = vadd.f32 %v4277, %v4295
    %v4363 = vadd.f32 %v4278, %v4299
    %v4364 = vadd.f32 %v4279, %v4287
    %v4365 = vadd.f32 %v4280, %v4291
    %v4366 = vadd.f32 %v4281, %v4295
    %v4367 = vadd.f32 %v4282, %v4299
    %v4368 = vpack.c.bf16 %v4308, %v4304
    %v4369 = vpack.c.bf16 %v4309, %v4305
    %v4370 = vpack.c.bf16 %v4310, %v4306
    %v4371 = vpack.c.bf16 %v4311, %v4307
    %v4372 = vpack.c.bf16 %v4316, %v4312
    %v4373 = vpack.c.bf16 %v4317, %v4313
    %v4374 = vpack.c.bf16 %v4318, %v4314
    %v4375 = vpack.c.bf16 %v4319, %v4315
    %v4376 = vpack.c.bf16 %v4324, %v4320
    %v4377 = vpack.c.bf16 %v4325, %v4321
    %v4378 = vpack.c.bf16 %v4326, %v4322
    %v4379 = vpack.c.bf16 %v4327, %v4323
    %v4380 = vpack.c.bf16 %v4332, %v4328
    %v4381 = vpack.c.bf16 %v4333, %v4329
    %v4382 = vpack.c.bf16 %v4334, %v4330
    %v4383 = vpack.c.bf16 %v4335, %v4331
    %v4384 = vpack.c.bf16 %v4340, %v4336
    %v4385 = vpack.c.bf16 %v4341, %v4337
    %v4386 = vpack.c.bf16 %v4342, %v4338
    %v4387 = vpack.c.bf16 %v4343, %v4339
    %v4388 = vpack.c.bf16 %v4348, %v4344
    %v4389 = vpack.c.bf16 %v4349, %v4345
    %v4390 = vpack.c.bf16 %v4350, %v4346
    %v4391 = vpack.c.bf16 %v4351, %v4347
    %v4392 = vpack.c.bf16 %v4356, %v4352
    %v4393 = vpack.c.bf16 %v4357, %v4353
    %v4394 = vpack.c.bf16 %v4358, %v4354
    %v4395 = vpack.c.bf16 %v4359, %v4355
    %v4396 = vpack.c.bf16 %v4364, %v4360
    %v4397 = vpack.c.bf16 %v4365, %v4361
    %v4398 = vpack.c.bf16 %v4366, %v4362
    %v4399 = vpack.c.bf16 %v4367, %v4363
    %s4400 = scalar_lea.vmem [#allocation14], 41
    %v4401 = vld [vmem:[%s4400] ss:$8 sm:$0x7]
    %s4402 = scalar_lea.vmem [#allocation14], 42
    %v4403 = vld [vmem:[%s4402] ss:$8 sm:$0x7]
    %s4404 = scalar_lea.vmem [#allocation14], 43
    %v4405 = vld [vmem:[%s4404] ss:$8 sm:$0x7]
    %s4406 = smul.u32 %s3123, 3
    %s4407 = sshll.u32 %s4406, 4
    %4408 = dma.done %s154, %s4407
    %v4409 = vld [vmem:[#allocation5] sm:$0xff]
    %v4410 = vld [vmem:[#allocation5 + $0x8] sm:$0xff]
    %v4411 = vld [vmem:[#allocation5 + $0x10] sm:$0xff]
    %v4412 = vld [vmem:[#allocation5 + $0x18] sm:$0xff]
    %v4413 = vld [vmem:[#allocation5 + $0x20] sm:$0xff]
    %v4414 = vld [vmem:[#allocation5 + $0x28] sm:$0xff]
    %v4415 = vld [vmem:[#allocation5 + $0x30] sm:$0xff]
    %v4416 = vld [vmem:[#allocation5 + $0x38] sm:$0xff]
    %v4417 = vld [vmem:[#allocation5 + $0x40] sm:$0xff]
    %v4418 = vld [vmem:[#allocation5 + $0x48] sm:$0xff]
    %v4419 = vld [vmem:[#allocation5 + $0x50] sm:$0xff]
    %v4420 = vld [vmem:[#allocation5 + $0x58] sm:$0xff]
    %v4421 = vld [vmem:[#allocation5 + $0x60] sm:$0xff]
    %v4422 = vld [vmem:[#allocation5 + $0x68] sm:$0xff]
    %v4423 = vld [vmem:[#allocation5 + $0x70] sm:$0xff]
    %v4424 = vld [vmem:[#allocation5 + $0x78] sm:$0xff]
    %v4425 = vld [vmem:[#allocation5 + $0x80] sm:$0xff]
    %v4426 = vld [vmem:[#allocation5 + $0x88] sm:$0xff]
    %v4427 = vld [vmem:[#allocation5 + $0x90] sm:$0xff]
    %v4428 = vld [vmem:[#allocation5 + $0x98] sm:$0xff]
    %v4429 = vld [vmem:[#allocation5 + $0xa0] sm:$0xff]
    %v4430 = vld [vmem:[#allocation5 + $0xa8] sm:$0xff]
    %v4431 = vld [vmem:[#allocation5 + $0xb0] sm:$0xff]
    %v4432 = vld [vmem:[#allocation5 + $0xb8] sm:$0xff]
    %v4433 = vld [vmem:[#allocation5 + $0xc0] sm:$0xff]
    %v4434 = vld [vmem:[#allocation5 + $0xc8] sm:$0xff]
    %v4435 = vld [vmem:[#allocation5 + $0xd0] sm:$0xff]
    %v4436 = vld [vmem:[#allocation5 + $0xd8] sm:$0xff]
    %v4437 = vld [vmem:[#allocation5 + $0xe0] sm:$0xff]
    %v4438 = vld [vmem:[#allocation5 + $0xe8] sm:$0xff]
    %v4439 = vld [vmem:[#allocation5 + $0xf0] sm:$0xff]
    %v4440 = vld [vmem:[#allocation5 + $0xf8] sm:$0xff]
    %v4441 = vld [vmem:[#allocation5 + $0x100] sm:$0xff]
    %v4442 = vld [vmem:[#allocation5 + $0x108] sm:$0xff]
    %v4443 = vld [vmem:[#allocation5 + $0x110] sm:$0xff]
    %v4444 = vld [vmem:[#allocation5 + $0x118] sm:$0xff]
    %v4445 = vld [vmem:[#allocation5 + $0x120] sm:$0xff]
    %v4446 = vld [vmem:[#allocation5 + $0x128] sm:$0xff]
    %v4447 = vld [vmem:[#allocation5 + $0x130] sm:$0xff]
    %v4448 = vld [vmem:[#allocation5 + $0x138] sm:$0xff]
    %v4449 = vld [vmem:[#allocation5 + $0x140] sm:$0xff]
    %v4450 = vld [vmem:[#allocation5 + $0x148] sm:$0xff]
    %v4451 = vld [vmem:[#allocation5 + $0x150] sm:$0xff]
    %v4452 = vld [vmem:[#allocation5 + $0x158] sm:$0xff]
    %v4453 = vld [vmem:[#allocation5 + $0x160] sm:$0xff]
    %v4454 = vld [vmem:[#allocation5 + $0x168] sm:$0xff]
    %v4455 = vld [vmem:[#allocation5 + $0x170] sm:$0xff]
    %v4456 = vld [vmem:[#allocation5 + $0x178] sm:$0xff]
    %v4457 = vld [vmem:[#allocation5 + $0x180] sm:$0xff]
    %v4458 = vld [vmem:[#allocation5 + $0x188] sm:$0xff]
    %v4459 = vld [vmem:[#allocation5 + $0x190] sm:$0xff]
    %v4460 = vld [vmem:[#allocation5 + $0x198] sm:$0xff]
    %v4461 = vld [vmem:[#allocation5 + $0x1a0] sm:$0xff]
    %v4462 = vld [vmem:[#allocation5 + $0x1a8] sm:$0xff]
    %v4463 = vld [vmem:[#allocation5 + $0x1b0] sm:$0xff]
    %v4464 = vld [vmem:[#allocation5 + $0x1b8] sm:$0xff]
    %v4465 = vld [vmem:[#allocation5 + $0x1c0] sm:$0xff]
    %v4466 = vld [vmem:[#allocation5 + $0x1c8] sm:$0xff]
    %v4467 = vld [vmem:[#allocation5 + $0x1d0] sm:$0xff]
    %v4468 = vld [vmem:[#allocation5 + $0x1d8] sm:$0xff]
    %v4469 = vld [vmem:[#allocation5 + $0x1e0] sm:$0xff]
    %v4470 = vld [vmem:[#allocation5 + $0x1e8] sm:$0xff]
    %v4471 = vld [vmem:[#allocation5 + $0x1f0] sm:$0xff]
    %v4472 = vld [vmem:[#allocation5 + $0x1f8] sm:$0xff]
    %v4473 = vld [vmem:[#allocation5 + $0x200] sm:$0xff]
    %v4474 = vld [vmem:[#allocation5 + $0x208] sm:$0xff]
    %v4475 = vld [vmem:[#allocation5 + $0x210] sm:$0xff]
    %v4476 = vld [vmem:[#allocation5 + $0x218] sm:$0xff]
    %v4477 = vld [vmem:[#allocation5 + $0x220] sm:$0xff]
    %v4478 = vld [vmem:[#allocation5 + $0x228] sm:$0xff]
    %v4479 = vld [vmem:[#allocation5 + $0x230] sm:$0xff]
    %v4480 = vld [vmem:[#allocation5 + $0x238] sm:$0xff]
    %v4481 = vld [vmem:[#allocation5 + $0x240] sm:$0xff]
    %v4482 = vld [vmem:[#allocation5 + $0x248] sm:$0xff]
    %v4483 = vld [vmem:[#allocation5 + $0x250] sm:$0xff]
    %v4484 = vld [vmem:[#allocation5 + $0x258] sm:$0xff]
    %v4485 = vld [vmem:[#allocation5 + $0x260] sm:$0xff]
    %v4486 = vld [vmem:[#allocation5 + $0x268] sm:$0xff]
    %v4487 = vld [vmem:[#allocation5 + $0x270] sm:$0xff]
    %v4488 = vld [vmem:[#allocation5 + $0x278] sm:$0xff]
    %v4489 = vld [vmem:[#allocation5 + $0x280] sm:$0xff]
    %v4490 = vld [vmem:[#allocation5 + $0x288] sm:$0xff]
    %v4491 = vld [vmem:[#allocation5 + $0x290] sm:$0xff]
    %v4492 = vld [vmem:[#allocation5 + $0x298] sm:$0xff]
    %v4493 = vld [vmem:[#allocation5 + $0x2a0] sm:$0xff]
    %v4494 = vld [vmem:[#allocation5 + $0x2a8] sm:$0xff]
    %v4495 = vld [vmem:[#allocation5 + $0x2b0] sm:$0xff]
    %v4496 = vld [vmem:[#allocation5 + $0x2b8] sm:$0xff]
    %v4497 = vld [vmem:[#allocation5 + $0x2c0] sm:$0xff]
    %v4498 = vld [vmem:[#allocation5 + $0x2c8] sm:$0xff]
    %v4499 = vld [vmem:[#allocation5 + $0x2d0] sm:$0xff]
    %v4500 = vld [vmem:[#allocation5 + $0x2d8] sm:$0xff]
    %v4501 = vld [vmem:[#allocation5 + $0x2e0] sm:$0xff]
    %v4502 = vld [vmem:[#allocation5 + $0x2e8] sm:$0xff]
    %v4503 = vld [vmem:[#allocation5 + $0x2f0] sm:$0xff]
    %v4504 = vld [vmem:[#allocation5 + $0x2f8] sm:$0xff]
    %v4506 = vlaneseq
    %v4507 = vshrl.u32 %v4506, 7
    %v4508 = vsub.s32 0, %v4507
    %v4509 = vrot.slane %v4401, %v4508
    %v4510 = vlaneseq
    %v4511 = vshrl.u32 %v4510, 7
    %v4512 = vsub.s32 1, %v4511
    %v4513 = vrot.slane %v4401, %v4512
    %v4514 = vlaneseq
    %v4515 = vshrl.u32 %v4514, 7
    %v4516 = vsub.s32 2, %v4515
    %v4517 = vrot.slane %v4401, %v4516
    %4521 = vmatprep.subr.bf16.mxu0 %v4410
    %4522 = vmatpush1.bf16.msra.mxu0 %v4409
    %4523 = vmatprep.subr.bf16.mxu0 %v4413
    %4524 = vmatpush1.bf16.msra.mxu0 %v4412
    %4525 = vmatprep.subr.bf16.mxu0 %v4416
    %4526 = vmatpush1.bf16.msra.mxu0 %v4415
    %4527 = vmatprep.subr.bf16.mxu0 %v4419
    %4528 = vmatpush1.bf16.msra.mxu0 %v4418
    %4529 = vmatprep.subr.bf16.mxu0 %v4422
    %4530 = vmatpush1.bf16.msra.mxu0 %v4421
    %4531 = vmatprep.subr.bf16.mxu0 %v4425
    %4532 = vmatpush1.bf16.msra.mxu0 %v4424
    %4533 = vmatprep.subr.bf16.mxu0 %v4428
    %4534 = vmatpush1.bf16.msra.mxu0 %v4427
    %4535 = vmatprep.subr.bf16.mxu0 %v4431
    %4536 = vmatpush1.bf16.msra.mxu0 %v4430
    %4537 = vmatprep.subr.bf16.mxu0 %v4434
    %4538 = vmatpush1.bf16.msra.mxu0 %v4433
    %4539 = vmatprep.subr.bf16.mxu0 %v4437
    %4540 = vmatpush1.bf16.msra.mxu0 %v4436
    %4541 = vmatprep.subr.bf16.mxu0 %v4440
    %4542 = vmatpush1.bf16.msra.mxu0 %v4439
    %4543 = vmatprep.subr.bf16.mxu0 %v4443
    %4544 = vmatpush1.bf16.msra.mxu0 %v4442
    %4545 = vmatprep.subr.bf16.mxu0 %v4446
    %4546 = vmatpush1.bf16.msra.mxu0 %v4445
    %4547 = vmatprep.subr.bf16.mxu0 %v4449
    %4548 = vmatpush1.bf16.msra.mxu0 %v4448
    %4549 = vmatprep.subr.bf16.mxu0 %v4452
    %4550 = vmatpush1.bf16.msra.mxu0 %v4451
    %4551 = vmatprep.subr.bf16.mxu0 %v4455
    %4552 = vmatpush1.bf16.msra.mxu0 %v4454
    %4553 = vmatprep.mubr.bf16.mxu0 %v4369
    %4554 = vmatmul.mubr.bf16.gmra.mrb[0].mxu0 %v4368
    %v4555 = vpop.f32.mrb[0].mxu0
    %v4556 = vadd.f32 %v4509, %v4555
    %v4557 = vpop.f32.mrb[0].mxu0
    %v4558 = vadd.f32 %v4513, %v4557
    %v4559 = vpop.f32.mrb[0].mxu0
    %v4560 = vadd.f32 %v4509, %v4559
    %v4561 = vpop.f32.mrb[0].mxu0
    %v4562 = vadd.f32 %v4513, %v4561
    %4563 = vmatprep.mubr.bf16.mxu0 %v4373
    %4564 = vmatmul.mubr.bf16.gmra.mrb[0].mxu0 %v4372
    %v4565 = vpop.f32.mrb[0].mxu0
    %v4566 = vadd.f32 %v4509, %v4565
    %v4567 = vpop.f32.mrb[0].mxu0
    %v4568 = vadd.f32 %v4513, %v4567
    %v4569 = vpop.f32.mrb[0].mxu0
    %v4570 = vadd.f32 %v4509, %v4569
    %v4571 = vpop.f32.mrb[0].mxu0
    %v4572 = vadd.f32 %v4513, %v4571
    %4573 = vmatprep.mubr.bf16.mxu0 %v4377
    %4574 = vmatmul.mubr.bf16.gmra.mrb[0].mxu0 %v4376
    %v4575 = vpop.f32.mrb[0].mxu0
    %v4576 = vadd.f32 %v4509, %v4575
    %v4577 = vpop.f32.mrb[0].mxu0
    %v4578 = vadd.f32 %v4513, %v4577
    %v4579 = vpop.f32.mrb[0].mxu0
    %v4580 = vadd.f32 %v4509, %v4579
    %v4581 = vpop.f32.mrb[0].mxu0
    %v4582 = vadd.f32 %v4513, %v4581
    %4583 = vmatprep.mubr.bf16.mxu0 %v4381
    %4584 = vmatmul.mubr.bf16.gmra.mrb[0].mxu0 %v4380
    %v4585 = vpop.f32.mrb[0].mxu0
    %v4586 = vadd.f32 %v4509, %v4585
    %v4587 = vpop.f32.mrb[0].mxu0
    %v4588 = vadd.f32 %v4513, %v4587
    %v4589 = vpop.f32.mrb[0].mxu0
    %v4590 = vadd.f32 %v4509, %v4589
    %v4591 = vpop.f32.mrb[0].mxu0
    %v4592 = vadd.f32 %v4513, %v4591
    %4593 = vmatprep.mubr.bf16.mxu0 %v4385
    %4594 = vmatmul.mubr.bf16.gmra.mrb[0].mxu0 %v4384
    %v4595 = vpop.f32.mrb[0].mxu0
    %v4596 = vadd.f32 %v4509, %v4595
    %v4597 = vpop.f32.mrb[0].mxu0
    %v4598 = vadd.f32 %v4513, %v4597
    %v4599 = vpop.f32.mrb[0].mxu0
    %v4600 = vadd.f32 %v4509, %v4599
    %v4601 = vpop.f32.mrb[0].mxu0
    %v4602 = vadd.f32 %v4513, %v4601
    %4603 = vmatprep.mubr.bf16.mxu0 %v4389
    %4604 = vmatmul.mubr.bf16.gmra.mrb[0].mxu0 %v4388
    %v4605 = vpop.f32.mrb[0].mxu0
    %v4606 = vadd.f32 %v4509, %v4605
    %v4607 = vpop.f32.mrb[0].mxu0
    %v4608 = vadd.f32 %v4513, %v4607
    %v4609 = vpop.f32.mrb[0].mxu0
    %v4610 = vadd.f32 %v4509, %v4609
    %v4611 = vpop.f32.mrb[0].mxu0
    %v4612 = vadd.f32 %v4513, %v4611
    %4613 = vmatprep.mubr.bf16.mxu0 %v4393
    %4614 = vmatmul.mubr.bf16.gmra.mrb[0].mxu0 %v4392
    %v4615 = vpop.f32.mrb[0].mxu0
    %v4616 = vadd.f32 %v4509, %v4615
    %v4617 = vpop.f32.mrb[0].mxu0
    %v4618 = vadd.f32 %v4513, %v4617
    %v4619 = vpop.f32.mrb[0].mxu0
    %v4620 = vadd.f32 %v4509, %v4619
    %v4621 = vpop.f32.mrb[0].mxu0
    %v4622 = vadd.f32 %v4513, %v4621
    %4623 = vmatprep.mubr.bf16.mxu0 %v4397
    %4624 = vmatmul.mubr.bf16.gmra.mrb[0].mxu0 %v4396
    %v4625 = vpop.f32.mrb[0].mxu0
    %v4626 = vadd.f32 %v4509, %v4625
    %v4627 = vpop.f32.mrb[0].mxu0
    %v4628 = vadd.f32 %v4513, %v4627
    %v4629 = vpop.f32.mrb[0].mxu0
    %v4630 = vadd.f32 %v4509, %v4629
    %v4631 = vpop.f32.mrb[0].mxu0
    %v4632 = vadd.f32 %v4513, %v4631
    %4633 = vdwg.mxu0
    %4634 = vmatprep.subr.bf16.mxu0 %v4458
    %4635 = vmatpush1.bf16.msra.mxu0 %v4457
    %4636 = vmatprep.subr.bf16.mxu0 %v4461
    %4637 = vmatpush1.bf16.msra.mxu0 %v4460
    %4638 = vmatprep.subr.bf16.mxu0 %v4464
    %4639 = vmatpush1.bf16.msra.mxu0 %v4463
    %4640 = vmatprep.subr.bf16.mxu0 %v4467
    %4641 = vmatpush1.bf16.msra.mxu0 %v4466
    %4642 = vmatprep.subr.bf16.mxu0 %v4470
    %4643 = vmatpush1.bf16.msra.mxu0 %v4469
    %4644 = vmatprep.subr.bf16.mxu0 %v4473
    %4645 = vmatpush1.bf16.msra.mxu0 %v4472
    %4646 = vmatprep.subr.bf16.mxu0 %v4476
    %4647 = vmatpush1.bf16.msra.mxu0 %v4475
    %4648 = vmatprep.subr.bf16.mxu0 %v4479
    %4649 = vmatpush1.bf16.msra.mxu0 %v4478
    %4650 = vmatprep.subr.bf16.mxu0 %v4482
    %4651 = vmatpush1.bf16.msra.mxu0 %v4481
    %4652 = vmatprep.subr.bf16.mxu0 %v4485
    %4653 = vmatpush1.bf16.msra.mxu0 %v4484
    %4654 = vmatprep.subr.bf16.mxu0 %v4488
    %4655 = vmatpush1.bf16.msra.mxu0 %v4487
    %4656 = vmatprep.subr.bf16.mxu0 %v4491
    %4657 = vmatpush1.bf16.msra.mxu0 %v4490
    %4658 = vmatprep.subr.bf16.mxu0 %v4494
    %4659 = vmatpush1.bf16.msra.mxu0 %v4493
    %4660 = vmatprep.subr.bf16.mxu0 %v4497
    %4661 = vmatpush1.bf16.msra.mxu0 %v4496
    %4662 = vmatprep.subr.bf16.mxu0 %v4500
    %4663 = vmatpush1.bf16.msra.mxu0 %v4499
    %4664 = vmatprep.subr.bf16.mxu0 %v4503
    %4665 = vmatpush1.bf16.msra.mxu0 %v4502
    %4666 = vmatprep.mubr.bf16.mxu0 %v4371
    %4667 = vmatmul.mubr.bf16.gmra.mrb[0].mxu0 %v4370
    %v4668 = vpop.f32.mrb[0].mxu0
    %v4669 = vadd.f32 %v4556, %v4668
    %v4670 = vpop.f32.mrb[0].mxu0
    %v4671 = vadd.f32 %v4558, %v4670
    %v4672 = vpop.f32.mrb[0].mxu0
    %v4673 = vadd.f32 %v4560, %v4672
    %v4674 = vpop.f32.mrb[0].mxu0
    %v4675 = vadd.f32 %v4562, %v4674
    %4676 = vmatprep.mubr.bf16.mxu0 %v4375
    %4677 = vmatmul.mubr.bf16.gmra.mrb[0].mxu0 %v4374
    %v4678 = vpop.f32.mrb[0].mxu0
    %v4679 = vadd.f32 %v4566, %v4678
    %v4680 = vpop.f32.mrb[0].mxu0
    %v4681 = vadd.f32 %v4568, %v4680
    %v4682 = vpop.f32.mrb[0].mxu0
    %v4683 = vadd.f32 %v4570, %v4682
    %v4684 = vpop.f32.mrb[0].mxu0
    %v4685 = vadd.f32 %v4572, %v4684
    %4686 = vmatprep.mubr.bf16.mxu0 %v4379
    %4687 = vmatmul.mubr.bf16.gmra.mrb[0].mxu0 %v4378
    %v4688 = vpop.f32.mrb[0].mxu0
    %v4689 = vadd.f32 %v4576, %v4688
    %v4690 = vpop.f32.mrb[0].mxu0
    %v4691 = vadd.f32 %v4578, %v4690
    %v4692 = vpop.f32.mrb[0].mxu0
    %v4693 = vadd.f32 %v4580, %v4692
    %v4694 = vpop.f32.mrb[0].mxu0
    %v4695 = vadd.f32 %v4582, %v4694
    %4696 = vmatprep.mubr.bf16.mxu0 %v4383
    %4697 = vmatmul.mubr.bf16.gmra.mrb[0].mxu0 %v4382
    %v4698 = vpop.f32.mrb[0].mxu0
    %v4699 = vadd.f32 %v4586, %v4698
    %v4700 = vpop.f32.mrb[0].mxu0
    %v4701 = vadd.f32 %v4588, %v4700
    %v4702 = vpop.f32.mrb[0].mxu0
    %v4703 = vadd.f32 %v4590, %v4702
    %v4704 = vpop.f32.mrb[0].mxu0
    %v4705 = vadd.f32 %v4592, %v4704
    %4706 = vmatprep.mubr.bf16.mxu0 %v4387
    %4707 = vmatmul.mubr.bf16.gmra.mrb[0].mxu0 %v4386
    %v4708 = vpop.f32.mrb[0].mxu0
    %v4709 = vadd.f32 %v4596, %v4708
    %v4710 = vpop.f32.mrb[0].mxu0
    %v4711 = vadd.f32 %v4598, %v4710
    %v4712 = vpop.f32.mrb[0].mxu0
    %v4713 = vadd.f32 %v4600, %v4712
    %v4714 = vpop.f32.mrb[0].mxu0
    %v4715 = vadd.f32 %v4602, %v4714
    %4716 = vmatprep.mubr.bf16.mxu0 %v4391
    %4717 = vmatmul.mubr.bf16.gmra.mrb[0].mxu0 %v4390
    %v4718 = vpop.f32.mrb[0].mxu0
    %v4719 = vadd.f32 %v4606, %v4718
    %v4720 = vpop.f32.mrb[0].mxu0
    %v4721 = vadd.f32 %v4608, %v4720
    %v4722 = vpop.f32.mrb[0].mxu0
    %v4723 = vadd.f32 %v4610, %v4722
    %v4724 = vpop.f32.mrb[0].mxu0
    %v4725 = vadd.f32 %v4612, %v4724
    %4726 = vmatprep.mubr.bf16.mxu0 %v4395
    %4727 = vmatmul.mubr.bf16.gmra.mrb[0].mxu0 %v4394
    %v4728 = vpop.f32.mrb[0].mxu0
    %v4729 = vadd.f32 %v4616, %v4728
    %v4730 = vpop.f32.mrb[0].mxu0
    %v4731 = vadd.f32 %v4618, %v4730
    %v4732 = vpop.f32.mrb[0].mxu0
    %v4733 = vadd.f32 %v4620, %v4732
    %v4734 = vpop.f32.mrb[0].mxu0
    %v4735 = vadd.f32 %v4622, %v4734
    %4736 = vmatprep.mubr.bf16.mxu0 %v4399
    %4737 = vmatmul.mubr.bf16.gmra.mrb[0].mxu0 %v4398
    %v4738 = vpop.f32.mrb[0].mxu0
    %v4739 = vadd.f32 %v4626, %v4738
    %v4740 = vpop.f32.mrb[0].mxu0
    %v4741 = vadd.f32 %v4628, %v4740
    %v4742 = vpop.f32.mrb[0].mxu0
    %v4743 = vadd.f32 %v4630, %v4742
    %v4744 = vpop.f32.mrb[0].mxu0
    %v4745 = vadd.f32 %v4632, %v4744
    %4746 = vdwg.mxu0
    %4747 = vmatprep.subr.bf16.mxu0 0
    %4748 = vmatpush1.bf16.msra.mxu0 %v4411
    %4749 = vmatprep.subr.bf16.mxu0 0
    %4750 = vmatpush1.bf16.msra.mxu0 %v4414
    %4751 = vmatprep.subr.bf16.mxu0 0
    %4752 = vmatpush1.bf16.msra.mxu0 %v4417
    %4753 = vmatprep.subr.bf16.mxu0 0
    %4754 = vmatpush1.bf16.msra.mxu0 %v4420
    %4755 = vmatprep.subr.bf16.mxu0 0
    %4756 = vmatpush1.bf16.msra.mxu0 %v4423
    %4757 = vmatprep.subr.bf16.mxu0 0
    %4758 = vmatpush1.bf16.msra.mxu0 %v4426
    %4759 = vmatprep.subr.bf16.mxu0 0
    %4760 = vmatpush1.bf16.msra.mxu0 %v4429
    %4761 = vmatprep.subr.bf16.mxu0 0
    %4762 = vmatpush1.bf16.msra.mxu0 %v4432
    %4763 = vmatprep.subr.bf16.mxu0 0
    %4764 = vmatpush1.bf16.msra.mxu0 %v4435
    %4765 = vmatprep.subr.bf16.mxu0 0
    %4766 = vmatpush1.bf16.msra.mxu0 %v4438
    %4767 = vmatprep.subr.bf16.mxu0 0
    %4768 = vmatpush1.bf16.msra.mxu0 %v4441
    %4769 = vmatprep.subr.bf16.mxu0 0
    %4770 = vmatpush1.bf16.msra.mxu0 %v4444
    %4771 = vmatprep.subr.bf16.mxu0 0
    %4772 = vmatpush1.bf16.msra.mxu0 %v4447
    %4773 = vmatprep.subr.bf16.mxu0 0
    %4774 = vmatpush1.bf16.msra.mxu0 %v4450
    %4775 = vmatprep.subr.bf16.mxu0 0
    %4776 = vmatpush1.bf16.msra.mxu0 %v4453
    %4777 = vmatprep.subr.bf16.mxu0 0
    %4778 = vmatpush1.bf16.msra.mxu0 %v4456
    %4779 = vmatprep.mubr.bf16.mxu0 %v4369
    %4780 = vmatmul.mubr.bf16.gmra.mrb[0].mxu0 %v4368
    %v4781 = vpop.f32.mrb[0].mxu0
    %v4782 = vadd.f32 %v4517, %v4781
    %v4783 = vpop.f32.mrb[0].mxu0
    %v4784 = vpop.f32.mrb[0].mxu0
    %v4785 = vadd.f32 %v4517, %v4784
    %v4786 = vpop.f32.mrb[0].mxu0
    %4787 = vmatprep.mubr.bf16.mxu0 %v4373
    %4788 = vmatmul.mubr.bf16.gmra.mrb[0].mxu0 %v4372
    %v4789 = vpop.f32.mrb[0].mxu0
    %v4790 = vadd.f32 %v4517, %v4789
    %v4791 = vpop.f32.mrb[0].mxu0
    %v4792 = vpop.f32.mrb[0].mxu0
    %v4793 = vadd.f32 %v4517, %v4792
    %v4794 = vpop.f32.mrb[0].mxu0
    %4795 = vmatprep.mubr.bf16.mxu0 %v4377
    %4796 = vmatmul.mubr.bf16.gmra.mrb[0].mxu0 %v4376
    %v4797 = vpop.f32.mrb[0].mxu0
    %v4798 = vadd.f32 %v4517, %v4797
    %v4799 = vpop.f32.mrb[0].mxu0
    %v4800 = vpop.f32.mrb[0].mxu0
    %v4801 = vadd.f32 %v4517, %v4800
    %v4802 = vpop.f32.mrb[0].mxu0
    %4803 = vmatprep.mubr.bf16.mxu0 %v4381
    %4804 = vmatmul.mubr.bf16.gmra.mrb[0].mxu0 %v4380
    %v4805 = vpop.f32.mrb[0].mxu0
    %v4806 = vadd.f32 %v4517, %v4805
    %v4807 = vpop.f32.mrb[0].mxu0
    %v4808 = vpop.f32.mrb[0].mxu0
    %v4809 = vadd.f32 %v4517, %v4808
    %v4810 = vpop.f32.mrb[0].mxu0
    %4811 = vmatprep.mubr.bf16.mxu0 %v4385
    %4812 = vmatmul.mubr.bf16.gmra.mrb[0].mxu0 %v4384
    %v4813 = vpop.f32.mrb[0].mxu0
    %v4814 = vadd.f32 %v4517, %v4813
    %v4815 = vpop.f32.mrb[0].mxu0
    %v4816 = vpop.f32.mrb[0].mxu0
    %v4817 = vadd.f32 %v4517, %v4816
    %v4818 = vpop.f32.mrb[0].mxu0
    %4819 = vmatprep.mubr.bf16.mxu0 %v4389
    %4820 = vmatmul.mubr.bf16.gmra.mrb[0].mxu0 %v4388
    %v4821 = vpop.f32.mrb[0].mxu0
    %v4822 = vadd.f32 %v4517, %v4821
    %v4823 = vpop.f32.mrb[0].mxu0
    %v4824 = vpop.f32.mrb[0].mxu0
    %v4825 = vadd.f32 %v4517, %v4824
    %v4826 = vpop.f32.mrb[0].mxu0
    %4827 = vmatprep.mubr.bf16.mxu0 %v4393
    %4828 = vmatmul.mubr.bf16.gmra.mrb[0].mxu0 %v4392
    %v4829 = vpop.f32.mrb[0].mxu0
    %v4830 = vadd.f32 %v4517, %v4829
    %v4831 = vpop.f32.mrb[0].mxu0
    %v4832 = vpop.f32.mrb[0].mxu0
    %v4833 = vadd.f32 %v4517, %v4832
    %v4834 = vpop.f32.mrb[0].mxu0
    %4835 = vmatprep.mubr.bf16.mxu0 %v4397
    %4836 = vmatmul.mubr.bf16.gmra.mrb[0].mxu0 %v4396
    %v4837 = vpop.f32.mrb[0].mxu0
    %v4838 = vadd.f32 %v4517, %v4837
    %v4839 = vpop.f32.mrb[0].mxu0
    %v4840 = vpop.f32.mrb[0].mxu0
    %v4841 = vadd.f32 %v4517, %v4840
    %v4842 = vpop.f32.mrb[0].mxu0
    %4843 = vdwg.mxu0
    %4844 = vmatprep.subr.bf16.mxu0 0
    %4845 = vmatpush1.bf16.msra.mxu0 %v4459
    %4846 = vmatprep.subr.bf16.mxu0 0
    %4847 = vmatpush1.bf16.msra.mxu0 %v4462
    %4848 = vmatprep.subr.bf16.mxu0 0
    %4849 = vmatpush1.bf16.msra.mxu0 %v4465
    %4850 = vmatprep.subr.bf16.mxu0 0
    %4851 = vmatpush1.bf16.msra.mxu0 %v4468
    %4852 = vmatprep.subr.bf16.mxu0 0
    %4853 = vmatpush1.bf16.msra.mxu0 %v4471
    %4854 = vmatprep.subr.bf16.mxu0 0
    %4855 = vmatpush1.bf16.msra.mxu0 %v4474
    %4856 = vmatprep.subr.bf16.mxu0 0
    %4857 = vmatpush1.bf16.msra.mxu0 %v4477
    %4858 = vmatprep.subr.bf16.mxu0 0
    %4859 = vmatpush1.bf16.msra.mxu0 %v4480
    %4860 = vmatprep.subr.bf16.mxu0 0
    %4861 = vmatpush1.bf16.msra.mxu0 %v4483
    %4862 = vmatprep.subr.bf16.mxu0 0
    %4863 = vmatpush1.bf16.msra.mxu0 %v4486
    %4864 = vmatprep.subr.bf16.mxu0 0
    %4865 = vmatpush1.bf16.msra.mxu0 %v4489
    %4866 = vmatprep.subr.bf16.mxu0 0
    %4867 = vmatpush1.bf16.msra.mxu0 %v4492
    %4868 = vmatprep.subr.bf16.mxu0 0
    %4869 = vmatpush1.bf16.msra.mxu0 %v4495
    %4870 = vmatprep.subr.bf16.mxu0 0
    %4871 = vmatpush1.bf16.msra.mxu0 %v4498
    %4872 = vmatprep.subr.bf16.mxu0 0
    %4873 = vmatpush1.bf16.msra.mxu0 %v4501
    %4874 = vmatprep.subr.bf16.mxu0 0
    %4875 = vmatpush1.bf16.msra.mxu0 %v4504
    %4876 = vmatprep.mubr.bf16.mxu0 %v4371
    %4877 = vmatmul.mubr.bf16.gmra.mrb[0].mxu0 %v4370
    %v4878 = vpop.f32.mrb[0].mxu0
    %v4879 = vadd.f32 %v4782, %v4878
    %v4880 = vpop.f32.mrb[0].mxu0
    %v4881 = vpop.f32.mrb[0].mxu0
    %v4882 = vadd.f32 %v4785, %v4881
    %v4883 = vpop.f32.mrb[0].mxu0
    %4884 = vmatprep.mubr.bf16.mxu0 %v4375
    %4885 = vmatmul.mubr.bf16.gmra.mrb[0].mxu0 %v4374
    %v4886 = vpop.f32.mrb[0].mxu0
    %v4887 = vadd.f32 %v4790, %v4886
    %v4888 = vpop.f32.mrb[0].mxu0
    %v4889 = vpop.f32.mrb[0].mxu0
    %v4890 = vadd.f32 %v4793, %v4889
    %v4891 = vpop.f32.mrb[0].mxu0
    %4892 = vmatprep.mubr.bf16.mxu0 %v4379
    %4893 = vmatmul.mubr.bf16.gmra.mrb[0].mxu0 %v4378
    %v4894 = vpop.f32.mrb[0].mxu0
    %v4895 = vadd.f32 %v4798, %v4894
    %v4896 = vpop.f32.mrb[0].mxu0
    %v4897 = vpop.f32.mrb[0].mxu0
    %v4898 = vadd.f32 %v4801, %v4897
    %v4899 = vpop.f32.mrb[0].mxu0
    %4900 = vmatprep.mubr.bf16.mxu0 %v4383
    %4901 = vmatmul.mubr.bf16.gmra.mrb[0].mxu0 %v4382
    %v4902 = vpop.f32.mrb[0].mxu0
    %v4903 = vadd.f32 %v4806, %v4902
    %v4904 = vpop.f32.mrb[0].mxu0
    %v4905 = vpop.f32.mrb[0].mxu0
    %v4906 = vadd.f32 %v4809, %v4905
    %v4907 = vpop.f32.mrb[0].mxu0
    %4908 = vmatprep.mubr.bf16.mxu0 %v4387
    %4909 = vmatmul.mubr.bf16.gmra.mrb[0].mxu0 %v4386
    %v4910 = vpop.f32.mrb[0].mxu0
    %v4911 = vadd.f32 %v4814, %v4910
    %v4912 = vpop.f32.mrb[0].mxu0
    %v4913 = vpop.f32.mrb[0].mxu0
    %v4914 = vadd.f32 %v4817, %v4913
    %v4915 = vpop.f32.mrb[0].mxu0
    %4916 = vmatprep.mubr.bf16.mxu0 %v4391
    %4917 = vmatmul.mubr.bf16.gmra.mrb[0].mxu0 %v4390
    %v4918 = vpop.f32.mrb[0].mxu0
    %v4919 = vadd.f32 %v4822, %v4918
    %v4920 = vpop.f32.mrb[0].mxu0
    %v4921 = vpop.f32.mrb[0].mxu0
    %v4922 = vadd.f32 %v4825, %v4921
    %v4923 = vpop.f32.mrb[0].mxu0
    %4924 = vmatprep.mubr.bf16.mxu0 %v4395
    %4925 = vmatmul.mubr.bf16.gmra.mrb[0].mxu0 %v4394
    %v4926 = vpop.f32.mrb[0].mxu0
    %v4927 = vadd.f32 %v4830, %v4926
    %v4928 = vpop.f32.mrb[0].mxu0
    %v4929 = vpop.f32.mrb[0].mxu0
    %v4930 = vadd.f32 %v4833, %v4929
    %v4931 = vpop.f32.mrb[0].mxu0
    %4932 = vmatprep.mubr.bf16.mxu0 %v4399
    %4933 = vmatmul.mubr.bf16.gmra.mrb[0].mxu0 %v4398
    %v4934 = vpop.f32.mrb[0].mxu0
    %v4935 = vadd.f32 %v4838, %v4934
    %v4936 = vpop.f32.mrb[0].mxu0
    %v4937 = vpop.f32.mrb[0].mxu0
    %v4938 = vadd.f32 %v4841, %v4937
    %v4939 = vpop.f32.mrb[0].mxu0
    %4940 = vdwg.mxu0
    %v4941 = vmul.f32 %v4669, 0.01
    %v4942 = vmul.f32 %v4671, 0.01
    %v4943 = vmul.f32 %v4879, 0.01
    %v4944 = vmul.f32 %v4673, 0.01
    %v4945 = vmul.f32 %v4675, 0.01
    %v4946 = vmul.f32 %v4882, 0.01
    %v4947 = vmul.f32 %v4679, 0.01
    %v4948 = vmul.f32 %v4681, 0.01
    %v4949 = vmul.f32 %v4887, 0.01
    %v4950 = vmul.f32 %v4683, 0.01
    %v4951 = vmul.f32 %v4685, 0.01
    %v4952 = vmul.f32 %v4890, 0.01
    %v4953 = vmul.f32 %v4689, 0.01
    %v4954 = vmul.f32 %v4691, 0.01
    %v4955 = vmul.f32 %v4895, 0.01
    %v4956 = vmul.f32 %v4693, 0.01
    %v4957 = vmul.f32 %v4695, 0.01
    %v4958 = vmul.f32 %v4898, 0.01
    %v4959 = vmul.f32 %v4699, 0.01
    %v4960 = vmul.f32 %v4701, 0.01
    %v4961 = vmul.f32 %v4903, 0.01
    %v4962 = vmul.f32 %v4703, 0.01
    %v4963 = vmul.f32 %v4705, 0.01
    %v4964 = vmul.f32 %v4906, 0.01
    %v4965 = vmul.f32 %v4709, 0.01
    %v4966 = vmul.f32 %v4711, 0.01
    %v4967 = vmul.f32 %v4911, 0.01
    %v4968 = vmul.f32 %v4713, 0.01
    %v4969 = vmul.f32 %v4715, 0.01
    %v4970 = vmul.f32 %v4914, 0.01
    %v4971 = vmul.f32 %v4719, 0.01
    %v4972 = vmul.f32 %v4721, 0.01
    %v4973 = vmul.f32 %v4919, 0.01
    %v4974 = vmul.f32 %v4723, 0.01
    %v4975 = vmul.f32 %v4725, 0.01
    %v4976 = vmul.f32 %v4922, 0.01
    %v4977 = vmul.f32 %v4729, 0.01
    %v4978 = vmul.f32 %v4731, 0.01
    %v4979 = vmul.f32 %v4927, 0.01
    %v4980 = vmul.f32 %v4733, 0.01
    %v4981 = vmul.f32 %v4735, 0.01
    %v4982 = vmul.f32 %v4930, 0.01
    %v4983 = vmul.f32 %v4739, 0.01
    %v4984 = vmul.f32 %v4741, 0.01
    %v4985 = vmul.f32 %v4935, 0.01
    %v4986 = vmul.f32 %v4743, 0.01
    %v4987 = vmul.f32 %v4745, 0.01
    %v4988 = vmul.f32 %v4938, 0.01
    %v4989 = vmax.f32 %v4669, %v4941
    %v4990 = vmax.f32 %v4671, %v4942
    %v4991 = vmax.f32 %v4879, %v4943
    %v4992 = vmax.f32 %v4673, %v4944
    %v4993 = vmax.f32 %v4675, %v4945
    %v4994 = vmax.f32 %v4882, %v4946
    %v4995 = vmax.f32 %v4679, %v4947
    %v4996 = vmax.f32 %v4681, %v4948
    %v4997 = vmax.f32 %v4887, %v4949
    %v4998 = vmax.f32 %v4683, %v4950
    %v4999 = vmax.f32 %v4685, %v4951
    %v5000 = vmax.f32 %v4890, %v4952
    %v5001 = vmax.f32 %v4689, %v4953
    %v5002 = vmax.f32 %v4691, %v4954
    %v5003 = vmax.f32 %v4895, %v4955
    %v5004 = vmax.f32 %v4693, %v4956
    %v5005 = vmax.f32 %v4695, %v4957
    %v5006 = vmax.f32 %v4898, %v4958
    %v5007 = vmax.f32 %v4699, %v4959
    %v5008 = vmax.f32 %v4701, %v4960
    %v5009 = vmax.f32 %v4903, %v4961
    %v5010 = vmax.f32 %v4703, %v4962
    %v5011 = vmax.f32 %v4705, %v4963
    %v5012 = vmax.f32 %v4906, %v4964
    %v5013 = vmax.f32 %v4709, %v4965
    %v5014 = vmax.f32 %v4711, %v4966
    %v5015 = vmax.f32 %v4911, %v4967
    %v5016 = vmax.f32 %v4713, %v4968
    %v5017 = vmax.f32 %v4715, %v4969
    %v5018 = vmax.f32 %v4914, %v4970
    %v5019 = vmax.f32 %v4719, %v4971
    %v5020 = vmax.f32 %v4721, %v4972
    %v5021 = vmax.f32 %v4919, %v4973
    %v5022 = vmax.f32 %v4723, %v4974
    %v5023 = vmax.f32 %v4725, %v4975
    %v5024 = vmax.f32 %v4922, %v4976
    %v5025 = vmax.f32 %v4729, %v4977
    %v5026 = vmax.f32 %v4731, %v4978
    %v5027 = vmax.f32 %v4927, %v4979
    %v5028 = vmax.f32 %v4733, %v4980
    %v5029 = vmax.f32 %v4735, %v4981
    %v5030 = vmax.f32 %v4930, %v4982
    %v5031 = vmax.f32 %v4739, %v4983
    %v5032 = vmax.f32 %v4741, %v4984
    %v5033 = vmax.f32 %v4935, %v4985
    %v5034 = vmax.f32 %v4743, %v4986
    %v5035 = vmax.f32 %v4745, %v4987
    %v5036 = vmax.f32 %v4938, %v4988
    %v5037 = vadd.f32 %v4989, %v4992
    %v5038 = vadd.f32 %v5037, %v4995
    %v5039 = vadd.f32 %v5038, %v4998
    %v5040 = vadd.f32 %v5039, %v5001
    %v5041 = vadd.f32 %v5040, %v5004
    %v5042 = vadd.f32 %v5041, %v5007
    %v5043 = vadd.f32 %v5042, %v5010
    %v5044 = vadd.f32 %v5043, %v5013
    %v5045 = vadd.f32 %v5044, %v5016
    %v5046 = vadd.f32 %v5045, %v5019
    %v5047 = vadd.f32 %v5046, %v5022
    %v5048 = vadd.f32 %v5047, %v5025
    %v5049 = vadd.f32 %v5048, %v5028
    %v5050 = vadd.f32 %v5049, %v5031
    %v5051 = vadd.f32 %v5050, %v5034
    %v5052 = vrot.slane %v5051, 4
    %v5053 = vadd.f32 %v5051, %v5052
    %v5054 = vrot.slane %v5053, 2
    %v5055 = vadd.f32 %v5053, %v5054
    %v5056 = vrot.slane %v5055, 1
    %v5057 = vadd.f32 %v5055, %v5056
    %v5058 = vadd.f32 %v4990, %v4993
    %v5059 = vadd.f32 %v5058, %v4996
    %v5060 = vadd.f32 %v5059, %v4999
    %v5061 = vadd.f32 %v5060, %v5002
    %v5062 = vadd.f32 %v5061, %v5005
    %v5063 = vadd.f32 %v5062, %v5008
    %v5064 = vadd.f32 %v5063, %v5011
    %v5065 = vadd.f32 %v5064, %v5014
    %v5066 = vadd.f32 %v5065, %v5017
    %v5067 = vadd.f32 %v5066, %v5020
    %v5068 = vadd.f32 %v5067, %v5023
    %v5069 = vadd.f32 %v5068, %v5026
    %v5070 = vadd.f32 %v5069, %v5029
    %v5071 = vadd.f32 %v5070, %v5032
    %v5072 = vadd.f32 %v5071, %v5035
    %v5073 = vrot.slane %v5072, 4
    %v5074 = vadd.f32 %v5072, %v5073
    %v5075 = vrot.slane %v5074, 2
    %v5076 = vadd.f32 %v5074, %v5075
    %v5077 = vrot.slane %v5076, 1
    %v5078 = vadd.f32 %v5076, %v5077
    %v5079 = vadd.f32 %v4991, %v4994
    %v5080 = vadd.f32 %v5079, %v4997
    %v5081 = vadd.f32 %v5080, %v5000
    %v5082 = vadd.f32 %v5081, %v5003
    %v5083 = vadd.f32 %v5082, %v5006
    %v5084 = vadd.f32 %v5083, %v5009
    %v5085 = vadd.f32 %v5084, %v5012
    %v5086 = vadd.f32 %v5085, %v5015
    %v5087 = vadd.f32 %v5086, %v5018
    %v5088 = vadd.f32 %v5087, %v5021
    %v5089 = vadd.f32 %v5088, %v5024
    %v5090 = vadd.f32 %v5089, %v5027
    %v5091 = vadd.f32 %v5090, %v5030
    %v5092 = vadd.f32 %v5091, %v5033
    %v5093 = vadd.f32 %v5092, %v5036
    %v5094 = vrot.slane %v5093, 4
    %v5095 = vadd.f32 %v5093, %v5094
    %v5096 = vrot.slane %v5095, 2
    %v5097 = vadd.f32 %v5095, %v5096
    %v5098 = vrot.slane %v5097, 1
    %v5099 = vadd.f32 %v5097, %v5098
    %v5100 = vmul.f32 %v5057, 0.0078125
    %v5101 = vmul.f32 %v5078, 0.0078125
    %v5102 = vmul.f32 %v5099, 0.0078125
    %v5103 = vsub.f32 %v4989, %v5100
    %v5104 = vsub.f32 %v4990, %v5101
    %v5105 = vsub.f32 %v4991, %v5102
    %v5106 = vsub.f32 %v4992, %v5100
    %v5107 = vsub.f32 %v4993, %v5101
    %v5108 = vsub.f32 %v4994, %v5102
    %v5109 = vsub.f32 %v4995, %v5100
    %v5110 = vsub.f32 %v4996, %v5101
    %v5111 = vsub.f32 %v4997, %v5102
    %v5112 = vsub.f32 %v4998, %v5100
    %v5113 = vsub.f32 %v4999, %v5101
    %v5114 = vsub.f32 %v5000, %v5102
    %v5115 = vsub.f32 %v5001, %v5100
    %v5116 = vsub.f32 %v5002, %v5101
    %v5117 = vsub.f32 %v5003, %v5102
    %v5118 = vsub.f32 %v5004, %v5100
    %v5119 = vsub.f32 %v5005, %v5101
    %v5120 = vsub.f32 %v5006, %v5102
    %v5121 = vsub.f32 %v5007, %v5100
    %v5122 = vsub.f32 %v5008, %v5101
    %v5123 = vsub.f32 %v5009, %v5102
    %v5124 = vsub.f32 %v5010, %v5100
    %v5125 = vsub.f32 %v5011, %v5101
    %v5126 = vsub.f32 %v5012, %v5102
    %v5127 = vsub.f32 %v5013, %v5100
    %v5128 = vsub.f32 %v5014, %v5101
    %v5129 = vsub.f32 %v5015, %v5102
    %v5130 = vsub.f32 %v5016, %v5100
    %v5131 = vsub.f32 %v5017, %v5101
    %v5132 = vsub.f32 %v5018, %v5102
    %v5133 = vsub.f32 %v5019, %v5100
    %v5134 = vsub.f32 %v5020, %v5101
    %v5135 = vsub.f32 %v5021, %v5102
    %v5136 = vsub.f32 %v5022, %v5100
    %v5137 = vsub.f32 %v5023, %v5101
    %v5138 = vsub.f32 %v5024, %v5102
    %v5139 = vsub.f32 %v5025, %v5100
    %v5140 = vsub.f32 %v5026, %v5101
    %v5141 = vsub.f32 %v5027, %v5102
    %v5142 = vsub.f32 %v5028, %v5100
    %v5143 = vsub.f32 %v5029, %v5101
    %v5144 = vsub.f32 %v5030, %v5102
    %v5145 = vsub.f32 %v5031, %v5100
    %v5146 = vsub.f32 %v5032, %v5101
    %v5147 = vsub.f32 %v5033, %v5102
    %v5148 = vsub.f32 %v5034, %v5100
    %v5149 = vsub.f32 %v5035, %v5101
    %v5150 = vsub.f32 %v5036, %v5102
    %v5151 = vmul.f32 %v5103, %v5103
    %v5152 = vmul.f32 %v5104, %v5104
    %v5153 = vmul.f32 %v5105, %v5105
    %v5154 = vmul.f32 %v5106, %v5106
    %v5155 = vmul.f32 %v5107, %v5107
    %v5156 = vmul.f32 %v5108, %v5108
    %v5157 = vmul.f32 %v5109, %v5109
    %v5158 = vmul.f32 %v5110, %v5110
    %v5159 = vmul.f32 %v5111, %v5111
    %v5160 = vmul.f32 %v5112, %v5112
    %v5161 = vmul.f32 %v5113, %v5113
    %v5162 = vmul.f32 %v5114, %v5114
    %v5163 = vmul.f32 %v5115, %v5115
    %v5164 = vmul.f32 %v5116, %v5116
    %v5165 = vmul.f32 %v5117, %v5117
    %v5166 = vmul.f32 %v5118, %v5118
    %v5167 = vmul.f32 %v5119, %v5119
    %v5168 = vmul.f32 %v5120, %v5120
    %v5169 = vmul.f32 %v5121, %v5121
    %v5170 = vmul.f32 %v5122, %v5122
    %v5171 = vmul.f32 %v5123, %v5123
    %v5172 = vmul.f32 %v5124, %v5124
    %v5173 = vmul.f32 %v5125, %v5125
    %v5174 = vmul.f32 %v5126, %v5126
    %v5175 = vmul.f32 %v5127, %v5127
    %v5176 = vmul.f32 %v5128, %v5128
    %v5177 = vmul.f32 %v5129, %v5129
    %v5178 = vmul.f32 %v5130, %v5130
    %v5179 = vmul.f32 %v5131, %v5131
    %v5180 = vmul.f32 %v5132, %v5132
    %v5181 = vmul.f32 %v5133, %v5133
    %v5182 = vmul.f32 %v5134, %v5134
    %v5183 = vmul.f32 %v5135, %v5135
    %v5184 = vmul.f32 %v5136, %v5136
    %v5185 = vmul.f32 %v5137, %v5137
    %v5186 = vmul.f32 %v5138, %v5138
    %v5187 = vmul.f32 %v5139, %v5139
    %v5188 = vmul.f32 %v5140, %v5140
    %v5189 = vmul.f32 %v5141, %v5141
    %v5190 = vmul.f32 %v5142, %v5142
    %v5191 = vmul.f32 %v5143, %v5143
    %v5192 = vmul.f32 %v5144, %v5144
    %v5193 = vmul.f32 %v5145, %v5145
    %v5194 = vmul.f32 %v5146, %v5146
    %v5195 = vmul.f32 %v5147, %v5147
    %v5196 = vmul.f32 %v5148, %v5148
    %v5197 = vmul.f32 %v5149, %v5149
    %v5198 = vmul.f32 %v5150, %v5150
    %v5199 = vadd.f32 %v5151, %v5154
    %v5200 = vadd.f32 %v5199, %v5157
    %v5201 = vadd.f32 %v5200, %v5160
    %v5202 = vadd.f32 %v5201, %v5163
    %v5203 = vadd.f32 %v5202, %v5166
    %v5204 = vadd.f32 %v5203, %v5169
    %v5205 = vadd.f32 %v5204, %v5172
    %v5206 = vadd.f32 %v5205, %v5175
    %v5207 = vadd.f32 %v5206, %v5178
    %v5208 = vadd.f32 %v5207, %v5181
    %v5209 = vadd.f32 %v5208, %v5184
    %v5210 = vadd.f32 %v5209, %v5187
    %v5211 = vadd.f32 %v5210, %v5190
    %v5212 = vadd.f32 %v5211, %v5193
    %v5213 = vadd.f32 %v5212, %v5196
    %v5214 = vrot.slane %v5213, 4
    %v5215 = vadd.f32 %v5213, %v5214
    %v5216 = vrot.slane %v5215, 2
    %v5217 = vadd.f32 %v5215, %v5216
    %v5218 = vrot.slane %v5217, 1
    %v5219 = vadd.f32 %v5217, %v5218
    %v5220 = vadd.f32 %v5152, %v5155
    %v5221 = vadd.f32 %v5220, %v5158
    %v5222 = vadd.f32 %v5221, %v5161
    %v5223 = vadd.f32 %v5222, %v5164
    %v5224 = vadd.f32 %v5223, %v5167
    %v5225 = vadd.f32 %v5224, %v5170
    %v5226 = vadd.f32 %v5225, %v5173
    %v5227 = vadd.f32 %v5226, %v5176
    %v5228 = vadd.f32 %v5227, %v5179
    %v5229 = vadd.f32 %v5228, %v5182
    %v5230 = vadd.f32 %v5229, %v5185
    %v5231 = vadd.f32 %v5230, %v5188
    %v5232 = vadd.f32 %v5231, %v5191
    %v5233 = vadd.f32 %v5232, %v5194
    %v5234 = vadd.f32 %v5233, %v5197
    %v5235 = vrot.slane %v5234, 4
    %v5236 = vadd.f32 %v5234, %v5235
    %v5237 = vrot.slane %v5236, 2
    %v5238 = vadd.f32 %v5236, %v5237
    %v5239 = vrot.slane %v5238, 1
    %v5240 = vadd.f32 %v5238, %v5239
    %v5241 = vadd.f32 %v5153, %v5156
    %v5242 = vadd.f32 %v5241, %v5159
    %v5243 = vadd.f32 %v5242, %v5162
    %v5244 = vadd.f32 %v5243, %v5165
    %v5245 = vadd.f32 %v5244, %v5168
    %v5246 = vadd.f32 %v5245, %v5171
    %v5247 = vadd.f32 %v5246, %v5174
    %v5248 = vadd.f32 %v5247, %v5177
    %v5249 = vadd.f32 %v5248, %v5180
    %v5250 = vadd.f32 %v5249, %v5183
    %v5251 = vadd.f32 %v5250, %v5186
    %v5252 = vadd.f32 %v5251, %v5189
    %v5253 = vadd.f32 %v5252, %v5192
    %v5254 = vadd.f32 %v5253, %v5195
    %v5255 = vadd.f32 %v5254, %v5198
    %v5256 = vrot.slane %v5255, 4
    %v5257 = vadd.f32 %v5255, %v5256
    %v5258 = vrot.slane %v5257, 2
    %v5259 = vadd.f32 %v5257, %v5258
    %v5260 = vrot.slane %v5259, 1
    %v5261 = vadd.f32 %v5259, %v5260
    %v5262 = vmul.f32 %v5219, 0.0078125
    %v5263 = vmul.f32 %v5240, 0.0078125
    %v5264 = vmul.f32 %v5261, 0.0078125
    %v5265 = vadd.f32 %v5262, 1e-05
    %v5266 = vadd.f32 %v5263, 1e-05
    %v5267 = vadd.f32 %v5264, 1e-05
    %v5268 = vrsqrt.pop %v5265
    %v5269 = vrsqrt.pop %v5266
    %v5270 = vrsqrt.pop %v5267
    %v5274 = vcombine.low %v5268, %v5269
    %v5276 = vunpack.c.l.s4 1966171168
    %v5277 = vunpack.c.0.s8 %v5276
    %v5278 = vlaneseq
    %v5279 = vshrl.u32 %v5278, 7
    %v5280 = vsub.s32 %v5277, %v5279
    %v5281 = vrot.slane %v5274, %v5280
    %v5283 = vunpack.c.l.s4 1966171168
    %v5284 = vunpack.c.0.s8 %v5283
    %v5285 = vlaneseq
    %v5286 = vshrl.u32 %v5285, 7
    %v5287 = vsub.s32 %v5284, %v5286
    %v5288 = vrot.slane %v5270, %v5287
    %v5289 = vcombine.low %v5281, %v5288
    %v5291 = vunpack.c.l.s4 1966171168
    %v5292 = vunpack.c.0.s8 %v5291
    %v5293 = vlaneseq
    %v5294 = vshrl.u32 %v5293, 7
    %v5295 = vsub.s32 %v5292, %v5294
    %v5296 = vrot.slane %v5289, %v5295
    %v5298 = vmul.f32 %v4403, %v5296
    %v5300 = vlaneseq
    %v5301 = vshrl.u32 %v5300, 7
    %v5302 = vsub.s32 0, %v5301
    %v5303 = vrot.slane %v5298, %v5302
    %v5304 = vlaneseq
    %v5305 = vshrl.u32 %v5304, 7
    %v5306 = vsub.s32 1, %v5305
    %v5307 = vrot.slane %v5298, %v5306
    %v5308 = vlaneseq
    %v5309 = vshrl.u32 %v5308, 7
    %v5310 = vsub.s32 2, %v5309
    %v5311 = vrot.slane %v5298, %v5310
    %v5315 = vmul.f32 %v5103, %v5303
    %v5316 = vmul.f32 %v5104, %v5307
    %v5317 = vmul.f32 %v5105, %v5311
    %v5318 = vmul.f32 %v5106, %v5303
    %v5319 = vmul.f32 %v5107, %v5307
    %v5320 = vmul.f32 %v5108, %v5311
    %v5321 = vmul.f32 %v5109, %v5303
    %v5322 = vmul.f32 %v5110, %v5307
    %v5323 = vmul.f32 %v5111, %v5311
    %v5324 = vmul.f32 %v5112, %v5303
    %v5325 = vmul.f32 %v5113, %v5307
    %v5326 = vmul.f32 %v5114, %v5311
    %v5327 = vmul.f32 %v5115, %v5303
    %v5328 = vmul.f32 %v5116, %v5307
    %v5329 = vmul.f32 %v5117, %v5311
    %v5330 = vmul.f32 %v5118, %v5303
    %v5331 = vmul.f32 %v5119, %v5307
    %v5332 = vmul.f32 %v5120, %v5311
    %v5333 = vmul.f32 %v5121, %v5303
    %v5334 = vmul.f32 %v5122, %v5307
    %v5335 = vmul.f32 %v5123, %v5311
    %v5336 = vmul.f32 %v5124, %v5303
    %v5337 = vmul.f32 %v5125, %v5307
    %v5338 = vmul.f32 %v5126, %v5311
    %v5339 = vmul.f32 %v5127, %v5303
    %v5340 = vmul.f32 %v5128, %v5307
    %v5341 = vmul.f32 %v5129, %v5311
    %v5342 = vmul.f32 %v5130, %v5303
    %v5343 = vmul.f32 %v5131, %v5307
    %v5344 = vmul.f32 %v5132, %v5311
    %v5345 = vmul.f32 %v5133, %v5303
    %v5346 = vmul.f32 %v5134, %v5307
    %v5347 = vmul.f32 %v5135, %v5311
    %v5348 = vmul.f32 %v5136, %v5303
    %v5349 = vmul.f32 %v5137, %v5307
    %v5350 = vmul.f32 %v5138, %v5311
    %v5351 = vmul.f32 %v5139, %v5303
    %v5352 = vmul.f32 %v5140, %v5307
    %v5353 = vmul.f32 %v5141, %v5311
    %v5354 = vmul.f32 %v5142, %v5303
    %v5355 = vmul.f32 %v5143, %v5307
    %v5356 = vmul.f32 %v5144, %v5311
    %v5357 = vmul.f32 %v5145, %v5303
    %v5358 = vmul.f32 %v5146, %v5307
    %v5359 = vmul.f32 %v5147, %v5311
    %v5360 = vmul.f32 %v5148, %v5303
    %v5361 = vmul.f32 %v5149, %v5307
    %v5362 = vmul.f32 %v5150, %v5311
    %v5364 = vlaneseq
    %v5365 = vshrl.u32 %v5364, 7
    %v5366 = vsub.s32 0, %v5365
    %v5367 = vrot.slane %v4405, %v5366
    %v5368 = vlaneseq
    %v5369 = vshrl.u32 %v5368, 7
    %v5370 = vsub.s32 1, %v5369
    %v5371 = vrot.slane %v4405, %v5370
    %v5372 = vlaneseq
    %v5373 = vshrl.u32 %v5372, 7
    %v5374 = vsub.s32 2, %v5373
    %v5375 = vrot.slane %v4405, %v5374
    %v5379 = vadd.f32 %v5315, %v5367
    %v5380 = vadd.f32 %v5316, %v5371
    %v5381 = vadd.f32 %v5317, %v5375
    %v5382 = vadd.f32 %v5318, %v5367
    %v5383 = vadd.f32 %v5319, %v5371
    %v5384 = vadd.f32 %v5320, %v5375
    %v5385 = vadd.f32 %v5321, %v5367
    %v5386 = vadd.f32 %v5322, %v5371
    %v5387 = vadd.f32 %v5323, %v5375
    %v5388 = vadd.f32 %v5324, %v5367
    %v5389 = vadd.f32 %v5325, %v5371
    %v5390 = vadd.f32 %v5326, %v5375
    %v5391 = vadd.f32 %v5327, %v5367
    %v5392 = vadd.f32 %v5328, %v5371
    %v5393 = vadd.f32 %v5329, %v5375
    %v5394 = vadd.f32 %v5330, %v5367
    %v5395 = vadd.f32 %v5331, %v5371
    %v5396 = vadd.f32 %v5332, %v5375
    %v5397 = vadd.f32 %v5333, %v5367
    %v5398 = vadd.f32 %v5334, %v5371
    %v5399 = vadd.f32 %v5335, %v5375
    %v5400 = vadd.f32 %v5336, %v5367
    %v5401 = vadd.f32 %v5337, %v5371
    %v5402 = vadd.f32 %v5338, %v5375
    %v5403 = vadd.f32 %v5339, %v5367
    %v5404 = vadd.f32 %v5340, %v5371
    %v5405 = vadd.f32 %v5341, %v5375
    %v5406 = vadd.f32 %v5342, %v5367
    %v5407 = vadd.f32 %v5343, %v5371
    %v5408 = vadd.f32 %v5344, %v5375
    %v5409 = vadd.f32 %v5345, %v5367
    %v5410 = vadd.f32 %v5346, %v5371
    %v5411 = vadd.f32 %v5347, %v5375
    %v5412 = vadd.f32 %v5348, %v5367
    %v5413 = vadd.f32 %v5349, %v5371
    %v5414 = vadd.f32 %v5350, %v5375
    %v5415 = vadd.f32 %v5351, %v5367
    %v5416 = vadd.f32 %v5352, %v5371
    %v5417 = vadd.f32 %v5353, %v5375
    %v5418 = vadd.f32 %v5354, %v5367
    %v5419 = vadd.f32 %v5355, %v5371
    %v5420 = vadd.f32 %v5356, %v5375
    %v5421 = vadd.f32 %v5357, %v5367
    %v5422 = vadd.f32 %v5358, %v5371
    %v5423 = vadd.f32 %v5359, %v5375
    %v5424 = vadd.f32 %v5360, %v5367
    %v5425 = vadd.f32 %v5361, %v5371
    %v5426 = vadd.f32 %v5362, %v5375
    %v5427 = vpack.c.bf16 %v5382, %v5379
    %v5428 = vpack.c.bf16 %v5383, %v5380
    %v5429 = vpack.c.bf16 %v5384, %v5381
    %v5430 = vpack.c.bf16 %v5388, %v5385
    %v5431 = vpack.c.bf16 %v5389, %v5386
    %v5432 = vpack.c.bf16 %v5390, %v5387
    %v5433 = vpack.c.bf16 %v5394, %v5391
    %v5434 = vpack.c.bf16 %v5395, %v5392
    %v5435 = vpack.c.bf16 %v5396, %v5393
    %v5436 = vpack.c.bf16 %v5400, %v5397
    %v5437 = vpack.c.bf16 %v5401, %v5398
    %v5438 = vpack.c.bf16 %v5402, %v5399
    %v5439 = vpack.c.bf16 %v5406, %v5403
    %v5440 = vpack.c.bf16 %v5407, %v5404
    %v5441 = vpack.c.bf16 %v5408, %v5405
    %v5442 = vpack.c.bf16 %v5412, %v5409
    %v5443 = vpack.c.bf16 %v5413, %v5410
    %v5444 = vpack.c.bf16 %v5414, %v5411
    %v5445 = vpack.c.bf16 %v5418, %v5415
    %v5446 = vpack.c.bf16 %v5419, %v5416
    %v5447 = vpack.c.bf16 %v5420, %v5417
    %v5448 = vpack.c.bf16 %v5424, %v5421
    %v5449 = vpack.c.bf16 %v5425, %v5422
    %v5450 = vpack.c.bf16 %v5426, %v5423
    %s5451 = scalar_lea.vmem [#allocation14], 44
    %v5452 = vld [vmem:[%s5451] ss:$8 sm:$0x3]
    %s5453 = scalar_lea.vmem [#allocation14], 45
    %v5454 = vld [vmem:[%s5453] ss:$8 sm:$0x3]
    %s5455 = scalar_lea.vmem [#allocation14], 46
    %v5456 = vld [vmem:[%s5455] ss:$8 sm:$0x3]
    %s5457 = smul.u32 4, 48
    %s5458 = smul.u32 %s5457, 2
    %s5459 = sshll.u32 %s5458, 4
    %5460 = dma.done %s189, %s5459
    %v5461 = vld [vmem:[#allocation6] sm:$0xff]
    %v5462 = vld [vmem:[#allocation6 + $0x8] sm:$0xff]
    %v5463 = vld [vmem:[#allocation6 + $0x10] sm:$0xff]
    %v5464 = vld [vmem:[#allocation6 + $0x18] sm:$0xff]
    %v5465 = vld [vmem:[#allocation6 + $0x20] sm:$0xff]
    %v5466 = vld [vmem:[#allocation6 + $0x28] sm:$0xff]
    %v5467 = vld [vmem:[#allocation6 + $0x30] sm:$0xff]
    %v5468 = vld [vmem:[#allocation6 + $0x38] sm:$0xff]
    %v5469 = vld [vmem:[#allocation6 + $0x40] sm:$0xff]
    %v5470 = vld [vmem:[#allocation6 + $0x48] sm:$0xff]
    %v5471 = vld [vmem:[#allocation6 + $0x50] sm:$0xff]
    %v5472 = vld [vmem:[#allocation6 + $0x58] sm:$0xff]
    %v5473 = vld [vmem:[#allocation6 + $0x60] sm:$0xff]
    %v5474 = vld [vmem:[#allocation6 + $0x68] sm:$0xff]
    %v5475 = vld [vmem:[#allocation6 + $0x70] sm:$0xff]
    %v5476 = vld [vmem:[#allocation6 + $0x78] sm:$0xff]
    %v5477 = vld [vmem:[#allocation6 + $0x80] sm:$0xff]
    %v5478 = vld [vmem:[#allocation6 + $0x88] sm:$0xff]
    %v5479 = vld [vmem:[#allocation6 + $0x90] sm:$0xff]
    %v5480 = vld [vmem:[#allocation6 + $0x98] sm:$0xff]
    %v5481 = vld [vmem:[#allocation6 + $0xa0] sm:$0xff]
    %v5482 = vld [vmem:[#allocation6 + $0xa8] sm:$0xff]
    %v5483 = vld [vmem:[#allocation6 + $0xb0] sm:$0xff]
    %v5484 = vld [vmem:[#allocation6 + $0xb8] sm:$0xff]
    %v5485 = vld [vmem:[#allocation6 + $0xc0] sm:$0xff]
    %v5486 = vld [vmem:[#allocation6 + $0xc8] sm:$0xff]
    %v5487 = vld [vmem:[#allocation6 + $0xd0] sm:$0xff]
    %v5488 = vld [vmem:[#allocation6 + $0xd8] sm:$0xff]
    %v5489 = vld [vmem:[#allocation6 + $0xe0] sm:$0xff]
    %v5490 = vld [vmem:[#allocation6 + $0xe8] sm:$0xff]
    %v5491 = vld [vmem:[#allocation6 + $0xf0] sm:$0xff]
    %v5492 = vld [vmem:[#allocation6 + $0xf8] sm:$0xff]
    %v5493 = vld [vmem:[#allocation6 + $0x100] sm:$0xff]
    %v5494 = vld [vmem:[#allocation6 + $0x108] sm:$0xff]
    %v5495 = vld [vmem:[#allocation6 + $0x110] sm:$0xff]
    %v5496 = vld [vmem:[#allocation6 + $0x118] sm:$0xff]
    %v5497 = vld [vmem:[#allocation6 + $0x120] sm:$0xff]
    %v5498 = vld [vmem:[#allocation6 + $0x128] sm:$0xff]
    %v5499 = vld [vmem:[#allocation6 + $0x130] sm:$0xff]
    %v5500 = vld [vmem:[#allocation6 + $0x138] sm:$0xff]
    %v5501 = vld [vmem:[#allocation6 + $0x140] sm:$0xff]
    %v5502 = vld [vmem:[#allocation6 + $0x148] sm:$0xff]
    %v5503 = vld [vmem:[#allocation6 + $0x150] sm:$0xff]
    %v5504 = vld [vmem:[#allocation6 + $0x158] sm:$0xff]
    %v5505 = vld [vmem:[#allocation6 + $0x160] sm:$0xff]
    %v5506 = vld [vmem:[#allocation6 + $0x168] sm:$0xff]
    %v5507 = vld [vmem:[#allocation6 + $0x170] sm:$0xff]
    %v5508 = vld [vmem:[#allocation6 + $0x178] sm:$0xff]
    %v5510 = vlaneseq
    %v5511 = vshrl.u32 %v5510, 7
    %v5512 = vsub.s32 0, %v5511
    %v5513 = vrot.slane %v5452, %v5512
    %v5514 = vlaneseq
    %v5515 = vshrl.u32 %v5514, 7
    %v5516 = vsub.s32 1, %v5515
    %v5517 = vrot.slane %v5452, %v5516
    %5520 = vmatprep.subr.bf16.mxu0 %v5462
    %5521 = vmatpush1.bf16.msra.mxu0 %v5461
    %5522 = vmatprep.subr.bf16.mxu0 %v5464
    %5523 = vmatpush1.bf16.msra.mxu0 %v5463
    %5524 = vmatprep.subr.bf16.mxu0 %v5466
    %5525 = vmatpush1.bf16.msra.mxu0 %v5465
    %5526 = vmatprep.subr.bf16.mxu0 %v5468
    %5527 = vmatpush1.bf16.msra.mxu0 %v5467
    %5528 = vmatprep.subr.bf16.mxu0 %v5470
    %5529 = vmatpush1.bf16.msra.mxu0 %v5469
    %5530 = vmatprep.subr.bf16.mxu0 %v5472
    %5531 = vmatpush1.bf16.msra.mxu0 %v5471
    %5532 = vmatprep.subr.bf16.mxu0 %v5474
    %5533 = vmatpush1.bf16.msra.mxu0 %v5473
    %5534 = vmatprep.subr.bf16.mxu0 %v5476
    %5535 = vmatpush1.bf16.msra.mxu0 %v5475
    %5536 = vmatprep.subr.bf16.mxu0 %v5478
    %5537 = vmatpush1.bf16.msra.mxu0 %v5477
    %5538 = vmatprep.subr.bf16.mxu0 %v5480
    %5539 = vmatpush1.bf16.msra.mxu0 %v5479
    %5540 = vmatprep.subr.bf16.mxu0 %v5482
    %5541 = vmatpush1.bf16.msra.mxu0 %v5481
    %5542 = vmatprep.subr.bf16.mxu0 %v5484
    %5543 = vmatpush1.bf16.msra.mxu0 %v5483
    %5544 = vmatprep.subr.bf16.mxu0 %v5486
    %5545 = vmatpush1.bf16.msra.mxu0 %v5485
    %5546 = vmatprep.subr.bf16.mxu0 %v5488
    %5547 = vmatpush1.bf16.msra.mxu0 %v5487
    %5548 = vmatprep.subr.bf16.mxu0 %v5490
    %5549 = vmatpush1.bf16.msra.mxu0 %v5489
    %5550 = vmatprep.subr.bf16.mxu0 %v5492
    %5551 = vmatpush1.bf16.msra.mxu0 %v5491
    %5552 = vmatprep.mubr.bf16.mxu0 %v5428
    %5553 = vmatmul.mubr.bf16.gmra.mrb[0].mxu0 %v5427
    %v5554 = vpop.f32.mrb[0].mxu0
    %v5555 = vadd.f32 %v5513, %v5554
    %v5556 = vpop.f32.mrb[0].mxu0
    %v5557 = vadd.f32 %v5517, %v5556
    %v5558 = vpop.f32.mrb[0].mxu0
    %v5559 = vadd.f32 %v5513, %v5558
    %v5560 = vpop.f32.mrb[0].mxu0
    %v5561 = vadd.f32 %v5517, %v5560
    %5562 = vmatprep.mubr.bf16.mxu0 %v5431
    %5563 = vmatmul.mubr.bf16.gmra.mrb[0].mxu0 %v5430
    %v5564 = vpop.f32.mrb[0].mxu0
    %v5565 = vadd.f32 %v5513, %v5564
    %v5566 = vpop.f32.mrb[0].mxu0
    %v5567 = vadd.f32 %v5517, %v5566
    %v5568 = vpop.f32.mrb[0].mxu0
    %v5569 = vadd.f32 %v5513, %v5568
    %v5570 = vpop.f32.mrb[0].mxu0
    %v5571 = vadd.f32 %v5517, %v5570
    %5572 = vmatprep.mubr.bf16.mxu0 %v5434
    %5573 = vmatmul.mubr.bf16.gmra.mrb[0].mxu0 %v5433
    %v5574 = vpop.f32.mrb[0].mxu0
    %v5575 = vadd.f32 %v5513, %v5574
    %v5576 = vpop.f32.mrb[0].mxu0
    %v5577 = vadd.f32 %v5517, %v5576
    %v5578 = vpop.f32.mrb[0].mxu0
    %v5579 = vadd.f32 %v5513, %v5578
    %v5580 = vpop.f32.mrb[0].mxu0
    %v5581 = vadd.f32 %v5517, %v5580
    %5582 = vmatprep.mubr.bf16.mxu0 %v5437
    %5583 = vmatmul.mubr.bf16.gmra.mrb[0].mxu0 %v5436
    %v5584 = vpop.f32.mrb[0].mxu0
    %v5585 = vadd.f32 %v5513, %v5584
    %v5586 = vpop.f32.mrb[0].mxu0
    %v5587 = vadd.f32 %v5517, %v5586
    %v5588 = vpop.f32.mrb[0].mxu0
    %v5589 = vadd.f32 %v5513, %v5588
    %v5590 = vpop.f32.mrb[0].mxu0
    %v5591 = vadd.f32 %v5517, %v5590
    %5592 = vmatprep.mubr.bf16.mxu0 %v5440
    %5593 = vmatmul.mubr.bf16.gmra.mrb[0].mxu0 %v5439
    %v5594 = vpop.f32.mrb[0].mxu0
    %v5595 = vadd.f32 %v5513, %v5594
    %v5596 = vpop.f32.mrb[0].mxu0
    %v5597 = vadd.f32 %v5517, %v5596
    %v5598 = vpop.f32.mrb[0].mxu0
    %v5599 = vadd.f32 %v5513, %v5598
    %v5600 = vpop.f32.mrb[0].mxu0
    %v5601 = vadd.f32 %v5517, %v5600
    %5602 = vmatprep.mubr.bf16.mxu0 %v5443
    %5603 = vmatmul.mubr.bf16.gmra.mrb[0].mxu0 %v5442
    %v5604 = vpop.f32.mrb[0].mxu0
    %v5605 = vadd.f32 %v5513, %v5604
    %v5606 = vpop.f32.mrb[0].mxu0
    %v5607 = vadd.f32 %v5517, %v5606
    %v5608 = vpop.f32.mrb[0].mxu0
    %v5609 = vadd.f32 %v5513, %v5608
    %v5610 = vpop.f32.mrb[0].mxu0
    %v5611 = vadd.f32 %v5517, %v5610
    %5612 = vmatprep.mubr.bf16.mxu0 %v5446
    %5613 = vmatmul.mubr.bf16.gmra.mrb[0].mxu0 %v5445
    %v5614 = vpop.f32.mrb[0].mxu0
    %v5615 = vadd.f32 %v5513, %v5614
    %v5616 = vpop.f32.mrb[0].mxu0
    %v5617 = vadd.f32 %v5517, %v5616
    %v5618 = vpop.f32.mrb[0].mxu0
    %v5619 = vadd.f32 %v5513, %v5618
    %v5620 = vpop.f32.mrb[0].mxu0
    %v5621 = vadd.f32 %v5517, %v5620
    %5622 = vmatprep.mubr.bf16.mxu0 %v5449
    %5623 = vmatmul.mubr.bf16.gmra.mrb[0].mxu0 %v5448
    %v5624 = vpop.f32.mrb[0].mxu0
    %v5625 = vadd.f32 %v5513, %v5624
    %v5626 = vpop.f32.mrb[0].mxu0
    %v5627 = vadd.f32 %v5517, %v5626
    %v5628 = vpop.f32.mrb[0].mxu0
    %v5629 = vadd.f32 %v5513, %v5628
    %v5630 = vpop.f32.mrb[0].mxu0
    %v5631 = vadd.f32 %v5517, %v5630
    %5632 = vdwg.mxu0
    %5633 = vmatprep.subr.bf16.mxu0 %v5494
    %5634 = vmatpush1.bf16.msra.mxu0 %v5493
    %5635 = vmatprep.subr.bf16.mxu0 %v5496
    %5636 = vmatpush1.bf16.msra.mxu0 %v5495
    %5637 = vmatprep.subr.bf16.mxu0 %v5498
    %5638 = vmatpush1.bf16.msra.mxu0 %v5497
    %5639 = vmatprep.subr.bf16.mxu0 %v5500
    %5640 = vmatpush1.bf16.msra.mxu0 %v5499
    %5641 = vmatprep.subr.bf16.mxu0 %v5502
    %5642 = vmatpush1.bf16.msra.mxu0 %v5501
    %5643 = vmatprep.subr.bf16.mxu0 %v5504
    %5644 = vmatpush1.bf16.msra.mxu0 %v5503
    %5645 = vmatprep.subr.bf16.mxu0 %v5506
    %5646 = vmatpush1.bf16.msra.mxu0 %v5505
    %5647 = vmatprep.subr.bf16.mxu0 %v5508
    %5648 = vmatpush1.bf16.msra.mxu0 %v5507
    %5649 = vmatprep.subr.bf16.mxu0 0
    %5650 = vmatpush1.bf16.msra.mxu0 0
    %5651 = vmatprep.subr.bf16.mxu0 0
    %5652 = vmatpush1.bf16.msra.mxu0 0
    %5653 = vmatprep.subr.bf16.mxu0 0
    %5654 = vmatpush1.bf16.msra.mxu0 0
    %5655 = vmatprep.subr.bf16.mxu0 0
    %5656 = vmatpush1.bf16.msra.mxu0 0
    %5657 = vmatprep.subr.bf16.mxu0 0
    %5658 = vmatpush1.bf16.msra.mxu0 0
    %5659 = vmatprep.subr.bf16.mxu0 0
    %5660 = vmatpush1.bf16.msra.mxu0 0
    %5661 = vmatprep.subr.bf16.mxu0 0
    %5662 = vmatpush1.bf16.msra.mxu0 0
    %5663 = vmatprep.subr.bf16.mxu0 0
    %5664 = vmatpush1.bf16.msra.mxu0 0
    %5665 = vmatprep.mubr.bf16.mxu0 0
    %5666 = vmatmul.mubr.bf16.gmra.mrb[0].mxu0 %v5429
    %v5667 = vpop.f32.mrb[0].mxu0
    %v5668 = vadd.f32 %v5555, %v5667
    %v5669 = vpop.f32.mrb[0].mxu0
    %v5670 = vadd.f32 %v5557, %v5669
    %v5671 = vpop.f32.mrb[0].mxu0
    %v5672 = vadd.f32 %v5559, %v5671
    %v5673 = vpop.f32.mrb[0].mxu0
    %v5674 = vadd.f32 %v5561, %v5673
    %5675 = vmatprep.mubr.bf16.mxu0 0
    %5676 = vmatmul.mubr.bf16.gmra.mrb[0].mxu0 %v5432
    %v5677 = vpop.f32.mrb[0].mxu0
    %v5678 = vadd.f32 %v5565, %v5677
    %v5679 = vpop.f32.mrb[0].mxu0
    %v5680 = vadd.f32 %v5567, %v5679
    %v5681 = vpop.f32.mrb[0].mxu0
    %v5682 = vadd.f32 %v5569, %v5681
    %v5683 = vpop.f32.mrb[0].mxu0
    %v5684 = vadd.f32 %v5571, %v5683
    %5685 = vmatprep.mubr.bf16.mxu0 0
    %5686 = vmatmul.mubr.bf16.gmra.mrb[0].mxu0 %v5435
    %v5687 = vpop.f32.mrb[0].mxu0
    %v5688 = vadd.f32 %v5575, %v5687
    %v5689 = vpop.f32.mrb[0].mxu0
    %v5690 = vadd.f32 %v5577, %v5689
    %v5691 = vpop.f32.mrb[0].mxu0
    %v5692 = vadd.f32 %v5579, %v5691
    %v5693 = vpop.f32.mrb[0].mxu0
    %v5694 = vadd.f32 %v5581, %v5693
    %5695 = vmatprep.mubr.bf16.mxu0 0
    %5696 = vmatmul.mubr.bf16.gmra.mrb[0].mxu0 %v5438
    %v5697 = vpop.f32.mrb[0].mxu0
    %v5698 = vadd.f32 %v5585, %v5697
    %v5699 = vpop.f32.mrb[0].mxu0
    %v5700 = vadd.f32 %v5587, %v5699
    %v5701 = vpop.f32.mrb[0].mxu0
    %v5702 = vadd.f32 %v5589, %v5701
    %v5703 = vpop.f32.mrb[0].mxu0
    %v5704 = vadd.f32 %v5591, %v5703
    %5705 = vmatprep.mubr.bf16.mxu0 0
    %5706 = vmatmul.mubr.bf16.gmra.mrb[0].mxu0 %v5441
    %v5707 = vpop.f32.mrb[0].mxu0
    %v5708 = vadd.f32 %v5595, %v5707
    %v5709 = vpop.f32.mrb[0].mxu0
    %v5710 = vadd.f32 %v5597, %v5709
    %v5711 = vpop.f32.mrb[0].mxu0
    %v5712 = vadd.f32 %v5599, %v5711
    %v5713 = vpop.f32.mrb[0].mxu0
    %v5714 = vadd.f32 %v5601, %v5713
    %5715 = vmatprep.mubr.bf16.mxu0 0
    %5716 = vmatmul.mubr.bf16.gmra.mrb[0].mxu0 %v5444
    %v5717 = vpop.f32.mrb[0].mxu0
    %v5718 = vadd.f32 %v5605, %v5717
    %v5719 = vpop.f32.mrb[0].mxu0
    %v5720 = vadd.f32 %v5607, %v5719
    %v5721 = vpop.f32.mrb[0].mxu0
    %v5722 = vadd.f32 %v5609, %v5721
    %v5723 = vpop.f32.mrb[0].mxu0
    %v5724 = vadd.f32 %v5611, %v5723
    %5725 = vmatprep.mubr.bf16.mxu0 0
    %5726 = vmatmul.mubr.bf16.gmra.mrb[0].mxu0 %v5447
    %v5727 = vpop.f32.mrb[0].mxu0
    %v5728 = vadd.f32 %v5615, %v5727
    %v5729 = vpop.f32.mrb[0].mxu0
    %v5730 = vadd.f32 %v5617, %v5729
    %v5731 = vpop.f32.mrb[0].mxu0
    %v5732 = vadd.f32 %v5619, %v5731
    %v5733 = vpop.f32.mrb[0].mxu0
    %v5734 = vadd.f32 %v5621, %v5733
    %5735 = vmatprep.mubr.bf16.mxu0 0
    %5736 = vmatmul.mubr.bf16.gmra.mrb[0].mxu0 %v5450
    %v5737 = vpop.f32.mrb[0].mxu0
    %v5738 = vadd.f32 %v5625, %v5737
    %v5739 = vpop.f32.mrb[0].mxu0
    %v5740 = vadd.f32 %v5627, %v5739
    %v5741 = vpop.f32.mrb[0].mxu0
    %v5742 = vadd.f32 %v5629, %v5741
    %v5743 = vpop.f32.mrb[0].mxu0
    %v5744 = vadd.f32 %v5631, %v5743
    %5745 = vdwg.mxu0
    %v5746 = vmul.f32 %v5668, 0.01
    %v5747 = vmul.f32 %v5670, 0.01
    %v5748 = vmul.f32 %v5672, 0.01
    %v5749 = vmul.f32 %v5674, 0.01
    %v5750 = vmul.f32 %v5678, 0.01
    %v5751 = vmul.f32 %v5680, 0.01
    %v5752 = vmul.f32 %v5682, 0.01
    %v5753 = vmul.f32 %v5684, 0.01
    %v5754 = vmul.f32 %v5688, 0.01
    %v5755 = vmul.f32 %v5690, 0.01
    %v5756 = vmul.f32 %v5692, 0.01
    %v5757 = vmul.f32 %v5694, 0.01
    %v5758 = vmul.f32 %v5698, 0.01
    %v5759 = vmul.f32 %v5700, 0.01
    %v5760 = vmul.f32 %v5702, 0.01
    %v5761 = vmul.f32 %v5704, 0.01
    %v5762 = vmul.f32 %v5708, 0.01
    %v5763 = vmul.f32 %v5710, 0.01
    %v5764 = vmul.f32 %v5712, 0.01
    %v5765 = vmul.f32 %v5714, 0.01
    %v5766 = vmul.f32 %v5718, 0.01
    %v5767 = vmul.f32 %v5720, 0.01
    %v5768 = vmul.f32 %v5722, 0.01
    %v5769 = vmul.f32 %v5724, 0.01
    %v5770 = vmul.f32 %v5728, 0.01
    %v5771 = vmul.f32 %v5730, 0.01
    %v5772 = vmul.f32 %v5732, 0.01
    %v5773 = vmul.f32 %v5734, 0.01
    %v5774 = vmul.f32 %v5738, 0.01
    %v5775 = vmul.f32 %v5740, 0.01
    %v5776 = vmul.f32 %v5742, 0.01
    %v5777 = vmul.f32 %v5744, 0.01
    %v5778 = vmax.f32 %v5668, %v5746
    %v5779 = vmax.f32 %v5670, %v5747
    %v5780 = vmax.f32 %v5672, %v5748
    %v5781 = vmax.f32 %v5674, %v5749
    %v5782 = vmax.f32 %v5678, %v5750
    %v5783 = vmax.f32 %v5680, %v5751
    %v5784 = vmax.f32 %v5682, %v5752
    %v5785 = vmax.f32 %v5684, %v5753
    %v5786 = vmax.f32 %v5688, %v5754
    %v5787 = vmax.f32 %v5690, %v5755
    %v5788 = vmax.f32 %v5692, %v5756
    %v5789 = vmax.f32 %v5694, %v5757
    %v5790 = vmax.f32 %v5698, %v5758
    %v5791 = vmax.f32 %v5700, %v5759
    %v5792 = vmax.f32 %v5702, %v5760
    %v5793 = vmax.f32 %v5704, %v5761
    %v5794 = vmax.f32 %v5708, %v5762
    %v5795 = vmax.f32 %v5710, %v5763
    %v5796 = vmax.f32 %v5712, %v5764
    %v5797 = vmax.f32 %v5714, %v5765
    %v5798 = vmax.f32 %v5718, %v5766
    %v5799 = vmax.f32 %v5720, %v5767
    %v5800 = vmax.f32 %v5722, %v5768
    %v5801 = vmax.f32 %v5724, %v5769
    %v5802 = vmax.f32 %v5728, %v5770
    %v5803 = vmax.f32 %v5730, %v5771
    %v5804 = vmax.f32 %v5732, %v5772
    %v5805 = vmax.f32 %v5734, %v5773
    %v5806 = vmax.f32 %v5738, %v5774
    %v5807 = vmax.f32 %v5740, %v5775
    %v5808 = vmax.f32 %v5742, %v5776
    %v5809 = vmax.f32 %v5744, %v5777
    %v5810 = vadd.f32 %v5778, %v5780
    %v5811 = vadd.f32 %v5810, %v5782
    %v5812 = vadd.f32 %v5811, %v5784
    %v5813 = vadd.f32 %v5812, %v5786
    %v5814 = vadd.f32 %v5813, %v5788
    %v5815 = vadd.f32 %v5814, %v5790
    %v5816 = vadd.f32 %v5815, %v5792
    %v5817 = vadd.f32 %v5816, %v5794
    %v5818 = vadd.f32 %v5817, %v5796
    %v5819 = vadd.f32 %v5818, %v5798
    %v5820 = vadd.f32 %v5819, %v5800
    %v5821 = vadd.f32 %v5820, %v5802
    %v5822 = vadd.f32 %v5821, %v5804
    %v5823 = vadd.f32 %v5822, %v5806
    %v5824 = vadd.f32 %v5823, %v5808
    %v5825 = vrot.slane %v5824, 4
    %v5826 = vadd.f32 %v5824, %v5825
    %v5827 = vrot.slane %v5826, 2
    %v5828 = vadd.f32 %v5826, %v5827
    %v5829 = vrot.slane %v5828, 1
    %v5830 = vadd.f32 %v5828, %v5829
    %v5831 = vadd.f32 %v5779, %v5781
    %v5832 = vadd.f32 %v5831, %v5783
    %v5833 = vadd.f32 %v5832, %v5785
    %v5834 = vadd.f32 %v5833, %v5787
    %v5835 = vadd.f32 %v5834, %v5789
    %v5836 = vadd.f32 %v5835, %v5791
    %v5837 = vadd.f32 %v5836, %v5793
    %v5838 = vadd.f32 %v5837, %v5795
    %v5839 = vadd.f32 %v5838, %v5797
    %v5840 = vadd.f32 %v5839, %v5799
    %v5841 = vadd.f32 %v5840, %v5801
    %v5842 = vadd.f32 %v5841, %v5803
    %v5843 = vadd.f32 %v5842, %v5805
    %v5844 = vadd.f32 %v5843, %v5807
    %v5845 = vadd.f32 %v5844, %v5809
    %v5846 = vrot.slane %v5845, 4
    %v5847 = vadd.f32 %v5845, %v5846
    %v5848 = vrot.slane %v5847, 2
    %v5849 = vadd.f32 %v5847, %v5848
    %v5850 = vrot.slane %v5849, 1
    %v5851 = vadd.f32 %v5849, %v5850
    %v5852 = vmul.f32 %v5830, 0.0078125
    %v5853 = vmul.f32 %v5851, 0.0078125
    %v5854 = vsub.f32 %v5778, %v5852
    %v5855 = vsub.f32 %v5779, %v5853
    %v5856 = vsub.f32 %v5780, %v5852
    %v5857 = vsub.f32 %v5781, %v5853
    %v5858 = vsub.f32 %v5782, %v5852
    %v5859 = vsub.f32 %v5783, %v5853
    %v5860 = vsub.f32 %v5784, %v5852
    %v5861 = vsub.f32 %v5785, %v5853
    %v5862 = vsub.f32 %v5786, %v5852
    %v5863 = vsub.f32 %v5787, %v5853
    %v5864 = vsub.f32 %v5788, %v5852
    %v5865 = vsub.f32 %v5789, %v5853
    %v5866 = vsub.f32 %v5790, %v5852
    %v5867 = vsub.f32 %v5791, %v5853
    %v5868 = vsub.f32 %v5792, %v5852
    %v5869 = vsub.f32 %v5793, %v5853
    %v5870 = vsub.f32 %v5794, %v5852
    %v5871 = vsub.f32 %v5795, %v5853
    %v5872 = vsub.f32 %v5796, %v5852
    %v5873 = vsub.f32 %v5797, %v5853
    %v5874 = vsub.f32 %v5798, %v5852
    %v5875 = vsub.f32 %v5799, %v5853
    %v5876 = vsub.f32 %v5800, %v5852
    %v5877 = vsub.f32 %v5801, %v5853
    %v5878 = vsub.f32 %v5802, %v5852
    %v5879 = vsub.f32 %v5803, %v5853
    %v5880 = vsub.f32 %v5804, %v5852
    %v5881 = vsub.f32 %v5805, %v5853
    %v5882 = vsub.f32 %v5806, %v5852
    %v5883 = vsub.f32 %v5807, %v5853
    %v5884 = vsub.f32 %v5808, %v5852
    %v5885 = vsub.f32 %v5809, %v5853
    %v5886 = vmul.f32 %v5854, %v5854
    %v5887 = vmul.f32 %v5855, %v5855
    %v5888 = vmul.f32 %v5856, %v5856
    %v5889 = vmul.f32 %v5857, %v5857
    %v5890 = vmul.f32 %v5858, %v5858
    %v5891 = vmul.f32 %v5859, %v5859
    %v5892 = vmul.f32 %v5860, %v5860
    %v5893 = vmul.f32 %v5861, %v5861
    %v5894 = vmul.f32 %v5862, %v5862
    %v5895 = vmul.f32 %v5863, %v5863
    %v5896 = vmul.f32 %v5864, %v5864
    %v5897 = vmul.f32 %v5865, %v5865
    %v5898 = vmul.f32 %v5866, %v5866
    %v5899 = vmul.f32 %v5867, %v5867
    %v5900 = vmul.f32 %v5868, %v5868
    %v5901 = vmul.f32 %v5869, %v5869
    %v5902 = vmul.f32 %v5870, %v5870
    %v5903 = vmul.f32 %v5871, %v5871
    %v5904 = vmul.f32 %v5872, %v5872
    %v5905 = vmul.f32 %v5873, %v5873
    %v5906 = vmul.f32 %v5874, %v5874
    %v5907 = vmul.f32 %v5875, %v5875
    %v5908 = vmul.f32 %v5876, %v5876
    %v5909 = vmul.f32 %v5877, %v5877
    %v5910 = vmul.f32 %v5878, %v5878
    %v5911 = vmul.f32 %v5879, %v5879
    %v5912 = vmul.f32 %v5880, %v5880
    %v5913 = vmul.f32 %v5881, %v5881
    %v5914 = vmul.f32 %v5882, %v5882
    %v5915 = vmul.f32 %v5883, %v5883
    %v5916 = vmul.f32 %v5884, %v5884
    %v5917 = vmul.f32 %v5885, %v5885
    %v5918 = vadd.f32 %v5886, %v5888
    %v5919 = vadd.f32 %v5918, %v5890
    %v5920 = vadd.f32 %v5919, %v5892
    %v5921 = vadd.f32 %v5920, %v5894
    %v5922 = vadd.f32 %v5921, %v5896
    %v5923 = vadd.f32 %v5922, %v5898
    %v5924 = vadd.f32 %v5923, %v5900
    %v5925 = vadd.f32 %v5924, %v5902
    %v5926 = vadd.f32 %v5925, %v5904
    %v5927 = vadd.f32 %v5926, %v5906
    %v5928 = vadd.f32 %v5927, %v5908
    %v5929 = vadd.f32 %v5928, %v5910
    %v5930 = vadd.f32 %v5929, %v5912
    %v5931 = vadd.f32 %v5930, %v5914
    %v5932 = vadd.f32 %v5931, %v5916
    %v5933 = vrot.slane %v5932, 4
    %v5934 = vadd.f32 %v5932, %v5933
    %v5935 = vrot.slane %v5934, 2
    %v5936 = vadd.f32 %v5934, %v5935
    %v5937 = vrot.slane %v5936, 1
    %v5938 = vadd.f32 %v5936, %v5937
    %v5939 = vadd.f32 %v5887, %v5889
    %v5940 = vadd.f32 %v5939, %v5891
    %v5941 = vadd.f32 %v5940, %v5893
    %v5942 = vadd.f32 %v5941, %v5895
    %v5943 = vadd.f32 %v5942, %v5897
    %v5944 = vadd.f32 %v5943, %v5899
    %v5945 = vadd.f32 %v5944, %v5901
    %v5946 = vadd.f32 %v5945, %v5903
    %v5947 = vadd.f32 %v5946, %v5905
    %v5948 = vadd.f32 %v5947, %v5907
    %v5949 = vadd.f32 %v5948, %v5909
    %v5950 = vadd.f32 %v5949, %v5911
    %v5951 = vadd.f32 %v5950, %v5913
    %v5952 = vadd.f32 %v5951, %v5915
    %v5953 = vadd.f32 %v5952, %v5917
    %v5954 = vrot.slane %v5953, 4
    %v5955 = vadd.f32 %v5953, %v5954
    %v5956 = vrot.slane %v5955, 2
    %v5957 = vadd.f32 %v5955, %v5956
    %v5958 = vrot.slane %v5957, 1
    %v5959 = vadd.f32 %v5957, %v5958
    %v5960 = vmul.f32 %v5938, 0.0078125
    %v5961 = vmul.f32 %v5959, 0.0078125
    %v5962 = vadd.f32 %v5960, 1e-05
    %v5963 = vadd.f32 %v5961, 1e-05
    %v5964 = vrsqrt.pop %v5962
    %v5965 = vrsqrt.pop %v5963
    %v5968 = vcombine.low %v5964, %v5965
    %v5970 = vunpack.c.l.s4 1966171168
    %v5971 = vunpack.c.0.s8 %v5970
    %v5972 = vlaneseq
    %v5973 = vshrl.u32 %v5972, 7
    %v5974 = vsub.s32 %v5971, %v5973
    %v5975 = vrot.slane %v5968, %v5974
    %v5977 = vunpack.c.l.s4 1966171168
    %v5978 = vunpack.c.0.s8 %v5977
    %v5979 = vlaneseq
    %v5980 = vshrl.u32 %v5979, 7
    %v5981 = vsub.s32 %v5978, %v5980
    %v5982 = vrot.slane %v5975, %v5981
    %v5984 = vmul.f32 %v5454, %v5982
    %v5986 = vlaneseq
    %v5987 = vshrl.u32 %v5986, 7
    %v5988 = vsub.s32 0, %v5987
    %v5989 = vrot.slane %v5984, %v5988
    %v5990 = vlaneseq
    %v5991 = vshrl.u32 %v5990, 7
    %v5992 = vsub.s32 1, %v5991
    %v5993 = vrot.slane %v5984, %v5992
    %v5996 = vmul.f32 %v5854, %v5989
    %v5997 = vmul.f32 %v5855, %v5993
    %v5998 = vmul.f32 %v5856, %v5989
    %v5999 = vmul.f32 %v5857, %v5993
    %v6000 = vmul.f32 %v5858, %v5989
    %v6001 = vmul.f32 %v5859, %v5993
    %v6002 = vmul.f32 %v5860, %v5989
    %v6003 = vmul.f32 %v5861, %v5993
    %v6004 = vmul.f32 %v5862, %v5989
    %v6005 = vmul.f32 %v5863, %v5993
    %v6006 = vmul.f32 %v5864, %v5989
    %v6007 = vmul.f32 %v5865, %v5993
    %v6008 = vmul.f32 %v5866, %v5989
    %v6009 = vmul.f32 %v5867, %v5993
    %v6010 = vmul.f32 %v5868, %v5989
    %v6011 = vmul.f32 %v5869, %v5993
    %v6012 = vmul.f32 %v5870, %v5989
    %v6013 = vmul.f32 %v5871, %v5993
    %v6014 = vmul.f32 %v5872, %v5989
    %v6015 = vmul.f32 %v5873, %v5993
    %v6016 = vmul.f32 %v5874, %v5989
    %v6017 = vmul.f32 %v5875, %v5993
    %v6018 = vmul.f32 %v5876, %v5989
    %v6019 = vmul.f32 %v5877, %v5993
    %v6020 = vmul.f32 %v5878, %v5989
    %v6021 = vmul.f32 %v5879, %v5993
    %v6022 = vmul.f32 %v5880, %v5989
    %v6023 = vmul.f32 %v5881, %v5993
    %v6024 = vmul.f32 %v5882, %v5989
    %v6025 = vmul.f32 %v5883, %v5993
    %v6026 = vmul.f32 %v5884, %v5989
    %v6027 = vmul.f32 %v5885, %v5993
    %v6029 = vlaneseq
    %v6030 = vshrl.u32 %v6029, 7
    %v6031 = vsub.s32 0, %v6030
    %v6032 = vrot.slane %v5456, %v6031
    %v6033 = vlaneseq
    %v6034 = vshrl.u32 %v6033, 7
    %v6035 = vsub.s32 1, %v6034
    %v6036 = vrot.slane %v5456, %v6035
    %v6039 = vadd.f32 %v5996, %v6032
    %v6040 = vadd.f32 %v5997, %v6036
    %v6041 = vadd.f32 %v5998, %v6032
    %v6042 = vadd.f32 %v5999, %v6036
    %v6043 = vadd.f32 %v6000, %v6032
    %v6044 = vadd.f32 %v6001, %v6036
    %v6045 = vadd.f32 %v6002, %v6032
    %v6046 = vadd.f32 %v6003, %v6036
    %v6047 = vadd.f32 %v6004, %v6032
    %v6048 = vadd.f32 %v6005, %v6036
    %v6049 = vadd.f32 %v6006, %v6032
    %v6050 = vadd.f32 %v6007, %v6036
    %v6051 = vadd.f32 %v6008, %v6032
    %v6052 = vadd.f32 %v6009, %v6036
    %v6053 = vadd.f32 %v6010, %v6032
    %v6054 = vadd.f32 %v6011, %v6036
    %v6055 = vadd.f32 %v6012, %v6032
    %v6056 = vadd.f32 %v6013, %v6036
    %v6057 = vadd.f32 %v6014, %v6032
    %v6058 = vadd.f32 %v6015, %v6036
    %v6059 = vadd.f32 %v6016, %v6032
    %v6060 = vadd.f32 %v6017, %v6036
    %v6061 = vadd.f32 %v6018, %v6032
    %v6062 = vadd.f32 %v6019, %v6036
    %v6063 = vadd.f32 %v6020, %v6032
    %v6064 = vadd.f32 %v6021, %v6036
    %v6065 = vadd.f32 %v6022, %v6032
    %v6066 = vadd.f32 %v6023, %v6036
    %v6067 = vadd.f32 %v6024, %v6032
    %v6068 = vadd.f32 %v6025, %v6036
    %v6069 = vadd.f32 %v6026, %v6032
    %v6070 = vadd.f32 %v6027, %v6036
    %v6071 = vpack.c.bf16 %v6041, %v6039
    %v6072 = vpack.c.bf16 %v6042, %v6040
    %v6073 = vpack.c.bf16 %v6045, %v6043
    %v6074 = vpack.c.bf16 %v6046, %v6044
    %v6075 = vpack.c.bf16 %v6049, %v6047
    %v6076 = vpack.c.bf16 %v6050, %v6048
    %v6077 = vpack.c.bf16 %v6053, %v6051
    %v6078 = vpack.c.bf16 %v6054, %v6052
    %v6079 = vpack.c.bf16 %v6057, %v6055
    %v6080 = vpack.c.bf16 %v6058, %v6056
    %v6081 = vpack.c.bf16 %v6061, %v6059
    %v6082 = vpack.c.bf16 %v6062, %v6060
    %v6083 = vpack.c.bf16 %v6065, %v6063
    %v6084 = vpack.c.bf16 %v6066, %v6064
    %v6085 = vpack.c.bf16 %v6069, %v6067
    %v6086 = vpack.c.bf16 %v6070, %v6068
    %v6087 = vld [vmem:[#allocation14 + $0x2f] ss:$0 sm:$0xff]
    %v6088 = vld [vmem:[#allocation14 + $0x50] ss:$0 sm:$0xff]
    %v6089 = vld [vmem:[#allocation14 + $0x51] ss:$0 sm:$0xff]
    %s6090 = smul.u32 4, 32
    %s6091 = smul.u32 %s6090, 1
    %s6092 = sshll.u32 %s6091, 4
    %6093 = dma.done %s224, %s6092
    %v6094 = vld [vmem:[#allocation7] sm:$0xff]
    %v6095 = vld [vmem:[#allocation7 + $0x8] sm:$0xff]
    %v6096 = vld [vmem:[#allocation7 + $0x10] sm:$0xff]
    %v6097 = vld [vmem:[#allocation7 + $0x18] sm:$0xff]
    %v6098 = vld [vmem:[#allocation7 + $0x20] sm:$0xff]
    %v6099 = vld [vmem:[#allocation7 + $0x28] sm:$0xff]
    %v6100 = vld [vmem:[#allocation7 + $0x30] sm:$0xff]
    %v6101 = vld [vmem:[#allocation7 + $0x38] sm:$0xff]
    %v6102 = vld [vmem:[#allocation7 + $0x40] sm:$0xff]
    %v6103 = vld [vmem:[#allocation7 + $0x48] sm:$0xff]
    %v6104 = vld [vmem:[#allocation7 + $0x50] sm:$0xff]
    %v6105 = vld [vmem:[#allocation7 + $0x58] sm:$0xff]
    %v6106 = vld [vmem:[#allocation7 + $0x60] sm:$0xff]
    %v6107 = vld [vmem:[#allocation7 + $0x68] sm:$0xff]
    %v6108 = vld [vmem:[#allocation7 + $0x70] sm:$0xff]
    %v6109 = vld [vmem:[#allocation7 + $0x78] sm:$0xff]
    %6110 = vmatprep.subr.bf16.mxu0 0
    %6111 = vmatpush1.bf16.msra.mxu0 %v6094
    %6112 = vmatprep.subr.bf16.mxu0 0
    %6113 = vmatpush1.bf16.msra.mxu0 %v6095
    %6114 = vmatprep.subr.bf16.mxu0 0
    %6115 = vmatpush1.bf16.msra.mxu0 %v6096
    %6116 = vmatprep.subr.bf16.mxu0 0
    %6117 = vmatpush1.bf16.msra.mxu0 %v6097
    %6118 = vmatprep.subr.bf16.mxu0 0
    %6119 = vmatpush1.bf16.msra.mxu0 %v6098
    %6120 = vmatprep.subr.bf16.mxu0 0
    %6121 = vmatpush1.bf16.msra.mxu0 %v6099
    %6122 = vmatprep.subr.bf16.mxu0 0
    %6123 = vmatpush1.bf16.msra.mxu0 %v6100
    %6124 = vmatprep.subr.bf16.mxu0 0
    %6125 = vmatpush1.bf16.msra.mxu0 %v6101
    %6126 = vmatprep.subr.bf16.mxu0 0
    %6127 = vmatpush1.bf16.msra.mxu0 %v6102
    %6128 = vmatprep.subr.bf16.mxu0 0
    %6129 = vmatpush1.bf16.msra.mxu0 %v6103
    %6130 = vmatprep.subr.bf16.mxu0 0
    %6131 = vmatpush1.bf16.msra.mxu0 %v6104
    %6132 = vmatprep.subr.bf16.mxu0 0
    %6133 = vmatpush1.bf16.msra.mxu0 %v6105
    %6134 = vmatprep.subr.bf16.mxu0 0
    %6135 = vmatpush1.bf16.msra.mxu0 %v6106
    %6136 = vmatprep.subr.bf16.mxu0 0
    %6137 = vmatpush1.bf16.msra.mxu0 %v6107
    %6138 = vmatprep.subr.bf16.mxu0 0
    %6139 = vmatpush1.bf16.msra.mxu0 %v6108
    %6140 = vmatprep.subr.bf16.mxu0 0
    %6141 = vmatpush1.bf16.msra.mxu0 %v6109
    %6142 = vmatprep.mubr.bf16.mxu0 %v6072
    %6143 = vmatmul.mubr.bf16.gmra.mrb[0].mxu0 %v6071
    %v6144 = vpop.f32.mrb[0].mxu0
    %v6145 = vadd.f32 %v6087, %v6144
    %v6146 = vpop.f32.mrb[0].mxu0
    %v6147 = vpop.f32.mrb[0].mxu0
    %v6148 = vadd.f32 %v6087, %v6147
    %v6149 = vpop.f32.mrb[0].mxu0
    %6150 = vmatprep.mubr.bf16.mxu0 %v6074
    %6151 = vmatmul.mubr.bf16.gmra.mrb[0].mxu0 %v6073
    %v6152 = vpop.f32.mrb[0].mxu0
    %v6153 = vadd.f32 %v6087, %v6152
    %v6154 = vpop.f32.mrb[0].mxu0
    %v6155 = vpop.f32.mrb[0].mxu0
    %v6156 = vadd.f32 %v6087, %v6155
    %v6157 = vpop.f32.mrb[0].mxu0
    %6158 = vmatprep.mubr.bf16.mxu0 %v6076
    %6159 = vmatmul.mubr.bf16.gmra.mrb[0].mxu0 %v6075
    %v6160 = vpop.f32.mrb[0].mxu0
    %v6161 = vadd.f32 %v6087, %v6160
    %v6162 = vpop.f32.mrb[0].mxu0
    %v6163 = vpop.f32.mrb[0].mxu0
    %v6164 = vadd.f32 %v6087, %v6163
    %v6165 = vpop.f32.mrb[0].mxu0
    %6166 = vmatprep.mubr.bf16.mxu0 %v6078
    %6167 = vmatmul.mubr.bf16.gmra.mrb[0].mxu0 %v6077
    %v6168 = vpop.f32.mrb[0].mxu0
    %v6169 = vadd.f32 %v6087, %v6168
    %v6170 = vpop.f32.mrb[0].mxu0
    %v6171 = vpop.f32.mrb[0].mxu0
    %v6172 = vadd.f32 %v6087, %v6171
    %v6173 = vpop.f32.mrb[0].mxu0
    %6174 = vmatprep.mubr.bf16.mxu0 %v6080
    %6175 = vmatmul.mubr.bf16.gmra.mrb[0].mxu0 %v6079
    %v6176 = vpop.f32.mrb[0].mxu0
    %v6177 = vadd.f32 %v6087, %v6176
    %v6178 = vpop.f32.mrb[0].mxu0
    %v6179 = vpop.f32.mrb[0].mxu0
    %v6180 = vadd.f32 %v6087, %v6179
    %v6181 = vpop.f32.mrb[0].mxu0
    %6182 = vmatprep.mubr.bf16.mxu0 %v6082
    %6183 = vmatmul.mubr.bf16.gmra.mrb[0].mxu0 %v6081
    %v6184 = vpop.f32.mrb[0].mxu0
    %v6185 = vadd.f32 %v6087, %v6184
    %v6186 = vpop.f32.mrb[0].mxu0
    %v6187 = vpop.f32.mrb[0].mxu0
    %v6188 = vadd.f32 %v6087, %v6187
    %v6189 = vpop.f32.mrb[0].mxu0
    %6190 = vmatprep.mubr.bf16.mxu0 %v6084
    %6191 = vmatmul.mubr.bf16.gmra.mrb[0].mxu0 %v6083
    %v6192 = vpop.f32.mrb[0].mxu0
    %v6193 = vadd.f32 %v6087, %v6192
    %v6194 = vpop.f32.mrb[0].mxu0
    %v6195 = vpop.f32.mrb[0].mxu0
    %v6196 = vadd.f32 %v6087, %v6195
    %v6197 = vpop.f32.mrb[0].mxu0
    %6198 = vmatprep.mubr.bf16.mxu0 %v6086
    %6199 = vmatmul.mubr.bf16.gmra.mrb[0].mxu0 %v6085
    %v6200 = vpop.f32.mrb[0].mxu0
    %v6201 = vadd.f32 %v6087, %v6200
    %v6202 = vpop.f32.mrb[0].mxu0
    %v6203 = vpop.f32.mrb[0].mxu0
    %v6204 = vadd.f32 %v6087, %v6203
    %v6205 = vpop.f32.mrb[0].mxu0
    %6206 = vdwg.mxu0
    %v6207 = vmul.f32 %v6145, 0.01
    %v6208 = vmul.f32 %v6148, 0.01
    %v6209 = vmul.f32 %v6153, 0.01
    %v6210 = vmul.f32 %v6156, 0.01
    %v6211 = vmul.f32 %v6161, 0.01
    %v6212 = vmul.f32 %v6164, 0.01
    %v6213 = vmul.f32 %v6169, 0.01
    %v6214 = vmul.f32 %v6172, 0.01
    %v6215 = vmul.f32 %v6177, 0.01
    %v6216 = vmul.f32 %v6180, 0.01
    %v6217 = vmul.f32 %v6185, 0.01
    %v6218 = vmul.f32 %v6188, 0.01
    %v6219 = vmul.f32 %v6193, 0.01
    %v6220 = vmul.f32 %v6196, 0.01
    %v6221 = vmul.f32 %v6201, 0.01
    %v6222 = vmul.f32 %v6204, 0.01
    %v6223 = vmax.f32 %v6145, %v6207
    %v6224 = vmax.f32 %v6148, %v6208
    %v6225 = vmax.f32 %v6153, %v6209
    %v6226 = vmax.f32 %v6156, %v6210
    %v6227 = vmax.f32 %v6161, %v6211
    %v6228 = vmax.f32 %v6164, %v6212
    %v6229 = vmax.f32 %v6169, %v6213
    %v6230 = vmax.f32 %v6172, %v6214
    %v6231 = vmax.f32 %v6177, %v6215
    %v6232 = vmax.f32 %v6180, %v6216
    %v6233 = vmax.f32 %v6185, %v6217
    %v6234 = vmax.f32 %v6188, %v6218
    %v6235 = vmax.f32 %v6193, %v6219
    %v6236 = vmax.f32 %v6196, %v6220
    %v6237 = vmax.f32 %v6201, %v6221
    %v6238 = vmax.f32 %v6204, %v6222
    %v6239 = vadd.f32 %v6223, %v6224
    %v6240 = vadd.f32 %v6239, %v6225
    %v6241 = vadd.f32 %v6240, %v6226
    %v6242 = vadd.f32 %v6241, %v6227
    %v6243 = vadd.f32 %v6242, %v6228
    %v6244 = vadd.f32 %v6243, %v6229
    %v6245 = vadd.f32 %v6244, %v6230
    %v6246 = vadd.f32 %v6245, %v6231
    %v6247 = vadd.f32 %v6246, %v6232
    %v6248 = vadd.f32 %v6247, %v6233
    %v6249 = vadd.f32 %v6248, %v6234
    %v6250 = vadd.f32 %v6249, %v6235
    %v6251 = vadd.f32 %v6250, %v6236
    %v6252 = vadd.f32 %v6251, %v6237
    %v6253 = vadd.f32 %v6252, %v6238
    %v6254 = vrot.slane %v6253, 4
    %v6255 = vadd.f32 %v6253, %v6254
    %v6256 = vrot.slane %v6255, 2
    %v6257 = vadd.f32 %v6255, %v6256
    %v6258 = vrot.slane %v6257, 1
    %v6259 = vadd.f32 %v6257, %v6258
    %v6260 = vmul.f32 %v6259, 0.0078125
    %v6261 = vsub.f32 %v6223, %v6260
    %v6262 = vsub.f32 %v6224, %v6260
    %v6263 = vsub.f32 %v6225, %v6260
    %v6264 = vsub.f32 %v6226, %v6260
    %v6265 = vsub.f32 %v6227, %v6260
    %v6266 = vsub.f32 %v6228, %v6260
    %v6267 = vsub.f32 %v6229, %v6260
    %v6268 = vsub.f32 %v6230, %v6260
    %v6269 = vsub.f32 %v6231, %v6260
    %v6270 = vsub.f32 %v6232, %v6260
    %v6271 = vsub.f32 %v6233, %v6260
    %v6272 = vsub.f32 %v6234, %v6260
    %v6273 = vsub.f32 %v6235, %v6260
    %v6274 = vsub.f32 %v6236, %v6260
    %v6275 = vsub.f32 %v6237, %v6260
    %v6276 = vsub.f32 %v6238, %v6260
    %v6277 = vmul.f32 %v6261, %v6261
    %v6278 = vmul.f32 %v6262, %v6262
    %v6279 = vmul.f32 %v6263, %v6263
    %v6280 = vmul.f32 %v6264, %v6264
    %v6281 = vmul.f32 %v6265, %v6265
    %v6282 = vmul.f32 %v6266, %v6266
    %v6283 = vmul.f32 %v6267, %v6267
    %v6284 = vmul.f32 %v6268, %v6268
    %v6285 = vmul.f32 %v6269, %v6269
    %v6286 = vmul.f32 %v6270, %v6270
    %v6287 = vmul.f32 %v6271, %v6271
    %v6288 = vmul.f32 %v6272, %v6272
    %v6289 = vmul.f32 %v6273, %v6273
    %v6290 = vmul.f32 %v6274, %v6274
    %v6291 = vmul.f32 %v6275, %v6275
    %v6292 = vmul.f32 %v6276, %v6276
    %v6293 = vadd.f32 %v6277, %v6278
    %v6294 = vadd.f32 %v6293, %v6279
    %v6295 = vadd.f32 %v6294, %v6280
    %v6296 = vadd.f32 %v6295, %v6281
    %v6297 = vadd.f32 %v6296, %v6282
    %v6298 = vadd.f32 %v6297, %v6283
    %v6299 = vadd.f32 %v6298, %v6284
    %v6300 = vadd.f32 %v6299, %v6285
    %v6301 = vadd.f32 %v6300, %v6286
    %v6302 = vadd.f32 %v6301, %v6287
    %v6303 = vadd.f32 %v6302, %v6288
    %v6304 = vadd.f32 %v6303, %v6289
    %v6305 = vadd.f32 %v6304, %v6290
    %v6306 = vadd.f32 %v6305, %v6291
    %v6307 = vadd.f32 %v6306, %v6292
    %v6308 = vrot.slane %v6307, 4
    %v6309 = vadd.f32 %v6307, %v6308
    %v6310 = vrot.slane %v6309, 2
    %v6311 = vadd.f32 %v6309, %v6310
    %v6312 = vrot.slane %v6311, 1
    %v6313 = vadd.f32 %v6311, %v6312
    %v6314 = vmul.f32 %v6313, 0.0078125
    %v6315 = vadd.f32 %v6314, 1e-05
    %v6316 = vrsqrt.pop %v6315
    %v6317 = vmul.f32 %v6088, %v6316
    %v6318 = vmul.f32 %v6261, %v6317
    %v6319 = vmul.f32 %v6262, %v6317
    %v6320 = vmul.f32 %v6263, %v6317
    %v6321 = vmul.f32 %v6264, %v6317
    %v6322 = vmul.f32 %v6265, %v6317
    %v6323 = vmul.f32 %v6266, %v6317
    %v6324 = vmul.f32 %v6267, %v6317
    %v6325 = vmul.f32 %v6268, %v6317
    %v6326 = vmul.f32 %v6269, %v6317
    %v6327 = vmul.f32 %v6270, %v6317
    %v6328 = vmul.f32 %v6271, %v6317
    %v6329 = vmul.f32 %v6272, %v6317
    %v6330 = vmul.f32 %v6273, %v6317
    %v6331 = vmul.f32 %v6274, %v6317
    %v6332 = vmul.f32 %v6275, %v6317
    %v6333 = vmul.f32 %v6276, %v6317
    %v6334 = vadd.f32 %v6318, %v6089
    %v6335 = vadd.f32 %v6319, %v6089
    %v6336 = vadd.f32 %v6320, %v6089
    %v6337 = vadd.f32 %v6321, %v6089
    %v6338 = vadd.f32 %v6322, %v6089
    %v6339 = vadd.f32 %v6323, %v6089
    %v6340 = vadd.f32 %v6324, %v6089
    %v6341 = vadd.f32 %v6325, %v6089
    %v6342 = vadd.f32 %v6326, %v6089
    %v6343 = vadd.f32 %v6327, %v6089
    %v6344 = vadd.f32 %v6328, %v6089
    %v6345 = vadd.f32 %v6329, %v6089
    %v6346 = vadd.f32 %v6330, %v6089
    %v6347 = vadd.f32 %v6331, %v6089
    %v6348 = vadd.f32 %v6332, %v6089
    %v6349 = vadd.f32 %v6333, %v6089
    %v6350 = vpack.c.bf16 %v6335, %v6334
    %v6351 = vpack.c.bf16 %v6337, %v6336
    %v6352 = vpack.c.bf16 %v6339, %v6338
    %v6353 = vpack.c.bf16 %v6341, %v6340
    %v6354 = vpack.c.bf16 %v6343, %v6342
    %v6355 = vpack.c.bf16 %v6345, %v6344
    %v6356 = vpack.c.bf16 %v6347, %v6346
    %v6357 = vpack.c.bf16 %v6349, %v6348
    %v6358 = vld [vmem:[#allocation14 + $0x52] ss:$0 sm:$0xff]
    %v6359 = vld [vmem:[#allocation14 + $0x53] ss:$0 sm:$0xff]
    %v6360 = vld [vmem:[#allocation14 + $0x54] ss:$0 sm:$0xff]
    %s6361 = smul.u32 %s287, 1
    %s6362 = sshll.u32 %s6361, 4
    %6363 = dma.done %s236, %s6362
    %v6364 = vld [vmem:[#allocation8] sm:$0xff]
    %v6365 = vld [vmem:[#allocation8 + $0x8] sm:$0xff]
    %v6366 = vld [vmem:[#allocation8 + $0x10] sm:$0xff]
    %v6367 = vld [vmem:[#allocation8 + $0x18] sm:$0xff]
    %v6368 = vld [vmem:[#allocation8 + $0x20] sm:$0xff]
    %v6369 = vld [vmem:[#allocation8 + $0x28] sm:$0xff]
    %v6370 = vld [vmem:[#allocation8 + $0x30] sm:$0xff]
    %v6371 = vld [vmem:[#allocation8 + $0x38] sm:$0xff]
    %6372 = vmatprep.subr.bf16.mxu0 0
    %6373 = vmatpush1.bf16.msra.mxu0 %v6364
    %6374 = vmatprep.subr.bf16.mxu0 0
    %6375 = vmatpush1.bf16.msra.mxu0 %v6365
    %6376 = vmatprep.subr.bf16.mxu0 0
    %6377 = vmatpush1.bf16.msra.mxu0 %v6366
    %6378 = vmatprep.subr.bf16.mxu0 0
    %6379 = vmatpush1.bf16.msra.mxu0 %v6367
    %6380 = vmatprep.subr.bf16.mxu0 0
    %6381 = vmatpush1.bf16.msra.mxu0 %v6368
    %6382 = vmatprep.subr.bf16.mxu0 0
    %6383 = vmatpush1.bf16.msra.mxu0 %v6369
    %6384 = vmatprep.subr.bf16.mxu0 0
    %6385 = vmatpush1.bf16.msra.mxu0 %v6370
    %6386 = vmatprep.subr.bf16.mxu0 0
    %6387 = vmatpush1.bf16.msra.mxu0 %v6371
    %6388 = vmatprep.subr.bf16.mxu0 0
    %6389 = vmatpush1.bf16.msra.mxu0 0
    %6390 = vmatprep.subr.bf16.mxu0 0
    %6391 = vmatpush1.bf16.msra.mxu0 0
    %6392 = vmatprep.subr.bf16.mxu0 0
    %6393 = vmatpush1.bf16.msra.mxu0 0
    %6394 = vmatprep.subr.bf16.mxu0 0
    %6395 = vmatpush1.bf16.msra.mxu0 0
    %6396 = vmatprep.subr.bf16.mxu0 0
    %6397 = vmatpush1.bf16.msra.mxu0 0
    %6398 = vmatprep.subr.bf16.mxu0 0
    %6399 = vmatpush1.bf16.msra.mxu0 0
    %6400 = vmatprep.subr.bf16.mxu0 0
    %6401 = vmatpush1.bf16.msra.mxu0 0
    %6402 = vmatprep.subr.bf16.mxu0 0
    %6403 = vmatpush1.bf16.msra.mxu0 0
    %6404 = vmatprep.mubr.bf16.mxu0 0
    %6405 = vmatmul.mubr.bf16.gmra.mrb[0].mxu0 %v6350
    %v6406 = vpop.f32.mrb[0].mxu0
    %v6407 = vadd.f32 %v6358, %v6406
    %v6408 = vpop.f32.mrb[0].mxu0
    %v6409 = vpop.f32.mrb[0].mxu0
    %v6410 = vadd.f32 %v6358, %v6409
    %v6411 = vpop.f32.mrb[0].mxu0
    %6412 = vmatprep.mubr.bf16.mxu0 0
    %6413 = vmatmul.mubr.bf16.gmra.mrb[0].mxu0 %v6351
    %v6414 = vpop.f32.mrb[0].mxu0
    %v6415 = vadd.f32 %v6358, %v6414
    %v6416 = vpop.f32.mrb[0].mxu0
    %v6417 = vpop.f32.mrb[0].mxu0
    %v6418 = vadd.f32 %v6358, %v6417
    %v6419 = vpop.f32.mrb[0].mxu0
    %6420 = vmatprep.mubr.bf16.mxu0 0
    %6421 = vmatmul.mubr.bf16.gmra.mrb[0].mxu0 %v6352
    %v6422 = vpop.f32.mrb[0].mxu0
    %v6423 = vadd.f32 %v6358, %v6422
    %v6424 = vpop.f32.mrb[0].mxu0
    %v6425 = vpop.f32.mrb[0].mxu0
    %v6426 = vadd.f32 %v6358, %v6425
    %v6427 = vpop.f32.mrb[0].mxu0
    %6428 = vmatprep.mubr.bf16.mxu0 0
    %6429 = vmatmul.mubr.bf16.gmra.mrb[0].mxu0 %v6353
    %v6430 = vpop.f32.mrb[0].mxu0
    %v6431 = vadd.f32 %v6358, %v6430
    %v6432 = vpop.f32.mrb[0].mxu0
    %v6433 = vpop.f32.mrb[0].mxu0
    %v6434 = vadd.f32 %v6358, %v6433
    %v6435 = vpop.f32.mrb[0].mxu0
    %6436 = vmatprep.mubr.bf16.mxu0 0
    %6437 = vmatmul.mubr.bf16.gmra.mrb[0].mxu0 %v6354
    %v6438 = vpop.f32.mrb[0].mxu0
    %v6439 = vadd.f32 %v6358, %v6438
    %v6440 = vpop.f32.mrb[0].mxu0
    %v6441 = vpop.f32.mrb[0].mxu0
    %v6442 = vadd.f32 %v6358, %v6441
    %v6443 = vpop.f32.mrb[0].mxu0
    %6444 = vmatprep.mubr.bf16.mxu0 0
    %6445 = vmatmul.mubr.bf16.gmra.mrb[0].mxu0 %v6355
    %v6446 = vpop.f32.mrb[0].mxu0
    %v6447 = vadd.f32 %v6358, %v6446
    %v6448 = vpop.f32.mrb[0].mxu0
    %v6449 = vpop.f32.mrb[0].mxu0
    %v6450 = vadd.f32 %v6358, %v6449
    %v6451 = vpop.f32.mrb[0].mxu0
    %6452 = vmatprep.mubr.bf16.mxu0 0
    %6453 = vmatmul.mubr.bf16.gmra.mrb[0].mxu0 %v6356
    %v6454 = vpop.f32.mrb[0].mxu0
    %v6455 = vadd.f32 %v6358, %v6454
    %v6456 = vpop.f32.mrb[0].mxu0
    %v6457 = vpop.f32.mrb[0].mxu0
    %v6458 = vadd.f32 %v6358, %v6457
    %v6459 = vpop.f32.mrb[0].mxu0
    %6460 = vmatprep.mubr.bf16.mxu0 0
    %6461 = vmatmul.mubr.bf16.gmra.mrb[0].mxu0 %v6357
    %v6462 = vpop.f32.mrb[0].mxu0
    %v6463 = vadd.f32 %v6358, %v6462
    %v6464 = vpop.f32.mrb[0].mxu0
    %v6465 = vpop.f32.mrb[0].mxu0
    %v6466 = vadd.f32 %v6358, %v6465
    %v6467 = vpop.f32.mrb[0].mxu0
    %6468 = vdwg.mxu0
    %v6469 = vmul.f32 %v6407, 0.01
    %v6470 = vmul.f32 %v6410, 0.01
    %v6471 = vmul.f32 %v6415, 0.01
    %v6472 = vmul.f32 %v6418, 0.01
    %v6473 = vmul.f32 %v6423, 0.01
    %v6474 = vmul.f32 %v6426, 0.01
    %v6475 = vmul.f32 %v6431, 0.01
    %v6476 = vmul.f32 %v6434, 0.01
    %v6477 = vmul.f32 %v6439, 0.01
    %v6478 = vmul.f32 %v6442, 0.01
    %v6479 = vmul.f32 %v6447, 0.01
    %v6480 = vmul.f32 %v6450, 0.01
    %v6481 = vmul.f32 %v6455, 0.01
    %v6482 = vmul.f32 %v6458, 0.01
    %v6483 = vmul.f32 %v6463, 0.01
    %v6484 = vmul.f32 %v6466, 0.01
    %v6485 = vmax.f32 %v6407, %v6469
    %v6486 = vmax.f32 %v6410, %v6470
    %v6487 = vmax.f32 %v6415, %v6471
    %v6488 = vmax.f32 %v6418, %v6472
    %v6489 = vmax.f32 %v6423, %v6473
    %v6490 = vmax.f32 %v6426, %v6474
    %v6491 = vmax.f32 %v6431, %v6475
    %v6492 = vmax.f32 %v6434, %v6476
    %v6493 = vmax.f32 %v6439, %v6477
    %v6494 = vmax.f32 %v6442, %v6478
    %v6495 = vmax.f32 %v6447, %v6479
    %v6496 = vmax.f32 %v6450, %v6480
    %v6497 = vmax.f32 %v6455, %v6481
    %v6498 = vmax.f32 %v6458, %v6482
    %v6499 = vmax.f32 %v6463, %v6483
    %v6500 = vmax.f32 %v6466, %v6484
    %v6501 = vadd.f32 %v6485, %v6486
    %v6502 = vadd.f32 %v6501, %v6487
    %v6503 = vadd.f32 %v6502, %v6488
    %v6504 = vadd.f32 %v6503, %v6489
    %v6505 = vadd.f32 %v6504, %v6490
    %v6506 = vadd.f32 %v6505, %v6491
    %v6507 = vadd.f32 %v6506, %v6492
    %v6508 = vadd.f32 %v6507, %v6493
    %v6509 = vadd.f32 %v6508, %v6494
    %v6510 = vadd.f32 %v6509, %v6495
    %v6511 = vadd.f32 %v6510, %v6496
    %v6512 = vadd.f32 %v6511, %v6497
    %v6513 = vadd.f32 %v6512, %v6498
    %v6514 = vadd.f32 %v6513, %v6499
    %v6515 = vadd.f32 %v6514, %v6500
    %v6516 = vrot.slane %v6515, 4
    %v6517 = vadd.f32 %v6515, %v6516
    %v6518 = vrot.slane %v6517, 2
    %v6519 = vadd.f32 %v6517, %v6518
    %v6520 = vrot.slane %v6519, 1
    %v6521 = vadd.f32 %v6519, %v6520
    %v6522 = vmul.f32 %v6521, 0.0078125
    %v6523 = vsub.f32 %v6485, %v6522
    %v6524 = vsub.f32 %v6486, %v6522
    %v6525 = vsub.f32 %v6487, %v6522
    %v6526 = vsub.f32 %v6488, %v6522
    %v6527 = vsub.f32 %v6489, %v6522
    %v6528 = vsub.f32 %v6490, %v6522
    %v6529 = vsub.f32 %v6491, %v6522
    %v6530 = vsub.f32 %v6492, %v6522
    %v6531 = vsub.f32 %v6493, %v6522
    %v6532 = vsub.f32 %v6494, %v6522
    %v6533 = vsub.f32 %v6495, %v6522
    %v6534 = vsub.f32 %v6496, %v6522
    %v6535 = vsub.f32 %v6497, %v6522
    %v6536 = vsub.f32 %v6498, %v6522
    %v6537 = vsub.f32 %v6499, %v6522
    %v6538 = vsub.f32 %v6500, %v6522
    %v6539 = vmul.f32 %v6523, %v6523
    %v6540 = vmul.f32 %v6524, %v6524
    %v6541 = vmul.f32 %v6525, %v6525
    %v6542 = vmul.f32 %v6526, %v6526
    %v6543 = vmul.f32 %v6527, %v6527
    %v6544 = vmul.f32 %v6528, %v6528
    %v6545 = vmul.f32 %v6529, %v6529
    %v6546 = vmul.f32 %v6530, %v6530
    %v6547 = vmul.f32 %v6531, %v6531
    %v6548 = vmul.f32 %v6532, %v6532
    %v6549 = vmul.f32 %v6533, %v6533
    %v6550 = vmul.f32 %v6534, %v6534
    %v6551 = vmul.f32 %v6535, %v6535
    %v6552 = vmul.f32 %v6536, %v6536
    %v6553 = vmul.f32 %v6537, %v6537
    %v6554 = vmul.f32 %v6538, %v6538
    %v6555 = vadd.f32 %v6539, %v6540
    %v6556 = vadd.f32 %v6555, %v6541
    %v6557 = vadd.f32 %v6556, %v6542
    %v6558 = vadd.f32 %v6557, %v6543
    %v6559 = vadd.f32 %v6558, %v6544
    %v6560 = vadd.f32 %v6559, %v6545
    %v6561 = vadd.f32 %v6560, %v6546
    %v6562 = vadd.f32 %v6561, %v6547
    %v6563 = vadd.f32 %v6562, %v6548
    %v6564 = vadd.f32 %v6563, %v6549
    %v6565 = vadd.f32 %v6564, %v6550
    %v6566 = vadd.f32 %v6565, %v6551
    %v6567 = vadd.f32 %v6566, %v6552
    %v6568 = vadd.f32 %v6567, %v6553
    %v6569 = vadd.f32 %v6568, %v6554
    %v6570 = vrot.slane %v6569, 4
    %v6571 = vadd.f32 %v6569, %v6570
    %v6572 = vrot.slane %v6571, 2
    %v6573 = vadd.f32 %v6571, %v6572
    %v6574 = vrot.slane %v6573, 1
    %v6575 = vadd.f32 %v6573, %v6574
    %v6576 = vmul.f32 %v6575, 0.0078125
    %v6577 = vadd.f32 %v6576, 1e-05
    %v6578 = vrsqrt.pop %v6577
    %v6579 = vmul.f32 %v6359, %v6578
    %v6580 = vmul.f32 %v6523, %v6579
    %v6581 = vmul.f32 %v6524, %v6579
    %v6582 = vmul.f32 %v6525, %v6579
    %v6583 = vmul.f32 %v6526, %v6579
    %v6584 = vmul.f32 %v6527, %v6579
    %v6585 = vmul.f32 %v6528, %v6579
    %v6586 = vmul.f32 %v6529, %v6579
    %v6587 = vmul.f32 %v6530, %v6579
    %v6588 = vmul.f32 %v6531, %v6579
    %v6589 = vmul.f32 %v6532, %v6579
    %v6590 = vmul.f32 %v6533, %v6579
    %v6591 = vmul.f32 %v6534, %v6579
    %v6592 = vmul.f32 %v6535, %v6579
    %v6593 = vmul.f32 %v6536, %v6579
    %v6594 = vmul.f32 %v6537, %v6579
    %v6595 = vmul.f32 %v6538, %v6579
    %v6596 = vadd.f32 %v6580, %v6360
    %v6597 = vadd.f32 %v6581, %v6360
    %v6598 = vadd.f32 %v6582, %v6360
    %v6599 = vadd.f32 %v6583, %v6360
    %v6600 = vadd.f32 %v6584, %v6360
    %v6601 = vadd.f32 %v6585, %v6360
    %v6602 = vadd.f32 %v6586, %v6360
    %v6603 = vadd.f32 %v6587, %v6360
    %v6604 = vadd.f32 %v6588, %v6360
    %v6605 = vadd.f32 %v6589, %v6360
    %v6606 = vadd.f32 %v6590, %v6360
    %v6607 = vadd.f32 %v6591, %v6360
    %v6608 = vadd.f32 %v6592, %v6360
    %v6609 = vadd.f32 %v6593, %v6360
    %v6610 = vadd.f32 %v6594, %v6360
    %v6611 = vadd.f32 %v6595, %v6360
    %v6612 = vpack.c.bf16 %v6597, %v6596
    %v6613 = vpack.c.bf16 %v6599, %v6598
    %v6614 = vpack.c.bf16 %v6601, %v6600
    %v6615 = vpack.c.bf16 %v6603, %v6602
    %v6616 = vpack.c.bf16 %v6605, %v6604
    %v6617 = vpack.c.bf16 %v6607, %v6606
    %v6618 = vpack.c.bf16 %v6609, %v6608
    %v6619 = vpack.c.bf16 %v6611, %v6610
    %s6620 = sshll.u32 %s6361, 4
    %6621 = dma.done %s248, %s6620
    %v6622 = vld [vmem:[#allocation9] sm:$0xff]
    %v6623 = vld [vmem:[#allocation9 + $0x8] sm:$0xff]
    %v6624 = vld [vmem:[#allocation9 + $0x10] sm:$0xff]
    %v6625 = vld [vmem:[#allocation9 + $0x18] sm:$0xff]
    %v6626 = vld [vmem:[#allocation9 + $0x20] sm:$0xff]
    %v6627 = vld [vmem:[#allocation9 + $0x28] sm:$0xff]
    %v6628 = vld [vmem:[#allocation9 + $0x30] sm:$0xff]
    %v6629 = vld [vmem:[#allocation9 + $0x38] sm:$0xff]
    %v6630 = vld [vmem:[#allocation14 + $0x55] ss:$0 sm:$0xff]
    %6631 = vmatprep.subr.bf16.mxu0 0
    %6632 = vmatpush1.bf16.msra.mxu0 %v6622
    %6633 = vmatprep.subr.bf16.mxu0 0
    %6634 = vmatpush1.bf16.msra.mxu0 %v6623
    %6635 = vmatprep.subr.bf16.mxu0 0
    %6636 = vmatpush1.bf16.msra.mxu0 %v6624
    %6637 = vmatprep.subr.bf16.mxu0 0
    %6638 = vmatpush1.bf16.msra.mxu0 %v6625
    %6639 = vmatprep.subr.bf16.mxu0 0
    %6640 = vmatpush1.bf16.msra.mxu0 %v6626
    %6641 = vmatprep.subr.bf16.mxu0 0
    %6642 = vmatpush1.bf16.msra.mxu0 %v6627
    %6643 = vmatprep.subr.bf16.mxu0 0
    %6644 = vmatpush1.bf16.msra.mxu0 %v6628
    %6645 = vmatprep.subr.bf16.mxu0 0
    %6646 = vmatpush1.bf16.msra.mxu0 %v6629
    %6647 = vmatprep.subr.bf16.mxu0 0
    %6648 = vmatpush1.bf16.msra.mxu0 0
    %6649 = vmatprep.subr.bf16.mxu0 0
    %6650 = vmatpush1.bf16.msra.mxu0 0
    %6651 = vmatprep.subr.bf16.mxu0 0
    %6652 = vmatpush1.bf16.msra.mxu0 0
    %6653 = vmatprep.subr.bf16.mxu0 0
    %6654 = vmatpush1.bf16.msra.mxu0 0
    %6655 = vmatprep.subr.bf16.mxu0 0
    %6656 = vmatpush1.bf16.msra.mxu0 0
    %6657 = vmatprep.subr.bf16.mxu0 0
    %6658 = vmatpush1.bf16.msra.mxu0 0
    %6659 = vmatprep.subr.bf16.mxu0 0
    %6660 = vmatpush1.bf16.msra.mxu0 0
    %6661 = vmatprep.subr.bf16.mxu0 0
    %6662 = vmatpush1.bf16.msra.mxu0 0
    %6663 = vmatprep.mubr.bf16.mxu0 0
    %6664 = vmatmul.mubr.bf16.gmra.mrb[0].mxu0 %v6612
    %v6665 = vpop.f32.mrb[0].mxu0
    %v6666 = vadd.f32 %v6630, %v6665
    %v6667 = vpop.f32.mrb[0].mxu0
    %v6668 = vpop.f32.mrb[0].mxu0
    %v6669 = vadd.f32 %v6630, %v6668
    %v6670 = vpop.f32.mrb[0].mxu0
    %6671 = vmatprep.mubr.bf16.mxu0 0
    %6672 = vmatmul.mubr.bf16.gmra.mrb[0].mxu0 %v6613
    %v6673 = vpop.f32.mrb[0].mxu0
    %v6674 = vadd.f32 %v6630, %v6673
    %v6675 = vpop.f32.mrb[0].mxu0
    %v6676 = vpop.f32.mrb[0].mxu0
    %v6677 = vadd.f32 %v6630, %v6676
    %v6678 = vpop.f32.mrb[0].mxu0
    %6679 = vmatprep.mubr.bf16.mxu0 0
    %6680 = vmatmul.mubr.bf16.gmra.mrb[0].mxu0 %v6614
    %v6681 = vpop.f32.mrb[0].mxu0
    %v6682 = vadd.f32 %v6630, %v6681
    %v6683 = vpop.f32.mrb[0].mxu0
    %v6684 = vpop.f32.mrb[0].mxu0
    %v6685 = vadd.f32 %v6630, %v6684
    %v6686 = vpop.f32.mrb[0].mxu0
    %6687 = vmatprep.mubr.bf16.mxu0 0
    %6688 = vmatmul.mubr.bf16.gmra.mrb[0].mxu0 %v6615
    %v6689 = vpop.f32.mrb[0].mxu0
    %v6690 = vadd.f32 %v6630, %v6689
    %v6691 = vpop.f32.mrb[0].mxu0
    %v6692 = vpop.f32.mrb[0].mxu0
    %v6693 = vadd.f32 %v6630, %v6692
    %v6694 = vpop.f32.mrb[0].mxu0
    %6695 = vmatprep.mubr.bf16.mxu0 0
    %6696 = vmatmul.mubr.bf16.gmra.mrb[0].mxu0 %v6616
    %v6697 = vpop.f32.mrb[0].mxu0
    %v6698 = vadd.f32 %v6630, %v6697
    %v6699 = vpop.f32.mrb[0].mxu0
    %v6700 = vpop.f32.mrb[0].mxu0
    %v6701 = vadd.f32 %v6630, %v6700
    %v6702 = vpop.f32.mrb[0].mxu0
    %6703 = vmatprep.mubr.bf16.mxu0 0
    %6704 = vmatmul.mubr.bf16.gmra.mrb[0].mxu0 %v6617
    %v6705 = vpop.f32.mrb[0].mxu0
    %v6706 = vadd.f32 %v6630, %v6705
    %v6707 = vpop.f32.mrb[0].mxu0
    %v6708 = vpop.f32.mrb[0].mxu0
    %v6709 = vadd.f32 %v6630, %v6708
    %v6710 = vpop.f32.mrb[0].mxu0
    %6711 = vmatprep.mubr.bf16.mxu0 0
    %6712 = vmatmul.mubr.bf16.gmra.mrb[0].mxu0 %v6618
    %v6713 = vpop.f32.mrb[0].mxu0
    %v6714 = vadd.f32 %v6630, %v6713
    %v6715 = vpop.f32.mrb[0].mxu0
    %v6716 = vpop.f32.mrb[0].mxu0
    %v6717 = vadd.f32 %v6630, %v6716
    %v6718 = vpop.f32.mrb[0].mxu0
    %6719 = vmatprep.mubr.bf16.mxu0 0
    %6720 = vmatmul.mubr.bf16.gmra.mrb[0].mxu0 %v6619
    %v6721 = vpop.f32.mrb[0].mxu0
    %v6722 = vadd.f32 %v6630, %v6721
    %v6723 = vpop.f32.mrb[0].mxu0
    %v6724 = vpop.f32.mrb[0].mxu0
    %v6725 = vadd.f32 %v6630, %v6724
    %v6726 = vpop.f32.mrb[0].mxu0
    %6727 = vdwg.mxu0
    %v6728 = vlaneseq
    %v6729 = vand.u32 %v6728, 127
    %vm6730 = vcmp.lt.s32.totalorder %v6729, 10
    %v6731 = vsel %vm6730, %v6666, -1e+30
    %v6732 = vsel %vm6730, %v6669, -1e+30
    %v6733 = vsel %vm6730, %v6674, -1e+30
    %v6734 = vsel %vm6730, %v6677, -1e+30
    %v6735 = vsel %vm6730, %v6682, -1e+30
    %v6736 = vsel %vm6730, %v6685, -1e+30
    %v6737 = vsel %vm6730, %v6690, -1e+30
    %v6738 = vsel %vm6730, %v6693, -1e+30
    %v6739 = vsel %vm6730, %v6698, -1e+30
    %v6740 = vsel %vm6730, %v6701, -1e+30
    %v6741 = vsel %vm6730, %v6706, -1e+30
    %v6742 = vsel %vm6730, %v6709, -1e+30
    %v6743 = vsel %vm6730, %v6714, -1e+30
    %v6744 = vsel %vm6730, %v6717, -1e+30
    %v6745 = vsel %vm6730, %v6722, -1e+30
    %v6746 = vsel %vm6730, %v6725, -1e+30
    %6747 = vmax.xlane.f32.xlu0 %v6731
    %v6748 = vpop.xlane.xlu0 %6747
    %6749 = vmax.xlane.f32.xlu0 %v6732
    %v6750 = vpop.xlane.xlu0 %6749
    %6751 = vmax.xlane.f32.xlu0 %v6733
    %v6752 = vpop.xlane.xlu0 %6751
    %6753 = vmax.xlane.f32.xlu0 %v6734
    %v6754 = vpop.xlane.xlu0 %6753
    %6755 = vmax.xlane.f32.xlu0 %v6735
    %v6756 = vpop.xlane.xlu0 %6755
    %6757 = vmax.xlane.f32.xlu0 %v6736
    %v6758 = vpop.xlane.xlu0 %6757
    %6759 = vmax.xlane.f32.xlu0 %v6737
    %v6760 = vpop.xlane.xlu0 %6759
    %6761 = vmax.xlane.f32.xlu0 %v6738
    %v6762 = vpop.xlane.xlu0 %6761
    %6763 = vmax.xlane.f32.xlu0 %v6739
    %v6764 = vpop.xlane.xlu0 %6763
    %6765 = vmax.xlane.f32.xlu0 %v6740
    %v6766 = vpop.xlane.xlu0 %6765
    %6767 = vmax.xlane.f32.xlu0 %v6741
    %v6768 = vpop.xlane.xlu0 %6767
    %6769 = vmax.xlane.f32.xlu0 %v6742
    %v6770 = vpop.xlane.xlu0 %6769
    %6771 = vmax.xlane.f32.xlu0 %v6743
    %v6772 = vpop.xlane.xlu0 %6771
    %6773 = vmax.xlane.f32.xlu0 %v6744
    %v6774 = vpop.xlane.xlu0 %6773
    %6775 = vmax.xlane.f32.xlu0 %v6745
    %v6776 = vpop.xlane.xlu0 %6775
    %6777 = vmax.xlane.f32.xlu0 %v6746
    %v6778 = vpop.xlane.xlu0 %6777
    %v6779 = vsub.f32 %v6731, %v6748
    %v6780 = vsub.f32 %v6732, %v6750
    %v6781 = vsub.f32 %v6733, %v6752
    %v6782 = vsub.f32 %v6734, %v6754
    %v6783 = vsub.f32 %v6735, %v6756
    %v6784 = vsub.f32 %v6736, %v6758
    %v6785 = vsub.f32 %v6737, %v6760
    %v6786 = vsub.f32 %v6738, %v6762
    %v6787 = vsub.f32 %v6739, %v6764
    %v6788 = vsub.f32 %v6740, %v6766
    %v6789 = vsub.f32 %v6741, %v6768
    %v6790 = vsub.f32 %v6742, %v6770
    %v6791 = vsub.f32 %v6743, %v6772
    %v6792 = vsub.f32 %v6744, %v6774
    %v6793 = vsub.f32 %v6745, %v6776
    %v6794 = vsub.f32 %v6746, %v6778
    %v6795 = vmul.f32 %v6779, 1.442695
    %v6796 = vpow.pop %v6795
    %v6797 = vmul.f32 %v6780, 1.442695
    %v6798 = vpow.pop %v6797
    %v6799 = vmul.f32 %v6781, 1.442695
    %v6800 = vpow.pop %v6799
    %v6801 = vmul.f32 %v6782, 1.442695
    %v6802 = vpow.pop %v6801
    %v6803 = vmul.f32 %v6783, 1.442695
    %v6804 = vpow.pop %v6803
    %v6805 = vmul.f32 %v6784, 1.442695
    %v6806 = vpow.pop %v6805
    %v6807 = vmul.f32 %v6785, 1.442695
    %v6808 = vpow.pop %v6807
    %v6809 = vmul.f32 %v6786, 1.442695
    %v6810 = vpow.pop %v6809
    %v6811 = vmul.f32 %v6787, 1.442695
    %v6812 = vpow.pop %v6811
    %v6813 = vmul.f32 %v6788, 1.442695
    %v6814 = vpow.pop %v6813
    %v6815 = vmul.f32 %v6789, 1.442695
    %v6816 = vpow.pop %v6815
    %v6817 = vmul.f32 %v6790, 1.442695
    %v6818 = vpow.pop %v6817
    %v6819 = vmul.f32 %v6791, 1.442695
    %v6820 = vpow.pop %v6819
    %v6821 = vmul.f32 %v6792, 1.442695
    %v6822 = vpow.pop %v6821
    %v6823 = vmul.f32 %v6793, 1.442695
    %v6824 = vpow.pop %v6823
    %v6825 = vmul.f32 %v6794, 1.442695
    %v6826 = vpow.pop %v6825
    %6827 = vadd.xlane.f32.xlu0 %v6796
    %v6828 = vpop.xlane.xlu0 %6827
    %6829 = vadd.xlane.f32.xlu0 %v6798
    %v6830 = vpop.xlane.xlu0 %6829
    %6831 = vadd.xlane.f32.xlu0 %v6800
    %v6832 = vpop.xlane.xlu0 %6831
    %6833 = vadd.xlane.f32.xlu0 %v6802
    %v6834 = vpop.xlane.xlu0 %6833
    %6835 = vadd.xlane.f32.xlu0 %v6804
    %v6836 = vpop.xlane.xlu0 %6835
    %6837 = vadd.xlane.f32.xlu0 %v6806
    %v6838 = vpop.xlane.xlu0 %6837
    %6839 = vadd.xlane.f32.xlu0 %v6808
    %v6840 = vpop.xlane.xlu0 %6839
    %6841 = vadd.xlane.f32.xlu0 %v6810
    %v6842 = vpop.xlane.xlu0 %6841
    %6843 = vadd.xlane.f32.xlu0 %v6812
    %v6844 = vpop.xlane.xlu0 %6843
    %6845 = vadd.xlane.f32.xlu0 %v6814
    %v6846 = vpop.xlane.xlu0 %6845
    %6847 = vadd.xlane.f32.xlu0 %v6816
    %v6848 = vpop.xlane.xlu0 %6847
    %6849 = vadd.xlane.f32.xlu0 %v6818
    %v6850 = vpop.xlane.xlu0 %6849
    %6851 = vadd.xlane.f32.xlu0 %v6820
    %v6852 = vpop.xlane.xlu0 %6851
    %6853 = vadd.xlane.f32.xlu0 %v6822
    %v6854 = vpop.xlane.xlu0 %6853
    %6855 = vadd.xlane.f32.xlu0 %v6824
    %v6856 = vpop.xlane.xlu0 %6855
    %6857 = vadd.xlane.f32.xlu0 %v6826
    %v6858 = vpop.xlane.xlu0 %6857
    %v6859 = vrcp.pop %v6828
    %v6860 = vmul.f32 %v6796, %v6859
    %v6861 = vrcp.pop %v6830
    %v6862 = vmul.f32 %v6798, %v6861
    %v6863 = vrcp.pop %v6832
    %v6864 = vmul.f32 %v6800, %v6863
    %v6865 = vrcp.pop %v6834
    %v6866 = vmul.f32 %v6802, %v6865
    %v6867 = vrcp.pop %v6836
    %v6868 = vmul.f32 %v6804, %v6867
    %v6869 = vrcp.pop %v6838
    %v6870 = vmul.f32 %v6806, %v6869
    %v6871 = vrcp.pop %v6840
    %v6872 = vmul.f32 %v6808, %v6871
    %v6873 = vrcp.pop %v6842
    %v6874 = vmul.f32 %v6810, %v6873
    %v6875 = vrcp.pop %v6844
    %v6876 = vmul.f32 %v6812, %v6875
    %v6877 = vrcp.pop %v6846
    %v6878 = vmul.f32 %v6814, %v6877
    %v6879 = vrcp.pop %v6848
    %v6880 = vmul.f32 %v6816, %v6879
    %v6881 = vrcp.pop %v6850
    %v6882 = vmul.f32 %v6818, %v6881
    %v6883 = vrcp.pop %v6852
    %v6884 = vmul.f32 %v6820, %v6883
    %v6885 = vrcp.pop %v6854
    %v6886 = vmul.f32 %v6822, %v6885
    %v6887 = vrcp.pop %v6856
    %v6888 = vmul.f32 %v6824, %v6887
    %v6889 = vrcp.pop %v6858
    %v6890 = vmul.f32 %v6826, %v6889
    %6891 = vst [vmem:[#allocation16] sm:$0xff] %v6860
    %6892 = vst [vmem:[#allocation16 + $0x8] sm:$0xff] %v6862
    %6893 = vst [vmem:[#allocation16 + $0x10] sm:$0xff] %v6864
    %6894 = vst [vmem:[#allocation16 + $0x18] sm:$0xff] %v6866
    %6895 = vst [vmem:[#allocation16 + $0x20] sm:$0xff] %v6868
    %6896 = vst [vmem:[#allocation16 + $0x28] sm:$0xff] %v6870
    %6897 = vst [vmem:[#allocation16 + $0x30] sm:$0xff] %v6872
    %6898 = vst [vmem:[#allocation16 + $0x38] sm:$0xff] %v6874
    %6899 = vst [vmem:[#allocation16 + $0x40] sm:$0xff] %v6876
    %6900 = vst [vmem:[#allocation16 + $0x48] sm:$0xff] %v6878
    %6901 = vst [vmem:[#allocation16 + $0x50] sm:$0xff] %v6880
    %6902 = vst [vmem:[#allocation16 + $0x58] sm:$0xff] %v6882
    %6903 = vst [vmem:[#allocation16 + $0x60] sm:$0xff] %v6884
    %6904 = vst [vmem:[#allocation16 + $0x68] sm:$0xff] %v6886
    %6905 = vst [vmem:[#allocation16 + $0x70] sm:$0xff] %v6888
    %6906 = vst [vmem:[#allocation16 + $0x78] sm:$0xff] %v6890
    // Predicated region
    $region30: #{tpu_custom_call.1} parent=1 // pred_check
      _
    $region31: #{tpu_custom_call.1} parent=1 // pred_check_branch
      %6908 = sbr.rel (0) target = $region33
    $region32: #{tpu_custom_call.1} parent=1 // pred_region
      %s6910 = ssub.s32 2048, 2048
      %6911 = vsyncadd [#allocation13], %s6910
      %s6912 = sshll.u32 [#allocation16], 4
      %s6913 = int_to_ptr.vmem [resolvable:$true] %s6912
      %6918 = dma.vmem_to_hbm [thread:$0]  %s6913, 2048, %s10, [#allocation13], 128, 128, 8
    $region33: #{tpu_custom_call.1} parent=1 // pred_fallthru
      _
    // Predicated region
    $region34: #{tpu_custom_call.1} parent=1 // pred_check
      _
    $region35: #{tpu_custom_call.1} parent=1 // pred_check_branch
      %6920 = sbr.rel (0) target = $region37
    $region36: #{tpu_custom_call.1} parent=1 // pred_region
      %6921 = dma.done [#allocation13], 2048
    $region37: #{tpu_custom_call.1} parent=1 // pred_fallthru
      _
    %6922 = vsyncpa [#allocation12], 1
    %6923 = vsyncpa [#allocation15], 1
    %6924 = vsyncpa [#allocation13], 1
  %6925 = vsyncmov [#allocation10]
  %s6926 = vpop.sfrf %6925
  %p6927 = scmp.eq.s32.totalorder %s6926, 0
  %p6928 = pneg %p6927
  %6930 = shalt.err (%p6928)
  %s6931 = scalar_lea.sflag [#allocation10], 1
  %6932 = vsyncmov %s6931
  %s6933 = vpop.sfrf %6932
  %p6934 = scmp.eq.s32.totalorder %s6933, 0
  %p6935 = pneg %p6934
  %6937 = shalt.err (%p6935)
  %s6938 = scalar_lea.sflag [#allocation10], 2
  %6939 = vsyncmov %s6938
  %s6940 = vpop.sfrf %6939
  %p6941 = scmp.eq.s32.totalorder %s6940, 0
  %p6942 = pneg %p6941
  %6944 = shalt.err (%p6942)
  %s6945 = scalar_lea.sflag [#allocation10], 3
  %6946 = vsyncmov %s6945
  %s6947 = vpop.sfrf %6946
  %p6948 = scmp.eq.s32.totalorder %s6947, 0
  %p6949 = pneg %p6948
  %6951 = shalt.err (%p6949)
  %s6952 = scalar_lea.sflag [#allocation10], 4
  %6953 = vsyncmov %s6952
  %s6954 = vpop.sfrf %6953
  %p6955 = scmp.eq.s32.totalorder %s6954, 0
  %p6956 = pneg %p6955
  %6958 = shalt.err (%p6956)
  %s6959 = scalar_lea.sflag [#allocation10], 5
  %6960 = vsyncmov %s6959
  %s6961 = vpop.sfrf %6960
  %p6962 = scmp.eq.s32.totalorder %s6961, 0
  %p6963 = pneg %p6962
  %6965 = shalt.err (%p6963)
  %s6966 = scalar_lea.sflag [#allocation10], 6
  %6967 = vsyncmov %s6966
  %s6968 = vpop.sfrf %6967
  %p6969 = scmp.eq.s32.totalorder %s6968, 0
  %p6970 = pneg %p6969
  %6972 = shalt.err (%p6970)
  %s6973 = scalar_lea.sflag [#allocation10], 7
  %6974 = vsyncmov %s6973
  %s6975 = vpop.sfrf %6974
  %p6976 = scmp.eq.s32.totalorder %s6975, 0
  %p6977 = pneg %p6976
  %6979 = shalt.err (%p6977)

</llo_original>
